<compile_context>
chip_gen: v6e
topology: v6e:2x2x1
jax: 0.10.0
libtpu: 0.0.40
codegen_flags: <defaults>
</compile_context>

<pallas_src>
import functools
import numpy as np
import jax
import jax.numpy as jnp
from jax.experimental import pallas as pl
from jax.experimental.pallas import tpu as pltpu

# whole-array block, resident in VMEM (all params + temporaries ~2-3 MB, far under budget)
_VMEM = pl.BlockSpec(memory_space=pltpu.MemorySpace.VMEM)

_BIG = 1e30       # finite min/max sentinel (inf * 0 in the penalty add would NaN); valid while |m| << 1e30
_MM_CHUNK = 8     # edges per running-min/max chunk (keeps the 3-D temp at <= 16 vregs)


# ------------------------------- fused whole-model kernel -------------------------------

def _model_kernel(*refs, f_ins, avg_log, avg_lin):
    (x_ref, a_ref, scat_ref, deg_ref,
     c1_pre, c1_preb, c1_post, c1_postb, c1_lin, c1_linb,
     c2_pre, c2_preb, c2_post, c2_postb, c2_lin, c2_linb,
     c3_pre, c3_preb, c3_post, c3_postb, c3_lin, c3_linb,
     n1_w, n1_b, a1_w, a1_b, a2_w, a2_b,
     f1_w, f1_b, f2_w, f2_b, f3_w, f3_b,
     o_ref) = refs

    f32 = jnp.float32
    relu = lambda v: jnp.maximum(v, 0.0)

    x = x_ref[...]                          # [N, C]
    a = a_ref[...]                          # [N, E]   a[n, e] = 1 iff dst(e) == n
    scat = scat_ref[...]                    # [E, 2N]  [onehot(dst) | onehot(src)]
    deg = deg_ref[...]                      # [N, 1]   in-degree (float)

    n_nodes = x.shape[0]
    n_edges = a.shape[1]

    # ---- degree-derived per-node scalars (shared across layers; exact divides) ----
    deg_c = jnp.maximum(deg, 1.0)           # PyG clamps degree to >= 1
    inv_deg = 1.0 / deg_c
    has = deg > 0.0
    amp = jnp.log(deg_c + 1.0) * f32(1.0 / avg_log)      # amplification
    lin_s = deg_c * f32(1.0 / avg_lin)                   # linear
    inv_amp = 1.0 / amp                                  # attenuation
    inv_lin = 1.0 / lin_s                                # inverse_linear

    # additive min/max penalty, edge-major so chunk slices are sublane-aligned
    penT = (scat[:, :n_nodes] - 1.0) * f32(_BIG)         # [E, N]: 0 on dst edges, -BIG otherwise

    def pna_layer(h_in, f_in, pre_w, pre_b, post_w, post_b, lin_w, lin_b):
        # message: m[e] = x[dst(e)] @ W_i + x[src(e)] @ W_j + b (gathers folded into matmuls)
        xp = jnp.dot(h_in, pre_w[...], preferred_element_type=f32)           # [N, 2Fi]
        stacked = jnp.concatenate([xp[:, :f_in], xp[:, f_in:]], axis=0)      # [2N, Fi] = [xi_p ; xj_p]
        m = jnp.dot(scat, stacked, preferred_element_type=f32) + pre_b[...]  # [E, Fi]

        # sum and sum-of-squares in ONE MXU call
        msq = jnp.concatenate([m, m * m], axis=-1)                           # [E, 2Fi]
        smsq = jnp.dot(a, msq, preferred_element_type=f32)                   # [N, 2Fi]
        s = smsq[:, :f_in]
        mean = s * inv_deg
        mean_sq = smsq[:, f_in:] * inv_deg
        var = mean_sq - mean * mean
        std = jnp.sqrt(jnp.maximum(var, 0.0) + 1e-5)                         # PyG std eps

        # min / max: chunked running max (min = -max(-m)); temp capped at [chunk, N, 2Fi];
        # per-chunk reduce is over the leading vreg-group axis (pure VPU, no sublane reduce)
        both = jnp.concatenate([m, -m], axis=-1)                             # [E, 2Fi]
        r = None
        for c0 in range(0, n_edges, _MM_CHUNK):
            both_c = both[c0:c0 + _MM_CHUNK]                                 # [chunk, 2Fi]
            pen_c = penT[c0:c0 + _MM_CHUNK]                                  # [chunk, N]
            t = both_c[:, None, :] + pen_c[:, :, None]                       # [chunk, N, 2Fi]
            tmax = jnp.max(t, axis=0)                                        # [N, 2Fi]
            r = tmax if r is None else jnp.maximum(r, tmax)
        mx = jnp.where(has, r[:, :f_in], 0.0)
        mn = jnp.where(has, -r[:, f_in:], 0.0)

        aggr = jnp.concatenate([s, mean, mn, mx, std], axis=-1)              # [N, 5Fi]

        # post-net + per-layer lin: single deep-K matmul over cat[x, scaled aggregations]
        full = jnp.concatenate(
            [h_in, aggr, amp * aggr, inv_amp * aggr, lin_s * aggr, inv_lin * aggr],
            axis=-1)                                                         # [N, 26Fi]
        h = jnp.dot(full, post_w[...], preferred_element_type=f32) + post_b[...]
        return jnp.dot(h, lin_w[...], preferred_element_type=f32) + lin_b[...]

    fi1, fi2, fi3 = f_ins
    x1 = pna_layer(x,  fi1, c1_pre, c1_preb, c1_post, c1_postb, c1_lin, c1_linb)   # [N, 32]
    x2 = pna_layer(x1, fi2, c2_pre, c2_preb, c2_post, c2_postb, c2_lin, c2_linb)   # [N, 64]
    x3 = pna_layer(x2, fi3, c3_pre, c3_preb, c3_post, c3_postb, c3_lin, c3_linb)   # [N, 128]

    # ---- head: Linear_node1 / _After1 / _After3 + 3-layer final MLP, fused ----
    gg1 = relu(jnp.dot(x,  n1_w[...], preferred_element_type=f32) + n1_b[...])
    xa1 = relu(jnp.dot(x1, a1_w[...], preferred_element_type=f32) + a1_b[...])
    xa2 = relu(jnp.dot(x2, a2_w[...], preferred_element_type=f32) + a2_b[...])
    xf = jnp.concatenate([gg1, x3, xa1, xa2], axis=-1)                       # [N, 352]
    h = relu(jnp.dot(xf, f1_w[...], preferred_element_type=f32) + f1_b[...])
    h = relu(jnp.dot(h,  f2_w[...], preferred_element_type=f32) + f2_b[...])
    y = jnp.dot(h, f3_w[...], preferred_element_type=f32) + f3_b[...]
    o_ref[...] = 1.0 / (1.0 + jnp.exp(-y))                                   # sigmoid


def model_forward(params, x, onehot_dst, scat_cat, deg, *, f_ins, avg_log, avg_lin):
    n = x.shape[0]
    args = (x, onehot_dst, scat_cat, deg)
    for c in ("conv1", "conv2", "conv3"):
        p = params[c]
        args += (p["pre_w"], p["pre_b"], p["post_w"], p["post_b"], p["lin_w"], p["lin_b"])
    args += (params["n1_w"], params["n1_b"],
             params["a1_w"], params["a1_b"],
             params["a2_w"], params["a2_b"],
             params["f1_w"], params["f1_b"],
             params["f2_w"], params["f2_b"],
             params["f3_w"], params["f3_b"])
    return pl.pallas_call(
        functools.partial(_model_kernel, f_ins=f_ins, avg_log=avg_log, avg_lin=avg_lin),
        in_specs=[_VMEM] * len(args),
        out_specs=_VMEM,
        out_shape=jax.ShapeDtypeStruct((n, 1), jnp.float32),
    )(*args)


# ---------------------------------- parameter init ----------------------------------

def init_linear(key, fan_in, fan_out):
    kw, kb = jax.random.split(key)
    bound = 1.0 / np.sqrt(fan_in)
    w = jax.random.uniform(kw, (fan_in, fan_out), jnp.float32, -bound, bound)
    b = jax.random.uniform(kb, (1, fan_out), jnp.float32, -bound, bound)
    return w, b


def init_pna_params(key, f_in, out_channels):
    # towers=1: pre Linear(2*Fi -> Fi), post Linear(26*Fi -> Fo), lin Linear(Fo -> Fo)
    k1, k2, k3 = jax.random.split(key, 3)
    pre_w, pre_b = init_linear(k1, 2 * f_in, f_in)
    # store pre-net weight side-by-side [Fi, 2Fi] = [W_i | W_j] so the xi/xj projections
    # come out of a single matmul in-kernel
    pre_w = jnp.concatenate([pre_w[:f_in], pre_w[f_in:]], axis=1)
    post_w, post_b = init_linear(k2, (5 * 5 + 1) * f_in, out_channels)
    lin_w, lin_b = init_linear(k3, out_channels, out_channels)
    return dict(pre_w=pre_w, pre_b=pre_b, post_w=post_w, post_b=post_b,
                lin_w=lin_w, lin_b=lin_b)


# --------------------------------------- main ---------------------------------------

if __name__ == "__main__":
    key = jax.random.PRNGKey(0)
    N, C_IN, N_EXTRA = 16, 16, 48

    k_x, k_p = jax.random.split(key, 2)

    # graph: a ring (guarantees every node has >= 1 incoming edge) + random extras
    ring_src = np.arange(N, dtype=np.int32)
    ring_dst = (np.arange(N, dtype=np.int32) + 1) % N
    rng = np.random.RandomState(0)
    ex_src = rng.randint(0, N, size=N_EXTRA).astype(np.int32)
    ex_dst = rng.randint(0, N, size=N_EXTRA).astype(np.int32)
    src_np = np.concatenate([ring_src, ex_src])
    dst_np = np.concatenate([ring_dst, ex_dst])
    E = int(src_np.shape[0])

    x = jax.random.normal(k_x, (N, C_IN), jnp.float32)

    # dense scatter/gather matrices (E=64, N=16 -> tiny; matmul-friendly on the MXU)
    eye = np.arange(N)
    scat_dst_np = (dst_np[:, None] == eye[None, :]).astype(np.float32)      # [E, N]
    scat_src_np = (src_np[:, None] == eye[None, :]).astype(np.float32)      # [E, N]
    onehot_dst = jnp.asarray(scat_dst_np.T)                                  # [N, E]
    scat_cat = jnp.asarray(np.concatenate([scat_dst_np, scat_src_np], 1))    # [E, 2N]

    deg_np = np.bincount(dst_np, minlength=N).astype(np.float32)
    deg = jnp.asarray(deg_np[:, None])                                       # [N, 1]

    # PNAConv `deg` histogram -> static avg-degree stats (train_norm=False in PyG)
    deg_hist = np.bincount(deg_np.astype(np.int64))
    bins = np.arange(deg_hist.shape[0], dtype=np.float64)
    n_nodes = float(deg_hist.sum())
    avg_lin = float((bins * deg_hist).sum() / n_nodes)
    avg_log = float((np.log(bins + 1.0) * deg_hist).sum() / n_nodes)

    kp = jax.random.split(k_p, 9)
    params = {
        "conv1": init_pna_params(kp[0], C_IN, 32),
        "conv2": init_pna_params(kp[1], 32, 64),
        "conv3": init_pna_params(kp[2], 64, 128),
    }
    params["n1_w"], params["n1_b"] = init_linear(kp[3], C_IN, 32)            # Linear_node1
    params["a1_w"], params["a1_b"] = init_linear(kp[4], 32, 64)              # Linear_node_After1
    params["a2_w"], params["a2_b"] = init_linear(kp[5], 64, 128)             # Linear_node_After3
    params["f1_w"], params["f1_b"] = init_linear(kp[6], 32 + 64 + 128 + 128, 300)  # Linear_final1
    params["f2_w"], params["f2_b"] = init_linear(kp[7], 300, 124)            # Linear_final2
    params["f3_w"], params["f3_b"] = init_linear(kp[8], 124, 1)              # Linear_final3

    fwd = jax.jit(functools.partial(model_forward, f_ins=(C_IN, 32, 64),
                                    avg_log=avg_log, avg_lin=avg_lin))
    out = fwd(params, x, onehot_dst, scat_cat, deg)
    out = jax.block_until_ready(out)
    assert out.shape == (N, 1)
    assert bool(jnp.all(jnp.isfinite(out)))
    assert bool(jnp.all((out >= 0.0) & (out <= 1.0)))
    print("KERNEL_OK")
</pallas_src>

<mosaic_0001>
module attributes {stable_mosaic.version = 11 : i64} {
  func.func @_model_kernel(%arg0: memref<16x16xf32, #tpu.memory_space<vmem>>, %arg1: memref<16x64xf32, #tpu.memory_space<vmem>>, %arg2: memref<64x32xf32, #tpu.memory_space<vmem>>, %arg3: memref<16x1xf32, #tpu.memory_space<vmem>>, %arg4: memref<16x32xf32, #tpu.memory_space<vmem>>, %arg5: memref<1x16xf32, #tpu.memory_space<vmem>>, %arg6: memref<416x32xf32, #tpu.memory_space<vmem>>, %arg7: memref<1x32xf32, #tpu.memory_space<vmem>>, %arg8: memref<32x32xf32, #tpu.memory_space<vmem>>, %arg9: memref<1x32xf32, #tpu.memory_space<vmem>>, %arg10: memref<32x64xf32, #tpu.memory_space<vmem>>, %arg11: memref<1x32xf32, #tpu.memory_space<vmem>>, %arg12: memref<832x64xf32, #tpu.memory_space<vmem>>, %arg13: memref<1x64xf32, #tpu.memory_space<vmem>>, %arg14: memref<64x64xf32, #tpu.memory_space<vmem>>, %arg15: memref<1x64xf32, #tpu.memory_space<vmem>>, %arg16: memref<64x128xf32, #tpu.memory_space<vmem>>, %arg17: memref<1x64xf32, #tpu.memory_space<vmem>>, %arg18: memref<1664x128xf32, #tpu.memory_space<vmem>>, %arg19: memref<1x128xf32, #tpu.memory_space<vmem>>, %arg20: memref<128x128xf32, #tpu.memory_space<vmem>>, %arg21: memref<1x128xf32, #tpu.memory_space<vmem>>, %arg22: memref<16x32xf32, #tpu.memory_space<vmem>>, %arg23: memref<1x32xf32, #tpu.memory_space<vmem>>, %arg24: memref<32x64xf32, #tpu.memory_space<vmem>>, %arg25: memref<1x64xf32, #tpu.memory_space<vmem>>, %arg26: memref<64x128xf32, #tpu.memory_space<vmem>>, %arg27: memref<1x128xf32, #tpu.memory_space<vmem>>, %arg28: memref<352x300xf32, #tpu.memory_space<vmem>>, %arg29: memref<1x300xf32, #tpu.memory_space<vmem>>, %arg30: memref<300x124xf32, #tpu.memory_space<vmem>>, %arg31: memref<1x124xf32, #tpu.memory_space<vmem>>, %arg32: memref<124x1xf32, #tpu.memory_space<vmem>>, %arg33: memref<1x1xf32, #tpu.memory_space<vmem>>, %arg34: memref<16x1xf32, #tpu.memory_space<vmem>>) attributes {dimension_semantics = [], scalar_prefetch = 0 : i64, scratch_operands = 0 : i64, tpu.core_type = #tpu.core_type<tc>} {
    %c0 = arith.constant 0 : index
    %c0_0 = arith.constant 0 : index
    %0 = vector.load %arg0[%c0, %c0_0] : memref<16x16xf32, #tpu.memory_space<vmem>>, vector<16x16xf32>
    %c0_1 = arith.constant 0 : index
    %c0_2 = arith.constant 0 : index
    %1 = vector.load %arg1[%c0_1, %c0_2] : memref<16x64xf32, #tpu.memory_space<vmem>>, vector<16x64xf32>
    %c0_3 = arith.constant 0 : index
    %c0_4 = arith.constant 0 : index
    %2 = vector.load %arg2[%c0_3, %c0_4] : memref<64x32xf32, #tpu.memory_space<vmem>>, vector<64x32xf32>
    %c0_5 = arith.constant 0 : index
    %c0_6 = arith.constant 0 : index
    %3 = vector.load %arg3[%c0_5, %c0_6] : memref<16x1xf32, #tpu.memory_space<vmem>>, vector<16x1xf32>
    %cst = arith.constant 1.000000e+00 : f32
    %4 = vector.broadcast %cst : f32 to vector<16x1xf32>
    %5 = arith.maximumf %3, %4 : vector<16x1xf32>
    %cst_7 = arith.constant 1.000000e+00 : f32
    %6 = vector.broadcast %cst_7 : f32 to vector<16x1xf32>
    %7 = arith.divf %6, %5 : vector<16x1xf32>
    %cst_8 = arith.constant 0.000000e+00 : f32
    %8 = vector.broadcast %cst_8 : f32 to vector<16x1xf32>
    %9 = arith.cmpf ogt, %3, %8 : vector<16x1xf32>
    %cst_9 = arith.constant 1.000000e+00 : f32
    %10 = vector.broadcast %cst_9 : f32 to vector<16x1xf32>
    %11 = arith.addf %5, %10 : vector<16x1xf32>
    %12 = math.log %11 : vector<16x1xf32>
    %cst_10 = arith.constant 0.640315115 : f32
    %13 = vector.broadcast %cst_10 : f32 to vector<16x1xf32>
    %14 = arith.mulf %12, %13 : vector<16x1xf32>
    %cst_11 = arith.constant 2.500000e-01 : f32
    %15 = vector.broadcast %cst_11 : f32 to vector<16x1xf32>
    %16 = arith.mulf %5, %15 : vector<16x1xf32>
    %cst_12 = arith.constant 1.000000e+00 : f32
    %17 = vector.broadcast %cst_12 : f32 to vector<16x1xf32>
    %18 = arith.divf %17, %14 : vector<16x1xf32>
    %cst_13 = arith.constant 1.000000e+00 : f32
    %19 = vector.broadcast %cst_13 : f32 to vector<16x1xf32>
    %20 = arith.divf %19, %16 : vector<16x1xf32>
    %21 = vector.extract_strided_slice %2 {offsets = [0, 0], sizes = [64, 16], strides = [1, 1]} : vector<64x32xf32> to vector<64x16xf32>
    %cst_14 = arith.constant 1.000000e+00 : f32
    %22 = vector.broadcast %cst_14 : f32 to vector<64x16xf32>
    %23 = arith.subf %21, %22 : vector<64x16xf32>
    %cst_15 = arith.constant 1.000000e+30 : f32
    %24 = vector.broadcast %cst_15 : f32 to vector<64x16xf32>
    %25 = arith.mulf %23, %24 : vector<64x16xf32>
    %c0_16 = arith.constant 0 : index
    %c0_17 = arith.constant 0 : index
    %26 = vector.load %arg4[%c0_16, %c0_17] : memref<16x32xf32, #tpu.memory_space<vmem>>, vector<16x32xf32>
    %cst_18 = arith.constant dense<0.000000e+00> : vector<16x32xf32>
    %27 = tpu.matmul %0, %26, %cst_18 {dimension_numbers = #tpu.dot_dimension_numbers<[1], [0], [0], [1], [0, 0, 1, 1], [], []>} : vector<16x16xf32>, vector<16x32xf32>, vector<16x32xf32> -> vector<16x32xf32>
    %28 = vector.extract_strided_slice %27 {offsets = [0, 0], sizes = [16, 16], strides = [1, 1]} : vector<16x32xf32> to vector<16x16xf32>
    %29 = vector.extract_strided_slice %27 {offsets = [0, 16], sizes = [16, 16], strides = [1, 1]} : vector<16x32xf32> to vector<16x16xf32>
    %30 = tpu.concatenate %28, %29 in 0 : vector<16x16xf32>, vector<16x16xf32> -> vector<32x16xf32>
    %cst_19 = arith.constant dense<0.000000e+00> : vector<64x16xf32>
    %31 = tpu.matmul %2, %30, %cst_19 {dimension_numbers = #tpu.dot_dimension_numbers<[1], [0], [0], [1], [0, 0, 1, 1], [], []>} : vector<64x32xf32>, vector<32x16xf32>, vector<64x16xf32> -> vector<64x16xf32>
    %c0_20 = arith.constant 0 : index
    %c0_21 = arith.constant 0 : index
    %32 = vector.load %arg5[%c0_20, %c0_21] : memref<1x16xf32, #tpu.memory_space<vmem>>, vector<1x16xf32>
    %33 = vector.broadcast %32 : vector<1x16xf32> to vector<64x16xf32>
    %34 = arith.addf %31, %33 : vector<64x16xf32>
    %35 = arith.mulf %34, %34 : vector<64x16xf32>
    %36 = tpu.concatenate %34, %35 in 1 : vector<64x16xf32>, vector<64x16xf32> -> vector<64x32xf32>
    %cst_22 = arith.constant dense<0.000000e+00> : vector<16x32xf32>
    %37 = tpu.matmul %1, %36, %cst_22 {dimension_numbers = #tpu.dot_dimension_numbers<[1], [0], [0], [1], [0, 0, 1, 1], [], []>} : vector<16x64xf32>, vector<64x32xf32>, vector<16x32xf32> -> vector<16x32xf32>
    %38 = vector.extract_strided_slice %37 {offsets = [0, 0], sizes = [16, 16], strides = [1, 1]} : vector<16x32xf32> to vector<16x16xf32>
    %39 = vector.broadcast %7 : vector<16x1xf32> to vector<16x16xf32>
    %40 = arith.mulf %38, %39 : vector<16x16xf32>
    %41 = vector.extract_strided_slice %37 {offsets = [0, 16], sizes = [16, 16], strides = [1, 1]} : vector<16x32xf32> to vector<16x16xf32>
    %42 = vector.broadcast %7 : vector<16x1xf32> to vector<16x16xf32>
    %43 = arith.mulf %41, %42 : vector<16x16xf32>
    %44 = arith.mulf %40, %40 : vector<16x16xf32>
    %45 = arith.subf %43, %44 : vector<16x16xf32>
    %cst_23 = arith.constant 0.000000e+00 : f32
    %46 = vector.broadcast %cst_23 : f32 to vector<16x16xf32>
    %47 = arith.maximumf %45, %46 : vector<16x16xf32>
    %cst_24 = arith.constant 9.99999974E-6 : f32
    %48 = vector.broadcast %cst_24 : f32 to vector<16x16xf32>
    %49 = arith.addf %47, %48 : vector<16x16xf32>
    %50 = math.sqrt %49 : vector<16x16xf32>
    %cst_25 = arith.constant 0.000000e+00 : f32
    %51 = vector.broadcast %cst_25 : f32 to vector<64x16xf32>
    %52 = arith.subf %51, %34 : vector<64x16xf32>
    %53 = tpu.concatenate %34, %52 in 1 : vector<64x16xf32>, vector<64x16xf32> -> vector<64x32xf32>
    %54 = vector.extract_strided_slice %53 {offsets = [0, 0], sizes = [8, 32], strides = [1, 1]} : vector<64x32xf32> to vector<8x32xf32>
    %55 = vector.extract_strided_slice %25 {offsets = [0, 0], sizes = [8, 16], strides = [1, 1]} : vector<64x16xf32> to vector<8x16xf32>
    %56 = vector.shape_cast %54 : vector<8x32xf32> to vector<8x1x32xf32>
    %57 = vector.shape_cast %55 : vector<8x16xf32> to vector<8x16x1xf32>
    %58 = vector.broadcast %56 : vector<8x1x32xf32> to vector<8x16x32xf32>
    %59 = vector.broadcast %57 : vector<8x16x1xf32> to vector<8x16x32xf32>
    %60 = arith.addf %58, %59 : vector<8x16x32xf32>
    %cst_26 = arith.constant dense<0xFF800000> : vector<16x32xf32>
    %61 = vector.multi_reduction <maximumf>, %60, %cst_26 [0] : vector<8x16x32xf32> to vector<16x32xf32>
    %62 = vector.extract_strided_slice %53 {offsets = [8, 0], sizes = [8, 32], strides = [1, 1]} : vector<64x32xf32> to vector<8x32xf32>
    %63 = vector.extract_strided_slice %25 {offsets = [8, 0], sizes = [8, 16], strides = [1, 1]} : vector<64x16xf32> to vector<8x16xf32>
    %64 = vector.shape_cast %62 : vector<8x32xf32> to vector<8x1x32xf32>
    %65 = vector.shape_cast %63 : vector<8x16xf32> to vector<8x16x1xf32>
    %66 = vector.broadcast %64 : vector<8x1x32xf32> to vector<8x16x32xf32>
    %67 = vector.broadcast %65 : vector<8x16x1xf32> to vector<8x16x32xf32>
    %68 = arith.addf %66, %67 : vector<8x16x32xf32>
    %cst_27 = arith.constant dense<0xFF800000> : vector<16x32xf32>
    %69 = vector.multi_reduction <maximumf>, %68, %cst_27 [0] : vector<8x16x32xf32> to vector<16x32xf32>
    %70 = arith.maximumf %61, %69 : vector<16x32xf32>
    %71 = vector.extract_strided_slice %53 {offsets = [16, 0], sizes = [8, 32], strides = [1, 1]} : vector<64x32xf32> to vector<8x32xf32>
    %72 = vector.extract_strided_slice %25 {offsets = [16, 0], sizes = [8, 16], strides = [1, 1]} : vector<64x16xf32> to vector<8x16xf32>
    %73 = vector.shape_cast %71 : vector<8x32xf32> to vector<8x1x32xf32>
    %74 = vector.shape_cast %72 : vector<8x16xf32> to vector<8x16x1xf32>
    %75 = vector.broadcast %73 : vector<8x1x32xf32> to vector<8x16x32xf32>
    %76 = vector.broadcast %74 : vector<8x16x1xf32> to vector<8x16x32xf32>
    %77 = arith.addf %75, %76 : vector<8x16x32xf32>
    %cst_28 = arith.constant dense<0xFF800000> : vector<16x32xf32>
    %78 = vector.multi_reduction <maximumf>, %77, %cst_28 [0] : vector<8x16x32xf32> to vector<16x32xf32>
    %79 = arith.maximumf %70, %78 : vector<16x32xf32>
    %80 = vector.extract_strided_slice %53 {offsets = [24, 0], sizes = [8, 32], strides = [1, 1]} : vector<64x32xf32> to vector<8x32xf32>
    %81 = vector.extract_strided_slice %25 {offsets = [24, 0], sizes = [8, 16], strides = [1, 1]} : vector<64x16xf32> to vector<8x16xf32>
    %82 = vector.shape_cast %80 : vector<8x32xf32> to vector<8x1x32xf32>
    %83 = vector.shape_cast %81 : vector<8x16xf32> to vector<8x16x1xf32>
    %84 = vector.broadcast %82 : vector<8x1x32xf32> to vector<8x16x32xf32>
    %85 = vector.broadcast %83 : vector<8x16x1xf32> to vector<8x16x32xf32>
    %86 = arith.addf %84, %85 : vector<8x16x32xf32>
    %cst_29 = arith.constant dense<0xFF800000> : vector<16x32xf32>
    %87 = vector.multi_reduction <maximumf>, %86, %cst_29 [0] : vector<8x16x32xf32> to vector<16x32xf32>
    %88 = arith.maximumf %79, %87 : vector<16x32xf32>
    %89 = vector.extract_strided_slice %53 {offsets = [32, 0], sizes = [8, 32], strides = [1, 1]} : vector<64x32xf32> to vector<8x32xf32>
    %90 = vector.extract_strided_slice %25 {offsets = [32, 0], sizes = [8, 16], strides = [1, 1]} : vector<64x16xf32> to vector<8x16xf32>
    %91 = vector.shape_cast %89 : vector<8x32xf32> to vector<8x1x32xf32>
    %92 = vector.shape_cast %90 : vector<8x16xf32> to vector<8x16x1xf32>
    %93 = vector.broadcast %91 : vector<8x1x32xf32> to vector<8x16x32xf32>
    %94 = vector.broadcast %92 : vector<8x16x1xf32> to vector<8x16x32xf32>
    %95 = arith.addf %93, %94 : vector<8x16x32xf32>
    %cst_30 = arith.constant dense<0xFF800000> : vector<16x32xf32>
    %96 = vector.multi_reduction <maximumf>, %95, %cst_30 [0] : vector<8x16x32xf32> to vector<16x32xf32>
    %97 = arith.maximumf %88, %96 : vector<16x32xf32>
    %98 = vector.extract_strided_slice %53 {offsets = [40, 0], sizes = [8, 32], strides = [1, 1]} : vector<64x32xf32> to vector<8x32xf32>
    %99 = vector.extract_strided_slice %25 {offsets = [40, 0], sizes = [8, 16], strides = [1, 1]} : vector<64x16xf32> to vector<8x16xf32>
    %100 = vector.shape_cast %98 : vector<8x32xf32> to vector<8x1x32xf32>
    %101 = vector.shape_cast %99 : vector<8x16xf32> to vector<8x16x1xf32>
    %102 = vector.broadcast %100 : vector<8x1x32xf32> to vector<8x16x32xf32>
    %103 = vector.broadcast %101 : vector<8x16x1xf32> to vector<8x16x32xf32>
    %104 = arith.addf %102, %103 : vector<8x16x32xf32>
    %cst_31 = arith.constant dense<0xFF800000> : vector<16x32xf32>
    %105 = vector.multi_reduction <maximumf>, %104, %cst_31 [0] : vector<8x16x32xf32> to vector<16x32xf32>
    %106 = arith.maximumf %97, %105 : vector<16x32xf32>
    %107 = vector.extract_strided_slice %53 {offsets = [48, 0], sizes = [8, 32], strides = [1, 1]} : vector<64x32xf32> to vector<8x32xf32>
    %108 = vector.extract_strided_slice %25 {offsets = [48, 0], sizes = [8, 16], strides = [1, 1]} : vector<64x16xf32> to vector<8x16xf32>
    %109 = vector.shape_cast %107 : vector<8x32xf32> to vector<8x1x32xf32>
    %110 = vector.shape_cast %108 : vector<8x16xf32> to vector<8x16x1xf32>
    %111 = vector.broadcast %109 : vector<8x1x32xf32> to vector<8x16x32xf32>
    %112 = vector.broadcast %110 : vector<8x16x1xf32> to vector<8x16x32xf32>
    %113 = arith.addf %111, %112 : vector<8x16x32xf32>
    %cst_32 = arith.constant dense<0xFF800000> : vector<16x32xf32>
    %114 = vector.multi_reduction <maximumf>, %113, %cst_32 [0] : vector<8x16x32xf32> to vector<16x32xf32>
    %115 = arith.maximumf %106, %114 : vector<16x32xf32>
    %116 = vector.extract_strided_slice %53 {offsets = [56, 0], sizes = [8, 32], strides = [1, 1]} : vector<64x32xf32> to vector<8x32xf32>
    %117 = vector.extract_strided_slice %25 {offsets = [56, 0], sizes = [8, 16], strides = [1, 1]} : vector<64x16xf32> to vector<8x16xf32>
    %118 = vector.shape_cast %116 : vector<8x32xf32> to vector<8x1x32xf32>
    %119 = vector.shape_cast %117 : vector<8x16xf32> to vector<8x16x1xf32>
    %120 = vector.broadcast %118 : vector<8x1x32xf32> to vector<8x16x32xf32>
    %121 = vector.broadcast %119 : vector<8x16x1xf32> to vector<8x16x32xf32>
    %122 = arith.addf %120, %121 : vector<8x16x32xf32>
    %cst_33 = arith.constant dense<0xFF800000> : vector<16x32xf32>
    %123 = vector.multi_reduction <maximumf>, %122, %cst_33 [0] : vector<8x16x32xf32> to vector<16x32xf32>
    %124 = arith.maximumf %115, %123 : vector<16x32xf32>
    %125 = vector.extract_strided_slice %124 {offsets = [0, 0], sizes = [16, 16], strides = [1, 1]} : vector<16x32xf32> to vector<16x16xf32>
    %cst_34 = arith.constant 0.000000e+00 : f32
    %126 = vector.shape_cast %9 : vector<16x1xi1> to vector<16x1xi1>
    %127 = vector.broadcast %126 : vector<16x1xi1> to vector<16x16xi1>
    %128 = vector.broadcast %cst_34 : f32 to vector<16x16xf32>
    %129 = arith.select %127, %125, %128 : vector<16x16xi1>, vector<16x16xf32>
    %130 = vector.extract_strided_slice %124 {offsets = [0, 16], sizes = [16, 16], strides = [1, 1]} : vector<16x32xf32> to vector<16x16xf32>
    %cst_35 = arith.constant 0.000000e+00 : f32
    %131 = vector.broadcast %cst_35 : f32 to vector<16x16xf32>
    %132 = arith.subf %131, %130 : vector<16x16xf32>
    %cst_36 = arith.constant 0.000000e+00 : f32
    %133 = vector.shape_cast %9 : vector<16x1xi1> to vector<16x1xi1>
    %134 = vector.broadcast %133 : vector<16x1xi1> to vector<16x16xi1>
    %135 = vector.broadcast %cst_36 : f32 to vector<16x16xf32>
    %136 = arith.select %134, %132, %135 : vector<16x16xi1>, vector<16x16xf32>
    %137 = tpu.concatenate %38, %40, %136, %129, %50 in 1 : vector<16x16xf32>, vector<16x16xf32>, vector<16x16xf32>, vector<16x16xf32>, vector<16x16xf32> -> vector<16x80xf32>
    %138 = vector.broadcast %14 : vector<16x1xf32> to vector<16x80xf32>
    %139 = arith.mulf %138, %137 : vector<16x80xf32>
    %140 = vector.broadcast %18 : vector<16x1xf32> to vector<16x80xf32>
    %141 = arith.mulf %140, %137 : vector<16x80xf32>
    %142 = vector.broadcast %16 : vector<16x1xf32> to vector<16x80xf32>
    %143 = arith.mulf %142, %137 : vector<16x80xf32>
    %144 = vector.broadcast %20 : vector<16x1xf32> to vector<16x80xf32>
    %145 = arith.mulf %144, %137 : vector<16x80xf32>
    %146 = tpu.concatenate %0, %137, %139, %141, %143, %145 in 1 : vector<16x16xf32>, vector<16x80xf32>, vector<16x80xf32>, vector<16x80xf32>, vector<16x80xf32>, vector<16x80xf32> -> vector<16x416xf32>
    %c0_37 = arith.constant 0 : index
    %c0_38 = arith.constant 0 : index
    %147 = vector.load %arg6[%c0_37, %c0_38] : memref<416x32xf32, #tpu.memory_space<vmem>>, vector<416x32xf32>
    %cst_39 = arith.constant dense<0.000000e+00> : vector<16x32xf32>
    %148 = tpu.matmul %146, %147, %cst_39 {dimension_numbers = #tpu.dot_dimension_numbers<[1], [0], [0], [1], [0, 0, 1, 1], [], []>} : vector<16x416xf32>, vector<416x32xf32>, vector<16x32xf32> -> vector<16x32xf32>
    %c0_40 = arith.constant 0 : index
    %c0_41 = arith.constant 0 : index
    %149 = vector.load %arg7[%c0_40, %c0_41] : memref<1x32xf32, #tpu.memory_space<vmem>>, vector<1x32xf32>
    %150 = vector.broadcast %149 : vector<1x32xf32> to vector<16x32xf32>
    %151 = arith.addf %148, %150 : vector<16x32xf32>
    %c0_42 = arith.constant 0 : index
    %c0_43 = arith.constant 0 : index
    %152 = vector.load %arg8[%c0_42, %c0_43] : memref<32x32xf32, #tpu.memory_space<vmem>>, vector<32x32xf32>
    %cst_44 = arith.constant dense<0.000000e+00> : vector<16x32xf32>
    %153 = tpu.matmul %151, %152, %cst_44 {dimension_numbers = #tpu.dot_dimension_numbers<[1], [0], [0], [1], [0, 0, 1, 1], [], []>} : vector<16x32xf32>, vector<32x32xf32>, vector<16x32xf32> -> vector<16x32xf32>
    %c0_45 = arith.constant 0 : index
    %c0_46 = arith.constant 0 : index
    %154 = vector.load %arg9[%c0_45, %c0_46] : memref<1x32xf32, #tpu.memory_space<vmem>>, vector<1x32xf32>
    %155 = vector.broadcast %154 : vector<1x32xf32> to vector<16x32xf32>
    %156 = arith.addf %153, %155 : vector<16x32xf32>
    %c0_47 = arith.constant 0 : index
    %c0_48 = arith.constant 0 : index
    %157 = vector.load %arg10[%c0_47, %c0_48] : memref<32x64xf32, #tpu.memory_space<vmem>>, vector<32x64xf32>
    %cst_49 = arith.constant dense<0.000000e+00> : vector<16x64xf32>
    %158 = tpu.matmul %156, %157, %cst_49 {dimension_numbers = #tpu.dot_dimension_numbers<[1], [0], [0], [1], [0, 0, 1, 1], [], []>} : vector<16x32xf32>, vector<32x64xf32>, vector<16x64xf32> -> vector<16x64xf32>
    %159 = vector.extract_strided_slice %158 {offsets = [0, 0], sizes = [16, 32], strides = [1, 1]} : vector<16x64xf32> to vector<16x32xf32>
    %160 = vector.extract_strided_slice %158 {offsets = [0, 32], sizes = [16, 32], strides = [1, 1]} : vector<16x64xf32> to vector<16x32xf32>
    %161 = tpu.concatenate %159, %160 in 0 : vector<16x32xf32>, vector<16x32xf32> -> vector<32x32xf32>
    %cst_50 = arith.constant dense<0.000000e+00> : vector<64x32xf32>
    %162 = tpu.matmul %2, %161, %cst_50 {dimension_numbers = #tpu.dot_dimension_numbers<[1], [0], [0], [1], [0, 0, 1, 1], [], []>} : vector<64x32xf32>, vector<32x32xf32>, vector<64x32xf32> -> vector<64x32xf32>
    %c0_51 = arith.constant 0 : index
    %c0_52 = arith.constant 0 : index
    %163 = vector.load %arg11[%c0_51, %c0_52] : memref<1x32xf32, #tpu.memory_space<vmem>>, vector<1x32xf32>
    %164 = vector.broadcast %163 : vector<1x32xf32> to vector<64x32xf32>
    %165 = arith.addf %162, %164 : vector<64x32xf32>
    %166 = arith.mulf %165, %165 : vector<64x32xf32>
    %167 = tpu.concatenate %165, %166 in 1 : vector<64x32xf32>, vector<64x32xf32> -> vector<64x64xf32>
    %cst_53 = arith.constant dense<0.000000e+00> : vector<16x64xf32>
    %168 = tpu.matmul %1, %167, %cst_53 {dimension_numbers = #tpu.dot_dimension_numbers<[1], [0], [0], [1], [0, 0, 1, 1], [], []>} : vector<16x64xf32>, vector<64x64xf32>, vector<16x64xf32> -> vector<16x64xf32>
    %169 = vector.extract_strided_slice %168 {offsets = [0, 0], sizes = [16, 32], strides = [1, 1]} : vector<16x64xf32> to vector<16x32xf32>
    %170 = vector.broadcast %7 : vector<16x1xf32> to vector<16x32xf32>
    %171 = arith.mulf %169, %170 : vector<16x32xf32>
    %172 = vector.extract_strided_slice %168 {offsets = [0, 32], sizes = [16, 32], strides = [1, 1]} : vector<16x64xf32> to vector<16x32xf32>
    %173 = vector.broadcast %7 : vector<16x1xf32> to vector<16x32xf32>
    %174 = arith.mulf %172, %173 : vector<16x32xf32>
    %175 = arith.mulf %171, %171 : vector<16x32xf32>
    %176 = arith.subf %174, %175 : vector<16x32xf32>
    %cst_54 = arith.constant 0.000000e+00 : f32
    %177 = vector.broadcast %cst_54 : f32 to vector<16x32xf32>
    %178 = arith.maximumf %176, %177 : vector<16x32xf32>
    %cst_55 = arith.constant 9.99999974E-6 : f32
    %179 = vector.broadcast %cst_55 : f32 to vector<16x32xf32>
    %180 = arith.addf %178, %179 : vector<16x32xf32>
    %181 = math.sqrt %180 : vector<16x32xf32>
    %cst_56 = arith.constant 0.000000e+00 : f32
    %182 = vector.broadcast %cst_56 : f32 to vector<64x32xf32>
    %183 = arith.subf %182, %165 : vector<64x32xf32>
    %184 = tpu.concatenate %165, %183 in 1 : vector<64x32xf32>, vector<64x32xf32> -> vector<64x64xf32>
    %185 = vector.extract_strided_slice %184 {offsets = [0, 0], sizes = [8, 64], strides = [1, 1]} : vector<64x64xf32> to vector<8x64xf32>
    %186 = vector.extract_strided_slice %25 {offsets = [0, 0], sizes = [8, 16], strides = [1, 1]} : vector<64x16xf32> to vector<8x16xf32>
    %187 = vector.shape_cast %185 : vector<8x64xf32> to vector<8x1x64xf32>
    %188 = vector.shape_cast %186 : vector<8x16xf32> to vector<8x16x1xf32>
    %189 = vector.broadcast %187 : vector<8x1x64xf32> to vector<8x16x64xf32>
    %190 = vector.broadcast %188 : vector<8x16x1xf32> to vector<8x16x64xf32>
    %191 = arith.addf %189, %190 : vector<8x16x64xf32>
    %cst_57 = arith.constant dense<0xFF800000> : vector<16x64xf32>
    %192 = vector.multi_reduction <maximumf>, %191, %cst_57 [0] : vector<8x16x64xf32> to vector<16x64xf32>
    %193 = vector.extract_strided_slice %184 {offsets = [8, 0], sizes = [8, 64], strides = [1, 1]} : vector<64x64xf32> to vector<8x64xf32>
    %194 = vector.extract_strided_slice %25 {offsets = [8, 0], sizes = [8, 16], strides = [1, 1]} : vector<64x16xf32> to vector<8x16xf32>
    %195 = vector.shape_cast %193 : vector<8x64xf32> to vector<8x1x64xf32>
    %196 = vector.shape_cast %194 : vector<8x16xf32> to vector<8x16x1xf32>
    %197 = vector.broadcast %195 : vector<8x1x64xf32> to vector<8x16x64xf32>
    %198 = vector.broadcast %196 : vector<8x16x1xf32> to vector<8x16x64xf32>
    %199 = arith.addf %197, %198 : vector<8x16x64xf32>
    %cst_58 = arith.constant dense<0xFF800000> : vector<16x64xf32>
    %200 = vector.multi_reduction <maximumf>, %199, %cst_58 [0] : vector<8x16x64xf32> to vector<16x64xf32>
    %201 = arith.maximumf %192, %200 : vector<16x64xf32>
    %202 = vector.extract_strided_slice %184 {offsets = [16, 0], sizes = [8, 64], strides = [1, 1]} : vector<64x64xf32> to vector<8x64xf32>
    %203 = vector.extract_strided_slice %25 {offsets = [16, 0], sizes = [8, 16], strides = [1, 1]} : vector<64x16xf32> to vector<8x16xf32>
    %204 = vector.shape_cast %202 : vector<8x64xf32> to vector<8x1x64xf32>
    %205 = vector.shape_cast %203 : vector<8x16xf32> to vector<8x16x1xf32>
    %206 = vector.broadcast %204 : vector<8x1x64xf32> to vector<8x16x64xf32>
    %207 = vector.broadcast %205 : vector<8x16x1xf32> to vector<8x16x64xf32>
    %208 = arith.addf %206, %207 : vector<8x16x64xf32>
    %cst_59 = arith.constant dense<0xFF800000> : vector<16x64xf32>
    %209 = vector.multi_reduction <maximumf>, %208, %cst_59 [0] : vector<8x16x64xf32> to vector<16x64xf32>
    %210 = arith.maximumf %201, %209 : vector<16x64xf32>
    %211 = vector.extract_strided_slice %184 {offsets = [24, 0], sizes = [8, 64], strides = [1, 1]} : vector<64x64xf32> to vector<8x64xf32>
    %212 = vector.extract_strided_slice %25 {offsets = [24, 0], sizes = [8, 16], strides = [1, 1]} : vector<64x16xf32> to vector<8x16xf32>
    %213 = vector.shape_cast %211 : vector<8x64xf32> to vector<8x1x64xf32>
    %214 = vector.shape_cast %212 : vector<8x16xf32> to vector<8x16x1xf32>
    %215 = vector.broadcast %213 : vector<8x1x64xf32> to vector<8x16x64xf32>
    %216 = vector.broadcast %214 : vector<8x16x1xf32> to vector<8x16x64xf32>
    %217 = arith.addf %215, %216 : vector<8x16x64xf32>
    %cst_60 = arith.constant dense<0xFF800000> : vector<16x64xf32>
    %218 = vector.multi_reduction <maximumf>, %217, %cst_60 [0] : vector<8x16x64xf32> to vector<16x64xf32>
    %219 = arith.maximumf %210, %218 : vector<16x64xf32>
    %220 = vector.extract_strided_slice %184 {offsets = [32, 0], sizes = [8, 64], strides = [1, 1]} : vector<64x64xf32> to vector<8x64xf32>
    %221 = vector.extract_strided_slice %25 {offsets = [32, 0], sizes = [8, 16], strides = [1, 1]} : vector<64x16xf32> to vector<8x16xf32>
    %222 = vector.shape_cast %220 : vector<8x64xf32> to vector<8x1x64xf32>
    %223 = vector.shape_cast %221 : vector<8x16xf32> to vector<8x16x1xf32>
    %224 = vector.broadcast %222 : vector<8x1x64xf32> to vector<8x16x64xf32>
    %225 = vector.broadcast %223 : vector<8x16x1xf32> to vector<8x16x64xf32>
    %226 = arith.addf %224, %225 : vector<8x16x64xf32>
    %cst_61 = arith.constant dense<0xFF800000> : vector<16x64xf32>
    %227 = vector.multi_reduction <maximumf>, %226, %cst_61 [0] : vector<8x16x64xf32> to vector<16x64xf32>
    %228 = arith.maximumf %219, %227 : vector<16x64xf32>
    %229 = vector.extract_strided_slice %184 {offsets = [40, 0], sizes = [8, 64], strides = [1, 1]} : vector<64x64xf32> to vector<8x64xf32>
    %230 = vector.extract_strided_slice %25 {offsets = [40, 0], sizes = [8, 16], strides = [1, 1]} : vector<64x16xf32> to vector<8x16xf32>
    %231 = vector.shape_cast %229 : vector<8x64xf32> to vector<8x1x64xf32>
    %232 = vector.shape_cast %230 : vector<8x16xf32> to vector<8x16x1xf32>
    %233 = vector.broadcast %231 : vector<8x1x64xf32> to vector<8x16x64xf32>
    %234 = vector.broadcast %232 : vector<8x16x1xf32> to vector<8x16x64xf32>
    %235 = arith.addf %233, %234 : vector<8x16x64xf32>
    %cst_62 = arith.constant dense<0xFF800000> : vector<16x64xf32>
    %236 = vector.multi_reduction <maximumf>, %235, %cst_62 [0] : vector<8x16x64xf32> to vector<16x64xf32>
    %237 = arith.maximumf %228, %236 : vector<16x64xf32>
    %238 = vector.extract_strided_slice %184 {offsets = [48, 0], sizes = [8, 64], strides = [1, 1]} : vector<64x64xf32> to vector<8x64xf32>
    %239 = vector.extract_strided_slice %25 {offsets = [48, 0], sizes = [8, 16], strides = [1, 1]} : vector<64x16xf32> to vector<8x16xf32>
    %240 = vector.shape_cast %238 : vector<8x64xf32> to vector<8x1x64xf32>
    %241 = vector.shape_cast %239 : vector<8x16xf32> to vector<8x16x1xf32>
    %242 = vector.broadcast %240 : vector<8x1x64xf32> to vector<8x16x64xf32>
    %243 = vector.broadcast %241 : vector<8x16x1xf32> to vector<8x16x64xf32>
    %244 = arith.addf %242, %243 : vector<8x16x64xf32>
    %cst_63 = arith.constant dense<0xFF800000> : vector<16x64xf32>
    %245 = vector.multi_reduction <maximumf>, %244, %cst_63 [0] : vector<8x16x64xf32> to vector<16x64xf32>
    %246 = arith.maximumf %237, %245 : vector<16x64xf32>
    %247 = vector.extract_strided_slice %184 {offsets = [56, 0], sizes = [8, 64], strides = [1, 1]} : vector<64x64xf32> to vector<8x64xf32>
    %248 = vector.extract_strided_slice %25 {offsets = [56, 0], sizes = [8, 16], strides = [1, 1]} : vector<64x16xf32> to vector<8x16xf32>
    %249 = vector.shape_cast %247 : vector<8x64xf32> to vector<8x1x64xf32>
    %250 = vector.shape_cast %248 : vector<8x16xf32> to vector<8x16x1xf32>
    %251 = vector.broadcast %249 : vector<8x1x64xf32> to vector<8x16x64xf32>
    %252 = vector.broadcast %250 : vector<8x16x1xf32> to vector<8x16x64xf32>
    %253 = arith.addf %251, %252 : vector<8x16x64xf32>
    %cst_64 = arith.constant dense<0xFF800000> : vector<16x64xf32>
    %254 = vector.multi_reduction <maximumf>, %253, %cst_64 [0] : vector<8x16x64xf32> to vector<16x64xf32>
    %255 = arith.maximumf %246, %254 : vector<16x64xf32>
    %256 = vector.extract_strided_slice %255 {offsets = [0, 0], sizes = [16, 32], strides = [1, 1]} : vector<16x64xf32> to vector<16x32xf32>
    %cst_65 = arith.constant 0.000000e+00 : f32
    %257 = vector.shape_cast %9 : vector<16x1xi1> to vector<16x1xi1>
    %258 = vector.broadcast %257 : vector<16x1xi1> to vector<16x32xi1>
    %259 = vector.broadcast %cst_65 : f32 to vector<16x32xf32>
    %260 = arith.select %258, %256, %259 : vector<16x32xi1>, vector<16x32xf32>
    %261 = vector.extract_strided_slice %255 {offsets = [0, 32], sizes = [16, 32], strides = [1, 1]} : vector<16x64xf32> to vector<16x32xf32>
    %cst_66 = arith.constant 0.000000e+00 : f32
    %262 = vector.broadcast %cst_66 : f32 to vector<16x32xf32>
    %263 = arith.subf %262, %261 : vector<16x32xf32>
    %cst_67 = arith.constant 0.000000e+00 : f32
    %264 = vector.shape_cast %9 : vector<16x1xi1> to vector<16x1xi1>
    %265 = vector.broadcast %264 : vector<16x1xi1> to vector<16x32xi1>
    %266 = vector.broadcast %cst_67 : f32 to vector<16x32xf32>
    %267 = arith.select %265, %263, %266 : vector<16x32xi1>, vector<16x32xf32>
    %268 = tpu.concatenate %169, %171, %267, %260, %181 in 1 : vector<16x32xf32>, vector<16x32xf32>, vector<16x32xf32>, vector<16x32xf32>, vector<16x32xf32> -> vector<16x160xf32>
    %269 = vector.broadcast %14 : vector<16x1xf32> to vector<16x160xf32>
    %270 = arith.mulf %269, %268 : vector<16x160xf32>
    %271 = vector.broadcast %18 : vector<16x1xf32> to vector<16x160xf32>
    %272 = arith.mulf %271, %268 : vector<16x160xf32>
    %273 = vector.broadcast %16 : vector<16x1xf32> to vector<16x160xf32>
    %274 = arith.mulf %273, %268 : vector<16x160xf32>
    %275 = vector.broadcast %20 : vector<16x1xf32> to vector<16x160xf32>
    %276 = arith.mulf %275, %268 : vector<16x160xf32>
    %277 = tpu.concatenate %156, %268, %270, %272, %274, %276 in 1 : vector<16x32xf32>, vector<16x160xf32>, vector<16x160xf32>, vector<16x160xf32>, vector<16x160xf32>, vector<16x160xf32> -> vector<16x832xf32>
    %c0_68 = arith.constant 0 : index
    %c0_69 = arith.constant 0 : index
    %278 = vector.load %arg12[%c0_68, %c0_69] : memref<832x64xf32, #tpu.memory_space<vmem>>, vector<832x64xf32>
    %cst_70 = arith.constant dense<0.000000e+00> : vector<16x64xf32>
    %279 = tpu.matmul %277, %278, %cst_70 {dimension_numbers = #tpu.dot_dimension_numbers<[1], [0], [0], [1], [0, 0, 1, 1], [], []>} : vector<16x832xf32>, vector<832x64xf32>, vector<16x64xf32> -> vector<16x64xf32>
    %c0_71 = arith.constant 0 : index
    %c0_72 = arith.constant 0 : index
    %280 = vector.load %arg13[%c0_71, %c0_72] : memref<1x64xf32, #tpu.memory_space<vmem>>, vector<1x64xf32>
    %281 = vector.broadcast %280 : vector<1x64xf32> to vector<16x64xf32>
    %282 = arith.addf %279, %281 : vector<16x64xf32>
    %c0_73 = arith.constant 0 : index
    %c0_74 = arith.constant 0 : index
    %283 = vector.load %arg14[%c0_73, %c0_74] : memref<64x64xf32, #tpu.memory_space<vmem>>, vector<64x64xf32>
    %cst_75 = arith.constant dense<0.000000e+00> : vector<16x64xf32>
    %284 = tpu.matmul %282, %283, %cst_75 {dimension_numbers = #tpu.dot_dimension_numbers<[1], [0], [0], [1], [0, 0, 1, 1], [], []>} : vector<16x64xf32>, vector<64x64xf32>, vector<16x64xf32> -> vector<16x64xf32>
    %c0_76 = arith.constant 0 : index
    %c0_77 = arith.constant 0 : index
    %285 = vector.load %arg15[%c0_76, %c0_77] : memref<1x64xf32, #tpu.memory_space<vmem>>, vector<1x64xf32>
    %286 = vector.broadcast %285 : vector<1x64xf32> to vector<16x64xf32>
    %287 = arith.addf %284, %286 : vector<16x64xf32>
    %c0_78 = arith.constant 0 : index
    %c0_79 = arith.constant 0 : index
    %288 = vector.load %arg16[%c0_78, %c0_79] : memref<64x128xf32, #tpu.memory_space<vmem>>, vector<64x128xf32>
    %cst_80 = arith.constant dense<0.000000e+00> : vector<16x128xf32>
    %289 = tpu.matmul %287, %288, %cst_80 {dimension_numbers = #tpu.dot_dimension_numbers<[1], [0], [0], [1], [0, 0, 1, 1], [], []>} : vector<16x64xf32>, vector<64x128xf32>, vector<16x128xf32> -> vector<16x128xf32>
    %290 = vector.extract_strided_slice %289 {offsets = [0, 0], sizes = [16, 64], strides = [1, 1]} : vector<16x128xf32> to vector<16x64xf32>
    %291 = vector.extract_strided_slice %289 {offsets = [0, 64], sizes = [16, 64], strides = [1, 1]} : vector<16x128xf32> to vector<16x64xf32>
    %292 = tpu.concatenate %290, %291 in 0 : vector<16x64xf32>, vector<16x64xf32> -> vector<32x64xf32>
    %cst_81 = arith.constant dense<0.000000e+00> : vector<64x64xf32>
    %293 = tpu.matmul %2, %292, %cst_81 {dimension_numbers = #tpu.dot_dimension_numbers<[1], [0], [0], [1], [0, 0, 1, 1], [], []>} : vector<64x32xf32>, vector<32x64xf32>, vector<64x64xf32> -> vector<64x64xf32>
    %c0_82 = arith.constant 0 : index
    %c0_83 = arith.constant 0 : index
    %294 = vector.load %arg17[%c0_82, %c0_83] : memref<1x64xf32, #tpu.memory_space<vmem>>, vector<1x64xf32>
    %295 = vector.broadcast %294 : vector<1x64xf32> to vector<64x64xf32>
    %296 = arith.addf %293, %295 : vector<64x64xf32>
    %297 = arith.mulf %296, %296 : vector<64x64xf32>
    %298 = tpu.concatenate %296, %297 in 1 : vector<64x64xf32>, vector<64x64xf32> -> vector<64x128xf32>
    %cst_84 = arith.constant dense<0.000000e+00> : vector<16x128xf32>
    %299 = tpu.matmul %1, %298, %cst_84 {dimension_numbers = #tpu.dot_dimension_numbers<[1], [0], [0], [1], [0, 0, 1, 1], [], []>} : vector<16x64xf32>, vector<64x128xf32>, vector<16x128xf32> -> vector<16x128xf32>
    %300 = vector.extract_strided_slice %299 {offsets = [0, 0], sizes = [16, 64], strides = [1, 1]} : vector<16x128xf32> to vector<16x64xf32>
    %301 = vector.broadcast %7 : vector<16x1xf32> to vector<16x64xf32>
    %302 = arith.mulf %300, %301 : vector<16x64xf32>
    %303 = vector.extract_strided_slice %299 {offsets = [0, 64], sizes = [16, 64], strides = [1, 1]} : vector<16x128xf32> to vector<16x64xf32>
    %304 = vector.broadcast %7 : vector<16x1xf32> to vector<16x64xf32>
    %305 = arith.mulf %303, %304 : vector<16x64xf32>
    %306 = arith.mulf %302, %302 : vector<16x64xf32>
    %307 = arith.subf %305, %306 : vector<16x64xf32>
    %cst_85 = arith.constant 0.000000e+00 : f32
    %308 = vector.broadcast %cst_85 : f32 to vector<16x64xf32>
    %309 = arith.maximumf %307, %308 : vector<16x64xf32>
    %cst_86 = arith.constant 9.99999974E-6 : f32
    %310 = vector.broadcast %cst_86 : f32 to vector<16x64xf32>
    %311 = arith.addf %309, %310 : vector<16x64xf32>
    %312 = math.sqrt %311 : vector<16x64xf32>
    %cst_87 = arith.constant 0.000000e+00 : f32
    %313 = vector.broadcast %cst_87 : f32 to vector<64x64xf32>
    %314 = arith.subf %313, %296 : vector<64x64xf32>
    %315 = tpu.concatenate %296, %314 in 1 : vector<64x64xf32>, vector<64x64xf32> -> vector<64x128xf32>
    %316 = vector.extract_strided_slice %315 {offsets = [0, 0], sizes = [8, 128], strides = [1, 1]} : vector<64x128xf32> to vector<8x128xf32>
    %317 = vector.extract_strided_slice %25 {offsets = [0, 0], sizes = [8, 16], strides = [1, 1]} : vector<64x16xf32> to vector<8x16xf32>
    %318 = vector.shape_cast %316 : vector<8x128xf32> to vector<8x1x128xf32>
    %319 = vector.shape_cast %317 : vector<8x16xf32> to vector<8x16x1xf32>
    %320 = vector.broadcast %318 : vector<8x1x128xf32> to vector<8x16x128xf32>
    %321 = vector.broadcast %319 : vector<8x16x1xf32> to vector<8x16x128xf32>
    %322 = arith.addf %320, %321 : vector<8x16x128xf32>
    %cst_88 = arith.constant dense<0xFF800000> : vector<16x128xf32>
    %323 = vector.multi_reduction <maximumf>, %322, %cst_88 [0] : vector<8x16x128xf32> to vector<16x128xf32>
    %324 = vector.extract_strided_slice %315 {offsets = [8, 0], sizes = [8, 128], strides = [1, 1]} : vector<64x128xf32> to vector<8x128xf32>
    %325 = vector.extract_strided_slice %25 {offsets = [8, 0], sizes = [8, 16], strides = [1, 1]} : vector<64x16xf32> to vector<8x16xf32>
    %326 = vector.shape_cast %324 : vector<8x128xf32> to vector<8x1x128xf32>
    %327 = vector.shape_cast %325 : vector<8x16xf32> to vector<8x16x1xf32>
    %328 = vector.broadcast %326 : vector<8x1x128xf32> to vector<8x16x128xf32>
    %329 = vector.broadcast %327 : vector<8x16x1xf32> to vector<8x16x128xf32>
    %330 = arith.addf %328, %329 : vector<8x16x128xf32>
    %cst_89 = arith.constant dense<0xFF800000> : vector<16x128xf32>
    %331 = vector.multi_reduction <maximumf>, %330, %cst_89 [0] : vector<8x16x128xf32> to vector<16x128xf32>
    %332 = arith.maximumf %323, %331 : vector<16x128xf32>
    %333 = vector.extract_strided_slice %315 {offsets = [16, 0], sizes = [8, 128], strides = [1, 1]} : vector<64x128xf32> to vector<8x128xf32>
    %334 = vector.extract_strided_slice %25 {offsets = [16, 0], sizes = [8, 16], strides = [1, 1]} : vector<64x16xf32> to vector<8x16xf32>
    %335 = vector.shape_cast %333 : vector<8x128xf32> to vector<8x1x128xf32>
    %336 = vector.shape_cast %334 : vector<8x16xf32> to vector<8x16x1xf32>
    %337 = vector.broadcast %335 : vector<8x1x128xf32> to vector<8x16x128xf32>
    %338 = vector.broadcast %336 : vector<8x16x1xf32> to vector<8x16x128xf32>
    %339 = arith.addf %337, %338 : vector<8x16x128xf32>
    %cst_90 = arith.constant dense<0xFF800000> : vector<16x128xf32>
    %340 = vector.multi_reduction <maximumf>, %339, %cst_90 [0] : vector<8x16x128xf32> to vector<16x128xf32>
    %341 = arith.maximumf %332, %340 : vector<16x128xf32>
    %342 = vector.extract_strided_slice %315 {offsets = [24, 0], sizes = [8, 128], strides = [1, 1]} : vector<64x128xf32> to vector<8x128xf32>
    %343 = vector.extract_strided_slice %25 {offsets = [24, 0], sizes = [8, 16], strides = [1, 1]} : vector<64x16xf32> to vector<8x16xf32>
    %344 = vector.shape_cast %342 : vector<8x128xf32> to vector<8x1x128xf32>
    %345 = vector.shape_cast %343 : vector<8x16xf32> to vector<8x16x1xf32>
    %346 = vector.broadcast %344 : vector<8x1x128xf32> to vector<8x16x128xf32>
    %347 = vector.broadcast %345 : vector<8x16x1xf32> to vector<8x16x128xf32>
    %348 = arith.addf %346, %347 : vector<8x16x128xf32>
    %cst_91 = arith.constant dense<0xFF800000> : vector<16x128xf32>
    %349 = vector.multi_reduction <maximumf>, %348, %cst_91 [0] : vector<8x16x128xf32> to vector<16x128xf32>
    %350 = arith.maximumf %341, %349 : vector<16x128xf32>
    %351 = vector.extract_strided_slice %315 {offsets = [32, 0], sizes = [8, 128], strides = [1, 1]} : vector<64x128xf32> to vector<8x128xf32>
    %352 = vector.extract_strided_slice %25 {offsets = [32, 0], sizes = [8, 16], strides = [1, 1]} : vector<64x16xf32> to vector<8x16xf32>
    %353 = vector.shape_cast %351 : vector<8x128xf32> to vector<8x1x128xf32>
    %354 = vector.shape_cast %352 : vector<8x16xf32> to vector<8x16x1xf32>
    %355 = vector.broadcast %353 : vector<8x1x128xf32> to vector<8x16x128xf32>
    %356 = vector.broadcast %354 : vector<8x16x1xf32> to vector<8x16x128xf32>
    %357 = arith.addf %355, %356 : vector<8x16x128xf32>
    %cst_92 = arith.constant dense<0xFF800000> : vector<16x128xf32>
    %358 = vector.multi_reduction <maximumf>, %357, %cst_92 [0] : vector<8x16x128xf32> to vector<16x128xf32>
    %359 = arith.maximumf %350, %358 : vector<16x128xf32>
    %360 = vector.extract_strided_slice %315 {offsets = [40, 0], sizes = [8, 128], strides = [1, 1]} : vector<64x128xf32> to vector<8x128xf32>
    %361 = vector.extract_strided_slice %25 {offsets = [40, 0], sizes = [8, 16], strides = [1, 1]} : vector<64x16xf32> to vector<8x16xf32>
    %362 = vector.shape_cast %360 : vector<8x128xf32> to vector<8x1x128xf32>
    %363 = vector.shape_cast %361 : vector<8x16xf32> to vector<8x16x1xf32>
    %364 = vector.broadcast %362 : vector<8x1x128xf32> to vector<8x16x128xf32>
    %365 = vector.broadcast %363 : vector<8x16x1xf32> to vector<8x16x128xf32>
    %366 = arith.addf %364, %365 : vector<8x16x128xf32>
    %cst_93 = arith.constant dense<0xFF800000> : vector<16x128xf32>
    %367 = vector.multi_reduction <maximumf>, %366, %cst_93 [0] : vector<8x16x128xf32> to vector<16x128xf32>
    %368 = arith.maximumf %359, %367 : vector<16x128xf32>
    %369 = vector.extract_strided_slice %315 {offsets = [48, 0], sizes = [8, 128], strides = [1, 1]} : vector<64x128xf32> to vector<8x128xf32>
    %370 = vector.extract_strided_slice %25 {offsets = [48, 0], sizes = [8, 16], strides = [1, 1]} : vector<64x16xf32> to vector<8x16xf32>
    %371 = vector.shape_cast %369 : vector<8x128xf32> to vector<8x1x128xf32>
    %372 = vector.shape_cast %370 : vector<8x16xf32> to vector<8x16x1xf32>
    %373 = vector.broadcast %371 : vector<8x1x128xf32> to vector<8x16x128xf32>
    %374 = vector.broadcast %372 : vector<8x16x1xf32> to vector<8x16x128xf32>
    %375 = arith.addf %373, %374 : vector<8x16x128xf32>
    %cst_94 = arith.constant dense<0xFF800000> : vector<16x128xf32>
    %376 = vector.multi_reduction <maximumf>, %375, %cst_94 [0] : vector<8x16x128xf32> to vector<16x128xf32>
    %377 = arith.maximumf %368, %376 : vector<16x128xf32>
    %378 = vector.extract_strided_slice %315 {offsets = [56, 0], sizes = [8, 128], strides = [1, 1]} : vector<64x128xf32> to vector<8x128xf32>
    %379 = vector.extract_strided_slice %25 {offsets = [56, 0], sizes = [8, 16], strides = [1, 1]} : vector<64x16xf32> to vector<8x16xf32>
    %380 = vector.shape_cast %378 : vector<8x128xf32> to vector<8x1x128xf32>
    %381 = vector.shape_cast %379 : vector<8x16xf32> to vector<8x16x1xf32>
    %382 = vector.broadcast %380 : vector<8x1x128xf32> to vector<8x16x128xf32>
    %383 = vector.broadcast %381 : vector<8x16x1xf32> to vector<8x16x128xf32>
    %384 = arith.addf %382, %383 : vector<8x16x128xf32>
    %cst_95 = arith.constant dense<0xFF800000> : vector<16x128xf32>
    %385 = vector.multi_reduction <maximumf>, %384, %cst_95 [0] : vector<8x16x128xf32> to vector<16x128xf32>
    %386 = arith.maximumf %377, %385 : vector<16x128xf32>
    %387 = vector.extract_strided_slice %386 {offsets = [0, 0], sizes = [16, 64], strides = [1, 1]} : vector<16x128xf32> to vector<16x64xf32>
    %cst_96 = arith.constant 0.000000e+00 : f32
    %388 = vector.shape_cast %9 : vector<16x1xi1> to vector<16x1xi1>
    %389 = vector.broadcast %388 : vector<16x1xi1> to vector<16x64xi1>
    %390 = vector.broadcast %cst_96 : f32 to vector<16x64xf32>
    %391 = arith.select %389, %387, %390 : vector<16x64xi1>, vector<16x64xf32>
    %392 = vector.extract_strided_slice %386 {offsets = [0, 64], sizes = [16, 64], strides = [1, 1]} : vector<16x128xf32> to vector<16x64xf32>
    %cst_97 = arith.constant 0.000000e+00 : f32
    %393 = vector.broadcast %cst_97 : f32 to vector<16x64xf32>
    %394 = arith.subf %393, %392 : vector<16x64xf32>
    %cst_98 = arith.constant 0.000000e+00 : f32
    %395 = vector.shape_cast %9 : vector<16x1xi1> to vector<16x1xi1>
    %396 = vector.broadcast %395 : vector<16x1xi1> to vector<16x64xi1>
    %397 = vector.broadcast %cst_98 : f32 to vector<16x64xf32>
    %398 = arith.select %396, %394, %397 : vector<16x64xi1>, vector<16x64xf32>
    %399 = tpu.concatenate %300, %302, %398, %391, %312 in 1 : vector<16x64xf32>, vector<16x64xf32>, vector<16x64xf32>, vector<16x64xf32>, vector<16x64xf32> -> vector<16x320xf32>
    %400 = vector.broadcast %14 : vector<16x1xf32> to vector<16x320xf32>
    %401 = arith.mulf %400, %399 : vector<16x320xf32>
    %402 = vector.broadcast %18 : vector<16x1xf32> to vector<16x320xf32>
    %403 = arith.mulf %402, %399 : vector<16x320xf32>
    %404 = vector.broadcast %16 : vector<16x1xf32> to vector<16x320xf32>
    %405 = arith.mulf %404, %399 : vector<16x320xf32>
    %406 = vector.broadcast %20 : vector<16x1xf32> to vector<16x320xf32>
    %407 = arith.mulf %406, %399 : vector<16x320xf32>
    %408 = tpu.concatenate %287, %399, %401, %403, %405, %407 in 1 : vector<16x64xf32>, vector<16x320xf32>, vector<16x320xf32>, vector<16x320xf32>, vector<16x320xf32>, vector<16x320xf32> -> vector<16x1664xf32>
    %c0_99 = arith.constant 0 : index
    %c0_100 = arith.constant 0 : index
    %409 = vector.load %arg18[%c0_99, %c0_100] : memref<1664x128xf32, #tpu.memory_space<vmem>>, vector<1664x128xf32>
    %cst_101 = arith.constant dense<0.000000e+00> : vector<16x128xf32>
    %410 = tpu.matmul %408, %409, %cst_101 {dimension_numbers = #tpu.dot_dimension_numbers<[1], [0], [0], [1], [0, 0, 1, 1], [], []>} : vector<16x1664xf32>, vector<1664x128xf32>, vector<16x128xf32> -> vector<16x128xf32>
    %c0_102 = arith.constant 0 : index
    %c0_103 = arith.constant 0 : index
    %411 = vector.load %arg19[%c0_102, %c0_103] : memref<1x128xf32, #tpu.memory_space<vmem>>, vector<1x128xf32>
    %412 = vector.broadcast %411 : vector<1x128xf32> to vector<16x128xf32>
    %413 = arith.addf %410, %412 : vector<16x128xf32>
    %c0_104 = arith.constant 0 : index
    %c0_105 = arith.constant 0 : index
    %414 = vector.load %arg20[%c0_104, %c0_105] : memref<128x128xf32, #tpu.memory_space<vmem>>, vector<128x128xf32>
    %cst_106 = arith.constant dense<0.000000e+00> : vector<16x128xf32>
    %415 = tpu.matmul %413, %414, %cst_106 {dimension_numbers = #tpu.dot_dimension_numbers<[1], [0], [0], [1], [0, 0, 1, 1], [], []>} : vector<16x128xf32>, vector<128x128xf32>, vector<16x128xf32> -> vector<16x128xf32>
    %c0_107 = arith.constant 0 : index
    %c0_108 = arith.constant 0 : index
    %416 = vector.load %arg21[%c0_107, %c0_108] : memref<1x128xf32, #tpu.memory_space<vmem>>, vector<1x128xf32>
    %417 = vector.broadcast %416 : vector<1x128xf32> to vector<16x128xf32>
    %418 = arith.addf %415, %417 : vector<16x128xf32>
    %c0_109 = arith.constant 0 : index
    %c0_110 = arith.constant 0 : index
    %419 = vector.load %arg22[%c0_109, %c0_110] : memref<16x32xf32, #tpu.memory_space<vmem>>, vector<16x32xf32>
    %cst_111 = arith.constant dense<0.000000e+00> : vector<16x32xf32>
    %420 = tpu.matmul %0, %419, %cst_111 {dimension_numbers = #tpu.dot_dimension_numbers<[1], [0], [0], [1], [0, 0, 1, 1], [], []>} : vector<16x16xf32>, vector<16x32xf32>, vector<16x32xf32> -> vector<16x32xf32>
    %c0_112 = arith.constant 0 : index
    %c0_113 = arith.constant 0 : index
    %421 = vector.load %arg23[%c0_112, %c0_113] : memref<1x32xf32, #tpu.memory_space<vmem>>, vector<1x32xf32>
    %422 = vector.broadcast %421 : vector<1x32xf32> to vector<16x32xf32>
    %423 = arith.addf %420, %422 : vector<16x32xf32>
    %cst_114 = arith.constant 0.000000e+00 : f32
    %424 = vector.broadcast %cst_114 : f32 to vector<16x32xf32>
    %425 = arith.maximumf %423, %424 : vector<16x32xf32>
    %c0_115 = arith.constant 0 : index
    %c0_116 = arith.constant 0 : index
    %426 = vector.load %arg24[%c0_115, %c0_116] : memref<32x64xf32, #tpu.memory_space<vmem>>, vector<32x64xf32>
    %cst_117 = arith.constant dense<0.000000e+00> : vector<16x64xf32>
    %427 = tpu.matmul %156, %426, %cst_117 {dimension_numbers = #tpu.dot_dimension_numbers<[1], [0], [0], [1], [0, 0, 1, 1], [], []>} : vector<16x32xf32>, vector<32x64xf32>, vector<16x64xf32> -> vector<16x64xf32>
    %c0_118 = arith.constant 0 : index
    %c0_119 = arith.constant 0 : index
    %428 = vector.load %arg25[%c0_118, %c0_119] : memref<1x64xf32, #tpu.memory_space<vmem>>, vector<1x64xf32>
    %429 = vector.broadcast %428 : vector<1x64xf32> to vector<16x64xf32>
    %430 = arith.addf %427, %429 : vector<16x64xf32>
    %cst_120 = arith.constant 0.000000e+00 : f32
    %431 = vector.broadcast %cst_120 : f32 to vector<16x64xf32>
    %432 = arith.maximumf %430, %431 : vector<16x64xf32>
    %c0_121 = arith.constant 0 : index
    %c0_122 = arith.constant 0 : index
    %433 = vector.load %arg26[%c0_121, %c0_122] : memref<64x128xf32, #tpu.memory_space<vmem>>, vector<64x128xf32>
    %cst_123 = arith.constant dense<0.000000e+00> : vector<16x128xf32>
    %434 = tpu.matmul %287, %433, %cst_123 {dimension_numbers = #tpu.dot_dimension_numbers<[1], [0], [0], [1], [0, 0, 1, 1], [], []>} : vector<16x64xf32>, vector<64x128xf32>, vector<16x128xf32> -> vector<16x128xf32>
    %c0_124 = arith.constant 0 : index
    %c0_125 = arith.constant 0 : index
    %435 = vector.load %arg27[%c0_124, %c0_125] : memref<1x128xf32, #tpu.memory_space<vmem>>, vector<1x128xf32>
    %436 = vector.broadcast %435 : vector<1x128xf32> to vector<16x128xf32>
    %437 = arith.addf %434, %436 : vector<16x128xf32>
    %cst_126 = arith.constant 0.000000e+00 : f32
    %438 = vector.broadcast %cst_126 : f32 to vector<16x128xf32>
    %439 = arith.maximumf %437, %438 : vector<16x128xf32>
    %440 = tpu.concatenate %425, %418, %432, %439 in 1 : vector<16x32xf32>, vector<16x128xf32>, vector<16x64xf32>, vector<16x128xf32> -> vector<16x352xf32>
    %c0_127 = arith.constant 0 : index
    %c0_128 = arith.constant 0 : index
    %441 = vector.load %arg28[%c0_127, %c0_128] : memref<352x300xf32, #tpu.memory_space<vmem>>, vector<352x300xf32>
    %cst_129 = arith.constant dense<0.000000e+00> : vector<16x300xf32>
    %442 = tpu.matmul %440, %441, %cst_129 {dimension_numbers = #tpu.dot_dimension_numbers<[1], [0], [0], [1], [0, 0, 1, 1], [], []>} : vector<16x352xf32>, vector<352x300xf32>, vector<16x300xf32> -> vector<16x300xf32>
    %c0_130 = arith.constant 0 : index
    %c0_131 = arith.constant 0 : index
    %443 = vector.load %arg29[%c0_130, %c0_131] : memref<1x300xf32, #tpu.memory_space<vmem>>, vector<1x300xf32>
    %444 = vector.broadcast %443 : vector<1x300xf32> to vector<16x300xf32>
    %445 = arith.addf %442, %444 : vector<16x300xf32>
    %cst_132 = arith.constant 0.000000e+00 : f32
    %446 = vector.broadcast %cst_132 : f32 to vector<16x300xf32>
    %447 = arith.maximumf %445, %446 : vector<16x300xf32>
    %c0_133 = arith.constant 0 : index
    %c0_134 = arith.constant 0 : index
    %448 = vector.load %arg30[%c0_133, %c0_134] : memref<300x124xf32, #tpu.memory_space<vmem>>, vector<300x124xf32>
    %cst_135 = arith.constant dense<0.000000e+00> : vector<16x124xf32>
    %449 = tpu.matmul %447, %448, %cst_135 {dimension_numbers = #tpu.dot_dimension_numbers<[1], [0], [0], [1], [0, 0, 1, 1], [], []>} : vector<16x300xf32>, vector<300x124xf32>, vector<16x124xf32> -> vector<16x124xf32>
    %c0_136 = arith.constant 0 : index
    %c0_137 = arith.constant 0 : index
    %450 = vector.load %arg31[%c0_136, %c0_137] : memref<1x124xf32, #tpu.memory_space<vmem>>, vector<1x124xf32>
    %451 = vector.broadcast %450 : vector<1x124xf32> to vector<16x124xf32>
    %452 = arith.addf %449, %451 : vector<16x124xf32>
    %cst_138 = arith.constant 0.000000e+00 : f32
    %453 = vector.broadcast %cst_138 : f32 to vector<16x124xf32>
    %454 = arith.maximumf %452, %453 : vector<16x124xf32>
    %c0_139 = arith.constant 0 : index
    %c0_140 = arith.constant 0 : index
    %455 = vector.load %arg32[%c0_139, %c0_140] : memref<124x1xf32, #tpu.memory_space<vmem>>, vector<124x1xf32>
    %cst_141 = arith.constant dense<0.000000e+00> : vector<16x1xf32>
    %456 = tpu.matmul %454, %455, %cst_141 {dimension_numbers = #tpu.dot_dimension_numbers<[1], [0], [0], [1], [0, 0, 1, 1], [], []>} : vector<16x124xf32>, vector<124x1xf32>, vector<16x1xf32> -> vector<16x1xf32>
    %c0_142 = arith.constant 0 : index
    %c0_143 = arith.constant 0 : index
    %457 = vector.load %arg33[%c0_142, %c0_143] : memref<1x1xf32, #tpu.memory_space<vmem>>, vector<1x1xf32>
    %458 = vector.broadcast %457 : vector<1x1xf32> to vector<16x1xf32>
    %459 = arith.addf %456, %458 : vector<16x1xf32>
    %cst_144 = arith.constant 0.000000e+00 : f32
    %460 = vector.broadcast %cst_144 : f32 to vector<16x1xf32>
    %461 = arith.subf %460, %459 : vector<16x1xf32>
    %462 = math.exp %461 : vector<16x1xf32>
    %cst_145 = arith.constant 1.000000e+00 : f32
    %463 = vector.broadcast %cst_145 : f32 to vector<16x1xf32>
    %464 = arith.addf %463, %462 : vector<16x1xf32>
    %cst_146 = arith.constant 1.000000e+00 : f32
    %465 = vector.broadcast %cst_146 : f32 to vector<16x1xf32>
    %466 = arith.divf %465, %464 : vector<16x1xf32>
    %c0_147 = arith.constant 0 : index
    %c0_148 = arith.constant 0 : index
    %467 = vector.load %arg34[%c0_147, %c0_148] : memref<16x1xf32, #tpu.memory_space<vmem>>, vector<16x1xf32>
    tpu.vector_store %arg34[%c0_147, %c0_148], %466 {strides = array<i32>} : memref<16x1xf32, #tpu.memory_space<vmem>>, vector<16x1xf32>,
    return
  }
}

</mosaic_0001>

<llo_original>
// kernel: model_forward.1
$region0: #{model_forward.1}
  #allocation0 [shape = 'u32[]', space=smem, size = 0x4, offset = 0x4, fixed_abs, tag = 'smem constant byte address 0x4 - core index']
  #allocation1 [shape = 'u32[144,128]{1,0:T(1,128)}', space=vmem, size = 0x12000, scoped, tag = 'internal scratch']
  #allocation2 [shape = 'f32[1,1]{1,0:T(1,128)S(1)}', space=vmem, size = 0x200, scoped, tag = 'scoped memory for model_forward.1']
  %s0 = inlined_call_operand.smem [shape: u32[35], index: -1, kind: input, shape index: {}]
  %s1 = sld [smem:[%s0]]
  %s2 = scalar_lea.smem %s0, 1
  %s3 = sld [smem:[%s2]]
  %s4 = scalar_lea.smem %s0, 2
  %s5 = sld [smem:[%s4]]
  %s6 = scalar_lea.smem %s0, 3
  %s7 = sld [smem:[%s6]]
  %s8 = scalar_lea.smem %s0, 4
  %s9 = sld [smem:[%s8]]
  %s10 = scalar_lea.smem %s0, 5
  %s11 = sld [smem:[%s10]]
  %s12 = scalar_lea.smem %s0, 6
  %s13 = sld [smem:[%s12]]
  %s14 = scalar_lea.smem %s0, 7
  %s15 = sld [smem:[%s14]]
  %s16 = scalar_lea.smem %s0, 8
  %s17 = sld [smem:[%s16]]
  %s18 = scalar_lea.smem %s0, 9
  %s19 = sld [smem:[%s18]]
  %s20 = scalar_lea.smem %s0, 10
  %s21 = sld [smem:[%s20]]
  %s22 = scalar_lea.smem %s0, 11
  %s23 = sld [smem:[%s22]]
  %s24 = scalar_lea.smem %s0, 12
  %s25 = sld [smem:[%s24]]
  %s26 = scalar_lea.smem %s0, 13
  %s27 = sld [smem:[%s26]]
  %s28 = scalar_lea.smem %s0, 14
  %s29 = sld [smem:[%s28]]
  %s30 = scalar_lea.smem %s0, 15
  %s31 = sld [smem:[%s30]]
  %s32 = scalar_lea.smem %s0, 16
  %s33 = sld [smem:[%s32]]
  %s34 = scalar_lea.smem %s0, 17
  %s35 = sld [smem:[%s34]]
  %s36 = scalar_lea.smem %s0, 18
  %s37 = sld [smem:[%s36]]
  %s38 = scalar_lea.smem %s0, 19
  %s39 = sld [smem:[%s38]]
  %s40 = scalar_lea.smem %s0, 20
  %s41 = sld [smem:[%s40]]
  %s42 = scalar_lea.smem %s0, 21
  %s43 = sld [smem:[%s42]]
  %s44 = scalar_lea.smem %s0, 22
  %s45 = sld [smem:[%s44]]
  %s46 = scalar_lea.smem %s0, 23
  %s47 = sld [smem:[%s46]]
  %s48 = scalar_lea.smem %s0, 24
  %s49 = sld [smem:[%s48]]
  %s50 = scalar_lea.smem %s0, 25
  %s51 = sld [smem:[%s50]]
  %s52 = scalar_lea.smem %s0, 26
  %s53 = sld [smem:[%s52]]
  %s54 = scalar_lea.smem %s0, 27
  %s55 = sld [smem:[%s54]]
  %s56 = scalar_lea.smem %s0, 28
  %s57 = sld [smem:[%s56]]
  %s58 = scalar_lea.smem %s0, 29
  %s59 = sld [smem:[%s58]]
  %s60 = scalar_lea.smem %s0, 30
  %s61 = sld [smem:[%s60]]
  %s62 = scalar_lea.smem %s0, 31
  %s63 = sld [smem:[%s62]]
  %s64 = scalar_lea.smem %s0, 32
  %s65 = sld [smem:[%s64]]
  %s66 = scalar_lea.smem %s0, 33
  %s67 = sld [smem:[%s66]]
  %s68 = scalar_lea.smem %s0, 34
  %s69 = sld [smem:[%s68]]
  %s70 = sld [smem:[#allocation0]]
  $region146: #{model_forward.1} parent=0
    _
  %s72 = ssub.s32 1, %s70
  %s73 = scalar_select 0, %s72, %s70
  %v74 = vstv %s67
  %75 = vst [vmem:[#allocation2] sm:$0x1] %v74
  // Predicated region
  $region2: #{model_forward.1} parent=0 // pred_check
    _
  $region3: #{model_forward.1} parent=0 // pred_check_branch
    %77 = sbr.rel (0) target = $region5
  $region4: #{model_forward.1} parent=0 // pred_region
    _
  $region5: #{model_forward.1} parent=0 // pred_fallthru
    _
  // Predicated region
  $region6: #{model_forward.1} parent=0 // pred_check
    _
  $region7: #{model_forward.1} parent=0 // pred_check_branch
    %79 = sbr.rel (0) target = $region9
  $region8: #{model_forward.1} parent=0 // pred_region
    _
  $region9: #{model_forward.1} parent=0 // pred_fallthru
    _
  // Predicated region
  $region10: #{model_forward.1} parent=0 // pred_check
    _
  $region11: #{model_forward.1} parent=0 // pred_check_branch
    %81 = sbr.rel (0) target = $region13
  $region12: #{model_forward.1} parent=0 // pred_region
    _
  $region13: #{model_forward.1} parent=0 // pred_fallthru
    _
  // Predicated region
  $region14: #{model_forward.1} parent=0 // pred_check
    _
  $region15: #{model_forward.1} parent=0 // pred_check_branch
    %83 = sbr.rel (0) target = $region17
  $region16: #{model_forward.1} parent=0 // pred_region
    _
  $region17: #{model_forward.1} parent=0 // pred_fallthru
    _
  // Predicated region
  $region18: #{model_forward.1} parent=0 // pred_check
    _
  $region19: #{model_forward.1} parent=0 // pred_check_branch
    %85 = sbr.rel (0) target = $region21
  $region20: #{model_forward.1} parent=0 // pred_region
    _
  $region21: #{model_forward.1} parent=0 // pred_fallthru
    _
  // Predicated region
  $region22: #{model_forward.1} parent=0 // pred_check
    _
  $region23: #{model_forward.1} parent=0 // pred_check_branch
    %87 = sbr.rel (0) target = $region25
  $region24: #{model_forward.1} parent=0 // pred_region
    _
  $region25: #{model_forward.1} parent=0 // pred_fallthru
    _
  // Predicated region
  $region26: #{model_forward.1} parent=0 // pred_check
    _
  $region27: #{model_forward.1} parent=0 // pred_check_branch
    %89 = sbr.rel (0) target = $region29
  $region28: #{model_forward.1} parent=0 // pred_region
    _
  $region29: #{model_forward.1} parent=0 // pred_fallthru
    _
  // Predicated region
  $region30: #{model_forward.1} parent=0 // pred_check
    _
  $region31: #{model_forward.1} parent=0 // pred_check_branch
    %91 = sbr.rel (0) target = $region33
  $region32: #{model_forward.1} parent=0 // pred_region
    _
  $region33: #{model_forward.1} parent=0 // pred_fallthru
    _
  // Predicated region
  $region34: #{model_forward.1} parent=0 // pred_check
    _
  $region35: #{model_forward.1} parent=0 // pred_check_branch
    %93 = sbr.rel (0) target = $region37
  $region36: #{model_forward.1} parent=0 // pred_region
    _
  $region37: #{model_forward.1} parent=0 // pred_fallthru
    _
  // Predicated region
  $region38: #{model_forward.1} parent=0 // pred_check
    _
  $region39: #{model_forward.1} parent=0 // pred_check_branch
    %95 = sbr.rel (0) target = $region41
  $region40: #{model_forward.1} parent=0 // pred_region
    _
  $region41: #{model_forward.1} parent=0 // pred_fallthru
    _
  // Predicated region
  $region42: #{model_forward.1} parent=0 // pred_check
    _
  $region43: #{model_forward.1} parent=0 // pred_check_branch
    %97 = sbr.rel (0) target = $region45
  $region44: #{model_forward.1} parent=0 // pred_region
    _
  $region45: #{model_forward.1} parent=0 // pred_fallthru
    _
  // Predicated region
  $region46: #{model_forward.1} parent=0 // pred_check
    _
  $region47: #{model_forward.1} parent=0 // pred_check_branch
    %99 = sbr.rel (0) target = $region49
  $region48: #{model_forward.1} parent=0 // pred_region
    _
  $region49: #{model_forward.1} parent=0 // pred_fallthru
    _
  // Predicated region
  $region50: #{model_forward.1} parent=0 // pred_check
    _
  $region51: #{model_forward.1} parent=0 // pred_check_branch
    %101 = sbr.rel (0) target = $region53
  $region52: #{model_forward.1} parent=0 // pred_region
    _
  $region53: #{model_forward.1} parent=0 // pred_fallthru
    _
  // Predicated region
  $region54: #{model_forward.1} parent=0 // pred_check
    _
  $region55: #{model_forward.1} parent=0 // pred_check_branch
    %103 = sbr.rel (0) target = $region57
  $region56: #{model_forward.1} parent=0 // pred_region
    _
  $region57: #{model_forward.1} parent=0 // pred_fallthru
    _
  // Predicated region
  $region58: #{model_forward.1} parent=0 // pred_check
    _
  $region59: #{model_forward.1} parent=0 // pred_check_branch
    %105 = sbr.rel (0) target = $region61
  $region60: #{model_forward.1} parent=0 // pred_region
    _
  $region61: #{model_forward.1} parent=0 // pred_fallthru
    _
  // Predicated region
  $region62: #{model_forward.1} parent=0 // pred_check
    _
  $region63: #{model_forward.1} parent=0 // pred_check_branch
    %107 = sbr.rel (0) target = $region65
  $region64: #{model_forward.1} parent=0 // pred_region
    _
  $region65: #{model_forward.1} parent=0 // pred_fallthru
    _
  // Predicated region
  $region66: #{model_forward.1} parent=0 // pred_check
    _
  $region67: #{model_forward.1} parent=0 // pred_check_branch
    %109 = sbr.rel (0) target = $region69
  $region68: #{model_forward.1} parent=0 // pred_region
    _
  $region69: #{model_forward.1} parent=0 // pred_fallthru
    _
  // Predicated region
  $region70: #{model_forward.1} parent=0 // pred_check
    _
  $region71: #{model_forward.1} parent=0 // pred_check_branch
    %111 = sbr.rel (0) target = $region73
  $region72: #{model_forward.1} parent=0 // pred_region
    _
  $region73: #{model_forward.1} parent=0 // pred_fallthru
    _
  // Predicated region
  $region74: #{model_forward.1} parent=0 // pred_check
    _
  $region75: #{model_forward.1} parent=0 // pred_check_branch
    %113 = sbr.rel (0) target = $region77
  $region76: #{model_forward.1} parent=0 // pred_region
    _
  $region77: #{model_forward.1} parent=0 // pred_fallthru
    _
  // Predicated region
  $region78: #{model_forward.1} parent=0 // pred_check
    _
  $region79: #{model_forward.1} parent=0 // pred_check_branch
    %115 = sbr.rel (0) target = $region81
  $region80: #{model_forward.1} parent=0 // pred_region
    _
  $region81: #{model_forward.1} parent=0 // pred_fallthru
    _
  // Predicated region
  $region82: #{model_forward.1} parent=0 // pred_check
    _
  $region83: #{model_forward.1} parent=0 // pred_check_branch
    %117 = sbr.rel (0) target = $region85
  $region84: #{model_forward.1} parent=0 // pred_region
    _
  $region85: #{model_forward.1} parent=0 // pred_fallthru
    _
  // Predicated region
  $region86: #{model_forward.1} parent=0 // pred_check
    _
  $region87: #{model_forward.1} parent=0 // pred_check_branch
    %119 = sbr.rel (0) target = $region89
  $region88: #{model_forward.1} parent=0 // pred_region
    _
  $region89: #{model_forward.1} parent=0 // pred_fallthru
    _
  // Predicated region
  $region90: #{model_forward.1} parent=0 // pred_check
    _
  $region91: #{model_forward.1} parent=0 // pred_check_branch
    %121 = sbr.rel (0) target = $region93
  $region92: #{model_forward.1} parent=0 // pred_region
    _
  $region93: #{model_forward.1} parent=0 // pred_fallthru
    _
  // Predicated region
  $region94: #{model_forward.1} parent=0 // pred_check
    _
  $region95: #{model_forward.1} parent=0 // pred_check_branch
    %123 = sbr.rel (0) target = $region97
  $region96: #{model_forward.1} parent=0 // pred_region
    _
  $region97: #{model_forward.1} parent=0 // pred_fallthru
    _
  // Predicated region
  $region98: #{model_forward.1} parent=0 // pred_check
    _
  $region99: #{model_forward.1} parent=0 // pred_check_branch
    %125 = sbr.rel (0) target = $region101
  $region100: #{model_forward.1} parent=0 // pred_region
    _
  $region101: #{model_forward.1} parent=0 // pred_fallthru
    _
  // Predicated region
  $region102: #{model_forward.1} parent=0 // pred_check
    _
  $region103: #{model_forward.1} parent=0 // pred_check_branch
    %127 = sbr.rel (0) target = $region105
  $region104: #{model_forward.1} parent=0 // pred_region
    _
  $region105: #{model_forward.1} parent=0 // pred_fallthru
    _
  // Predicated region
  $region106: #{model_forward.1} parent=0 // pred_check
    _
  $region107: #{model_forward.1} parent=0 // pred_check_branch
    %129 = sbr.rel (0) target = $region109
  $region108: #{model_forward.1} parent=0 // pred_region
    _
  $region109: #{model_forward.1} parent=0 // pred_fallthru
    _
  // Predicated region
  $region110: #{model_forward.1} parent=0 // pred_check
    _
  $region111: #{model_forward.1} parent=0 // pred_check_branch
    %131 = sbr.rel (0) target = $region113
  $region112: #{model_forward.1} parent=0 // pred_region
    _
  $region113: #{model_forward.1} parent=0 // pred_fallthru
    _
  // Predicated region
  $region114: #{model_forward.1} parent=0 // pred_check
    _
  $region115: #{model_forward.1} parent=0 // pred_check_branch
    %133 = sbr.rel (0) target = $region117
  $region116: #{model_forward.1} parent=0 // pred_region
    _
  $region117: #{model_forward.1} parent=0 // pred_fallthru
    _
  // Predicated region
  $region118: #{model_forward.1} parent=0 // pred_check
    _
  $region119: #{model_forward.1} parent=0 // pred_check_branch
    %135 = sbr.rel (0) target = $region121
  $region120: #{model_forward.1} parent=0 // pred_region
    _
  $region121: #{model_forward.1} parent=0 // pred_fallthru
    _
  // Predicated region
  $region122: #{model_forward.1} parent=0 // pred_check
    _
  $region123: #{model_forward.1} parent=0 // pred_check_branch
    %137 = sbr.rel (0) target = $region125
  $region124: #{model_forward.1} parent=0 // pred_region
    _
  $region125: #{model_forward.1} parent=0 // pred_fallthru
    _
  // Predicated region
  $region126: #{model_forward.1} parent=0 // pred_check
    _
  $region127: #{model_forward.1} parent=0 // pred_check_branch
    %139 = sbr.rel (0) target = $region129
  $region128: #{model_forward.1} parent=0 // pred_region
    _
  $region129: #{model_forward.1} parent=0 // pred_fallthru
    _
  // Predicated region
  $region130: #{model_forward.1} parent=0 // pred_check
    _
  $region131: #{model_forward.1} parent=0 // pred_check_branch
    %141 = sbr.rel (0) target = $region133
  $region132: #{model_forward.1} parent=0 // pred_region
    _
  $region133: #{model_forward.1} parent=0 // pred_fallthru
    _
  // Predicated region
  $region134: #{model_forward.1} parent=0 // pred_check
    _
  $region135: #{model_forward.1} parent=0 // pred_check_branch
    %143 = sbr.rel (0) target = $region137
  $region136: #{model_forward.1} parent=0 // pred_region
    _
  $region137: #{model_forward.1} parent=0 // pred_fallthru
    _
  %v144 = vld [vmem:[%s1] sm:$0xff]
  %v145 = vld [vmem:[%s1 + $0x8] sm:$0xff]
  %v146 = vld [vmem:[%s3] sm:$0xff]
  %v147 = vld [vmem:[%s3 + $0x8] sm:$0xff]
  %v148 = vld [vmem:[%s5] sm:$0xff]
  %v149 = vld [vmem:[%s5 + $0x8] sm:$0xff]
  %v150 = vld [vmem:[%s5 + $0x10] sm:$0xff]
  %v151 = vld [vmem:[%s5 + $0x18] sm:$0xff]
  %v152 = vld [vmem:[%s5 + $0x20] sm:$0xff]
  %v153 = vld [vmem:[%s5 + $0x28] sm:$0xff]
  %v154 = vld [vmem:[%s5 + $0x30] sm:$0xff]
  %v155 = vld [vmem:[%s5 + $0x38] sm:$0xff]
  %v156 = vld [vmem:[%s7] sm:$0xff]
  %v157 = vld [vmem:[%s7 + $0x8] sm:$0xff]
  %v158 = vmax.f32 %v156, 1.0
  %v159 = vmax.f32 %v157, 1.0
  %v160 = vrcp.pop %v158
  %v161 = vmul.f32 1.0, %v160
  %v162 = vrcp.pop %v159
  %v163 = vmul.f32 1.0, %v162
  %vm164 = vcmp.gt.f32.partialorder %v156, 0.0
  %vm165 = vcmp.gt.f32.partialorder %v157, 0.0
  %v166 = vadd.f32 %v158, 1.0
  %v167 = vadd.f32 %v159, 1.0
  %v168 = vlog2.pop %v166
  %v169 = vmul.f32 %v168, 0.6931472
  %v170 = vlog2.pop %v167
  %v171 = vmul.f32 %v170, 0.6931472
  %v172 = vmul.f32 %v169, 0.6403151
  %v173 = vmul.f32 %v171, 0.6403151
  %v174 = vmul.f32 %v158, 0.25
  %v175 = vmul.f32 %v159, 0.25
  %v176 = vrcp.pop %v172
  %v177 = vmul.f32 1.0, %v176
  %v178 = vrcp.pop %v173
  %v179 = vmul.f32 1.0, %v178
  %v180 = vrcp.pop %v174
  %v181 = vmul.f32 1.0, %v180
  %v182 = vrcp.pop %v175
  %v183 = vmul.f32 1.0, %v182
  %v184 = vsub.f32 %v148, 1.0
  %v185 = vsub.f32 %v149, 1.0
  %v186 = vsub.f32 %v150, 1.0
  %v187 = vsub.f32 %v151, 1.0
  %v188 = vsub.f32 %v152, 1.0
  %v189 = vsub.f32 %v153, 1.0
  %v190 = vsub.f32 %v154, 1.0
  %v191 = vsub.f32 %v155, 1.0
  %v192 = vmul.f32 %v184, 1e+30
  %v193 = vmul.f32 %v185, 1e+30
  %v194 = vmul.f32 %v186, 1e+30
  %v195 = vmul.f32 %v187, 1e+30
  %v196 = vmul.f32 %v188, 1e+30
  %v197 = vmul.f32 %v189, 1e+30
  %v198 = vmul.f32 %v190, 1e+30
  %v199 = vmul.f32 %v191, 1e+30
  %v200 = vld [vmem:[%s9] sm:$0xff]
  %v201 = vld [vmem:[%s9 + $0x8] sm:$0xff]
  %vm202 = vcmask 130048
  %v204 = vsel %vm202, %v144, 0
  %v207 = vsel %vm202, %v145, 0
  %209 = vmatprep.subr.mxu0 0.0
  %210 = vmatpush1.msra.mxu0 0.0
  %211 = vmatprep.subr.mxu0 0.0
  %212 = vmatpush1.msra.mxu0 0.0
  %213 = vmatprep.subr.mxu0 0.0
  %214 = vmatpush1.msra.mxu0 0.0
  %215 = vmatprep.subr.mxu0 0.0
  %216 = vmatpush1.msra.mxu0 0.0
  %217 = vmatprep.subr.mxu0 0.0
  %218 = vmatpush1.msra.mxu0 0.0
  %219 = vmatprep.subr.mxu0 0.0
  %220 = vmatpush1.msra.mxu0 0.0
  %221 = vmatprep.subr.mxu0 0.0
  %222 = vmatpush1.msra.mxu0 0.0
  %223 = vmatprep.subr.mxu0 0.0
  %224 = vmatpush1.msra.mxu0 0.0
  %225 = vmatprep.subr.mxu0 0.0
  %226 = vmatpush1.msra.mxu0 0.0
  %227 = vmatprep.subr.mxu0 0.0
  %228 = vmatpush1.msra.mxu0 0.0
  %229 = vmatprep.subr.mxu0 0.0
  %230 = vmatpush1.msra.mxu0 0.0
  %231 = vmatprep.subr.mxu0 0.0
  %232 = vmatpush1.msra.mxu0 0.0
  %233 = vmatprep.subr.mxu0 0.0
  %234 = vmatpush1.msra.mxu0 0.0
  %235 = vmatprep.subr.mxu0 0.0
  %236 = vmatpush1.msra.mxu0 0.0
  %237 = vmatprep.subr.mxu0 0.0
  %238 = vmatpush1.msra.mxu0 %v201
  %239 = vmatprep.subr.mxu0 0.0
  %240 = vmatpush1.msra.mxu0 %v200
  %241 = vmatprep.subr.mxu0 0.0
  %242 = vmatpush2.msra.mxu0 0.0
  %243 = vmatprep.subr.mxu0 0.0
  %244 = vmatpush2.msra.mxu0 0.0
  %245 = vmatprep.subr.mxu0 0.0
  %246 = vmatpush2.msra.mxu0 0.0
  %247 = vmatprep.subr.mxu0 0.0
  %248 = vmatpush2.msra.mxu0 0.0
  %249 = vmatprep.subr.mxu0 0.0
  %250 = vmatpush2.msra.mxu0 0.0
  %251 = vmatprep.subr.mxu0 0.0
  %252 = vmatpush2.msra.mxu0 0.0
  %253 = vmatprep.subr.mxu0 0.0
  %254 = vmatpush2.msra.mxu0 0.0
  %255 = vmatprep.subr.mxu0 0.0
  %256 = vmatpush2.msra.mxu0 0.0
  %257 = vmatprep.subr.mxu0 0.0
  %258 = vmatpush2.msra.mxu0 0.0
  %259 = vmatprep.subr.mxu0 0.0
  %260 = vmatpush2.msra.mxu0 0.0
  %261 = vmatprep.subr.mxu0 0.0
  %262 = vmatpush2.msra.mxu0 0.0
  %263 = vmatprep.subr.mxu0 0.0
  %264 = vmatpush2.msra.mxu0 0.0
  %265 = vmatprep.subr.mxu0 0.0
  %266 = vmatpush2.msra.mxu0 0.0
  %267 = vmatprep.subr.mxu0 0.0
  %268 = vmatpush2.msra.mxu0 0.0
  %269 = vmatprep.subr.mxu0 0.0
  %270 = vmatpush2.msra.mxu0 0.0
  %271 = vmatprep.subr.mxu0 0.0
  %272 = vmatpush2.msra.mxu0 0.0
  %273 = vmatprep.mubr.f32.mxu0 0.0
  %274 = vmatmul.mubr.f32.gmra.mxu0 %v204
  %v275 = vpop.f32.mrf.mxu0
  %v276 = vadd.f32 0.0, %v275
  %v277 = vpop.f32.mrf.mxu0
  %278 = vmatprep.mubr.f32.mxu0 0.0
  %279 = vmatmul.mubr.f32.gmra.mxu0 %v207
  %v280 = vpop.f32.mrf.mxu0
  %v281 = vadd.f32 0.0, %v280
  %v282 = vpop.f32.mrf.mxu0
  %283 = vdwg.mxu0
  %286 = vrot.lane.b32.xlu0 %v276, 112
  %v287 = vpop.permute.xlu0 %286
  %288 = vrot.lane.b32.xlu0 %v281, 112
  %v289 = vpop.permute.xlu0 %288
  %v292 = vld [vmem:[%s11] sm:$0x1]
  %v294 = vlaneseq
  %v295 = vshrl.u32 %v294, 7
  %v296 = vsub.s32 0, %v295
  %v297 = vrot.slane %v292, %v296
  %vm299 = vcmask 261120
  %v301 = vsel %vm299, %v148, 0
  %v304 = vsel %vm299, %v149, 0
  %v307 = vsel %vm299, %v150, 0
  %v310 = vsel %vm299, %v151, 0
  %v313 = vsel %vm299, %v152, 0
  %v316 = vsel %vm299, %v153, 0
  %v319 = vsel %vm299, %v154, 0
  %v322 = vsel %vm299, %v155, 0
  %324 = vmatprep.subr.mxu0 0.0
  %325 = vmatpush1.msra.mxu0 0.0
  %326 = vmatprep.subr.mxu0 0.0
  %327 = vmatpush1.msra.mxu0 0.0
  %328 = vmatprep.subr.mxu0 0.0
  %329 = vmatpush1.msra.mxu0 0.0
  %330 = vmatprep.subr.mxu0 0.0
  %331 = vmatpush1.msra.mxu0 0.0
  %332 = vmatprep.subr.mxu0 0.0
  %333 = vmatpush1.msra.mxu0 0.0
  %334 = vmatprep.subr.mxu0 0.0
  %335 = vmatpush1.msra.mxu0 0.0
  %336 = vmatprep.subr.mxu0 0.0
  %337 = vmatpush1.msra.mxu0 0.0
  %338 = vmatprep.subr.mxu0 0.0
  %339 = vmatpush1.msra.mxu0 0.0
  %340 = vmatprep.subr.mxu0 0.0
  %341 = vmatpush1.msra.mxu0 0.0
  %342 = vmatprep.subr.mxu0 0.0
  %343 = vmatpush1.msra.mxu0 0.0
  %344 = vmatprep.subr.mxu0 0.0
  %345 = vmatpush1.msra.mxu0 0.0
  %346 = vmatprep.subr.mxu0 0.0
  %347 = vmatpush1.msra.mxu0 0.0
  %348 = vmatprep.subr.mxu0 0.0
  %349 = vmatpush1.msra.mxu0 %v289
  %350 = vmatprep.subr.mxu0 0.0
  %351 = vmatpush1.msra.mxu0 %v287
  %352 = vmatprep.subr.mxu0 0.0
  %353 = vmatpush1.msra.mxu0 %v281
  %354 = vmatprep.subr.mxu0 0.0
  %355 = vmatpush1.msra.mxu0 %v276
  %356 = vmatprep.subr.mxu0 0.0
  %357 = vmatpush2.msra.mxu0 0.0
  %358 = vmatprep.subr.mxu0 0.0
  %359 = vmatpush2.msra.mxu0 0.0
  %360 = vmatprep.subr.mxu0 0.0
  %361 = vmatpush2.msra.mxu0 0.0
  %362 = vmatprep.subr.mxu0 0.0
  %363 = vmatpush2.msra.mxu0 0.0
  %364 = vmatprep.subr.mxu0 0.0
  %365 = vmatpush2.msra.mxu0 0.0
  %366 = vmatprep.subr.mxu0 0.0
  %367 = vmatpush2.msra.mxu0 0.0
  %368 = vmatprep.subr.mxu0 0.0
  %369 = vmatpush2.msra.mxu0 0.0
  %370 = vmatprep.subr.mxu0 0.0
  %371 = vmatpush2.msra.mxu0 0.0
  %372 = vmatprep.subr.mxu0 0.0
  %373 = vmatpush2.msra.mxu0 0.0
  %374 = vmatprep.subr.mxu0 0.0
  %375 = vmatpush2.msra.mxu0 0.0
  %376 = vmatprep.subr.mxu0 0.0
  %377 = vmatpush2.msra.mxu0 0.0
  %378 = vmatprep.subr.mxu0 0.0
  %379 = vmatpush2.msra.mxu0 0.0
  %380 = vmatprep.subr.mxu0 0.0
  %381 = vmatpush2.msra.mxu0 0.0
  %382 = vmatprep.subr.mxu0 0.0
  %383 = vmatpush2.msra.mxu0 0.0
  %384 = vmatprep.subr.mxu0 0.0
  %385 = vmatpush2.msra.mxu0 0.0
  %386 = vmatprep.subr.mxu0 0.0
  %387 = vmatpush2.msra.mxu0 0.0
  %388 = vmatprep.mubr.f32.mxu0 0.0
  %389 = vmatmul.mubr.f32.gmra.mxu0 %v301
  %v390 = vpop.f32.mrf.mxu0
  %v391 = vadd.f32 %v297, %v390
  %v392 = vpop.f32.mrf.mxu0
  %393 = vmatprep.mubr.f32.mxu0 0.0
  %394 = vmatmul.mubr.f32.gmra.mxu0 %v304
  %v395 = vpop.f32.mrf.mxu0
  %v396 = vadd.f32 %v297, %v395
  %v397 = vpop.f32.mrf.mxu0
  %398 = vmatprep.mubr.f32.mxu0 0.0
  %399 = vmatmul.mubr.f32.gmra.mxu0 %v307
  %v400 = vpop.f32.mrf.mxu0
  %v401 = vadd.f32 %v297, %v400
  %v402 = vpop.f32.mrf.mxu0
  %403 = vmatprep.mubr.f32.mxu0 0.0
  %404 = vmatmul.mubr.f32.gmra.mxu0 %v310
  %v405 = vpop.f32.mrf.mxu0
  %v406 = vadd.f32 %v297, %v405
  %v407 = vpop.f32.mrf.mxu0
  %408 = vmatprep.mubr.f32.mxu0 0.0
  %409 = vmatmul.mubr.f32.gmra.mxu0 %v313
  %v410 = vpop.f32.mrf.mxu0
  %v411 = vadd.f32 %v297, %v410
  %v412 = vpop.f32.mrf.mxu0
  %413 = vmatprep.mubr.f32.mxu0 0.0
  %414 = vmatmul.mubr.f32.gmra.mxu0 %v316
  %v415 = vpop.f32.mrf.mxu0
  %v416 = vadd.f32 %v297, %v415
  %v417 = vpop.f32.mrf.mxu0
  %418 = vmatprep.mubr.f32.mxu0 0.0
  %419 = vmatmul.mubr.f32.gmra.mxu0 %v319
  %v420 = vpop.f32.mrf.mxu0
  %v421 = vadd.f32 %v297, %v420
  %v422 = vpop.f32.mrf.mxu0
  %423 = vmatprep.mubr.f32.mxu0 0.0
  %424 = vmatmul.mubr.f32.gmra.mxu0 %v322
  %v425 = vpop.f32.mrf.mxu0
  %v426 = vadd.f32 %v297, %v425
  %v427 = vpop.f32.mrf.mxu0
  %428 = vdwg.mxu0
  %v429 = vmul.f32 %v391, %v391
  %v430 = vmul.f32 %v396, %v396
  %v431 = vmul.f32 %v401, %v401
  %v432 = vmul.f32 %v406, %v406
  %v433 = vmul.f32 %v411, %v411
  %v434 = vmul.f32 %v416, %v416
  %v435 = vmul.f32 %v421, %v421
  %v436 = vmul.f32 %v426, %v426
  %445 = vrot.lane.b32.xlu0 %v429, 16
  %v446 = vpop.permute.xlu0 %445
  %447 = vrot.lane.b32.xlu0 %v430, 16
  %v448 = vpop.permute.xlu0 %447
  %449 = vrot.lane.b32.xlu0 %v431, 16
  %v450 = vpop.permute.xlu0 %449
  %451 = vrot.lane.b32.xlu0 %v432, 16
  %v452 = vpop.permute.xlu0 %451
  %453 = vrot.lane.b32.xlu0 %v433, 16
  %v454 = vpop.permute.xlu0 %453
  %455 = vrot.lane.b32.xlu0 %v434, 16
  %v456 = vpop.permute.xlu0 %455
  %457 = vrot.lane.b32.xlu0 %v435, 16
  %v458 = vpop.permute.xlu0 %457
  %459 = vrot.lane.b32.xlu0 %v436, 16
  %v460 = vpop.permute.xlu0 %459
  %v469 = vsel %vm202, %v391, %v446
  %v470 = vsel %vm202, %v396, %v448
  %v471 = vsel %vm202, %v401, %v450
  %v472 = vsel %vm202, %v406, %v452
  %v473 = vsel %vm202, %v411, %v454
  %v474 = vsel %vm202, %v416, %v456
  %v475 = vsel %vm202, %v421, %v458
  %v476 = vsel %vm202, %v426, %v460
  %vm477 = vcmask 523264
  %v479 = vsel %vm477, %v146, 0
  %v482 = vsel %vm477, %v147, 0
  %484 = vmatprep.subr.mxu0 0.0
  %485 = vmatpush1.msra.mxu0 0.0
  %486 = vmatprep.subr.mxu0 0.0
  %487 = vmatpush1.msra.mxu0 0.0
  %488 = vmatprep.subr.mxu0 0.0
  %489 = vmatpush1.msra.mxu0 0.0
  %490 = vmatprep.subr.mxu0 0.0
  %491 = vmatpush1.msra.mxu0 0.0
  %492 = vmatprep.subr.mxu0 0.0
  %493 = vmatpush1.msra.mxu0 0.0
  %494 = vmatprep.subr.mxu0 0.0
  %495 = vmatpush1.msra.mxu0 0.0
  %496 = vmatprep.subr.mxu0 0.0
  %497 = vmatpush1.msra.mxu0 0.0
  %498 = vmatprep.subr.mxu0 0.0
  %499 = vmatpush1.msra.mxu0 0.0
  %500 = vmatprep.subr.mxu0 0.0
  %501 = vmatpush1.msra.mxu0 %v476
  %502 = vmatprep.subr.mxu0 0.0
  %503 = vmatpush1.msra.mxu0 %v475
  %504 = vmatprep.subr.mxu0 0.0
  %505 = vmatpush1.msra.mxu0 %v474
  %506 = vmatprep.subr.mxu0 0.0
  %507 = vmatpush1.msra.mxu0 %v473
  %508 = vmatprep.subr.mxu0 0.0
  %509 = vmatpush1.msra.mxu0 %v472
  %510 = vmatprep.subr.mxu0 0.0
  %511 = vmatpush1.msra.mxu0 %v471
  %512 = vmatprep.subr.mxu0 0.0
  %513 = vmatpush1.msra.mxu0 %v470
  %514 = vmatprep.subr.mxu0 0.0
  %515 = vmatpush1.msra.mxu0 %v469
  %516 = vmatprep.subr.mxu0 0.0
  %517 = vmatpush2.msra.mxu0 0.0
  %518 = vmatprep.subr.mxu0 0.0
  %519 = vmatpush2.msra.mxu0 0.0
  %520 = vmatprep.subr.mxu0 0.0
  %521 = vmatpush2.msra.mxu0 0.0
  %522 = vmatprep.subr.mxu0 0.0
  %523 = vmatpush2.msra.mxu0 0.0
  %524 = vmatprep.subr.mxu0 0.0
  %525 = vmatpush2.msra.mxu0 0.0
  %526 = vmatprep.subr.mxu0 0.0
  %527 = vmatpush2.msra.mxu0 0.0
  %528 = vmatprep.subr.mxu0 0.0
  %529 = vmatpush2.msra.mxu0 0.0
  %530 = vmatprep.subr.mxu0 0.0
  %531 = vmatpush2.msra.mxu0 0.0
  %532 = vmatprep.subr.mxu0 0.0
  %533 = vmatpush2.msra.mxu0 0.0
  %534 = vmatprep.subr.mxu0 0.0
  %535 = vmatpush2.msra.mxu0 0.0
  %536 = vmatprep.subr.mxu0 0.0
  %537 = vmatpush2.msra.mxu0 0.0
  %538 = vmatprep.subr.mxu0 0.0
  %539 = vmatpush2.msra.mxu0 0.0
  %540 = vmatprep.subr.mxu0 0.0
  %541 = vmatpush2.msra.mxu0 0.0
  %542 = vmatprep.subr.mxu0 0.0
  %543 = vmatpush2.msra.mxu0 0.0
  %544 = vmatprep.subr.mxu0 0.0
  %545 = vmatpush2.msra.mxu0 0.0
  %546 = vmatprep.subr.mxu0 0.0
  %547 = vmatpush2.msra.mxu0 0.0
  %548 = vmatprep.mubr.f32.mxu0 0.0
  %549 = vmatmul.mubr.f32.gmra.mxu0 %v479
  %v550 = vpop.f32.mrf.mxu0
  %v551 = vadd.f32 0.0, %v550
  %v552 = vpop.f32.mrf.mxu0
  %553 = vmatprep.mubr.f32.mxu0 0.0
  %554 = vmatmul.mubr.f32.gmra.mxu0 %v482
  %v555 = vpop.f32.mrf.mxu0
  %v556 = vadd.f32 0.0, %v555
  %v557 = vpop.f32.mrf.mxu0
  %558 = vdwg.mxu0
  %560 = vset.pattern.permute.xlu0 0
  %561 = vperm.xlu0 %560, %v161
  %v562 = vpop.permute.xlu0 %561
  %565 = vset.pattern.permute.xlu0 0
  %566 = vperm.xlu0 %565, %v163
  %v567 = vpop.permute.xlu0 %566
  %v569 = vmul.f32 %v551, %v562
  %v570 = vmul.f32 %v556, %v567
  %v571 = vmul.f32 %v569, %v569
  %v572 = vmul.f32 %v570, %v570
  %575 = vrot.lane.b32.xlu0 %v571, 16
  %v576 = vpop.permute.xlu0 %575
  %577 = vrot.lane.b32.xlu0 %v572, 16
  %v578 = vpop.permute.xlu0 %577
  %v581 = vsub.f32 %v569, %v576
  %v582 = vsub.f32 %v570, %v578
  %v583 = vmax.f32 %v581, 0.0
  %v584 = vmax.f32 %v582, 0.0
  %v585 = vadd.f32 %v583, 1e-05
  %v586 = vadd.f32 %v584, 1e-05
  %v587 = vrsqrt.pop %v585
  %v588 = vmul.f32 %v585, %v587
  %vm589 = vcmp.eq.f32.partialorder %v585, inf
  %v590 = vsel %vm589, %v585, %v588
  %vm591 = vcmp.eq.f32.partialorder %v585, 0.0
  %v592 = vand.u32 %v585, 2147483648
  %v593 = vsel %vm591, %v592, %v590
  %v594 = vrsqrt.pop %v586
  %v595 = vmul.f32 %v586, %v594
  %vm596 = vcmp.eq.f32.partialorder %v586, inf
  %v597 = vsel %vm596, %v586, %v595
  %vm598 = vcmp.eq.f32.partialorder %v586, 0.0
  %v599 = vand.u32 %v586, 2147483648
  %v600 = vsel %vm598, %v599, %v597
  %v601 = vsub.f32 0.0, %v391
  %v602 = vsub.f32 0.0, %v396
  %v603 = vsub.f32 0.0, %v401
  %v604 = vsub.f32 0.0, %v406
  %v605 = vsub.f32 0.0, %v411
  %v606 = vsub.f32 0.0, %v416
  %v607 = vsub.f32 0.0, %v421
  %v608 = vsub.f32 0.0, %v426
  %617 = vrot.lane.b32.xlu0 %v601, 16
  %v618 = vpop.permute.xlu0 %617
  %619 = vrot.lane.b32.xlu0 %v602, 16
  %v620 = vpop.permute.xlu0 %619
  %621 = vrot.lane.b32.xlu0 %v603, 16
  %v622 = vpop.permute.xlu0 %621
  %623 = vrot.lane.b32.xlu0 %v604, 16
  %v624 = vpop.permute.xlu0 %623
  %625 = vrot.lane.b32.xlu0 %v605, 16
  %v626 = vpop.permute.xlu0 %625
  %627 = vrot.lane.b32.xlu0 %v606, 16
  %v628 = vpop.permute.xlu0 %627
  %629 = vrot.lane.b32.xlu0 %v607, 16
  %v630 = vpop.permute.xlu0 %629
  %631 = vrot.lane.b32.xlu0 %v608, 16
  %v632 = vpop.permute.xlu0 %631
  %v641 = vsel %vm202, %v391, %v618
  %v642 = vsel %vm202, %v396, %v620
  %v643 = vsel %vm202, %v401, %v622
  %v644 = vsel %vm202, %v406, %v624
  %v645 = vsel %vm202, %v411, %v626
  %v646 = vsel %vm202, %v416, %v628
  %v647 = vsel %vm202, %v421, %v630
  %v648 = vsel %vm202, %v426, %v632
  %v650 = vcombine.high %v641, %v641
  %v652 = vunpack.c.l.s4 1966171168
  %v653 = vunpack.c.0.s8 %v652
  %v654 = vlaneseq
  %v655 = vshrl.u32 %v654, 7
  %v656 = vsub.s32 %v653, %v655
  %v657 = vrot.slane %v641, %v656
  %v659 = vunpack.c.l.s4 1966171168
  %v660 = vunpack.c.0.s8 %v659
  %v661 = vlaneseq
  %v662 = vshrl.u32 %v661, 7
  %v663 = vsub.s32 %v660, %v662
  %v664 = vrot.slane %v650, %v663
  %v665 = vcombine.high %v657, %v657
  %v666 = vcombine.high %v664, %v664
  %v668 = vunpack.c.l.s4 1966171168
  %v669 = vunpack.c.0.s8 %v668
  %v670 = vlaneseq
  %v671 = vshrl.u32 %v670, 7
  %v672 = vsub.s32 %v669, %v671
  %v673 = vrot.slane %v657, %v672
  %v675 = vunpack.c.l.s4 1966171168
  %v676 = vunpack.c.0.s8 %v675
  %v677 = vlaneseq
  %v678 = vshrl.u32 %v677, 7
  %v679 = vsub.s32 %v676, %v678
  %v680 = vrot.slane %v664, %v679
  %v682 = vunpack.c.l.s4 1966171168
  %v683 = vunpack.c.0.s8 %v682
  %v684 = vlaneseq
  %v685 = vshrl.u32 %v684, 7
  %v686 = vsub.s32 %v683, %v685
  %v687 = vrot.slane %v665, %v686
  %v689 = vunpack.c.l.s4 1966171168
  %v690 = vunpack.c.0.s8 %v689
  %v691 = vlaneseq
  %v692 = vshrl.u32 %v691, 7
  %v693 = vsub.s32 %v690, %v692
  %v694 = vrot.slane %v666, %v693
  %v695 = vcombine.high %v673, %v673
  %v696 = vcombine.high %v680, %v680
  %v697 = vcombine.high %v687, %v687
  %v698 = vcombine.high %v694, %v694
  %v699 = vlaneseq
  %v700 = vshrl.u32 %v699, 7
  %v701 = vsub.s32 0, %v700
  %v702 = vrot.slane %v192, %v701
  %704 = vbcast.lane.b32.xlu0 %v702, 256
  %v705 = vpop.permute.xlu0 %704
  %s707 = sor.u32 256, 8
  %708 = vbcast.lane.b32.xlu0 %v702, %s707
  %v709 = vpop.permute.xlu0 %708
  %v710 = vlaneseq
  %v711 = vshrl.u32 %v710, 7
  %v712 = vsub.s32 1, %v711
  %v713 = vrot.slane %v192, %v712
  %715 = vbcast.lane.b32.xlu0 %v713, 256
  %v716 = vpop.permute.xlu0 %715
  %s718 = sor.u32 256, 8
  %719 = vbcast.lane.b32.xlu0 %v713, %s718
  %v720 = vpop.permute.xlu0 %719
  %v721 = vlaneseq
  %v722 = vshrl.u32 %v721, 7
  %v723 = vsub.s32 2, %v722
  %v724 = vrot.slane %v192, %v723
  %726 = vbcast.lane.b32.xlu0 %v724, 256
  %v727 = vpop.permute.xlu0 %726
  %s729 = sor.u32 256, 8
  %730 = vbcast.lane.b32.xlu0 %v724, %s729
  %v731 = vpop.permute.xlu0 %730
  %v732 = vlaneseq
  %v733 = vshrl.u32 %v732, 7
  %v734 = vsub.s32 3, %v733
  %v735 = vrot.slane %v192, %v734
  %737 = vbcast.lane.b32.xlu0 %v735, 256
  %v738 = vpop.permute.xlu0 %737
  %s740 = sor.u32 256, 8
  %741 = vbcast.lane.b32.xlu0 %v735, %s740
  %v742 = vpop.permute.xlu0 %741
  %v743 = vlaneseq
  %v744 = vshrl.u32 %v743, 7
  %v745 = vsub.s32 4, %v744
  %v746 = vrot.slane %v192, %v745
  %748 = vbcast.lane.b32.xlu0 %v746, 256
  %v749 = vpop.permute.xlu0 %748
  %s751 = sor.u32 256, 8
  %752 = vbcast.lane.b32.xlu0 %v746, %s751
  %v753 = vpop.permute.xlu0 %752
  %v754 = vlaneseq
  %v755 = vshrl.u32 %v754, 7
  %v756 = vsub.s32 5, %v755
  %v757 = vrot.slane %v192, %v756
  %759 = vbcast.lane.b32.xlu0 %v757, 256
  %v760 = vpop.permute.xlu0 %759
  %s762 = sor.u32 256, 8
  %763 = vbcast.lane.b32.xlu0 %v757, %s762
  %v764 = vpop.permute.xlu0 %763
  %v765 = vlaneseq
  %v766 = vshrl.u32 %v765, 7
  %v767 = vsub.s32 6, %v766
  %v768 = vrot.slane %v192, %v767
  %770 = vbcast.lane.b32.xlu0 %v768, 256
  %v771 = vpop.permute.xlu0 %770
  %s773 = sor.u32 256, 8
  %774 = vbcast.lane.b32.xlu0 %v768, %s773
  %v775 = vpop.permute.xlu0 %774
  %v776 = vlaneseq
  %v777 = vshrl.u32 %v776, 7
  %v778 = vsub.s32 7, %v777
  %v779 = vrot.slane %v192, %v778
  %781 = vbcast.lane.b32.xlu0 %v779, 256
  %v782 = vpop.permute.xlu0 %781
  %s784 = sor.u32 256, 8
  %785 = vbcast.lane.b32.xlu0 %v779, %s784
  %v786 = vpop.permute.xlu0 %785
  %v787 = vlaneseq
  %v788 = vshrl.u32 %v787, 7
  %v789 = vsub.s32 0, %v788
  %v790 = vrot.slane %v673, %v789
  %v791 = vlaneseq
  %v792 = vshrl.u32 %v791, 7
  %v793 = vsub.s32 0, %v792
  %v794 = vrot.slane %v687, %v793
  %v795 = vlaneseq
  %v796 = vshrl.u32 %v795, 7
  %v797 = vsub.s32 0, %v796
  %v798 = vrot.slane %v695, %v797
  %v799 = vlaneseq
  %v800 = vshrl.u32 %v799, 7
  %v801 = vsub.s32 0, %v800
  %v802 = vrot.slane %v697, %v801
  %v803 = vlaneseq
  %v804 = vshrl.u32 %v803, 7
  %v805 = vsub.s32 0, %v804
  %v806 = vrot.slane %v680, %v805
  %v807 = vlaneseq
  %v808 = vshrl.u32 %v807, 7
  %v809 = vsub.s32 0, %v808
  %v810 = vrot.slane %v694, %v809
  %v811 = vlaneseq
  %v812 = vshrl.u32 %v811, 7
  %v813 = vsub.s32 0, %v812
  %v814 = vrot.slane %v696, %v813
  %v815 = vlaneseq
  %v816 = vshrl.u32 %v815, 7
  %v817 = vsub.s32 0, %v816
  %v818 = vrot.slane %v698, %v817
  %v827 = vadd.f32 %v790, %v705
  %v828 = vadd.f32 %v790, %v709
  %v829 = vadd.f32 %v794, %v716
  %v830 = vadd.f32 %v794, %v720
  %v831 = vadd.f32 %v798, %v727
  %v832 = vadd.f32 %v798, %v731
  %v833 = vadd.f32 %v802, %v738
  %v834 = vadd.f32 %v802, %v742
  %v835 = vadd.f32 %v806, %v749
  %v836 = vadd.f32 %v806, %v753
  %v837 = vadd.f32 %v810, %v760
  %v838 = vadd.f32 %v810, %v764
  %v839 = vadd.f32 %v814, %v771
  %v840 = vadd.f32 %v814, %v775
  %v841 = vadd.f32 %v818, %v782
  %v842 = vadd.f32 %v818, %v786
  %v843 = vsel %vm299, %v827, -inf
  %v844 = vsel %vm299, %v829, -inf
  %v845 = vsel %vm299, %v831, -inf
  %v846 = vmax.f32 %v843, %v845
  %v847 = vsel %vm299, %v833, -inf
  %v848 = vmax.f32 %v844, %v847
  %v849 = vsel %vm299, %v835, -inf
  %v850 = vmax.f32 %v846, %v849
  %v851 = vsel %vm299, %v837, -inf
  %v852 = vmax.f32 %v848, %v851
  %v853 = vsel %vm299, %v839, -inf
  %v854 = vmax.f32 %v850, %v853
  %v855 = vsel %vm299, %v841, -inf
  %v856 = vmax.f32 %v852, %v855
  %v857 = vmax.f32 %v854, %v856
  %v858 = vsel %vm299, %v828, -inf
  %v859 = vsel %vm299, %v830, -inf
  %v860 = vsel %vm299, %v832, -inf
  %v861 = vmax.f32 %v858, %v860
  %v862 = vsel %vm299, %v834, -inf
  %v863 = vmax.f32 %v859, %v862
  %v864 = vsel %vm299, %v836, -inf
  %v865 = vmax.f32 %v861, %v864
  %v866 = vsel %vm299, %v838, -inf
  %v867 = vmax.f32 %v863, %v866
  %v868 = vsel %vm299, %v840, -inf
  %v869 = vmax.f32 %v865, %v868
  %v870 = vsel %vm299, %v842, -inf
  %v871 = vmax.f32 %v867, %v870
  %v872 = vmax.f32 %v869, %v871
  %v874 = vcombine.high %v642, %v642
  %v876 = vunpack.c.l.s4 1966171168
  %v877 = vunpack.c.0.s8 %v876
  %v878 = vlaneseq
  %v879 = vshrl.u32 %v878, 7
  %v880 = vsub.s32 %v877, %v879
  %v881 = vrot.slane %v642, %v880
  %v883 = vunpack.c.l.s4 1966171168
  %v884 = vunpack.c.0.s8 %v883
  %v885 = vlaneseq
  %v886 = vshrl.u32 %v885, 7
  %v887 = vsub.s32 %v884, %v886
  %v888 = vrot.slane %v874, %v887
  %v889 = vcombine.high %v881, %v881
  %v890 = vcombine.high %v888, %v888
  %v892 = vunpack.c.l.s4 1966171168
  %v893 = vunpack.c.0.s8 %v892
  %v894 = vlaneseq
  %v895 = vshrl.u32 %v894, 7
  %v896 = vsub.s32 %v893, %v895
  %v897 = vrot.slane %v881, %v896
  %v899 = vunpack.c.l.s4 1966171168
  %v900 = vunpack.c.0.s8 %v899
  %v901 = vlaneseq
  %v902 = vshrl.u32 %v901, 7
  %v903 = vsub.s32 %v900, %v902
  %v904 = vrot.slane %v888, %v903
  %v906 = vunpack.c.l.s4 1966171168
  %v907 = vunpack.c.0.s8 %v906
  %v908 = vlaneseq
  %v909 = vshrl.u32 %v908, 7
  %v910 = vsub.s32 %v907, %v909
  %v911 = vrot.slane %v889, %v910
  %v913 = vunpack.c.l.s4 1966171168
  %v914 = vunpack.c.0.s8 %v913
  %v915 = vlaneseq
  %v916 = vshrl.u32 %v915, 7
  %v917 = vsub.s32 %v914, %v916
  %v918 = vrot.slane %v890, %v917
  %v919 = vcombine.high %v897, %v897
  %v920 = vcombine.high %v904, %v904
  %v921 = vcombine.high %v911, %v911
  %v922 = vcombine.high %v918, %v918
  %v923 = vlaneseq
  %v924 = vshrl.u32 %v923, 7
  %v925 = vsub.s32 0, %v924
  %v926 = vrot.slane %v193, %v925
  %928 = vbcast.lane.b32.xlu0 %v926, 256
  %v929 = vpop.permute.xlu0 %928
  %s931 = sor.u32 256, 8
  %932 = vbcast.lane.b32.xlu0 %v926, %s931
  %v933 = vpop.permute.xlu0 %932
  %v934 = vlaneseq
  %v935 = vshrl.u32 %v934, 7
  %v936 = vsub.s32 1, %v935
  %v937 = vrot.slane %v193, %v936
  %939 = vbcast.lane.b32.xlu0 %v937, 256
  %v940 = vpop.permute.xlu0 %939
  %s942 = sor.u32 256, 8
  %943 = vbcast.lane.b32.xlu0 %v937, %s942
  %v944 = vpop.permute.xlu0 %943
  %v945 = vlaneseq
  %v946 = vshrl.u32 %v945, 7
  %v947 = vsub.s32 2, %v946
  %v948 = vrot.slane %v193, %v947
  %950 = vbcast.lane.b32.xlu0 %v948, 256
  %v951 = vpop.permute.xlu0 %950
  %s953 = sor.u32 256, 8
  %954 = vbcast.lane.b32.xlu0 %v948, %s953
  %v955 = vpop.permute.xlu0 %954
  %v956 = vlaneseq
  %v957 = vshrl.u32 %v956, 7
  %v958 = vsub.s32 3, %v957
  %v959 = vrot.slane %v193, %v958
  %961 = vbcast.lane.b32.xlu0 %v959, 256
  %v962 = vpop.permute.xlu0 %961
  %s964 = sor.u32 256, 8
  %965 = vbcast.lane.b32.xlu0 %v959, %s964
  %v966 = vpop.permute.xlu0 %965
  %v967 = vlaneseq
  %v968 = vshrl.u32 %v967, 7
  %v969 = vsub.s32 4, %v968
  %v970 = vrot.slane %v193, %v969
  %972 = vbcast.lane.b32.xlu0 %v970, 256
  %v973 = vpop.permute.xlu0 %972
  %s975 = sor.u32 256, 8
  %976 = vbcast.lane.b32.xlu0 %v970, %s975
  %v977 = vpop.permute.xlu0 %976
  %v978 = vlaneseq
  %v979 = vshrl.u32 %v978, 7
  %v980 = vsub.s32 5, %v979
  %v981 = vrot.slane %v193, %v980
  %983 = vbcast.lane.b32.xlu0 %v981, 256
  %v984 = vpop.permute.xlu0 %983
  %s986 = sor.u32 256, 8
  %987 = vbcast.lane.b32.xlu0 %v981, %s986
  %v988 = vpop.permute.xlu0 %987
  %v989 = vlaneseq
  %v990 = vshrl.u32 %v989, 7
  %v991 = vsub.s32 6, %v990
  %v992 = vrot.slane %v193, %v991
  %994 = vbcast.lane.b32.xlu0 %v992, 256
  %v995 = vpop.permute.xlu0 %994
  %s997 = sor.u32 256, 8
  %998 = vbcast.lane.b32.xlu0 %v992, %s997
  %v999 = vpop.permute.xlu0 %998
  %v1000 = vlaneseq
  %v1001 = vshrl.u32 %v1000, 7
  %v1002 = vsub.s32 7, %v1001
  %v1003 = vrot.slane %v193, %v1002
  %1005 = vbcast.lane.b32.xlu0 %v1003, 256
  %v1006 = vpop.permute.xlu0 %1005
  %s1008 = sor.u32 256, 8
  %1009 = vbcast.lane.b32.xlu0 %v1003, %s1008
  %v1010 = vpop.permute.xlu0 %1009
  %v1011 = vlaneseq
  %v1012 = vshrl.u32 %v1011, 7
  %v1013 = vsub.s32 0, %v1012
  %v1014 = vrot.slane %v897, %v1013
  %v1015 = vlaneseq
  %v1016 = vshrl.u32 %v1015, 7
  %v1017 = vsub.s32 0, %v1016
  %v1018 = vrot.slane %v911, %v1017
  %v1019 = vlaneseq
  %v1020 = vshrl.u32 %v1019, 7
  %v1021 = vsub.s32 0, %v1020
  %v1022 = vrot.slane %v919, %v1021
  %v1023 = vlaneseq
  %v1024 = vshrl.u32 %v1023, 7
  %v1025 = vsub.s32 0, %v1024
  %v1026 = vrot.slane %v921, %v1025
  %v1027 = vlaneseq
  %v1028 = vshrl.u32 %v1027, 7
  %v1029 = vsub.s32 0, %v1028
  %v1030 = vrot.slane %v904, %v1029
  %v1031 = vlaneseq
  %v1032 = vshrl.u32 %v1031, 7
  %v1033 = vsub.s32 0, %v1032
  %v1034 = vrot.slane %v918, %v1033
  %v1035 = vlaneseq
  %v1036 = vshrl.u32 %v1035, 7
  %v1037 = vsub.s32 0, %v1036
  %v1038 = vrot.slane %v920, %v1037
  %v1039 = vlaneseq
  %v1040 = vshrl.u32 %v1039, 7
  %v1041 = vsub.s32 0, %v1040
  %v1042 = vrot.slane %v922, %v1041
  %v1051 = vadd.f32 %v1014, %v929
  %v1052 = vadd.f32 %v1014, %v933
  %v1053 = vadd.f32 %v1018, %v940
  %v1054 = vadd.f32 %v1018, %v944
  %v1055 = vadd.f32 %v1022, %v951
  %v1056 = vadd.f32 %v1022, %v955
  %v1057 = vadd.f32 %v1026, %v962
  %v1058 = vadd.f32 %v1026, %v966
  %v1059 = vadd.f32 %v1030, %v973
  %v1060 = vadd.f32 %v1030, %v977
  %v1061 = vadd.f32 %v1034, %v984
  %v1062 = vadd.f32 %v1034, %v988
  %v1063 = vadd.f32 %v1038, %v995
  %v1064 = vadd.f32 %v1038, %v999
  %v1065 = vadd.f32 %v1042, %v1006
  %v1066 = vadd.f32 %v1042, %v1010
  %v1067 = vsel %vm299, %v1051, -inf
  %v1068 = vsel %vm299, %v1053, -inf
  %v1069 = vsel %vm299, %v1055, -inf
  %v1070 = vmax.f32 %v1067, %v1069
  %v1071 = vsel %vm299, %v1057, -inf
  %v1072 = vmax.f32 %v1068, %v1071
  %v1073 = vsel %vm299, %v1059, -inf
  %v1074 = vmax.f32 %v1070, %v1073
  %v1075 = vsel %vm299, %v1061, -inf
  %v1076 = vmax.f32 %v1072, %v1075
  %v1077 = vsel %vm299, %v1063, -inf
  %v1078 = vmax.f32 %v1074, %v1077
  %v1079 = vsel %vm299, %v1065, -inf
  %v1080 = vmax.f32 %v1076, %v1079
  %v1081 = vmax.f32 %v1078, %v1080
  %v1082 = vsel %vm299, %v1052, -inf
  %v1083 = vsel %vm299, %v1054, -inf
  %v1084 = vsel %vm299, %v1056, -inf
  %v1085 = vmax.f32 %v1082, %v1084
  %v1086 = vsel %vm299, %v1058, -inf
  %v1087 = vmax.f32 %v1083, %v1086
  %v1088 = vsel %vm299, %v1060, -inf
  %v1089 = vmax.f32 %v1085, %v1088
  %v1090 = vsel %vm299, %v1062, -inf
  %v1091 = vmax.f32 %v1087, %v1090
  %v1092 = vsel %vm299, %v1064, -inf
  %v1093 = vmax.f32 %v1089, %v1092
  %v1094 = vsel %vm299, %v1066, -inf
  %v1095 = vmax.f32 %v1091, %v1094
  %v1096 = vmax.f32 %v1093, %v1095
  %v1097 = vmax.f32 %v857, %v1081
  %v1098 = vmax.f32 %v872, %v1096
  %v1100 = vcombine.high %v643, %v643
  %v1102 = vunpack.c.l.s4 1966171168
  %v1103 = vunpack.c.0.s8 %v1102
  %v1104 = vlaneseq
  %v1105 = vshrl.u32 %v1104, 7
  %v1106 = vsub.s32 %v1103, %v1105
  %v1107 = vrot.slane %v643, %v1106
  %v1109 = vunpack.c.l.s4 1966171168
  %v1110 = vunpack.c.0.s8 %v1109
  %v1111 = vlaneseq
  %v1112 = vshrl.u32 %v1111, 7
  %v1113 = vsub.s32 %v1110, %v1112
  %v1114 = vrot.slane %v1100, %v1113
  %v1115 = vcombine.high %v1107, %v1107
  %v1116 = vcombine.high %v1114, %v1114
  %v1118 = vunpack.c.l.s4 1966171168
  %v1119 = vunpack.c.0.s8 %v1118
  %v1120 = vlaneseq
  %v1121 = vshrl.u32 %v1120, 7
  %v1122 = vsub.s32 %v1119, %v1121
  %v1123 = vrot.slane %v1107, %v1122
  %v1125 = vunpack.c.l.s4 1966171168
  %v1126 = vunpack.c.0.s8 %v1125
  %v1127 = vlaneseq
  %v1128 = vshrl.u32 %v1127, 7
  %v1129 = vsub.s32 %v1126, %v1128
  %v1130 = vrot.slane %v1114, %v1129
  %v1132 = vunpack.c.l.s4 1966171168
  %v1133 = vunpack.c.0.s8 %v1132
  %v1134 = vlaneseq
  %v1135 = vshrl.u32 %v1134, 7
  %v1136 = vsub.s32 %v1133, %v1135
  %v1137 = vrot.slane %v1115, %v1136
  %v1139 = vunpack.c.l.s4 1966171168
  %v1140 = vunpack.c.0.s8 %v1139
  %v1141 = vlaneseq
  %v1142 = vshrl.u32 %v1141, 7
  %v1143 = vsub.s32 %v1140, %v1142
  %v1144 = vrot.slane %v1116, %v1143
  %v1145 = vcombine.high %v1123, %v1123
  %v1146 = vcombine.high %v1130, %v1130
  %v1147 = vcombine.high %v1137, %v1137
  %v1148 = vcombine.high %v1144, %v1144
  %v1149 = vlaneseq
  %v1150 = vshrl.u32 %v1149, 7
  %v1151 = vsub.s32 0, %v1150
  %v1152 = vrot.slane %v194, %v1151
  %1154 = vbcast.lane.b32.xlu0 %v1152, 256
  %v1155 = vpop.permute.xlu0 %1154
  %s1157 = sor.u32 256, 8
  %1158 = vbcast.lane.b32.xlu0 %v1152, %s1157
  %v1159 = vpop.permute.xlu0 %1158
  %v1160 = vlaneseq
  %v1161 = vshrl.u32 %v1160, 7
  %v1162 = vsub.s32 1, %v1161
  %v1163 = vrot.slane %v194, %v1162
  %1165 = vbcast.lane.b32.xlu0 %v1163, 256
  %v1166 = vpop.permute.xlu0 %1165
  %s1168 = sor.u32 256, 8
  %1169 = vbcast.lane.b32.xlu0 %v1163, %s1168
  %v1170 = vpop.permute.xlu0 %1169
  %v1171 = vlaneseq
  %v1172 = vshrl.u32 %v1171, 7
  %v1173 = vsub.s32 2, %v1172
  %v1174 = vrot.slane %v194, %v1173
  %1176 = vbcast.lane.b32.xlu0 %v1174, 256
  %v1177 = vpop.permute.xlu0 %1176
  %s1179 = sor.u32 256, 8
  %1180 = vbcast.lane.b32.xlu0 %v1174, %s1179
  %v1181 = vpop.permute.xlu0 %1180
  %v1182 = vlaneseq
  %v1183 = vshrl.u32 %v1182, 7
  %v1184 = vsub.s32 3, %v1183
  %v1185 = vrot.slane %v194, %v1184
  %1187 = vbcast.lane.b32.xlu0 %v1185, 256
  %v1188 = vpop.permute.xlu0 %1187
  %s1190 = sor.u32 256, 8
  %1191 = vbcast.lane.b32.xlu0 %v1185, %s1190
  %v1192 = vpop.permute.xlu0 %1191
  %v1193 = vlaneseq
  %v1194 = vshrl.u32 %v1193, 7
  %v1195 = vsub.s32 4, %v1194
  %v1196 = vrot.slane %v194, %v1195
  %1198 = vbcast.lane.b32.xlu0 %v1196, 256
  %v1199 = vpop.permute.xlu0 %1198
  %s1201 = sor.u32 256, 8
  %1202 = vbcast.lane.b32.xlu0 %v1196, %s1201
  %v1203 = vpop.permute.xlu0 %1202
  %v1204 = vlaneseq
  %v1205 = vshrl.u32 %v1204, 7
  %v1206 = vsub.s32 5, %v1205
  %v1207 = vrot.slane %v194, %v1206
  %1209 = vbcast.lane.b32.xlu0 %v1207, 256
  %v1210 = vpop.permute.xlu0 %1209
  %s1212 = sor.u32 256, 8
  %1213 = vbcast.lane.b32.xlu0 %v1207, %s1212
  %v1214 = vpop.permute.xlu0 %1213
  %v1215 = vlaneseq
  %v1216 = vshrl.u32 %v1215, 7
  %v1217 = vsub.s32 6, %v1216
  %v1218 = vrot.slane %v194, %v1217
  %1220 = vbcast.lane.b32.xlu0 %v1218, 256
  %v1221 = vpop.permute.xlu0 %1220
  %s1223 = sor.u32 256, 8
  %1224 = vbcast.lane.b32.xlu0 %v1218, %s1223
  %v1225 = vpop.permute.xlu0 %1224
  %v1226 = vlaneseq
  %v1227 = vshrl.u32 %v1226, 7
  %v1228 = vsub.s32 7, %v1227
  %v1229 = vrot.slane %v194, %v1228
  %1231 = vbcast.lane.b32.xlu0 %v1229, 256
  %v1232 = vpop.permute.xlu0 %1231
  %s1234 = sor.u32 256, 8
  %1235 = vbcast.lane.b32.xlu0 %v1229, %s1234
  %v1236 = vpop.permute.xlu0 %1235
  %v1237 = vlaneseq
  %v1238 = vshrl.u32 %v1237, 7
  %v1239 = vsub.s32 0, %v1238
  %v1240 = vrot.slane %v1123, %v1239
  %v1241 = vlaneseq
  %v1242 = vshrl.u32 %v1241, 7
  %v1243 = vsub.s32 0, %v1242
  %v1244 = vrot.slane %v1137, %v1243
  %v1245 = vlaneseq
  %v1246 = vshrl.u32 %v1245, 7
  %v1247 = vsub.s32 0, %v1246
  %v1248 = vrot.slane %v1145, %v1247
  %v1249 = vlaneseq
  %v1250 = vshrl.u32 %v1249, 7
  %v1251 = vsub.s32 0, %v1250
  %v1252 = vrot.slane %v1147, %v1251
  %v1253 = vlaneseq
  %v1254 = vshrl.u32 %v1253, 7
  %v1255 = vsub.s32 0, %v1254
  %v1256 = vrot.slane %v1130, %v1255
  %v1257 = vlaneseq
  %v1258 = vshrl.u32 %v1257, 7
  %v1259 = vsub.s32 0, %v1258
  %v1260 = vrot.slane %v1144, %v1259
  %v1261 = vlaneseq
  %v1262 = vshrl.u32 %v1261, 7
  %v1263 = vsub.s32 0, %v1262
  %v1264 = vrot.slane %v1146, %v1263
  %v1265 = vlaneseq
  %v1266 = vshrl.u32 %v1265, 7
  %v1267 = vsub.s32 0, %v1266
  %v1268 = vrot.slane %v1148, %v1267
  %v1277 = vadd.f32 %v1240, %v1155
  %v1278 = vadd.f32 %v1240, %v1159
  %v1279 = vadd.f32 %v1244, %v1166
  %v1280 = vadd.f32 %v1244, %v1170
  %v1281 = vadd.f32 %v1248, %v1177
  %v1282 = vadd.f32 %v1248, %v1181
  %v1283 = vadd.f32 %v1252, %v1188
  %v1284 = vadd.f32 %v1252, %v1192
  %v1285 = vadd.f32 %v1256, %v1199
  %v1286 = vadd.f32 %v1256, %v1203
  %v1287 = vadd.f32 %v1260, %v1210
  %v1288 = vadd.f32 %v1260, %v1214
  %v1289 = vadd.f32 %v1264, %v1221
  %v1290 = vadd.f32 %v1264, %v1225
  %v1291 = vadd.f32 %v1268, %v1232
  %v1292 = vadd.f32 %v1268, %v1236
  %v1293 = vsel %vm299, %v1277, -inf
  %v1294 = vsel %vm299, %v1279, -inf
  %v1295 = vsel %vm299, %v1281, -inf
  %v1296 = vmax.f32 %v1293, %v1295
  %v1297 = vsel %vm299, %v1283, -inf
  %v1298 = vmax.f32 %v1294, %v1297
  %v1299 = vsel %vm299, %v1285, -inf
  %v1300 = vmax.f32 %v1296, %v1299
  %v1301 = vsel %vm299, %v1287, -inf
  %v1302 = vmax.f32 %v1298, %v1301
  %v1303 = vsel %vm299, %v1289, -inf
  %v1304 = vmax.f32 %v1300, %v1303
  %v1305 = vsel %vm299, %v1291, -inf
  %v1306 = vmax.f32 %v1302, %v1305
  %v1307 = vmax.f32 %v1304, %v1306
  %v1308 = vsel %vm299, %v1278, -inf
  %v1309 = vsel %vm299, %v1280, -inf
  %v1310 = vsel %vm299, %v1282, -inf
  %v1311 = vmax.f32 %v1308, %v1310
  %v1312 = vsel %vm299, %v1284, -inf
  %v1313 = vmax.f32 %v1309, %v1312
  %v1314 = vsel %vm299, %v1286, -inf
  %v1315 = vmax.f32 %v1311, %v1314
  %v1316 = vsel %vm299, %v1288, -inf
  %v1317 = vmax.f32 %v1313, %v1316
  %v1318 = vsel %vm299, %v1290, -inf
  %v1319 = vmax.f32 %v1315, %v1318
  %v1320 = vsel %vm299, %v1292, -inf
  %v1321 = vmax.f32 %v1317, %v1320
  %v1322 = vmax.f32 %v1319, %v1321
  %v1323 = vmax.f32 %v1097, %v1307
  %v1324 = vmax.f32 %v1098, %v1322
  %v1326 = vcombine.high %v644, %v644
  %v1328 = vunpack.c.l.s4 1966171168
  %v1329 = vunpack.c.0.s8 %v1328
  %v1330 = vlaneseq
  %v1331 = vshrl.u32 %v1330, 7
  %v1332 = vsub.s32 %v1329, %v1331
  %v1333 = vrot.slane %v644, %v1332
  %v1335 = vunpack.c.l.s4 1966171168
  %v1336 = vunpack.c.0.s8 %v1335
  %v1337 = vlaneseq
  %v1338 = vshrl.u32 %v1337, 7
  %v1339 = vsub.s32 %v1336, %v1338
  %v1340 = vrot.slane %v1326, %v1339
  %v1341 = vcombine.high %v1333, %v1333
  %v1342 = vcombine.high %v1340, %v1340
  %v1344 = vunpack.c.l.s4 1966171168
  %v1345 = vunpack.c.0.s8 %v1344
  %v1346 = vlaneseq
  %v1347 = vshrl.u32 %v1346, 7
  %v1348 = vsub.s32 %v1345, %v1347
  %v1349 = vrot.slane %v1333, %v1348
  %v1351 = vunpack.c.l.s4 1966171168
  %v1352 = vunpack.c.0.s8 %v1351
  %v1353 = vlaneseq
  %v1354 = vshrl.u32 %v1353, 7
  %v1355 = vsub.s32 %v1352, %v1354
  %v1356 = vrot.slane %v1340, %v1355
  %v1358 = vunpack.c.l.s4 1966171168
  %v1359 = vunpack.c.0.s8 %v1358
  %v1360 = vlaneseq
  %v1361 = vshrl.u32 %v1360, 7
  %v1362 = vsub.s32 %v1359, %v1361
  %v1363 = vrot.slane %v1341, %v1362
  %v1365 = vunpack.c.l.s4 1966171168
  %v1366 = vunpack.c.0.s8 %v1365
  %v1367 = vlaneseq
  %v1368 = vshrl.u32 %v1367, 7
  %v1369 = vsub.s32 %v1366, %v1368
  %v1370 = vrot.slane %v1342, %v1369
  %v1371 = vcombine.high %v1349, %v1349
  %v1372 = vcombine.high %v1356, %v1356
  %v1373 = vcombine.high %v1363, %v1363
  %v1374 = vcombine.high %v1370, %v1370
  %v1375 = vlaneseq
  %v1376 = vshrl.u32 %v1375, 7
  %v1377 = vsub.s32 0, %v1376
  %v1378 = vrot.slane %v195, %v1377
  %1380 = vbcast.lane.b32.xlu0 %v1378, 256
  %v1381 = vpop.permute.xlu0 %1380
  %s1383 = sor.u32 256, 8
  %1384 = vbcast.lane.b32.xlu0 %v1378, %s1383
  %v1385 = vpop.permute.xlu0 %1384
  %v1386 = vlaneseq
  %v1387 = vshrl.u32 %v1386, 7
  %v1388 = vsub.s32 1, %v1387
  %v1389 = vrot.slane %v195, %v1388
  %1391 = vbcast.lane.b32.xlu0 %v1389, 256
  %v1392 = vpop.permute.xlu0 %1391
  %s1394 = sor.u32 256, 8
  %1395 = vbcast.lane.b32.xlu0 %v1389, %s1394
  %v1396 = vpop.permute.xlu0 %1395
  %v1397 = vlaneseq
  %v1398 = vshrl.u32 %v1397, 7
  %v1399 = vsub.s32 2, %v1398
  %v1400 = vrot.slane %v195, %v1399
  %1402 = vbcast.lane.b32.xlu0 %v1400, 256
  %v1403 = vpop.permute.xlu0 %1402
  %s1405 = sor.u32 256, 8
  %1406 = vbcast.lane.b32.xlu0 %v1400, %s1405
  %v1407 = vpop.permute.xlu0 %1406
  %v1408 = vlaneseq
  %v1409 = vshrl.u32 %v1408, 7
  %v1410 = vsub.s32 3, %v1409
  %v1411 = vrot.slane %v195, %v1410
  %1413 = vbcast.lane.b32.xlu0 %v1411, 256
  %v1414 = vpop.permute.xlu0 %1413
  %s1416 = sor.u32 256, 8
  %1417 = vbcast.lane.b32.xlu0 %v1411, %s1416
  %v1418 = vpop.permute.xlu0 %1417
  %v1419 = vlaneseq
  %v1420 = vshrl.u32 %v1419, 7
  %v1421 = vsub.s32 4, %v1420
  %v1422 = vrot.slane %v195, %v1421
  %1424 = vbcast.lane.b32.xlu0 %v1422, 256
  %v1425 = vpop.permute.xlu0 %1424
  %s1427 = sor.u32 256, 8
  %1428 = vbcast.lane.b32.xlu0 %v1422, %s1427
  %v1429 = vpop.permute.xlu0 %1428
  %v1430 = vlaneseq
  %v1431 = vshrl.u32 %v1430, 7
  %v1432 = vsub.s32 5, %v1431
  %v1433 = vrot.slane %v195, %v1432
  %1435 = vbcast.lane.b32.xlu0 %v1433, 256
  %v1436 = vpop.permute.xlu0 %1435
  %s1438 = sor.u32 256, 8
  %1439 = vbcast.lane.b32.xlu0 %v1433, %s1438
  %v1440 = vpop.permute.xlu0 %1439
  %v1441 = vlaneseq
  %v1442 = vshrl.u32 %v1441, 7
  %v1443 = vsub.s32 6, %v1442
  %v1444 = vrot.slane %v195, %v1443
  %1446 = vbcast.lane.b32.xlu0 %v1444, 256
  %v1447 = vpop.permute.xlu0 %1446
  %s1449 = sor.u32 256, 8
  %1450 = vbcast.lane.b32.xlu0 %v1444, %s1449
  %v1451 = vpop.permute.xlu0 %1450
  %v1452 = vlaneseq
  %v1453 = vshrl.u32 %v1452, 7
  %v1454 = vsub.s32 7, %v1453
  %v1455 = vrot.slane %v195, %v1454
  %1457 = vbcast.lane.b32.xlu0 %v1455, 256
  %v1458 = vpop.permute.xlu0 %1457
  %s1460 = sor.u32 256, 8
  %1461 = vbcast.lane.b32.xlu0 %v1455, %s1460
  %v1462 = vpop.permute.xlu0 %1461
  %v1463 = vlaneseq
  %v1464 = vshrl.u32 %v1463, 7
  %v1465 = vsub.s32 0, %v1464
  %v1466 = vrot.slane %v1349, %v1465
  %v1467 = vlaneseq
  %v1468 = vshrl.u32 %v1467, 7
  %v1469 = vsub.s32 0, %v1468
  %v1470 = vrot.slane %v1363, %v1469
  %v1471 = vlaneseq
  %v1472 = vshrl.u32 %v1471, 7
  %v1473 = vsub.s32 0, %v1472
  %v1474 = vrot.slane %v1371, %v1473
  %v1475 = vlaneseq
  %v1476 = vshrl.u32 %v1475, 7
  %v1477 = vsub.s32 0, %v1476
  %v1478 = vrot.slane %v1373, %v1477
  %v1479 = vlaneseq
  %v1480 = vshrl.u32 %v1479, 7
  %v1481 = vsub.s32 0, %v1480
  %v1482 = vrot.slane %v1356, %v1481
  %v1483 = vlaneseq
  %v1484 = vshrl.u32 %v1483, 7
  %v1485 = vsub.s32 0, %v1484
  %v1486 = vrot.slane %v1370, %v1485
  %v1487 = vlaneseq
  %v1488 = vshrl.u32 %v1487, 7
  %v1489 = vsub.s32 0, %v1488
  %v1490 = vrot.slane %v1372, %v1489
  %v1491 = vlaneseq
  %v1492 = vshrl.u32 %v1491, 7
  %v1493 = vsub.s32 0, %v1492
  %v1494 = vrot.slane %v1374, %v1493
  %v1503 = vadd.f32 %v1466, %v1381
  %v1504 = vadd.f32 %v1466, %v1385
  %v1505 = vadd.f32 %v1470, %v1392
  %v1506 = vadd.f32 %v1470, %v1396
  %v1507 = vadd.f32 %v1474, %v1403
  %v1508 = vadd.f32 %v1474, %v1407
  %v1509 = vadd.f32 %v1478, %v1414
  %v1510 = vadd.f32 %v1478, %v1418
  %v1511 = vadd.f32 %v1482, %v1425
  %v1512 = vadd.f32 %v1482, %v1429
  %v1513 = vadd.f32 %v1486, %v1436
  %v1514 = vadd.f32 %v1486, %v1440
  %v1515 = vadd.f32 %v1490, %v1447
  %v1516 = vadd.f32 %v1490, %v1451
  %v1517 = vadd.f32 %v1494, %v1458
  %v1518 = vadd.f32 %v1494, %v1462
  %v1519 = vsel %vm299, %v1503, -inf
  %v1520 = vsel %vm299, %v1505, -inf
  %v1521 = vsel %vm299, %v1507, -inf
  %v1522 = vmax.f32 %v1519, %v1521
  %v1523 = vsel %vm299, %v1509, -inf
  %v1524 = vmax.f32 %v1520, %v1523
  %v1525 = vsel %vm299, %v1511, -inf
  %v1526 = vmax.f32 %v1522, %v1525
  %v1527 = vsel %vm299, %v1513, -inf
  %v1528 = vmax.f32 %v1524, %v1527
  %v1529 = vsel %vm299, %v1515, -inf
  %v1530 = vmax.f32 %v1526, %v1529
  %v1531 = vsel %vm299, %v1517, -inf
  %v1532 = vmax.f32 %v1528, %v1531
  %v1533 = vmax.f32 %v1530, %v1532
  %v1534 = vsel %vm299, %v1504, -inf
  %v1535 = vsel %vm299, %v1506, -inf
  %v1536 = vsel %vm299, %v1508, -inf
  %v1537 = vmax.f32 %v1534, %v1536
  %v1538 = vsel %vm299, %v1510, -inf
  %v1539 = vmax.f32 %v1535, %v1538
  %v1540 = vsel %vm299, %v1512, -inf
  %v1541 = vmax.f32 %v1537, %v1540
  %v1542 = vsel %vm299, %v1514, -inf
  %v1543 = vmax.f32 %v1539, %v1542
  %v1544 = vsel %vm299, %v1516, -inf
  %v1545 = vmax.f32 %v1541, %v1544
  %v1546 = vsel %vm299, %v1518, -inf
  %v1547 = vmax.f32 %v1543, %v1546
  %v1548 = vmax.f32 %v1545, %v1547
  %v1549 = vmax.f32 %v1323, %v1533
  %v1550 = vmax.f32 %v1324, %v1548
  %v1552 = vcombine.high %v645, %v645
  %v1554 = vunpack.c.l.s4 1966171168
  %v1555 = vunpack.c.0.s8 %v1554
  %v1556 = vlaneseq
  %v1557 = vshrl.u32 %v1556, 7
  %v1558 = vsub.s32 %v1555, %v1557
  %v1559 = vrot.slane %v645, %v1558
  %v1561 = vunpack.c.l.s4 1966171168
  %v1562 = vunpack.c.0.s8 %v1561
  %v1563 = vlaneseq
  %v1564 = vshrl.u32 %v1563, 7
  %v1565 = vsub.s32 %v1562, %v1564
  %v1566 = vrot.slane %v1552, %v1565
  %v1567 = vcombine.high %v1559, %v1559
  %v1568 = vcombine.high %v1566, %v1566
  %v1570 = vunpack.c.l.s4 1966171168
  %v1571 = vunpack.c.0.s8 %v1570
  %v1572 = vlaneseq
  %v1573 = vshrl.u32 %v1572, 7
  %v1574 = vsub.s32 %v1571, %v1573
  %v1575 = vrot.slane %v1559, %v1574
  %v1577 = vunpack.c.l.s4 1966171168
  %v1578 = vunpack.c.0.s8 %v1577
  %v1579 = vlaneseq
  %v1580 = vshrl.u32 %v1579, 7
  %v1581 = vsub.s32 %v1578, %v1580
  %v1582 = vrot.slane %v1566, %v1581
  %v1584 = vunpack.c.l.s4 1966171168
  %v1585 = vunpack.c.0.s8 %v1584
  %v1586 = vlaneseq
  %v1587 = vshrl.u32 %v1586, 7
  %v1588 = vsub.s32 %v1585, %v1587
  %v1589 = vrot.slane %v1567, %v1588
  %v1591 = vunpack.c.l.s4 1966171168
  %v1592 = vunpack.c.0.s8 %v1591
  %v1593 = vlaneseq
  %v1594 = vshrl.u32 %v1593, 7
  %v1595 = vsub.s32 %v1592, %v1594
  %v1596 = vrot.slane %v1568, %v1595
  %v1597 = vcombine.high %v1575, %v1575
  %v1598 = vcombine.high %v1582, %v1582
  %v1599 = vcombine.high %v1589, %v1589
  %v1600 = vcombine.high %v1596, %v1596
  %v1601 = vlaneseq
  %v1602 = vshrl.u32 %v1601, 7
  %v1603 = vsub.s32 0, %v1602
  %v1604 = vrot.slane %v196, %v1603
  %1606 = vbcast.lane.b32.xlu0 %v1604, 256
  %v1607 = vpop.permute.xlu0 %1606
  %s1609 = sor.u32 256, 8
  %1610 = vbcast.lane.b32.xlu0 %v1604, %s1609
  %v1611 = vpop.permute.xlu0 %1610
  %v1612 = vlaneseq
  %v1613 = vshrl.u32 %v1612, 7
  %v1614 = vsub.s32 1, %v1613
  %v1615 = vrot.slane %v196, %v1614
  %1617 = vbcast.lane.b32.xlu0 %v1615, 256
  %v1618 = vpop.permute.xlu0 %1617
  %s1620 = sor.u32 256, 8
  %1621 = vbcast.lane.b32.xlu0 %v1615, %s1620
  %v1622 = vpop.permute.xlu0 %1621
  %v1623 = vlaneseq
  %v1624 = vshrl.u32 %v1623, 7
  %v1625 = vsub.s32 2, %v1624
  %v1626 = vrot.slane %v196, %v1625
  %1628 = vbcast.lane.b32.xlu0 %v1626, 256
  %v1629 = vpop.permute.xlu0 %1628
  %s1631 = sor.u32 256, 8
  %1632 = vbcast.lane.b32.xlu0 %v1626, %s1631
  %v1633 = vpop.permute.xlu0 %1632
  %v1634 = vlaneseq
  %v1635 = vshrl.u32 %v1634, 7
  %v1636 = vsub.s32 3, %v1635
  %v1637 = vrot.slane %v196, %v1636
  %1639 = vbcast.lane.b32.xlu0 %v1637, 256
  %v1640 = vpop.permute.xlu0 %1639
  %s1642 = sor.u32 256, 8
  %1643 = vbcast.lane.b32.xlu0 %v1637, %s1642
  %v1644 = vpop.permute.xlu0 %1643
  %v1645 = vlaneseq
  %v1646 = vshrl.u32 %v1645, 7
  %v1647 = vsub.s32 4, %v1646
  %v1648 = vrot.slane %v196, %v1647
  %1650 = vbcast.lane.b32.xlu0 %v1648, 256
  %v1651 = vpop.permute.xlu0 %1650
  %s1653 = sor.u32 256, 8
  %1654 = vbcast.lane.b32.xlu0 %v1648, %s1653
  %v1655 = vpop.permute.xlu0 %1654
  %v1656 = vlaneseq
  %v1657 = vshrl.u32 %v1656, 7
  %v1658 = vsub.s32 5, %v1657
  %v1659 = vrot.slane %v196, %v1658
  %1661 = vbcast.lane.b32.xlu0 %v1659, 256
  %v1662 = vpop.permute.xlu0 %1661
  %s1664 = sor.u32 256, 8
  %1665 = vbcast.lane.b32.xlu0 %v1659, %s1664
  %v1666 = vpop.permute.xlu0 %1665
  %v1667 = vlaneseq
  %v1668 = vshrl.u32 %v1667, 7
  %v1669 = vsub.s32 6, %v1668
  %v1670 = vrot.slane %v196, %v1669
  %1672 = vbcast.lane.b32.xlu0 %v1670, 256
  %v1673 = vpop.permute.xlu0 %1672
  %s1675 = sor.u32 256, 8
  %1676 = vbcast.lane.b32.xlu0 %v1670, %s1675
  %v1677 = vpop.permute.xlu0 %1676
  %v1678 = vlaneseq
  %v1679 = vshrl.u32 %v1678, 7
  %v1680 = vsub.s32 7, %v1679
  %v1681 = vrot.slane %v196, %v1680
  %1683 = vbcast.lane.b32.xlu0 %v1681, 256
  %v1684 = vpop.permute.xlu0 %1683
  %s1686 = sor.u32 256, 8
  %1687 = vbcast.lane.b32.xlu0 %v1681, %s1686
  %v1688 = vpop.permute.xlu0 %1687
  %v1689 = vlaneseq
  %v1690 = vshrl.u32 %v1689, 7
  %v1691 = vsub.s32 0, %v1690
  %v1692 = vrot.slane %v1575, %v1691
  %v1693 = vlaneseq
  %v1694 = vshrl.u32 %v1693, 7
  %v1695 = vsub.s32 0, %v1694
  %v1696 = vrot.slane %v1589, %v1695
  %v1697 = vlaneseq
  %v1698 = vshrl.u32 %v1697, 7
  %v1699 = vsub.s32 0, %v1698
  %v1700 = vrot.slane %v1597, %v1699
  %v1701 = vlaneseq
  %v1702 = vshrl.u32 %v1701, 7
  %v1703 = vsub.s32 0, %v1702
  %v1704 = vrot.slane %v1599, %v1703
  %v1705 = vlaneseq
  %v1706 = vshrl.u32 %v1705, 7
  %v1707 = vsub.s32 0, %v1706
  %v1708 = vrot.slane %v1582, %v1707
  %v1709 = vlaneseq
  %v1710 = vshrl.u32 %v1709, 7
  %v1711 = vsub.s32 0, %v1710
  %v1712 = vrot.slane %v1596, %v1711
  %v1713 = vlaneseq
  %v1714 = vshrl.u32 %v1713, 7
  %v1715 = vsub.s32 0, %v1714
  %v1716 = vrot.slane %v1598, %v1715
  %v1717 = vlaneseq
  %v1718 = vshrl.u32 %v1717, 7
  %v1719 = vsub.s32 0, %v1718
  %v1720 = vrot.slane %v1600, %v1719
  %v1729 = vadd.f32 %v1692, %v1607
  %v1730 = vadd.f32 %v1692, %v1611
  %v1731 = vadd.f32 %v1696, %v1618
  %v1732 = vadd.f32 %v1696, %v1622
  %v1733 = vadd.f32 %v1700, %v1629
  %v1734 = vadd.f32 %v1700, %v1633
  %v1735 = vadd.f32 %v1704, %v1640
  %v1736 = vadd.f32 %v1704, %v1644
  %v1737 = vadd.f32 %v1708, %v1651
  %v1738 = vadd.f32 %v1708, %v1655
  %v1739 = vadd.f32 %v1712, %v1662
  %v1740 = vadd.f32 %v1712, %v1666
  %v1741 = vadd.f32 %v1716, %v1673
  %v1742 = vadd.f32 %v1716, %v1677
  %v1743 = vadd.f32 %v1720, %v1684
  %v1744 = vadd.f32 %v1720, %v1688
  %v1745 = vsel %vm299, %v1729, -inf
  %v1746 = vsel %vm299, %v1731, -inf
  %v1747 = vsel %vm299, %v1733, -inf
  %v1748 = vmax.f32 %v1745, %v1747
  %v1749 = vsel %vm299, %v1735, -inf
  %v1750 = vmax.f32 %v1746, %v1749
  %v1751 = vsel %vm299, %v1737, -inf
  %v1752 = vmax.f32 %v1748, %v1751
  %v1753 = vsel %vm299, %v1739, -inf
  %v1754 = vmax.f32 %v1750, %v1753
  %v1755 = vsel %vm299, %v1741, -inf
  %v1756 = vmax.f32 %v1752, %v1755
  %v1757 = vsel %vm299, %v1743, -inf
  %v1758 = vmax.f32 %v1754, %v1757
  %v1759 = vmax.f32 %v1756, %v1758
  %v1760 = vsel %vm299, %v1730, -inf
  %v1761 = vsel %vm299, %v1732, -inf
  %v1762 = vsel %vm299, %v1734, -inf
  %v1763 = vmax.f32 %v1760, %v1762
  %v1764 = vsel %vm299, %v1736, -inf
  %v1765 = vmax.f32 %v1761, %v1764
  %v1766 = vsel %vm299, %v1738, -inf
  %v1767 = vmax.f32 %v1763, %v1766
  %v1768 = vsel %vm299, %v1740, -inf
  %v1769 = vmax.f32 %v1765, %v1768
  %v1770 = vsel %vm299, %v1742, -inf
  %v1771 = vmax.f32 %v1767, %v1770
  %v1772 = vsel %vm299, %v1744, -inf
  %v1773 = vmax.f32 %v1769, %v1772
  %v1774 = vmax.f32 %v1771, %v1773
  %v1775 = vmax.f32 %v1549, %v1759
  %v1776 = vmax.f32 %v1550, %v1774
  %v1778 = vcombine.high %v646, %v646
  %v1780 = vunpack.c.l.s4 1966171168
  %v1781 = vunpack.c.0.s8 %v1780
  %v1782 = vlaneseq
  %v1783 = vshrl.u32 %v1782, 7
  %v1784 = vsub.s32 %v1781, %v1783
  %v1785 = vrot.slane %v646, %v1784
  %v1787 = vunpack.c.l.s4 1966171168
  %v1788 = vunpack.c.0.s8 %v1787
  %v1789 = vlaneseq
  %v1790 = vshrl.u32 %v1789, 7
  %v1791 = vsub.s32 %v1788, %v1790
  %v1792 = vrot.slane %v1778, %v1791
  %v1793 = vcombine.high %v1785, %v1785
  %v1794 = vcombine.high %v1792, %v1792
  %v1796 = vunpack.c.l.s4 1966171168
  %v1797 = vunpack.c.0.s8 %v1796
  %v1798 = vlaneseq
  %v1799 = vshrl.u32 %v1798, 7
  %v1800 = vsub.s32 %v1797, %v1799
  %v1801 = vrot.slane %v1785, %v1800
  %v1803 = vunpack.c.l.s4 1966171168
  %v1804 = vunpack.c.0.s8 %v1803
  %v1805 = vlaneseq
  %v1806 = vshrl.u32 %v1805, 7
  %v1807 = vsub.s32 %v1804, %v1806
  %v1808 = vrot.slane %v1792, %v1807
  %v1810 = vunpack.c.l.s4 1966171168
  %v1811 = vunpack.c.0.s8 %v1810
  %v1812 = vlaneseq
  %v1813 = vshrl.u32 %v1812, 7
  %v1814 = vsub.s32 %v1811, %v1813
  %v1815 = vrot.slane %v1793, %v1814
  %v1817 = vunpack.c.l.s4 1966171168
  %v1818 = vunpack.c.0.s8 %v1817
  %v1819 = vlaneseq
  %v1820 = vshrl.u32 %v1819, 7
  %v1821 = vsub.s32 %v1818, %v1820
  %v1822 = vrot.slane %v1794, %v1821
  %v1823 = vcombine.high %v1801, %v1801
  %v1824 = vcombine.high %v1808, %v1808
  %v1825 = vcombine.high %v1815, %v1815
  %v1826 = vcombine.high %v1822, %v1822
  %v1827 = vlaneseq
  %v1828 = vshrl.u32 %v1827, 7
  %v1829 = vsub.s32 0, %v1828
  %v1830 = vrot.slane %v197, %v1829
  %1832 = vbcast.lane.b32.xlu0 %v1830, 256
  %v1833 = vpop.permute.xlu0 %1832
  %s1835 = sor.u32 256, 8
  %1836 = vbcast.lane.b32.xlu0 %v1830, %s1835
  %v1837 = vpop.permute.xlu0 %1836
  %v1838 = vlaneseq
  %v1839 = vshrl.u32 %v1838, 7
  %v1840 = vsub.s32 1, %v1839
  %v1841 = vrot.slane %v197, %v1840
  %1843 = vbcast.lane.b32.xlu0 %v1841, 256
  %v1844 = vpop.permute.xlu0 %1843
  %s1846 = sor.u32 256, 8
  %1847 = vbcast.lane.b32.xlu0 %v1841, %s1846
  %v1848 = vpop.permute.xlu0 %1847
  %v1849 = vlaneseq
  %v1850 = vshrl.u32 %v1849, 7
  %v1851 = vsub.s32 2, %v1850
  %v1852 = vrot.slane %v197, %v1851
  %1854 = vbcast.lane.b32.xlu0 %v1852, 256
  %v1855 = vpop.permute.xlu0 %1854
  %s1857 = sor.u32 256, 8
  %1858 = vbcast.lane.b32.xlu0 %v1852, %s1857
  %v1859 = vpop.permute.xlu0 %1858
  %v1860 = vlaneseq
  %v1861 = vshrl.u32 %v1860, 7
  %v1862 = vsub.s32 3, %v1861
  %v1863 = vrot.slane %v197, %v1862
  %1865 = vbcast.lane.b32.xlu0 %v1863, 256
  %v1866 = vpop.permute.xlu0 %1865
  %s1868 = sor.u32 256, 8
  %1869 = vbcast.lane.b32.xlu0 %v1863, %s1868
  %v1870 = vpop.permute.xlu0 %1869
  %v1871 = vlaneseq
  %v1872 = vshrl.u32 %v1871, 7
  %v1873 = vsub.s32 4, %v1872
  %v1874 = vrot.slane %v197, %v1873
  %1876 = vbcast.lane.b32.xlu0 %v1874, 256
  %v1877 = vpop.permute.xlu0 %1876
  %s1879 = sor.u32 256, 8
  %1880 = vbcast.lane.b32.xlu0 %v1874, %s1879
  %v1881 = vpop.permute.xlu0 %1880
  %v1882 = vlaneseq
  %v1883 = vshrl.u32 %v1882, 7
  %v1884 = vsub.s32 5, %v1883
  %v1885 = vrot.slane %v197, %v1884
  %1887 = vbcast.lane.b32.xlu0 %v1885, 256
  %v1888 = vpop.permute.xlu0 %1887
  %s1890 = sor.u32 256, 8
  %1891 = vbcast.lane.b32.xlu0 %v1885, %s1890
  %v1892 = vpop.permute.xlu0 %1891
  %v1893 = vlaneseq
  %v1894 = vshrl.u32 %v1893, 7
  %v1895 = vsub.s32 6, %v1894
  %v1896 = vrot.slane %v197, %v1895
  %1898 = vbcast.lane.b32.xlu0 %v1896, 256
  %v1899 = vpop.permute.xlu0 %1898
  %s1901 = sor.u32 256, 8
  %1902 = vbcast.lane.b32.xlu0 %v1896, %s1901
  %v1903 = vpop.permute.xlu0 %1902
  %v1904 = vlaneseq
  %v1905 = vshrl.u32 %v1904, 7
  %v1906 = vsub.s32 7, %v1905
  %v1907 = vrot.slane %v197, %v1906
  %1909 = vbcast.lane.b32.xlu0 %v1907, 256
  %v1910 = vpop.permute.xlu0 %1909
  %s1912 = sor.u32 256, 8
  %1913 = vbcast.lane.b32.xlu0 %v1907, %s1912
  %v1914 = vpop.permute.xlu0 %1913
  %v1915 = vlaneseq
  %v1916 = vshrl.u32 %v1915, 7
  %v1917 = vsub.s32 0, %v1916
  %v1918 = vrot.slane %v1801, %v1917
  %v1919 = vlaneseq
  %v1920 = vshrl.u32 %v1919, 7
  %v1921 = vsub.s32 0, %v1920
  %v1922 = vrot.slane %v1815, %v1921
  %v1923 = vlaneseq
  %v1924 = vshrl.u32 %v1923, 7
  %v1925 = vsub.s32 0, %v1924
  %v1926 = vrot.slane %v1823, %v1925
  %v1927 = vlaneseq
  %v1928 = vshrl.u32 %v1927, 7
  %v1929 = vsub.s32 0, %v1928
  %v1930 = vrot.slane %v1825, %v1929
  %v1931 = vlaneseq
  %v1932 = vshrl.u32 %v1931, 7
  %v1933 = vsub.s32 0, %v1932
  %v1934 = vrot.slane %v1808, %v1933
  %v1935 = vlaneseq
  %v1936 = vshrl.u32 %v1935, 7
  %v1937 = vsub.s32 0, %v1936
  %v1938 = vrot.slane %v1822, %v1937
  %v1939 = vlaneseq
  %v1940 = vshrl.u32 %v1939, 7
  %v1941 = vsub.s32 0, %v1940
  %v1942 = vrot.slane %v1824, %v1941
  %v1943 = vlaneseq
  %v1944 = vshrl.u32 %v1943, 7
  %v1945 = vsub.s32 0, %v1944
  %v1946 = vrot.slane %v1826, %v1945
  %v1955 = vadd.f32 %v1918, %v1833
  %v1956 = vadd.f32 %v1918, %v1837
  %v1957 = vadd.f32 %v1922, %v1844
  %v1958 = vadd.f32 %v1922, %v1848
  %v1959 = vadd.f32 %v1926, %v1855
  %v1960 = vadd.f32 %v1926, %v1859
  %v1961 = vadd.f32 %v1930, %v1866
  %v1962 = vadd.f32 %v1930, %v1870
  %v1963 = vadd.f32 %v1934, %v1877
  %v1964 = vadd.f32 %v1934, %v1881
  %v1965 = vadd.f32 %v1938, %v1888
  %v1966 = vadd.f32 %v1938, %v1892
  %v1967 = vadd.f32 %v1942, %v1899
  %v1968 = vadd.f32 %v1942, %v1903
  %v1969 = vadd.f32 %v1946, %v1910
  %v1970 = vadd.f32 %v1946, %v1914
  %v1971 = vsel %vm299, %v1955, -inf
  %v1972 = vsel %vm299, %v1957, -inf
  %v1973 = vsel %vm299, %v1959, -inf
  %v1974 = vmax.f32 %v1971, %v1973
  %v1975 = vsel %vm299, %v1961, -inf
  %v1976 = vmax.f32 %v1972, %v1975
  %v1977 = vsel %vm299, %v1963, -inf
  %v1978 = vmax.f32 %v1974, %v1977
  %v1979 = vsel %vm299, %v1965, -inf
  %v1980 = vmax.f32 %v1976, %v1979
  %v1981 = vsel %vm299, %v1967, -inf
  %v1982 = vmax.f32 %v1978, %v1981
  %v1983 = vsel %vm299, %v1969, -inf
  %v1984 = vmax.f32 %v1980, %v1983
  %v1985 = vmax.f32 %v1982, %v1984
  %v1986 = vsel %vm299, %v1956, -inf
  %v1987 = vsel %vm299, %v1958, -inf
  %v1988 = vsel %vm299, %v1960, -inf
  %v1989 = vmax.f32 %v1986, %v1988
  %v1990 = vsel %vm299, %v1962, -inf
  %v1991 = vmax.f32 %v1987, %v1990
  %v1992 = vsel %vm299, %v1964, -inf
  %v1993 = vmax.f32 %v1989, %v1992
  %v1994 = vsel %vm299, %v1966, -inf
  %v1995 = vmax.f32 %v1991, %v1994
  %v1996 = vsel %vm299, %v1968, -inf
  %v1997 = vmax.f32 %v1993, %v1996
  %v1998 = vsel %vm299, %v1970, -inf
  %v1999 = vmax.f32 %v1995, %v1998
  %v2000 = vmax.f32 %v1997, %v1999
  %v2001 = vmax.f32 %v1775, %v1985
  %v2002 = vmax.f32 %v1776, %v2000
  %v2004 = vcombine.high %v647, %v647
  %v2006 = vunpack.c.l.s4 1966171168
  %v2007 = vunpack.c.0.s8 %v2006
  %v2008 = vlaneseq
  %v2009 = vshrl.u32 %v2008, 7
  %v2010 = vsub.s32 %v2007, %v2009
  %v2011 = vrot.slane %v647, %v2010
  %v2013 = vunpack.c.l.s4 1966171168
  %v2014 = vunpack.c.0.s8 %v2013
  %v2015 = vlaneseq
  %v2016 = vshrl.u32 %v2015, 7
  %v2017 = vsub.s32 %v2014, %v2016
  %v2018 = vrot.slane %v2004, %v2017
  %v2019 = vcombine.high %v2011, %v2011
  %v2020 = vcombine.high %v2018, %v2018
  %v2022 = vunpack.c.l.s4 1966171168
  %v2023 = vunpack.c.0.s8 %v2022
  %v2024 = vlaneseq
  %v2025 = vshrl.u32 %v2024, 7
  %v2026 = vsub.s32 %v2023, %v2025
  %v2027 = vrot.slane %v2011, %v2026
  %v2029 = vunpack.c.l.s4 1966171168
  %v2030 = vunpack.c.0.s8 %v2029
  %v2031 = vlaneseq
  %v2032 = vshrl.u32 %v2031, 7
  %v2033 = vsub.s32 %v2030, %v2032
  %v2034 = vrot.slane %v2018, %v2033
  %v2036 = vunpack.c.l.s4 1966171168
  %v2037 = vunpack.c.0.s8 %v2036
  %v2038 = vlaneseq
  %v2039 = vshrl.u32 %v2038, 7
  %v2040 = vsub.s32 %v2037, %v2039
  %v2041 = vrot.slane %v2019, %v2040
  %v2043 = vunpack.c.l.s4 1966171168
  %v2044 = vunpack.c.0.s8 %v2043
  %v2045 = vlaneseq
  %v2046 = vshrl.u32 %v2045, 7
  %v2047 = vsub.s32 %v2044, %v2046
  %v2048 = vrot.slane %v2020, %v2047
  %v2049 = vcombine.high %v2027, %v2027
  %v2050 = vcombine.high %v2034, %v2034
  %v2051 = vcombine.high %v2041, %v2041
  %v2052 = vcombine.high %v2048, %v2048
  %v2053 = vlaneseq
  %v2054 = vshrl.u32 %v2053, 7
  %v2055 = vsub.s32 0, %v2054
  %v2056 = vrot.slane %v198, %v2055
  %2058 = vbcast.lane.b32.xlu0 %v2056, 256
  %v2059 = vpop.permute.xlu0 %2058
  %s2061 = sor.u32 256, 8
  %2062 = vbcast.lane.b32.xlu0 %v2056, %s2061
  %v2063 = vpop.permute.xlu0 %2062
  %v2064 = vlaneseq
  %v2065 = vshrl.u32 %v2064, 7
  %v2066 = vsub.s32 1, %v2065
  %v2067 = vrot.slane %v198, %v2066
  %2069 = vbcast.lane.b32.xlu0 %v2067, 256
  %v2070 = vpop.permute.xlu0 %2069
  %s2072 = sor.u32 256, 8
  %2073 = vbcast.lane.b32.xlu0 %v2067, %s2072
  %v2074 = vpop.permute.xlu0 %2073
  %v2075 = vlaneseq
  %v2076 = vshrl.u32 %v2075, 7
  %v2077 = vsub.s32 2, %v2076
  %v2078 = vrot.slane %v198, %v2077
  %2080 = vbcast.lane.b32.xlu0 %v2078, 256
  %v2081 = vpop.permute.xlu0 %2080
  %s2083 = sor.u32 256, 8
  %2084 = vbcast.lane.b32.xlu0 %v2078, %s2083
  %v2085 = vpop.permute.xlu0 %2084
  %v2086 = vlaneseq
  %v2087 = vshrl.u32 %v2086, 7
  %v2088 = vsub.s32 3, %v2087
  %v2089 = vrot.slane %v198, %v2088
  %2091 = vbcast.lane.b32.xlu0 %v2089, 256
  %v2092 = vpop.permute.xlu0 %2091
  %s2094 = sor.u32 256, 8
  %2095 = vbcast.lane.b32.xlu0 %v2089, %s2094
  %v2096 = vpop.permute.xlu0 %2095
  %v2097 = vlaneseq
  %v2098 = vshrl.u32 %v2097, 7
  %v2099 = vsub.s32 4, %v2098
  %v2100 = vrot.slane %v198, %v2099
  %2102 = vbcast.lane.b32.xlu0 %v2100, 256
  %v2103 = vpop.permute.xlu0 %2102
  %s2105 = sor.u32 256, 8
  %2106 = vbcast.lane.b32.xlu0 %v2100, %s2105
  %v2107 = vpop.permute.xlu0 %2106
  %v2108 = vlaneseq
  %v2109 = vshrl.u32 %v2108, 7
  %v2110 = vsub.s32 5, %v2109
  %v2111 = vrot.slane %v198, %v2110
  %2113 = vbcast.lane.b32.xlu0 %v2111, 256
  %v2114 = vpop.permute.xlu0 %2113
  %s2116 = sor.u32 256, 8
  %2117 = vbcast.lane.b32.xlu0 %v2111, %s2116
  %v2118 = vpop.permute.xlu0 %2117
  %v2119 = vlaneseq
  %v2120 = vshrl.u32 %v2119, 7
  %v2121 = vsub.s32 6, %v2120
  %v2122 = vrot.slane %v198, %v2121
  %2124 = vbcast.lane.b32.xlu0 %v2122, 256
  %v2125 = vpop.permute.xlu0 %2124
  %s2127 = sor.u32 256, 8
  %2128 = vbcast.lane.b32.xlu0 %v2122, %s2127
  %v2129 = vpop.permute.xlu0 %2128
  %v2130 = vlaneseq
  %v2131 = vshrl.u32 %v2130, 7
  %v2132 = vsub.s32 7, %v2131
  %v2133 = vrot.slane %v198, %v2132
  %2135 = vbcast.lane.b32.xlu0 %v2133, 256
  %v2136 = vpop.permute.xlu0 %2135
  %s2138 = sor.u32 256, 8
  %2139 = vbcast.lane.b32.xlu0 %v2133, %s2138
  %v2140 = vpop.permute.xlu0 %2139
  %v2141 = vlaneseq
  %v2142 = vshrl.u32 %v2141, 7
  %v2143 = vsub.s32 0, %v2142
  %v2144 = vrot.slane %v2027, %v2143
  %v2145 = vlaneseq
  %v2146 = vshrl.u32 %v2145, 7
  %v2147 = vsub.s32 0, %v2146
  %v2148 = vrot.slane %v2041, %v2147
  %v2149 = vlaneseq
  %v2150 = vshrl.u32 %v2149, 7
  %v2151 = vsub.s32 0, %v2150
  %v2152 = vrot.slane %v2049, %v2151
  %v2153 = vlaneseq
  %v2154 = vshrl.u32 %v2153, 7
  %v2155 = vsub.s32 0, %v2154
  %v2156 = vrot.slane %v2051, %v2155
  %v2157 = vlaneseq
  %v2158 = vshrl.u32 %v2157, 7
  %v2159 = vsub.s32 0, %v2158
  %v2160 = vrot.slane %v2034, %v2159
  %v2161 = vlaneseq
  %v2162 = vshrl.u32 %v2161, 7
  %v2163 = vsub.s32 0, %v2162
  %v2164 = vrot.slane %v2048, %v2163
  %v2165 = vlaneseq
  %v2166 = vshrl.u32 %v2165, 7
  %v2167 = vsub.s32 0, %v2166
  %v2168 = vrot.slane %v2050, %v2167
  %v2169 = vlaneseq
  %v2170 = vshrl.u32 %v2169, 7
  %v2171 = vsub.s32 0, %v2170
  %v2172 = vrot.slane %v2052, %v2171
  %v2181 = vadd.f32 %v2144, %v2059
  %v2182 = vadd.f32 %v2144, %v2063
  %v2183 = vadd.f32 %v2148, %v2070
  %v2184 = vadd.f32 %v2148, %v2074
  %v2185 = vadd.f32 %v2152, %v2081
  %v2186 = vadd.f32 %v2152, %v2085
  %v2187 = vadd.f32 %v2156, %v2092
  %v2188 = vadd.f32 %v2156, %v2096
  %v2189 = vadd.f32 %v2160, %v2103
  %v2190 = vadd.f32 %v2160, %v2107
  %v2191 = vadd.f32 %v2164, %v2114
  %v2192 = vadd.f32 %v2164, %v2118
  %v2193 = vadd.f32 %v2168, %v2125
  %v2194 = vadd.f32 %v2168, %v2129
  %v2195 = vadd.f32 %v2172, %v2136
  %v2196 = vadd.f32 %v2172, %v2140
  %v2197 = vsel %vm299, %v2181, -inf
  %v2198 = vsel %vm299, %v2183, -inf
  %v2199 = vsel %vm299, %v2185, -inf
  %v2200 = vmax.f32 %v2197, %v2199
  %v2201 = vsel %vm299, %v2187, -inf
  %v2202 = vmax.f32 %v2198, %v2201
  %v2203 = vsel %vm299, %v2189, -inf
  %v2204 = vmax.f32 %v2200, %v2203
  %v2205 = vsel %vm299, %v2191, -inf
  %v2206 = vmax.f32 %v2202, %v2205
  %v2207 = vsel %vm299, %v2193, -inf
  %v2208 = vmax.f32 %v2204, %v2207
  %v2209 = vsel %vm299, %v2195, -inf
  %v2210 = vmax.f32 %v2206, %v2209
  %v2211 = vmax.f32 %v2208, %v2210
  %v2212 = vsel %vm299, %v2182, -inf
  %v2213 = vsel %vm299, %v2184, -inf
  %v2214 = vsel %vm299, %v2186, -inf
  %v2215 = vmax.f32 %v2212, %v2214
  %v2216 = vsel %vm299, %v2188, -inf
  %v2217 = vmax.f32 %v2213, %v2216
  %v2218 = vsel %vm299, %v2190, -inf
  %v2219 = vmax.f32 %v2215, %v2218
  %v2220 = vsel %vm299, %v2192, -inf
  %v2221 = vmax.f32 %v2217, %v2220
  %v2222 = vsel %vm299, %v2194, -inf
  %v2223 = vmax.f32 %v2219, %v2222
  %v2224 = vsel %vm299, %v2196, -inf
  %v2225 = vmax.f32 %v2221, %v2224
  %v2226 = vmax.f32 %v2223, %v2225
  %v2227 = vmax.f32 %v2001, %v2211
  %v2228 = vmax.f32 %v2002, %v2226
  %v2230 = vcombine.high %v648, %v648
  %v2232 = vunpack.c.l.s4 1966171168
  %v2233 = vunpack.c.0.s8 %v2232
  %v2234 = vlaneseq
  %v2235 = vshrl.u32 %v2234, 7
  %v2236 = vsub.s32 %v2233, %v2235
  %v2237 = vrot.slane %v648, %v2236
  %v2239 = vunpack.c.l.s4 1966171168
  %v2240 = vunpack.c.0.s8 %v2239
  %v2241 = vlaneseq
  %v2242 = vshrl.u32 %v2241, 7
  %v2243 = vsub.s32 %v2240, %v2242
  %v2244 = vrot.slane %v2230, %v2243
  %v2245 = vcombine.high %v2237, %v2237
  %v2246 = vcombine.high %v2244, %v2244
  %v2248 = vunpack.c.l.s4 1966171168
  %v2249 = vunpack.c.0.s8 %v2248
  %v2250 = vlaneseq
  %v2251 = vshrl.u32 %v2250, 7
  %v2252 = vsub.s32 %v2249, %v2251
  %v2253 = vrot.slane %v2237, %v2252
  %v2255 = vunpack.c.l.s4 1966171168
  %v2256 = vunpack.c.0.s8 %v2255
  %v2257 = vlaneseq
  %v2258 = vshrl.u32 %v2257, 7
  %v2259 = vsub.s32 %v2256, %v2258
  %v2260 = vrot.slane %v2244, %v2259
  %v2262 = vunpack.c.l.s4 1966171168
  %v2263 = vunpack.c.0.s8 %v2262
  %v2264 = vlaneseq
  %v2265 = vshrl.u32 %v2264, 7
  %v2266 = vsub.s32 %v2263, %v2265
  %v2267 = vrot.slane %v2245, %v2266
  %v2269 = vunpack.c.l.s4 1966171168
  %v2270 = vunpack.c.0.s8 %v2269
  %v2271 = vlaneseq
  %v2272 = vshrl.u32 %v2271, 7
  %v2273 = vsub.s32 %v2270, %v2272
  %v2274 = vrot.slane %v2246, %v2273
  %v2275 = vcombine.high %v2253, %v2253
  %v2276 = vcombine.high %v2260, %v2260
  %v2277 = vcombine.high %v2267, %v2267
  %v2278 = vcombine.high %v2274, %v2274
  %v2279 = vlaneseq
  %v2280 = vshrl.u32 %v2279, 7
  %v2281 = vsub.s32 0, %v2280
  %v2282 = vrot.slane %v199, %v2281
  %2284 = vbcast.lane.b32.xlu0 %v2282, 256
  %v2285 = vpop.permute.xlu0 %2284
  %s2287 = sor.u32 256, 8
  %2288 = vbcast.lane.b32.xlu0 %v2282, %s2287
  %v2289 = vpop.permute.xlu0 %2288
  %v2290 = vlaneseq
  %v2291 = vshrl.u32 %v2290, 7
  %v2292 = vsub.s32 1, %v2291
  %v2293 = vrot.slane %v199, %v2292
  %2295 = vbcast.lane.b32.xlu0 %v2293, 256
  %v2296 = vpop.permute.xlu0 %2295
  %s2298 = sor.u32 256, 8
  %2299 = vbcast.lane.b32.xlu0 %v2293, %s2298
  %v2300 = vpop.permute.xlu0 %2299
  %v2301 = vlaneseq
  %v2302 = vshrl.u32 %v2301, 7
  %v2303 = vsub.s32 2, %v2302
  %v2304 = vrot.slane %v199, %v2303
  %2306 = vbcast.lane.b32.xlu0 %v2304, 256
  %v2307 = vpop.permute.xlu0 %2306
  %s2309 = sor.u32 256, 8
  %2310 = vbcast.lane.b32.xlu0 %v2304, %s2309
  %v2311 = vpop.permute.xlu0 %2310
  %v2312 = vlaneseq
  %v2313 = vshrl.u32 %v2312, 7
  %v2314 = vsub.s32 3, %v2313
  %v2315 = vrot.slane %v199, %v2314
  %2317 = vbcast.lane.b32.xlu0 %v2315, 256
  %v2318 = vpop.permute.xlu0 %2317
  %s2320 = sor.u32 256, 8
  %2321 = vbcast.lane.b32.xlu0 %v2315, %s2320
  %v2322 = vpop.permute.xlu0 %2321
  %v2323 = vlaneseq
  %v2324 = vshrl.u32 %v2323, 7
  %v2325 = vsub.s32 4, %v2324
  %v2326 = vrot.slane %v199, %v2325
  %2328 = vbcast.lane.b32.xlu0 %v2326, 256
  %v2329 = vpop.permute.xlu0 %2328
  %s2331 = sor.u32 256, 8
  %2332 = vbcast.lane.b32.xlu0 %v2326, %s2331
  %v2333 = vpop.permute.xlu0 %2332
  %v2334 = vlaneseq
  %v2335 = vshrl.u32 %v2334, 7
  %v2336 = vsub.s32 5, %v2335
  %v2337 = vrot.slane %v199, %v2336
  %2339 = vbcast.lane.b32.xlu0 %v2337, 256
  %v2340 = vpop.permute.xlu0 %2339
  %s2342 = sor.u32 256, 8
  %2343 = vbcast.lane.b32.xlu0 %v2337, %s2342
  %v2344 = vpop.permute.xlu0 %2343
  %v2345 = vlaneseq
  %v2346 = vshrl.u32 %v2345, 7
  %v2347 = vsub.s32 6, %v2346
  %v2348 = vrot.slane %v199, %v2347
  %2350 = vbcast.lane.b32.xlu0 %v2348, 256
  %v2351 = vpop.permute.xlu0 %2350
  %s2353 = sor.u32 256, 8
  %2354 = vbcast.lane.b32.xlu0 %v2348, %s2353
  %v2355 = vpop.permute.xlu0 %2354
  %v2356 = vlaneseq
  %v2357 = vshrl.u32 %v2356, 7
  %v2358 = vsub.s32 7, %v2357
  %v2359 = vrot.slane %v199, %v2358
  %2361 = vbcast.lane.b32.xlu0 %v2359, 256
  %v2362 = vpop.permute.xlu0 %2361
  %s2364 = sor.u32 256, 8
  %2365 = vbcast.lane.b32.xlu0 %v2359, %s2364
  %v2366 = vpop.permute.xlu0 %2365
  %v2367 = vlaneseq
  %v2368 = vshrl.u32 %v2367, 7
  %v2369 = vsub.s32 0, %v2368
  %v2370 = vrot.slane %v2253, %v2369
  %v2371 = vlaneseq
  %v2372 = vshrl.u32 %v2371, 7
  %v2373 = vsub.s32 0, %v2372
  %v2374 = vrot.slane %v2267, %v2373
  %v2375 = vlaneseq
  %v2376 = vshrl.u32 %v2375, 7
  %v2377 = vsub.s32 0, %v2376
  %v2378 = vrot.slane %v2275, %v2377
  %v2379 = vlaneseq
  %v2380 = vshrl.u32 %v2379, 7
  %v2381 = vsub.s32 0, %v2380
  %v2382 = vrot.slane %v2277, %v2381
  %v2383 = vlaneseq
  %v2384 = vshrl.u32 %v2383, 7
  %v2385 = vsub.s32 0, %v2384
  %v2386 = vrot.slane %v2260, %v2385
  %v2387 = vlaneseq
  %v2388 = vshrl.u32 %v2387, 7
  %v2389 = vsub.s32 0, %v2388
  %v2390 = vrot.slane %v2274, %v2389
  %v2391 = vlaneseq
  %v2392 = vshrl.u32 %v2391, 7
  %v2393 = vsub.s32 0, %v2392
  %v2394 = vrot.slane %v2276, %v2393
  %v2395 = vlaneseq
  %v2396 = vshrl.u32 %v2395, 7
  %v2397 = vsub.s32 0, %v2396
  %v2398 = vrot.slane %v2278, %v2397
  %v2407 = vadd.f32 %v2370, %v2285
  %v2408 = vadd.f32 %v2370, %v2289
  %v2409 = vadd.f32 %v2374, %v2296
  %v2410 = vadd.f32 %v2374, %v2300
  %v2411 = vadd.f32 %v2378, %v2307
  %v2412 = vadd.f32 %v2378, %v2311
  %v2413 = vadd.f32 %v2382, %v2318
  %v2414 = vadd.f32 %v2382, %v2322
  %v2415 = vadd.f32 %v2386, %v2329
  %v2416 = vadd.f32 %v2386, %v2333
  %v2417 = vadd.f32 %v2390, %v2340
  %v2418 = vadd.f32 %v2390, %v2344
  %v2419 = vadd.f32 %v2394, %v2351
  %v2420 = vadd.f32 %v2394, %v2355
  %v2421 = vadd.f32 %v2398, %v2362
  %v2422 = vadd.f32 %v2398, %v2366
  %v2423 = vsel %vm299, %v2407, -inf
  %v2424 = vsel %vm299, %v2409, -inf
  %v2425 = vsel %vm299, %v2411, -inf
  %v2426 = vmax.f32 %v2423, %v2425
  %v2427 = vsel %vm299, %v2413, -inf
  %v2428 = vmax.f32 %v2424, %v2427
  %v2429 = vsel %vm299, %v2415, -inf
  %v2430 = vmax.f32 %v2426, %v2429
  %v2431 = vsel %vm299, %v2417, -inf
  %v2432 = vmax.f32 %v2428, %v2431
  %v2433 = vsel %vm299, %v2419, -inf
  %v2434 = vmax.f32 %v2430, %v2433
  %v2435 = vsel %vm299, %v2421, -inf
  %v2436 = vmax.f32 %v2432, %v2435
  %v2437 = vmax.f32 %v2434, %v2436
  %v2438 = vsel %vm299, %v2408, -inf
  %v2439 = vsel %vm299, %v2410, -inf
  %v2440 = vsel %vm299, %v2412, -inf
  %v2441 = vmax.f32 %v2438, %v2440
  %v2442 = vsel %vm299, %v2414, -inf
  %v2443 = vmax.f32 %v2439, %v2442
  %v2444 = vsel %vm299, %v2416, -inf
  %v2445 = vmax.f32 %v2441, %v2444
  %v2446 = vsel %vm299, %v2418, -inf
  %v2447 = vmax.f32 %v2443, %v2446
  %v2448 = vsel %vm299, %v2420, -inf
  %v2449 = vmax.f32 %v2445, %v2448
  %v2450 = vsel %vm299, %v2422, -inf
  %v2451 = vmax.f32 %v2447, %v2450
  %v2452 = vmax.f32 %v2449, %v2451
  %v2453 = vmax.f32 %v2227, %v2437
  %v2454 = vmax.f32 %v2228, %v2452
  %v2455 = vsel %vm164, 1, 0
  %v2456 = vsel %vm165, 1, 0
  %2457 = vset.pattern.permute.xlu0 0
  %2458 = vperm.xlu0 %2457, %v2455
  %v2459 = vpop.permute.xlu0 %2458
  %2460 = vset.pattern.permute.xlu0 0
  %2461 = vperm.xlu0 %2460, %v2456
  %v2462 = vpop.permute.xlu0 %2461
  %vm2463 = vcmp.eq.s32.totalorder %v2459, 1
  %vm2464 = vcmp.eq.s32.totalorder %v2462, 1
  %v2465 = vsel %vm2463, %v2453, 0.0
  %v2466 = vsel %vm2464, %v2454, 0.0
  %v2467 = vsub.f32 0.0, %v2453
  %v2468 = vsub.f32 0.0, %v2454
  %v2469 = vsel %vm2463, %v2467, 0.0
  %v2470 = vsel %vm2464, %v2468, 0.0
  %2473 = vrot.lane.b32.xlu0 %v569, 16
  %v2474 = vpop.permute.xlu0 %2473
  %2475 = vrot.lane.b32.xlu0 %v570, 16
  %v2476 = vpop.permute.xlu0 %2475
  %2481 = vrot.lane.b32.xlu0 %v2469, 16
  %v2482 = vpop.permute.xlu0 %2481
  %2483 = vrot.lane.b32.xlu0 %v2470, 16
  %v2484 = vpop.permute.xlu0 %2483
  %2489 = vrot.lane.b32.xlu0 %v2465, 48
  %v2490 = vpop.permute.xlu0 %2489
  %2491 = vrot.lane.b32.xlu0 %v2466, 48
  %v2492 = vpop.permute.xlu0 %2491
  %2497 = vrot.lane.b32.xlu0 %v593, 48
  %v2498 = vpop.permute.xlu0 %2497
  %2499 = vrot.lane.b32.xlu0 %v600, 48
  %v2500 = vpop.permute.xlu0 %2499
  %v2503 = vsel %vm202, %v551, %v2474
  %v2504 = vsel %vm202, %v556, %v2476
  %v2505 = vsel %vm299, %v2503, %v2482
  %v2506 = vsel %vm299, %v2504, %v2484
  %vm2507 = vcmask 392192
  %v2508 = vsel %vm2507, %v2505, %v2490
  %v2509 = vsel %vm2507, %v2506, %v2492
  %v2510 = vsel %vm477, %v2508, %v2498
  %v2511 = vsel %vm477, %v2509, %v2500
  %2513 = vset.pattern.permute.xlu0 0
  %2514 = vperm.xlu0 %2513, %v172
  %v2515 = vpop.permute.xlu0 %2514
  %2518 = vset.pattern.permute.xlu0 0
  %2519 = vperm.xlu0 %2518, %v173
  %v2520 = vpop.permute.xlu0 %2519
  %v2522 = vmul.f32 %v2515, %v2510
  %v2523 = vmul.f32 %v2520, %v2511
  %2525 = vset.pattern.permute.xlu0 0
  %2526 = vperm.xlu0 %2525, %v177
  %v2527 = vpop.permute.xlu0 %2526
  %2530 = vset.pattern.permute.xlu0 0
  %2531 = vperm.xlu0 %2530, %v179
  %v2532 = vpop.permute.xlu0 %2531
  %v2534 = vmul.f32 %v2527, %v2510
  %v2535 = vmul.f32 %v2532, %v2511
  %2537 = vset.pattern.permute.xlu0 0
  %2538 = vperm.xlu0 %2537, %v174
  %v2539 = vpop.permute.xlu0 %2538
  %2542 = vset.pattern.permute.xlu0 0
  %2543 = vperm.xlu0 %2542, %v175
  %v2544 = vpop.permute.xlu0 %2543
  %v2546 = vmul.f32 %v2539, %v2510
  %v2547 = vmul.f32 %v2544, %v2511
  %2549 = vset.pattern.permute.xlu0 0
  %2550 = vperm.xlu0 %2549, %v181
  %v2551 = vpop.permute.xlu0 %2550
  %2554 = vset.pattern.permute.xlu0 0
  %2555 = vperm.xlu0 %2554, %v183
  %v2556 = vpop.permute.xlu0 %2555
  %v2558 = vmul.f32 %v2551, %v2510
  %v2559 = vmul.f32 %v2556, %v2511
  %2562 = vrot.lane.b32.xlu0 %v2510, 16
  %v2563 = vpop.permute.xlu0 %2562
  %2564 = vrot.lane.b32.xlu0 %v2511, 16
  %v2565 = vpop.permute.xlu0 %2564
  %2570 = vrot.lane.b32.xlu0 %v2522, 96
  %v2571 = vpop.permute.xlu0 %2570
  %2572 = vrot.lane.b32.xlu0 %v2523, 96
  %v2573 = vpop.permute.xlu0 %2572
  %2578 = vrot.lane.b32.xlu0 %v2534, 48
  %v2579 = vpop.permute.xlu0 %2578
  %2580 = vrot.lane.b32.xlu0 %v2535, 48
  %v2581 = vpop.permute.xlu0 %2580
  %2586 = vrot.lane.b32.xlu0 %v2558, 80
  %v2587 = vpop.permute.xlu0 %2586
  %2588 = vrot.lane.b32.xlu0 %v2559, 80
  %v2589 = vpop.permute.xlu0 %2588
  %v2592 = vsel %vm202, %v144, %v2563
  %v2593 = vsel %vm202, %v145, %v2565
  %vm2594 = vcmask 785408
  %v2595 = vsel %vm2594, %v2592, %v2571
  %v2596 = vsel %vm2594, %v2593, %v2573
  %v2597 = vsel %vm2507, %v2571, %v2579
  %v2598 = vsel %vm2507, %v2573, %v2581
  %vm2599 = vcmask 654336
  %v2600 = vsel %vm2599, %v2546, %v2587
  %v2601 = vsel %vm2599, %v2547, %v2589
  %v2602 = vld [vmem:[%s13] sm:$0xff]
  %v2603 = vld [vmem:[%s13 + $0x8] sm:$0xff]
  %v2604 = vld [vmem:[%s13 + $0x10] sm:$0xff]
  %v2605 = vld [vmem:[%s13 + $0x18] sm:$0xff]
  %v2606 = vld [vmem:[%s13 + $0x20] sm:$0xff]
  %v2607 = vld [vmem:[%s13 + $0x28] sm:$0xff]
  %v2608 = vld [vmem:[%s13 + $0x30] sm:$0xff]
  %v2609 = vld [vmem:[%s13 + $0x38] sm:$0xff]
  %v2610 = vld [vmem:[%s13 + $0x40] sm:$0xff]
  %v2611 = vld [vmem:[%s13 + $0x48] sm:$0xff]
  %v2612 = vld [vmem:[%s13 + $0x50] sm:$0xff]
  %v2613 = vld [vmem:[%s13 + $0x58] sm:$0xff]
  %v2614 = vld [vmem:[%s13 + $0x60] sm:$0xff]
  %v2615 = vld [vmem:[%s13 + $0x68] sm:$0xff]
  %v2616 = vld [vmem:[%s13 + $0x70] sm:$0xff]
  %v2617 = vld [vmem:[%s13 + $0x78] sm:$0xff]
  %v2618 = vld [vmem:[%s13 + $0x80] sm:$0xff]
  %v2619 = vld [vmem:[%s13 + $0x88] sm:$0xff]
  %v2620 = vld [vmem:[%s13 + $0x90] sm:$0xff]
  %v2621 = vld [vmem:[%s13 + $0x98] sm:$0xff]
  %v2622 = vld [vmem:[%s13 + $0xa0] sm:$0xff]
  %v2623 = vld [vmem:[%s13 + $0xa8] sm:$0xff]
  %v2624 = vld [vmem:[%s13 + $0xb0] sm:$0xff]
  %v2625 = vld [vmem:[%s13 + $0xb8] sm:$0xff]
  %v2626 = vld [vmem:[%s13 + $0xc0] sm:$0xff]
  %v2627 = vld [vmem:[%s13 + $0xc8] sm:$0xff]
  %v2628 = vld [vmem:[%s13 + $0xd0] sm:$0xff]
  %v2629 = vld [vmem:[%s13 + $0xd8] sm:$0xff]
  %v2630 = vld [vmem:[%s13 + $0xe0] sm:$0xff]
  %v2631 = vld [vmem:[%s13 + $0xe8] sm:$0xff]
  %v2632 = vld [vmem:[%s13 + $0xf0] sm:$0xff]
  %v2633 = vld [vmem:[%s13 + $0xf8] sm:$0xff]
  %v2634 = vld [vmem:[%s13 + $0x100] sm:$0xff]
  %v2635 = vld [vmem:[%s13 + $0x108] sm:$0xff]
  %v2636 = vld [vmem:[%s13 + $0x110] sm:$0xff]
  %v2637 = vld [vmem:[%s13 + $0x118] sm:$0xff]
  %v2638 = vld [vmem:[%s13 + $0x120] sm:$0xff]
  %v2639 = vld [vmem:[%s13 + $0x128] sm:$0xff]
  %v2640 = vld [vmem:[%s13 + $0x130] sm:$0xff]
  %v2641 = vld [vmem:[%s13 + $0x138] sm:$0xff]
  %v2642 = vld [vmem:[%s13 + $0x140] sm:$0xff]
  %v2643 = vld [vmem:[%s13 + $0x148] sm:$0xff]
  %v2644 = vld [vmem:[%s13 + $0x150] sm:$0xff]
  %v2645 = vld [vmem:[%s13 + $0x158] sm:$0xff]
  %v2646 = vld [vmem:[%s13 + $0x160] sm:$0xff]
  %v2647 = vld [vmem:[%s13 + $0x168] sm:$0xff]
  %v2648 = vld [vmem:[%s13 + $0x170] sm:$0xff]
  %v2649 = vld [vmem:[%s13 + $0x178] sm:$0xff]
  %v2650 = vld [vmem:[%s13 + $0x180] sm:$0xff]
  %v2651 = vld [vmem:[%s13 + $0x188] sm:$0xff]
  %v2652 = vld [vmem:[%s13 + $0x190] sm:$0xff]
  %v2653 = vld [vmem:[%s13 + $0x198] sm:$0xff]
  %v2654 = vld [vmem:[%s15] sm:$0x1]
  %v2656 = vlaneseq
  %v2657 = vshrl.u32 %v2656, 7
  %v2658 = vsub.s32 0, %v2657
  %v2659 = vrot.slane %v2654, %v2658
  %v2661 = vsel %vm299, %v2587, 0
  %v2663 = vsel %vm299, %v2589, 0
  %2665 = vmatprep.subr.mxu0 0.0
  %2666 = vmatpush1.msra.mxu0 %v2617
  %2667 = vmatprep.subr.mxu0 0.0
  %2668 = vmatpush1.msra.mxu0 %v2616
  %2669 = vmatprep.subr.mxu0 0.0
  %2670 = vmatpush1.msra.mxu0 %v2615
  %2671 = vmatprep.subr.mxu0 0.0
  %2672 = vmatpush1.msra.mxu0 %v2614
  %2673 = vmatprep.subr.mxu0 0.0
  %2674 = vmatpush1.msra.mxu0 %v2613
  %2675 = vmatprep.subr.mxu0 0.0
  %2676 = vmatpush1.msra.mxu0 %v2612
  %2677 = vmatprep.subr.mxu0 0.0
  %2678 = vmatpush1.msra.mxu0 %v2611
  %2679 = vmatprep.subr.mxu0 0.0
  %2680 = vmatpush1.msra.mxu0 %v2610
  %2681 = vmatprep.subr.mxu0 0.0
  %2682 = vmatpush1.msra.mxu0 %v2609
  %2683 = vmatprep.subr.mxu0 0.0
  %2684 = vmatpush1.msra.mxu0 %v2608
  %2685 = vmatprep.subr.mxu0 0.0
  %2686 = vmatpush1.msra.mxu0 %v2607
  %2687 = vmatprep.subr.mxu0 0.0
  %2688 = vmatpush1.msra.mxu0 %v2606
  %2689 = vmatprep.subr.mxu0 0.0
  %2690 = vmatpush1.msra.mxu0 %v2605
  %2691 = vmatprep.subr.mxu0 0.0
  %2692 = vmatpush1.msra.mxu0 %v2604
  %2693 = vmatprep.subr.mxu0 0.0
  %2694 = vmatpush1.msra.mxu0 %v2603
  %2695 = vmatprep.subr.mxu0 0.0
  %2696 = vmatpush1.msra.mxu0 %v2602
  %2697 = vmatprep.subr.mxu0 0.0
  %2698 = vmatpush2.msra.mxu0 %v2633
  %2699 = vmatprep.subr.mxu0 0.0
  %2700 = vmatpush2.msra.mxu0 %v2632
  %2701 = vmatprep.subr.mxu0 0.0
  %2702 = vmatpush2.msra.mxu0 %v2631
  %2703 = vmatprep.subr.mxu0 0.0
  %2704 = vmatpush2.msra.mxu0 %v2630
  %2705 = vmatprep.subr.mxu0 0.0
  %2706 = vmatpush2.msra.mxu0 %v2629
  %2707 = vmatprep.subr.mxu0 0.0
  %2708 = vmatpush2.msra.mxu0 %v2628
  %2709 = vmatprep.subr.mxu0 0.0
  %2710 = vmatpush2.msra.mxu0 %v2627
  %2711 = vmatprep.subr.mxu0 0.0
  %2712 = vmatpush2.msra.mxu0 %v2626
  %2713 = vmatprep.subr.mxu0 0.0
  %2714 = vmatpush2.msra.mxu0 %v2625
  %2715 = vmatprep.subr.mxu0 0.0
  %2716 = vmatpush2.msra.mxu0 %v2624
  %2717 = vmatprep.subr.mxu0 0.0
  %2718 = vmatpush2.msra.mxu0 %v2623
  %2719 = vmatprep.subr.mxu0 0.0
  %2720 = vmatpush2.msra.mxu0 %v2622
  %2721 = vmatprep.subr.mxu0 0.0
  %2722 = vmatpush2.msra.mxu0 %v2621
  %2723 = vmatprep.subr.mxu0 0.0
  %2724 = vmatpush2.msra.mxu0 %v2620
  %2725 = vmatprep.subr.mxu0 0.0
  %2726 = vmatpush2.msra.mxu0 %v2619
  %2727 = vmatprep.subr.mxu0 0.0
  %2728 = vmatpush2.msra.mxu0 %v2618
  %2729 = vmatprep.mubr.f32.mxu0 %v2597
  %2730 = vmatmul.mubr.f32.gmra.mxu0 %v2595
  %v2731 = vpop.f32.mrf.mxu0
  %v2732 = vadd.f32 %v2659, %v2731
  %v2733 = vpop.f32.mrf.mxu0
  %2734 = vmatprep.mubr.f32.mxu0 %v2598
  %2735 = vmatmul.mubr.f32.gmra.mxu0 %v2596
  %v2736 = vpop.f32.mrf.mxu0
  %v2737 = vadd.f32 %v2659, %v2736
  %v2738 = vpop.f32.mrf.mxu0
  %2739 = vdwg.mxu0
  %2740 = vmatprep.subr.mxu0 0.0
  %2741 = vmatpush1.msra.mxu0 %v2649
  %2742 = vmatprep.subr.mxu0 0.0
  %2743 = vmatpush1.msra.mxu0 %v2648
  %2744 = vmatprep.subr.mxu0 0.0
  %2745 = vmatpush1.msra.mxu0 %v2647
  %2746 = vmatprep.subr.mxu0 0.0
  %2747 = vmatpush1.msra.mxu0 %v2646
  %2748 = vmatprep.subr.mxu0 0.0
  %2749 = vmatpush1.msra.mxu0 %v2645
  %2750 = vmatprep.subr.mxu0 0.0
  %2751 = vmatpush1.msra.mxu0 %v2644
  %2752 = vmatprep.subr.mxu0 0.0
  %2753 = vmatpush1.msra.mxu0 %v2643
  %2754 = vmatprep.subr.mxu0 0.0
  %2755 = vmatpush1.msra.mxu0 %v2642
  %2756 = vmatprep.subr.mxu0 0.0
  %2757 = vmatpush1.msra.mxu0 %v2641
  %2758 = vmatprep.subr.mxu0 0.0
  %2759 = vmatpush1.msra.mxu0 %v2640
  %2760 = vmatprep.subr.mxu0 0.0
  %2761 = vmatpush1.msra.mxu0 %v2639
  %2762 = vmatprep.subr.mxu0 0.0
  %2763 = vmatpush1.msra.mxu0 %v2638
  %2764 = vmatprep.subr.mxu0 0.0
  %2765 = vmatpush1.msra.mxu0 %v2637
  %2766 = vmatprep.subr.mxu0 0.0
  %2767 = vmatpush1.msra.mxu0 %v2636
  %2768 = vmatprep.subr.mxu0 0.0
  %2769 = vmatpush1.msra.mxu0 %v2635
  %2770 = vmatprep.subr.mxu0 0.0
  %2771 = vmatpush1.msra.mxu0 %v2634
  %2772 = vmatprep.subr.mxu0 0.0
  %2773 = vmatpush2.msra.mxu0 0.0
  %2774 = vmatprep.subr.mxu0 0.0
  %2775 = vmatpush2.msra.mxu0 0.0
  %2776 = vmatprep.subr.mxu0 0.0
  %2777 = vmatpush2.msra.mxu0 0.0
  %2778 = vmatprep.subr.mxu0 0.0
  %2779 = vmatpush2.msra.mxu0 0.0
  %2780 = vmatprep.subr.mxu0 0.0
  %2781 = vmatpush2.msra.mxu0 0.0
  %2782 = vmatprep.subr.mxu0 0.0
  %2783 = vmatpush2.msra.mxu0 0.0
  %2784 = vmatprep.subr.mxu0 0.0
  %2785 = vmatpush2.msra.mxu0 0.0
  %2786 = vmatprep.subr.mxu0 0.0
  %2787 = vmatpush2.msra.mxu0 0.0
  %2788 = vmatprep.subr.mxu0 0.0
  %2789 = vmatpush2.msra.mxu0 0.0
  %2790 = vmatprep.subr.mxu0 0.0
  %2791 = vmatpush2.msra.mxu0 0.0
  %2792 = vmatprep.subr.mxu0 0.0
  %2793 = vmatpush2.msra.mxu0 0.0
  %2794 = vmatprep.subr.mxu0 0.0
  %2795 = vmatpush2.msra.mxu0 0.0
  %2796 = vmatprep.subr.mxu0 0.0
  %2797 = vmatpush2.msra.mxu0 %v2653
  %2798 = vmatprep.subr.mxu0 0.0
  %2799 = vmatpush2.msra.mxu0 %v2652
  %2800 = vmatprep.subr.mxu0 0.0
  %2801 = vmatpush2.msra.mxu0 %v2651
  %2802 = vmatprep.subr.mxu0 0.0
  %2803 = vmatpush2.msra.mxu0 %v2650
  %2804 = vmatprep.mubr.f32.mxu0 %v2661
  %2805 = vmatmul.mubr.f32.gmra.mxu0 %v2600
  %v2806 = vpop.f32.mrf.mxu0
  %v2807 = vadd.f32 %v2732, %v2806
  %v2808 = vpop.f32.mrf.mxu0
  %2809 = vmatprep.mubr.f32.mxu0 %v2663
  %2810 = vmatmul.mubr.f32.gmra.mxu0 %v2601
  %v2811 = vpop.f32.mrf.mxu0
  %v2812 = vadd.f32 %v2737, %v2811
  %v2813 = vpop.f32.mrf.mxu0
  %2814 = vdwg.mxu0
  %v2815 = vld [vmem:[%s17] sm:$0xff]
  %v2816 = vld [vmem:[%s17 + $0x8] sm:$0xff]
  %v2817 = vld [vmem:[%s17 + $0x10] sm:$0xff]
  %v2818 = vld [vmem:[%s17 + $0x18] sm:$0xff]
  %v2819 = vld [vmem:[%s19] sm:$0x1]
  %v2821 = vlaneseq
  %v2822 = vshrl.u32 %v2821, 7
  %v2823 = vsub.s32 0, %v2822
  %v2824 = vrot.slane %v2819, %v2823
  %v2827 = vsel %vm299, %v2807, 0
  %v2830 = vsel %vm299, %v2812, 0
  %2832 = vmatprep.subr.mxu0 0.0
  %2833 = vmatpush1.msra.mxu0 0.0
  %2834 = vmatprep.subr.mxu0 0.0
  %2835 = vmatpush1.msra.mxu0 0.0
  %2836 = vmatprep.subr.mxu0 0.0
  %2837 = vmatpush1.msra.mxu0 0.0
  %2838 = vmatprep.subr.mxu0 0.0
  %2839 = vmatpush1.msra.mxu0 0.0
  %2840 = vmatprep.subr.mxu0 0.0
  %2841 = vmatpush1.msra.mxu0 0.0
  %2842 = vmatprep.subr.mxu0 0.0
  %2843 = vmatpush1.msra.mxu0 0.0
  %2844 = vmatprep.subr.mxu0 0.0
  %2845 = vmatpush1.msra.mxu0 0.0
  %2846 = vmatprep.subr.mxu0 0.0
  %2847 = vmatpush1.msra.mxu0 0.0
  %2848 = vmatprep.subr.mxu0 0.0
  %2849 = vmatpush1.msra.mxu0 0.0
  %2850 = vmatprep.subr.mxu0 0.0
  %2851 = vmatpush1.msra.mxu0 0.0
  %2852 = vmatprep.subr.mxu0 0.0
  %2853 = vmatpush1.msra.mxu0 0.0
  %2854 = vmatprep.subr.mxu0 0.0
  %2855 = vmatpush1.msra.mxu0 0.0
  %2856 = vmatprep.subr.mxu0 0.0
  %2857 = vmatpush1.msra.mxu0 %v2818
  %2858 = vmatprep.subr.mxu0 0.0
  %2859 = vmatpush1.msra.mxu0 %v2817
  %2860 = vmatprep.subr.mxu0 0.0
  %2861 = vmatpush1.msra.mxu0 %v2816
  %2862 = vmatprep.subr.mxu0 0.0
  %2863 = vmatpush1.msra.mxu0 %v2815
  %2864 = vmatprep.subr.mxu0 0.0
  %2865 = vmatpush2.msra.mxu0 0.0
  %2866 = vmatprep.subr.mxu0 0.0
  %2867 = vmatpush2.msra.mxu0 0.0
  %2868 = vmatprep.subr.mxu0 0.0
  %2869 = vmatpush2.msra.mxu0 0.0
  %2870 = vmatprep.subr.mxu0 0.0
  %2871 = vmatpush2.msra.mxu0 0.0
  %2872 = vmatprep.subr.mxu0 0.0
  %2873 = vmatpush2.msra.mxu0 0.0
  %2874 = vmatprep.subr.mxu0 0.0
  %2875 = vmatpush2.msra.mxu0 0.0
  %2876 = vmatprep.subr.mxu0 0.0
  %2877 = vmatpush2.msra.mxu0 0.0
  %2878 = vmatprep.subr.mxu0 0.0
  %2879 = vmatpush2.msra.mxu0 0.0
  %2880 = vmatprep.subr.mxu0 0.0
  %2881 = vmatpush2.msra.mxu0 0.0
  %2882 = vmatprep.subr.mxu0 0.0
  %2883 = vmatpush2.msra.mxu0 0.0
  %2884 = vmatprep.subr.mxu0 0.0
  %2885 = vmatpush2.msra.mxu0 0.0
  %2886 = vmatprep.subr.mxu0 0.0
  %2887 = vmatpush2.msra.mxu0 0.0
  %2888 = vmatprep.subr.mxu0 0.0
  %2889 = vmatpush2.msra.mxu0 0.0
  %2890 = vmatprep.subr.mxu0 0.0
  %2891 = vmatpush2.msra.mxu0 0.0
  %2892 = vmatprep.subr.mxu0 0.0
  %2893 = vmatpush2.msra.mxu0 0.0
  %2894 = vmatprep.subr.mxu0 0.0
  %2895 = vmatpush2.msra.mxu0 0.0
  %2896 = vmatprep.mubr.f32.mxu0 0.0
  %2897 = vmatmul.mubr.f32.gmra.mxu0 %v2827
  %v2898 = vpop.f32.mrf.mxu0
  %v2899 = vadd.f32 %v2824, %v2898
  %v2900 = vpop.f32.mrf.mxu0
  %2901 = vmatprep.mubr.f32.mxu0 0.0
  %2902 = vmatmul.mubr.f32.gmra.mxu0 %v2830
  %v2903 = vpop.f32.mrf.mxu0
  %v2904 = vadd.f32 %v2824, %v2903
  %v2905 = vpop.f32.mrf.mxu0
  %2906 = vdwg.mxu0
  %v2907 = vld [vmem:[%s21] sm:$0xff]
  %v2908 = vld [vmem:[%s21 + $0x8] sm:$0xff]
  %v2909 = vld [vmem:[%s21 + $0x10] sm:$0xff]
  %v2910 = vld [vmem:[%s21 + $0x18] sm:$0xff]
  %v2912 = vsel %vm299, %v2899, 0
  %v2915 = vsel %vm299, %v2904, 0
  %2917 = vmatprep.subr.mxu0 0.0
  %2918 = vmatpush1.msra.mxu0 0.0
  %2919 = vmatprep.subr.mxu0 0.0
  %2920 = vmatpush1.msra.mxu0 0.0
  %2921 = vmatprep.subr.mxu0 0.0
  %2922 = vmatpush1.msra.mxu0 0.0
  %2923 = vmatprep.subr.mxu0 0.0
  %2924 = vmatpush1.msra.mxu0 0.0
  %2925 = vmatprep.subr.mxu0 0.0
  %2926 = vmatpush1.msra.mxu0 0.0
  %2927 = vmatprep.subr.mxu0 0.0
  %2928 = vmatpush1.msra.mxu0 0.0
  %2929 = vmatprep.subr.mxu0 0.0
  %2930 = vmatpush1.msra.mxu0 0.0
  %2931 = vmatprep.subr.mxu0 0.0
  %2932 = vmatpush1.msra.mxu0 0.0
  %2933 = vmatprep.subr.mxu0 0.0
  %2934 = vmatpush1.msra.mxu0 0.0
  %2935 = vmatprep.subr.mxu0 0.0
  %2936 = vmatpush1.msra.mxu0 0.0
  %2937 = vmatprep.subr.mxu0 0.0
  %2938 = vmatpush1.msra.mxu0 0.0
  %2939 = vmatprep.subr.mxu0 0.0
  %2940 = vmatpush1.msra.mxu0 0.0
  %2941 = vmatprep.subr.mxu0 0.0
  %2942 = vmatpush1.msra.mxu0 %v2910
  %2943 = vmatprep.subr.mxu0 0.0
  %2944 = vmatpush1.msra.mxu0 %v2909
  %2945 = vmatprep.subr.mxu0 0.0
  %2946 = vmatpush1.msra.mxu0 %v2908
  %2947 = vmatprep.subr.mxu0 0.0
  %2948 = vmatpush1.msra.mxu0 %v2907
  %2949 = vmatprep.subr.mxu0 0.0
  %2950 = vmatpush2.msra.mxu0 0.0
  %2951 = vmatprep.subr.mxu0 0.0
  %2952 = vmatpush2.msra.mxu0 0.0
  %2953 = vmatprep.subr.mxu0 0.0
  %2954 = vmatpush2.msra.mxu0 0.0
  %2955 = vmatprep.subr.mxu0 0.0
  %2956 = vmatpush2.msra.mxu0 0.0
  %2957 = vmatprep.subr.mxu0 0.0
  %2958 = vmatpush2.msra.mxu0 0.0
  %2959 = vmatprep.subr.mxu0 0.0
  %2960 = vmatpush2.msra.mxu0 0.0
  %2961 = vmatprep.subr.mxu0 0.0
  %2962 = vmatpush2.msra.mxu0 0.0
  %2963 = vmatprep.subr.mxu0 0.0
  %2964 = vmatpush2.msra.mxu0 0.0
  %2965 = vmatprep.subr.mxu0 0.0
  %2966 = vmatpush2.msra.mxu0 0.0
  %2967 = vmatprep.subr.mxu0 0.0
  %2968 = vmatpush2.msra.mxu0 0.0
  %2969 = vmatprep.subr.mxu0 0.0
  %2970 = vmatpush2.msra.mxu0 0.0
  %2971 = vmatprep.subr.mxu0 0.0
  %2972 = vmatpush2.msra.mxu0 0.0
  %2973 = vmatprep.subr.mxu0 0.0
  %2974 = vmatpush2.msra.mxu0 0.0
  %2975 = vmatprep.subr.mxu0 0.0
  %2976 = vmatpush2.msra.mxu0 0.0
  %2977 = vmatprep.subr.mxu0 0.0
  %2978 = vmatpush2.msra.mxu0 0.0
  %2979 = vmatprep.subr.mxu0 0.0
  %2980 = vmatpush2.msra.mxu0 0.0
  %2981 = vmatprep.mubr.f32.mxu0 0.0
  %2982 = vmatmul.mubr.f32.gmra.mxu0 %v2912
  %v2983 = vpop.f32.mrf.mxu0
  %v2984 = vadd.f32 0.0, %v2983
  %v2985 = vpop.f32.mrf.mxu0
  %2986 = vmatprep.mubr.f32.mxu0 0.0
  %2987 = vmatmul.mubr.f32.gmra.mxu0 %v2915
  %v2988 = vpop.f32.mrf.mxu0
  %v2989 = vadd.f32 0.0, %v2988
  %v2990 = vpop.f32.mrf.mxu0
  %2991 = vdwg.mxu0
  %2994 = vrot.lane.b32.xlu0 %v2984, 96
  %v2995 = vpop.permute.xlu0 %2994
  %2996 = vrot.lane.b32.xlu0 %v2989, 96
  %v2997 = vpop.permute.xlu0 %2996
  %v3000 = vld [vmem:[%s23] sm:$0x1]
  %v3002 = vlaneseq
  %v3003 = vshrl.u32 %v3002, 7
  %v3004 = vsub.s32 0, %v3003
  %v3005 = vrot.slane %v3000, %v3004
  %3007 = vmatprep.subr.mxu0 0.0
  %3008 = vmatpush1.msra.mxu0 0.0
  %3009 = vmatprep.subr.mxu0 0.0
  %3010 = vmatpush1.msra.mxu0 0.0
  %3011 = vmatprep.subr.mxu0 0.0
  %3012 = vmatpush1.msra.mxu0 0.0
  %3013 = vmatprep.subr.mxu0 0.0
  %3014 = vmatpush1.msra.mxu0 0.0
  %3015 = vmatprep.subr.mxu0 0.0
  %3016 = vmatpush1.msra.mxu0 0.0
  %3017 = vmatprep.subr.mxu0 0.0
  %3018 = vmatpush1.msra.mxu0 0.0
  %3019 = vmatprep.subr.mxu0 0.0
  %3020 = vmatpush1.msra.mxu0 0.0
  %3021 = vmatprep.subr.mxu0 0.0
  %3022 = vmatpush1.msra.mxu0 0.0
  %3023 = vmatprep.subr.mxu0 0.0
  %3024 = vmatpush1.msra.mxu0 0.0
  %3025 = vmatprep.subr.mxu0 0.0
  %3026 = vmatpush1.msra.mxu0 0.0
  %3027 = vmatprep.subr.mxu0 0.0
  %3028 = vmatpush1.msra.mxu0 0.0
  %3029 = vmatprep.subr.mxu0 0.0
  %3030 = vmatpush1.msra.mxu0 0.0
  %3031 = vmatprep.subr.mxu0 0.0
  %3032 = vmatpush1.msra.mxu0 %v2997
  %3033 = vmatprep.subr.mxu0 0.0
  %3034 = vmatpush1.msra.mxu0 %v2995
  %3035 = vmatprep.subr.mxu0 0.0
  %3036 = vmatpush1.msra.mxu0 %v2989
  %3037 = vmatprep.subr.mxu0 0.0
  %3038 = vmatpush1.msra.mxu0 %v2984
  %3039 = vmatprep.subr.mxu0 0.0
  %3040 = vmatpush2.msra.mxu0 0.0
  %3041 = vmatprep.subr.mxu0 0.0
  %3042 = vmatpush2.msra.mxu0 0.0
  %3043 = vmatprep.subr.mxu0 0.0
  %3044 = vmatpush2.msra.mxu0 0.0
  %3045 = vmatprep.subr.mxu0 0.0
  %3046 = vmatpush2.msra.mxu0 0.0
  %3047 = vmatprep.subr.mxu0 0.0
  %3048 = vmatpush2.msra.mxu0 0.0
  %3049 = vmatprep.subr.mxu0 0.0
  %3050 = vmatpush2.msra.mxu0 0.0
  %3051 = vmatprep.subr.mxu0 0.0
  %3052 = vmatpush2.msra.mxu0 0.0
  %3053 = vmatprep.subr.mxu0 0.0
  %3054 = vmatpush2.msra.mxu0 0.0
  %3055 = vmatprep.subr.mxu0 0.0
  %3056 = vmatpush2.msra.mxu0 0.0
  %3057 = vmatprep.subr.mxu0 0.0
  %3058 = vmatpush2.msra.mxu0 0.0
  %3059 = vmatprep.subr.mxu0 0.0
  %3060 = vmatpush2.msra.mxu0 0.0
  %3061 = vmatprep.subr.mxu0 0.0
  %3062 = vmatpush2.msra.mxu0 0.0
  %3063 = vmatprep.subr.mxu0 0.0
  %3064 = vmatpush2.msra.mxu0 0.0
  %3065 = vmatprep.subr.mxu0 0.0
  %3066 = vmatpush2.msra.mxu0 0.0
  %3067 = vmatprep.subr.mxu0 0.0
  %3068 = vmatpush2.msra.mxu0 0.0
  %3069 = vmatprep.subr.mxu0 0.0
  %3070 = vmatpush2.msra.mxu0 0.0
  %3071 = vmatprep.mubr.f32.mxu0 0.0
  %3072 = vmatmul.mubr.f32.gmra.mxu0 %v301
  %v3073 = vpop.f32.mrf.mxu0
  %v3074 = vadd.f32 %v3005, %v3073
  %v3075 = vpop.f32.mrf.mxu0
  %3076 = vmatprep.mubr.f32.mxu0 0.0
  %3077 = vmatmul.mubr.f32.gmra.mxu0 %v304
  %v3078 = vpop.f32.mrf.mxu0
  %v3079 = vadd.f32 %v3005, %v3078
  %v3080 = vpop.f32.mrf.mxu0
  %3081 = vmatprep.mubr.f32.mxu0 0.0
  %3082 = vmatmul.mubr.f32.gmra.mxu0 %v307
  %v3083 = vpop.f32.mrf.mxu0
  %v3084 = vadd.f32 %v3005, %v3083
  %v3085 = vpop.f32.mrf.mxu0
  %3086 = vmatprep.mubr.f32.mxu0 0.0
  %3087 = vmatmul.mubr.f32.gmra.mxu0 %v310
  %v3088 = vpop.f32.mrf.mxu0
  %v3089 = vadd.f32 %v3005, %v3088
  %v3090 = vpop.f32.mrf.mxu0
  %3091 = vmatprep.mubr.f32.mxu0 0.0
  %3092 = vmatmul.mubr.f32.gmra.mxu0 %v313
  %v3093 = vpop.f32.mrf.mxu0
  %v3094 = vadd.f32 %v3005, %v3093
  %v3095 = vpop.f32.mrf.mxu0
  %3096 = vmatprep.mubr.f32.mxu0 0.0
  %3097 = vmatmul.mubr.f32.gmra.mxu0 %v316
  %v3098 = vpop.f32.mrf.mxu0
  %v3099 = vadd.f32 %v3005, %v3098
  %v3100 = vpop.f32.mrf.mxu0
  %3101 = vmatprep.mubr.f32.mxu0 0.0
  %3102 = vmatmul.mubr.f32.gmra.mxu0 %v319
  %v3103 = vpop.f32.mrf.mxu0
  %v3104 = vadd.f32 %v3005, %v3103
  %v3105 = vpop.f32.mrf.mxu0
  %3106 = vmatprep.mubr.f32.mxu0 0.0
  %3107 = vmatmul.mubr.f32.gmra.mxu0 %v322
  %v3108 = vpop.f32.mrf.mxu0
  %v3109 = vadd.f32 %v3005, %v3108
  %v3110 = vpop.f32.mrf.mxu0
  %3111 = vdwg.mxu0
  %v3112 = vmul.f32 %v3074, %v3074
  %v3113 = vmul.f32 %v3079, %v3079
  %v3114 = vmul.f32 %v3084, %v3084
  %v3115 = vmul.f32 %v3089, %v3089
  %v3116 = vmul.f32 %v3094, %v3094
  %v3117 = vmul.f32 %v3099, %v3099
  %v3118 = vmul.f32 %v3104, %v3104
  %v3119 = vmul.f32 %v3109, %v3109
  %3128 = vrot.lane.b32.xlu0 %v3112, 32
  %v3129 = vpop.permute.xlu0 %3128
  %3130 = vrot.lane.b32.xlu0 %v3113, 32
  %v3131 = vpop.permute.xlu0 %3130
  %3132 = vrot.lane.b32.xlu0 %v3114, 32
  %v3133 = vpop.permute.xlu0 %3132
  %3134 = vrot.lane.b32.xlu0 %v3115, 32
  %v3135 = vpop.permute.xlu0 %3134
  %3136 = vrot.lane.b32.xlu0 %v3116, 32
  %v3137 = vpop.permute.xlu0 %3136
  %3138 = vrot.lane.b32.xlu0 %v3117, 32
  %v3139 = vpop.permute.xlu0 %3138
  %3140 = vrot.lane.b32.xlu0 %v3118, 32
  %v3141 = vpop.permute.xlu0 %3140
  %3142 = vrot.lane.b32.xlu0 %v3119, 32
  %v3143 = vpop.permute.xlu0 %3142
  %v3152 = vsel %vm299, %v3074, %v3129
  %v3153 = vsel %vm299, %v3079, %v3131
  %v3154 = vsel %vm299, %v3084, %v3133
  %v3155 = vsel %vm299, %v3089, %v3135
  %v3156 = vsel %vm299, %v3094, %v3137
  %v3157 = vsel %vm299, %v3099, %v3139
  %v3158 = vsel %vm299, %v3104, %v3141
  %v3159 = vsel %vm299, %v3109, %v3143
  %3160 = vmatprep.subr.mxu0 0.0
  %3161 = vmatpush1.msra.mxu0 0.0
  %3162 = vmatprep.subr.mxu0 0.0
  %3163 = vmatpush1.msra.mxu0 0.0
  %3164 = vmatprep.subr.mxu0 0.0
  %3165 = vmatpush1.msra.mxu0 0.0
  %3166 = vmatprep.subr.mxu0 0.0
  %3167 = vmatpush1.msra.mxu0 0.0
  %3168 = vmatprep.subr.mxu0 0.0
  %3169 = vmatpush1.msra.mxu0 0.0
  %3170 = vmatprep.subr.mxu0 0.0
  %3171 = vmatpush1.msra.mxu0 0.0
  %3172 = vmatprep.subr.mxu0 0.0
  %3173 = vmatpush1.msra.mxu0 0.0
  %3174 = vmatprep.subr.mxu0 0.0
  %3175 = vmatpush1.msra.mxu0 0.0
  %3176 = vmatprep.subr.mxu0 0.0
  %3177 = vmatpush1.msra.mxu0 %v3159
  %3178 = vmatprep.subr.mxu0 0.0
  %3179 = vmatpush1.msra.mxu0 %v3158
  %3180 = vmatprep.subr.mxu0 0.0
  %3181 = vmatpush1.msra.mxu0 %v3157
  %3182 = vmatprep.subr.mxu0 0.0
  %3183 = vmatpush1.msra.mxu0 %v3156
  %3184 = vmatprep.subr.mxu0 0.0
  %3185 = vmatpush1.msra.mxu0 %v3155
  %3186 = vmatprep.subr.mxu0 0.0
  %3187 = vmatpush1.msra.mxu0 %v3154
  %3188 = vmatprep.subr.mxu0 0.0
  %3189 = vmatpush1.msra.mxu0 %v3153
  %3190 = vmatprep.subr.mxu0 0.0
  %3191 = vmatpush1.msra.mxu0 %v3152
  %3192 = vmatprep.subr.mxu0 0.0
  %3193 = vmatpush2.msra.mxu0 0.0
  %3194 = vmatprep.subr.mxu0 0.0
  %3195 = vmatpush2.msra.mxu0 0.0
  %3196 = vmatprep.subr.mxu0 0.0
  %3197 = vmatpush2.msra.mxu0 0.0
  %3198 = vmatprep.subr.mxu0 0.0
  %3199 = vmatpush2.msra.mxu0 0.0
  %3200 = vmatprep.subr.mxu0 0.0
  %3201 = vmatpush2.msra.mxu0 0.0
  %3202 = vmatprep.subr.mxu0 0.0
  %3203 = vmatpush2.msra.mxu0 0.0
  %3204 = vmatprep.subr.mxu0 0.0
  %3205 = vmatpush2.msra.mxu0 0.0
  %3206 = vmatprep.subr.mxu0 0.0
  %3207 = vmatpush2.msra.mxu0 0.0
  %3208 = vmatprep.subr.mxu0 0.0
  %3209 = vmatpush2.msra.mxu0 0.0
  %3210 = vmatprep.subr.mxu0 0.0
  %3211 = vmatpush2.msra.mxu0 0.0
  %3212 = vmatprep.subr.mxu0 0.0
  %3213 = vmatpush2.msra.mxu0 0.0
  %3214 = vmatprep.subr.mxu0 0.0
  %3215 = vmatpush2.msra.mxu0 0.0
  %3216 = vmatprep.subr.mxu0 0.0
  %3217 = vmatpush2.msra.mxu0 0.0
  %3218 = vmatprep.subr.mxu0 0.0
  %3219 = vmatpush2.msra.mxu0 0.0
  %3220 = vmatprep.subr.mxu0 0.0
  %3221 = vmatpush2.msra.mxu0 0.0
  %3222 = vmatprep.subr.mxu0 0.0
  %3223 = vmatpush2.msra.mxu0 0.0
  %3224 = vmatprep.mubr.f32.mxu0 0.0
  %3225 = vmatmul.mubr.f32.gmra.mxu0 %v479
  %v3226 = vpop.f32.mrf.mxu0
  %v3227 = vadd.f32 0.0, %v3226
  %v3228 = vpop.f32.mrf.mxu0
  %3229 = vmatprep.mubr.f32.mxu0 0.0
  %3230 = vmatmul.mubr.f32.gmra.mxu0 %v482
  %v3231 = vpop.f32.mrf.mxu0
  %v3232 = vadd.f32 0.0, %v3231
  %v3233 = vpop.f32.mrf.mxu0
  %3234 = vdwg.mxu0
  %v3235 = vmul.f32 %v3227, %v562
  %v3236 = vmul.f32 %v3232, %v567
  %v3237 = vmul.f32 %v3235, %v3235
  %v3238 = vmul.f32 %v3236, %v3236
  %3241 = vrot.lane.b32.xlu0 %v3237, 32
  %v3242 = vpop.permute.xlu0 %3241
  %3243 = vrot.lane.b32.xlu0 %v3238, 32
  %v3244 = vpop.permute.xlu0 %3243
  %v3247 = vsub.f32 %v3235, %v3242
  %v3248 = vsub.f32 %v3236, %v3244
  %v3249 = vmax.f32 %v3247, 0.0
  %v3250 = vmax.f32 %v3248, 0.0
  %v3251 = vadd.f32 %v3249, 1e-05
  %v3252 = vadd.f32 %v3250, 1e-05
  %v3253 = vrsqrt.pop %v3251
  %v3254 = vmul.f32 %v3251, %v3253
  %vm3255 = vcmp.eq.f32.partialorder %v3251, inf
  %v3256 = vsel %vm3255, %v3251, %v3254
  %vm3257 = vcmp.eq.f32.partialorder %v3251, 0.0
  %v3258 = vand.u32 %v3251, 2147483648
  %v3259 = vsel %vm3257, %v3258, %v3256
  %v3260 = vrsqrt.pop %v3252
  %v3261 = vmul.f32 %v3252, %v3260
  %vm3262 = vcmp.eq.f32.partialorder %v3252, inf
  %v3263 = vsel %vm3262, %v3252, %v3261
  %vm3264 = vcmp.eq.f32.partialorder %v3252, 0.0
  %v3265 = vand.u32 %v3252, 2147483648
  %v3266 = vsel %vm3264, %v3265, %v3263
  %v3267 = vsub.f32 0.0, %v3074
  %v3268 = vsub.f32 0.0, %v3079
  %v3269 = vsub.f32 0.0, %v3084
  %v3270 = vsub.f32 0.0, %v3089
  %v3271 = vsub.f32 0.0, %v3094
  %v3272 = vsub.f32 0.0, %v3099
  %v3273 = vsub.f32 0.0, %v3104
  %v3274 = vsub.f32 0.0, %v3109
  %3283 = vrot.lane.b32.xlu0 %v3267, 32
  %v3284 = vpop.permute.xlu0 %3283
  %3285 = vrot.lane.b32.xlu0 %v3268, 32
  %v3286 = vpop.permute.xlu0 %3285
  %3287 = vrot.lane.b32.xlu0 %v3269, 32
  %v3288 = vpop.permute.xlu0 %3287
  %3289 = vrot.lane.b32.xlu0 %v3270, 32
  %v3290 = vpop.permute.xlu0 %3289
  %3291 = vrot.lane.b32.xlu0 %v3271, 32
  %v3292 = vpop.permute.xlu0 %3291
  %3293 = vrot.lane.b32.xlu0 %v3272, 32
  %v3294 = vpop.permute.xlu0 %3293
  %3295 = vrot.lane.b32.xlu0 %v3273, 32
  %v3296 = vpop.permute.xlu0 %3295
  %3297 = vrot.lane.b32.xlu0 %v3274, 32
  %v3298 = vpop.permute.xlu0 %3297
  %v3307 = vsel %vm299, %v3074, %v3284
  %v3308 = vsel %vm299, %v3079, %v3286
  %v3309 = vsel %vm299, %v3084, %v3288
  %v3310 = vsel %vm299, %v3089, %v3290
  %v3311 = vsel %vm299, %v3094, %v3292
  %v3312 = vsel %vm299, %v3099, %v3294
  %v3313 = vsel %vm299, %v3104, %v3296
  %v3314 = vsel %vm299, %v3109, %v3298
  %v3316 = vcombine.high %v3307, %v3307
  %v3318 = vunpack.c.l.s4 1966171168
  %v3319 = vunpack.c.0.s8 %v3318
  %v3320 = vlaneseq
  %v3321 = vshrl.u32 %v3320, 7
  %v3322 = vsub.s32 %v3319, %v3321
  %v3323 = vrot.slane %v3307, %v3322
  %v3325 = vunpack.c.l.s4 1966171168
  %v3326 = vunpack.c.0.s8 %v3325
  %v3327 = vlaneseq
  %v3328 = vshrl.u32 %v3327, 7
  %v3329 = vsub.s32 %v3326, %v3328
  %v3330 = vrot.slane %v3316, %v3329
  %v3331 = vcombine.high %v3323, %v3323
  %v3332 = vcombine.high %v3330, %v3330
  %v3334 = vunpack.c.l.s4 1966171168
  %v3335 = vunpack.c.0.s8 %v3334
  %v3336 = vlaneseq
  %v3337 = vshrl.u32 %v3336, 7
  %v3338 = vsub.s32 %v3335, %v3337
  %v3339 = vrot.slane %v3323, %v3338
  %v3341 = vunpack.c.l.s4 1966171168
  %v3342 = vunpack.c.0.s8 %v3341
  %v3343 = vlaneseq
  %v3344 = vshrl.u32 %v3343, 7
  %v3345 = vsub.s32 %v3342, %v3344
  %v3346 = vrot.slane %v3330, %v3345
  %v3348 = vunpack.c.l.s4 1966171168
  %v3349 = vunpack.c.0.s8 %v3348
  %v3350 = vlaneseq
  %v3351 = vshrl.u32 %v3350, 7
  %v3352 = vsub.s32 %v3349, %v3351
  %v3353 = vrot.slane %v3331, %v3352
  %v3355 = vunpack.c.l.s4 1966171168
  %v3356 = vunpack.c.0.s8 %v3355
  %v3357 = vlaneseq
  %v3358 = vshrl.u32 %v3357, 7
  %v3359 = vsub.s32 %v3356, %v3358
  %v3360 = vrot.slane %v3332, %v3359
  %v3361 = vcombine.high %v3339, %v3339
  %v3362 = vcombine.high %v3346, %v3346
  %v3363 = vcombine.high %v3353, %v3353
  %v3364 = vcombine.high %v3360, %v3360
  %v3365 = vlaneseq
  %v3366 = vshrl.u32 %v3365, 7
  %v3367 = vsub.s32 0, %v3366
  %v3368 = vrot.slane %v3339, %v3367
  %v3369 = vlaneseq
  %v3370 = vshrl.u32 %v3369, 7
  %v3371 = vsub.s32 0, %v3370
  %v3372 = vrot.slane %v3353, %v3371
  %v3373 = vlaneseq
  %v3374 = vshrl.u32 %v3373, 7
  %v3375 = vsub.s32 0, %v3374
  %v3376 = vrot.slane %v3361, %v3375
  %v3377 = vlaneseq
  %v3378 = vshrl.u32 %v3377, 7
  %v3379 = vsub.s32 0, %v3378
  %v3380 = vrot.slane %v3363, %v3379
  %v3381 = vlaneseq
  %v3382 = vshrl.u32 %v3381, 7
  %v3383 = vsub.s32 0, %v3382
  %v3384 = vrot.slane %v3346, %v3383
  %v3385 = vlaneseq
  %v3386 = vshrl.u32 %v3385, 7
  %v3387 = vsub.s32 0, %v3386
  %v3388 = vrot.slane %v3360, %v3387
  %v3389 = vlaneseq
  %v3390 = vshrl.u32 %v3389, 7
  %v3391 = vsub.s32 0, %v3390
  %v3392 = vrot.slane %v3362, %v3391
  %v3393 = vlaneseq
  %v3394 = vshrl.u32 %v3393, 7
  %v3395 = vsub.s32 0, %v3394
  %v3396 = vrot.slane %v3364, %v3395
  %v3405 = vadd.f32 %v3368, %v705
  %v3406 = vadd.f32 %v3368, %v709
  %v3407 = vadd.f32 %v3372, %v716
  %v3408 = vadd.f32 %v3372, %v720
  %v3409 = vadd.f32 %v3376, %v727
  %v3410 = vadd.f32 %v3376, %v731
  %v3411 = vadd.f32 %v3380, %v738
  %v3412 = vadd.f32 %v3380, %v742
  %v3413 = vadd.f32 %v3384, %v749
  %v3414 = vadd.f32 %v3384, %v753
  %v3415 = vadd.f32 %v3388, %v760
  %v3416 = vadd.f32 %v3388, %v764
  %v3417 = vadd.f32 %v3392, %v771
  %v3418 = vadd.f32 %v3392, %v775
  %v3419 = vadd.f32 %v3396, %v782
  %v3420 = vadd.f32 %v3396, %v786
  %v3421 = vsel %vm477, %v3405, -inf
  %v3422 = vsel %vm477, %v3407, -inf
  %v3423 = vsel %vm477, %v3409, -inf
  %v3424 = vmax.f32 %v3421, %v3423
  %v3425 = vsel %vm477, %v3411, -inf
  %v3426 = vmax.f32 %v3422, %v3425
  %v3427 = vsel %vm477, %v3413, -inf
  %v3428 = vmax.f32 %v3424, %v3427
  %v3429 = vsel %vm477, %v3415, -inf
  %v3430 = vmax.f32 %v3426, %v3429
  %v3431 = vsel %vm477, %v3417, -inf
  %v3432 = vmax.f32 %v3428, %v3431
  %v3433 = vsel %vm477, %v3419, -inf
  %v3434 = vmax.f32 %v3430, %v3433
  %v3435 = vmax.f32 %v3432, %v3434
  %v3436 = vsel %vm477, %v3406, -inf
  %v3437 = vsel %vm477, %v3408, -inf
  %v3438 = vsel %vm477, %v3410, -inf
  %v3439 = vmax.f32 %v3436, %v3438
  %v3440 = vsel %vm477, %v3412, -inf
  %v3441 = vmax.f32 %v3437, %v3440
  %v3442 = vsel %vm477, %v3414, -inf
  %v3443 = vmax.f32 %v3439, %v3442
  %v3444 = vsel %vm477, %v3416, -inf
  %v3445 = vmax.f32 %v3441, %v3444
  %v3446 = vsel %vm477, %v3418, -inf
  %v3447 = vmax.f32 %v3443, %v3446
  %v3448 = vsel %vm477, %v3420, -inf
  %v3449 = vmax.f32 %v3445, %v3448
  %v3450 = vmax.f32 %v3447, %v3449
  %v3452 = vcombine.high %v3308, %v3308
  %v3454 = vunpack.c.l.s4 1966171168
  %v3455 = vunpack.c.0.s8 %v3454
  %v3456 = vlaneseq
  %v3457 = vshrl.u32 %v3456, 7
  %v3458 = vsub.s32 %v3455, %v3457
  %v3459 = vrot.slane %v3308, %v3458
  %v3461 = vunpack.c.l.s4 1966171168
  %v3462 = vunpack.c.0.s8 %v3461
  %v3463 = vlaneseq
  %v3464 = vshrl.u32 %v3463, 7
  %v3465 = vsub.s32 %v3462, %v3464
  %v3466 = vrot.slane %v3452, %v3465
  %v3467 = vcombine.high %v3459, %v3459
  %v3468 = vcombine.high %v3466, %v3466
  %v3470 = vunpack.c.l.s4 1966171168
  %v3471 = vunpack.c.0.s8 %v3470
  %v3472 = vlaneseq
  %v3473 = vshrl.u32 %v3472, 7
  %v3474 = vsub.s32 %v3471, %v3473
  %v3475 = vrot.slane %v3459, %v3474
  %v3477 = vunpack.c.l.s4 1966171168
  %v3478 = vunpack.c.0.s8 %v3477
  %v3479 = vlaneseq
  %v3480 = vshrl.u32 %v3479, 7
  %v3481 = vsub.s32 %v3478, %v3480
  %v3482 = vrot.slane %v3466, %v3481
  %v3484 = vunpack.c.l.s4 1966171168
  %v3485 = vunpack.c.0.s8 %v3484
  %v3486 = vlaneseq
  %v3487 = vshrl.u32 %v3486, 7
  %v3488 = vsub.s32 %v3485, %v3487
  %v3489 = vrot.slane %v3467, %v3488
  %v3491 = vunpack.c.l.s4 1966171168
  %v3492 = vunpack.c.0.s8 %v3491
  %v3493 = vlaneseq
  %v3494 = vshrl.u32 %v3493, 7
  %v3495 = vsub.s32 %v3492, %v3494
  %v3496 = vrot.slane %v3468, %v3495
  %v3497 = vcombine.high %v3475, %v3475
  %v3498 = vcombine.high %v3482, %v3482
  %v3499 = vcombine.high %v3489, %v3489
  %v3500 = vcombine.high %v3496, %v3496
  %v3501 = vlaneseq
  %v3502 = vshrl.u32 %v3501, 7
  %v3503 = vsub.s32 0, %v3502
  %v3504 = vrot.slane %v3475, %v3503
  %v3505 = vlaneseq
  %v3506 = vshrl.u32 %v3505, 7
  %v3507 = vsub.s32 0, %v3506
  %v3508 = vrot.slane %v3489, %v3507
  %v3509 = vlaneseq
  %v3510 = vshrl.u32 %v3509, 7
  %v3511 = vsub.s32 0, %v3510
  %v3512 = vrot.slane %v3497, %v3511
  %v3513 = vlaneseq
  %v3514 = vshrl.u32 %v3513, 7
  %v3515 = vsub.s32 0, %v3514
  %v3516 = vrot.slane %v3499, %v3515
  %v3517 = vlaneseq
  %v3518 = vshrl.u32 %v3517, 7
  %v3519 = vsub.s32 0, %v3518
  %v3520 = vrot.slane %v3482, %v3519
  %v3521 = vlaneseq
  %v3522 = vshrl.u32 %v3521, 7
  %v3523 = vsub.s32 0, %v3522
  %v3524 = vrot.slane %v3496, %v3523
  %v3525 = vlaneseq
  %v3526 = vshrl.u32 %v3525, 7
  %v3527 = vsub.s32 0, %v3526
  %v3528 = vrot.slane %v3498, %v3527
  %v3529 = vlaneseq
  %v3530 = vshrl.u32 %v3529, 7
  %v3531 = vsub.s32 0, %v3530
  %v3532 = vrot.slane %v3500, %v3531
  %v3541 = vadd.f32 %v3504, %v929
  %v3542 = vadd.f32 %v3504, %v933
  %v3543 = vadd.f32 %v3508, %v940
  %v3544 = vadd.f32 %v3508, %v944
  %v3545 = vadd.f32 %v3512, %v951
  %v3546 = vadd.f32 %v3512, %v955
  %v3547 = vadd.f32 %v3516, %v962
  %v3548 = vadd.f32 %v3516, %v966
  %v3549 = vadd.f32 %v3520, %v973
  %v3550 = vadd.f32 %v3520, %v977
  %v3551 = vadd.f32 %v3524, %v984
  %v3552 = vadd.f32 %v3524, %v988
  %v3553 = vadd.f32 %v3528, %v995
  %v3554 = vadd.f32 %v3528, %v999
  %v3555 = vadd.f32 %v3532, %v1006
  %v3556 = vadd.f32 %v3532, %v1010
  %v3557 = vsel %vm477, %v3541, -inf
  %v3558 = vsel %vm477, %v3543, -inf
  %v3559 = vsel %vm477, %v3545, -inf
  %v3560 = vmax.f32 %v3557, %v3559
  %v3561 = vsel %vm477, %v3547, -inf
  %v3562 = vmax.f32 %v3558, %v3561
  %v3563 = vsel %vm477, %v3549, -inf
  %v3564 = vmax.f32 %v3560, %v3563
  %v3565 = vsel %vm477, %v3551, -inf
  %v3566 = vmax.f32 %v3562, %v3565
  %v3567 = vsel %vm477, %v3553, -inf
  %v3568 = vmax.f32 %v3564, %v3567
  %v3569 = vsel %vm477, %v3555, -inf
  %v3570 = vmax.f32 %v3566, %v3569
  %v3571 = vmax.f32 %v3568, %v3570
  %v3572 = vsel %vm477, %v3542, -inf
  %v3573 = vsel %vm477, %v3544, -inf
  %v3574 = vsel %vm477, %v3546, -inf
  %v3575 = vmax.f32 %v3572, %v3574
  %v3576 = vsel %vm477, %v3548, -inf
  %v3577 = vmax.f32 %v3573, %v3576
  %v3578 = vsel %vm477, %v3550, -inf
  %v3579 = vmax.f32 %v3575, %v3578
  %v3580 = vsel %vm477, %v3552, -inf
  %v3581 = vmax.f32 %v3577, %v3580
  %v3582 = vsel %vm477, %v3554, -inf
  %v3583 = vmax.f32 %v3579, %v3582
  %v3584 = vsel %vm477, %v3556, -inf
  %v3585 = vmax.f32 %v3581, %v3584
  %v3586 = vmax.f32 %v3583, %v3585
  %v3587 = vmax.f32 %v3435, %v3571
  %v3588 = vmax.f32 %v3450, %v3586
  %v3590 = vcombine.high %v3309, %v3309
  %v3592 = vunpack.c.l.s4 1966171168
  %v3593 = vunpack.c.0.s8 %v3592
  %v3594 = vlaneseq
  %v3595 = vshrl.u32 %v3594, 7
  %v3596 = vsub.s32 %v3593, %v3595
  %v3597 = vrot.slane %v3309, %v3596
  %v3599 = vunpack.c.l.s4 1966171168
  %v3600 = vunpack.c.0.s8 %v3599
  %v3601 = vlaneseq
  %v3602 = vshrl.u32 %v3601, 7
  %v3603 = vsub.s32 %v3600, %v3602
  %v3604 = vrot.slane %v3590, %v3603
  %v3605 = vcombine.high %v3597, %v3597
  %v3606 = vcombine.high %v3604, %v3604
  %v3608 = vunpack.c.l.s4 1966171168
  %v3609 = vunpack.c.0.s8 %v3608
  %v3610 = vlaneseq
  %v3611 = vshrl.u32 %v3610, 7
  %v3612 = vsub.s32 %v3609, %v3611
  %v3613 = vrot.slane %v3597, %v3612
  %v3615 = vunpack.c.l.s4 1966171168
  %v3616 = vunpack.c.0.s8 %v3615
  %v3617 = vlaneseq
  %v3618 = vshrl.u32 %v3617, 7
  %v3619 = vsub.s32 %v3616, %v3618
  %v3620 = vrot.slane %v3604, %v3619
  %v3622 = vunpack.c.l.s4 1966171168
  %v3623 = vunpack.c.0.s8 %v3622
  %v3624 = vlaneseq
  %v3625 = vshrl.u32 %v3624, 7
  %v3626 = vsub.s32 %v3623, %v3625
  %v3627 = vrot.slane %v3605, %v3626
  %v3629 = vunpack.c.l.s4 1966171168
  %v3630 = vunpack.c.0.s8 %v3629
  %v3631 = vlaneseq
  %v3632 = vshrl.u32 %v3631, 7
  %v3633 = vsub.s32 %v3630, %v3632
  %v3634 = vrot.slane %v3606, %v3633
  %v3635 = vcombine.high %v3613, %v3613
  %v3636 = vcombine.high %v3620, %v3620
  %v3637 = vcombine.high %v3627, %v3627
  %v3638 = vcombine.high %v3634, %v3634
  %v3639 = vlaneseq
  %v3640 = vshrl.u32 %v3639, 7
  %v3641 = vsub.s32 0, %v3640
  %v3642 = vrot.slane %v3613, %v3641
  %v3643 = vlaneseq
  %v3644 = vshrl.u32 %v3643, 7
  %v3645 = vsub.s32 0, %v3644
  %v3646 = vrot.slane %v3627, %v3645
  %v3647 = vlaneseq
  %v3648 = vshrl.u32 %v3647, 7
  %v3649 = vsub.s32 0, %v3648
  %v3650 = vrot.slane %v3635, %v3649
  %v3651 = vlaneseq
  %v3652 = vshrl.u32 %v3651, 7
  %v3653 = vsub.s32 0, %v3652
  %v3654 = vrot.slane %v3637, %v3653
  %v3655 = vlaneseq
  %v3656 = vshrl.u32 %v3655, 7
  %v3657 = vsub.s32 0, %v3656
  %v3658 = vrot.slane %v3620, %v3657
  %v3659 = vlaneseq
  %v3660 = vshrl.u32 %v3659, 7
  %v3661 = vsub.s32 0, %v3660
  %v3662 = vrot.slane %v3634, %v3661
  %v3663 = vlaneseq
  %v3664 = vshrl.u32 %v3663, 7
  %v3665 = vsub.s32 0, %v3664
  %v3666 = vrot.slane %v3636, %v3665
  %v3667 = vlaneseq
  %v3668 = vshrl.u32 %v3667, 7
  %v3669 = vsub.s32 0, %v3668
  %v3670 = vrot.slane %v3638, %v3669
  %v3679 = vadd.f32 %v3642, %v1155
  %v3680 = vadd.f32 %v3642, %v1159
  %v3681 = vadd.f32 %v3646, %v1166
  %v3682 = vadd.f32 %v3646, %v1170
  %v3683 = vadd.f32 %v3650, %v1177
  %v3684 = vadd.f32 %v3650, %v1181
  %v3685 = vadd.f32 %v3654, %v1188
  %v3686 = vadd.f32 %v3654, %v1192
  %v3687 = vadd.f32 %v3658, %v1199
  %v3688 = vadd.f32 %v3658, %v1203
  %v3689 = vadd.f32 %v3662, %v1210
  %v3690 = vadd.f32 %v3662, %v1214
  %v3691 = vadd.f32 %v3666, %v1221
  %v3692 = vadd.f32 %v3666, %v1225
  %v3693 = vadd.f32 %v3670, %v1232
  %v3694 = vadd.f32 %v3670, %v1236
  %v3695 = vsel %vm477, %v3679, -inf
  %v3696 = vsel %vm477, %v3681, -inf
  %v3697 = vsel %vm477, %v3683, -inf
  %v3698 = vmax.f32 %v3695, %v3697
  %v3699 = vsel %vm477, %v3685, -inf
  %v3700 = vmax.f32 %v3696, %v3699
  %v3701 = vsel %vm477, %v3687, -inf
  %v3702 = vmax.f32 %v3698, %v3701
  %v3703 = vsel %vm477, %v3689, -inf
  %v3704 = vmax.f32 %v3700, %v3703
  %v3705 = vsel %vm477, %v3691, -inf
  %v3706 = vmax.f32 %v3702, %v3705
  %v3707 = vsel %vm477, %v3693, -inf
  %v3708 = vmax.f32 %v3704, %v3707
  %v3709 = vmax.f32 %v3706, %v3708
  %v3710 = vsel %vm477, %v3680, -inf
  %v3711 = vsel %vm477, %v3682, -inf
  %v3712 = vsel %vm477, %v3684, -inf
  %v3713 = vmax.f32 %v3710, %v3712
  %v3714 = vsel %vm477, %v3686, -inf
  %v3715 = vmax.f32 %v3711, %v3714
  %v3716 = vsel %vm477, %v3688, -inf
  %v3717 = vmax.f32 %v3713, %v3716
  %v3718 = vsel %vm477, %v3690, -inf
  %v3719 = vmax.f32 %v3715, %v3718
  %v3720 = vsel %vm477, %v3692, -inf
  %v3721 = vmax.f32 %v3717, %v3720
  %v3722 = vsel %vm477, %v3694, -inf
  %v3723 = vmax.f32 %v3719, %v3722
  %v3724 = vmax.f32 %v3721, %v3723
  %v3725 = vmax.f32 %v3587, %v3709
  %v3726 = vmax.f32 %v3588, %v3724
  %v3728 = vcombine.high %v3310, %v3310
  %v3730 = vunpack.c.l.s4 1966171168
  %v3731 = vunpack.c.0.s8 %v3730
  %v3732 = vlaneseq
  %v3733 = vshrl.u32 %v3732, 7
  %v3734 = vsub.s32 %v3731, %v3733
  %v3735 = vrot.slane %v3310, %v3734
  %v3737 = vunpack.c.l.s4 1966171168
  %v3738 = vunpack.c.0.s8 %v3737
  %v3739 = vlaneseq
  %v3740 = vshrl.u32 %v3739, 7
  %v3741 = vsub.s32 %v3738, %v3740
  %v3742 = vrot.slane %v3728, %v3741
  %v3743 = vcombine.high %v3735, %v3735
  %v3744 = vcombine.high %v3742, %v3742
  %v3746 = vunpack.c.l.s4 1966171168
  %v3747 = vunpack.c.0.s8 %v3746
  %v3748 = vlaneseq
  %v3749 = vshrl.u32 %v3748, 7
  %v3750 = vsub.s32 %v3747, %v3749
  %v3751 = vrot.slane %v3735, %v3750
  %v3753 = vunpack.c.l.s4 1966171168
  %v3754 = vunpack.c.0.s8 %v3753
  %v3755 = vlaneseq
  %v3756 = vshrl.u32 %v3755, 7
  %v3757 = vsub.s32 %v3754, %v3756
  %v3758 = vrot.slane %v3742, %v3757
  %v3760 = vunpack.c.l.s4 1966171168
  %v3761 = vunpack.c.0.s8 %v3760
  %v3762 = vlaneseq
  %v3763 = vshrl.u32 %v3762, 7
  %v3764 = vsub.s32 %v3761, %v3763
  %v3765 = vrot.slane %v3743, %v3764
  %v3767 = vunpack.c.l.s4 1966171168
  %v3768 = vunpack.c.0.s8 %v3767
  %v3769 = vlaneseq
  %v3770 = vshrl.u32 %v3769, 7
  %v3771 = vsub.s32 %v3768, %v3770
  %v3772 = vrot.slane %v3744, %v3771
  %v3773 = vcombine.high %v3751, %v3751
  %v3774 = vcombine.high %v3758, %v3758
  %v3775 = vcombine.high %v3765, %v3765
  %v3776 = vcombine.high %v3772, %v3772
  %v3777 = vlaneseq
  %v3778 = vshrl.u32 %v3777, 7
  %v3779 = vsub.s32 0, %v3778
  %v3780 = vrot.slane %v3751, %v3779
  %v3781 = vlaneseq
  %v3782 = vshrl.u32 %v3781, 7
  %v3783 = vsub.s32 0, %v3782
  %v3784 = vrot.slane %v3765, %v3783
  %v3785 = vlaneseq
  %v3786 = vshrl.u32 %v3785, 7
  %v3787 = vsub.s32 0, %v3786
  %v3788 = vrot.slane %v3773, %v3787
  %v3789 = vlaneseq
  %v3790 = vshrl.u32 %v3789, 7
  %v3791 = vsub.s32 0, %v3790
  %v3792 = vrot.slane %v3775, %v3791
  %v3793 = vlaneseq
  %v3794 = vshrl.u32 %v3793, 7
  %v3795 = vsub.s32 0, %v3794
  %v3796 = vrot.slane %v3758, %v3795
  %v3797 = vlaneseq
  %v3798 = vshrl.u32 %v3797, 7
  %v3799 = vsub.s32 0, %v3798
  %v3800 = vrot.slane %v3772, %v3799
  %v3801 = vlaneseq
  %v3802 = vshrl.u32 %v3801, 7
  %v3803 = vsub.s32 0, %v3802
  %v3804 = vrot.slane %v3774, %v3803
  %v3805 = vlaneseq
  %v3806 = vshrl.u32 %v3805, 7
  %v3807 = vsub.s32 0, %v3806
  %v3808 = vrot.slane %v3776, %v3807
  %v3817 = vadd.f32 %v3780, %v1381
  %v3818 = vadd.f32 %v3780, %v1385
  %v3819 = vadd.f32 %v3784, %v1392
  %v3820 = vadd.f32 %v3784, %v1396
  %v3821 = vadd.f32 %v3788, %v1403
  %v3822 = vadd.f32 %v3788, %v1407
  %v3823 = vadd.f32 %v3792, %v1414
  %v3824 = vadd.f32 %v3792, %v1418
  %v3825 = vadd.f32 %v3796, %v1425
  %v3826 = vadd.f32 %v3796, %v1429
  %v3827 = vadd.f32 %v3800, %v1436
  %v3828 = vadd.f32 %v3800, %v1440
  %v3829 = vadd.f32 %v3804, %v1447
  %v3830 = vadd.f32 %v3804, %v1451
  %v3831 = vadd.f32 %v3808, %v1458
  %v3832 = vadd.f32 %v3808, %v1462
  %v3833 = vsel %vm477, %v3817, -inf
  %v3834 = vsel %vm477, %v3819, -inf
  %v3835 = vsel %vm477, %v3821, -inf
  %v3836 = vmax.f32 %v3833, %v3835
  %v3837 = vsel %vm477, %v3823, -inf
  %v3838 = vmax.f32 %v3834, %v3837
  %v3839 = vsel %vm477, %v3825, -inf
  %v3840 = vmax.f32 %v3836, %v3839
  %v3841 = vsel %vm477, %v3827, -inf
  %v3842 = vmax.f32 %v3838, %v3841
  %v3843 = vsel %vm477, %v3829, -inf
  %v3844 = vmax.f32 %v3840, %v3843
  %v3845 = vsel %vm477, %v3831, -inf
  %v3846 = vmax.f32 %v3842, %v3845
  %v3847 = vmax.f32 %v3844, %v3846
  %v3848 = vsel %vm477, %v3818, -inf
  %v3849 = vsel %vm477, %v3820, -inf
  %v3850 = vsel %vm477, %v3822, -inf
  %v3851 = vmax.f32 %v3848, %v3850
  %v3852 = vsel %vm477, %v3824, -inf
  %v3853 = vmax.f32 %v3849, %v3852
  %v3854 = vsel %vm477, %v3826, -inf
  %v3855 = vmax.f32 %v3851, %v3854
  %v3856 = vsel %vm477, %v3828, -inf
  %v3857 = vmax.f32 %v3853, %v3856
  %v3858 = vsel %vm477, %v3830, -inf
  %v3859 = vmax.f32 %v3855, %v3858
  %v3860 = vsel %vm477, %v3832, -inf
  %v3861 = vmax.f32 %v3857, %v3860
  %v3862 = vmax.f32 %v3859, %v3861
  %v3863 = vmax.f32 %v3725, %v3847
  %v3864 = vmax.f32 %v3726, %v3862
  %v3866 = vcombine.high %v3311, %v3311
  %v3868 = vunpack.c.l.s4 1966171168
  %v3869 = vunpack.c.0.s8 %v3868
  %v3870 = vlaneseq
  %v3871 = vshrl.u32 %v3870, 7
  %v3872 = vsub.s32 %v3869, %v3871
  %v3873 = vrot.slane %v3311, %v3872
  %v3875 = vunpack.c.l.s4 1966171168
  %v3876 = vunpack.c.0.s8 %v3875
  %v3877 = vlaneseq
  %v3878 = vshrl.u32 %v3877, 7
  %v3879 = vsub.s32 %v3876, %v3878
  %v3880 = vrot.slane %v3866, %v3879
  %v3881 = vcombine.high %v3873, %v3873
  %v3882 = vcombine.high %v3880, %v3880
  %v3884 = vunpack.c.l.s4 1966171168
  %v3885 = vunpack.c.0.s8 %v3884
  %v3886 = vlaneseq
  %v3887 = vshrl.u32 %v3886, 7
  %v3888 = vsub.s32 %v3885, %v3887
  %v3889 = vrot.slane %v3873, %v3888
  %v3891 = vunpack.c.l.s4 1966171168
  %v3892 = vunpack.c.0.s8 %v3891
  %v3893 = vlaneseq
  %v3894 = vshrl.u32 %v3893, 7
  %v3895 = vsub.s32 %v3892, %v3894
  %v3896 = vrot.slane %v3880, %v3895
  %v3898 = vunpack.c.l.s4 1966171168
  %v3899 = vunpack.c.0.s8 %v3898
  %v3900 = vlaneseq
  %v3901 = vshrl.u32 %v3900, 7
  %v3902 = vsub.s32 %v3899, %v3901
  %v3903 = vrot.slane %v3881, %v3902
  %v3905 = vunpack.c.l.s4 1966171168
  %v3906 = vunpack.c.0.s8 %v3905
  %v3907 = vlaneseq
  %v3908 = vshrl.u32 %v3907, 7
  %v3909 = vsub.s32 %v3906, %v3908
  %v3910 = vrot.slane %v3882, %v3909
  %v3911 = vcombine.high %v3889, %v3889
  %v3912 = vcombine.high %v3896, %v3896
  %v3913 = vcombine.high %v3903, %v3903
  %v3914 = vcombine.high %v3910, %v3910
  %v3915 = vlaneseq
  %v3916 = vshrl.u32 %v3915, 7
  %v3917 = vsub.s32 0, %v3916
  %v3918 = vrot.slane %v3889, %v3917
  %v3919 = vlaneseq
  %v3920 = vshrl.u32 %v3919, 7
  %v3921 = vsub.s32 0, %v3920
  %v3922 = vrot.slane %v3903, %v3921
  %v3923 = vlaneseq
  %v3924 = vshrl.u32 %v3923, 7
  %v3925 = vsub.s32 0, %v3924
  %v3926 = vrot.slane %v3911, %v3925
  %v3927 = vlaneseq
  %v3928 = vshrl.u32 %v3927, 7
  %v3929 = vsub.s32 0, %v3928
  %v3930 = vrot.slane %v3913, %v3929
  %v3931 = vlaneseq
  %v3932 = vshrl.u32 %v3931, 7
  %v3933 = vsub.s32 0, %v3932
  %v3934 = vrot.slane %v3896, %v3933
  %v3935 = vlaneseq
  %v3936 = vshrl.u32 %v3935, 7
  %v3937 = vsub.s32 0, %v3936
  %v3938 = vrot.slane %v3910, %v3937
  %v3939 = vlaneseq
  %v3940 = vshrl.u32 %v3939, 7
  %v3941 = vsub.s32 0, %v3940
  %v3942 = vrot.slane %v3912, %v3941
  %v3943 = vlaneseq
  %v3944 = vshrl.u32 %v3943, 7
  %v3945 = vsub.s32 0, %v3944
  %v3946 = vrot.slane %v3914, %v3945
  %v3955 = vadd.f32 %v3918, %v1607
  %v3956 = vadd.f32 %v3918, %v1611
  %v3957 = vadd.f32 %v3922, %v1618
  %v3958 = vadd.f32 %v3922, %v1622
  %v3959 = vadd.f32 %v3926, %v1629
  %v3960 = vadd.f32 %v3926, %v1633
  %v3961 = vadd.f32 %v3930, %v1640
  %v3962 = vadd.f32 %v3930, %v1644
  %v3963 = vadd.f32 %v3934, %v1651
  %v3964 = vadd.f32 %v3934, %v1655
  %v3965 = vadd.f32 %v3938, %v1662
  %v3966 = vadd.f32 %v3938, %v1666
  %v3967 = vadd.f32 %v3942, %v1673
  %v3968 = vadd.f32 %v3942, %v1677
  %v3969 = vadd.f32 %v3946, %v1684
  %v3970 = vadd.f32 %v3946, %v1688
  %v3971 = vsel %vm477, %v3955, -inf
  %v3972 = vsel %vm477, %v3957, -inf
  %v3973 = vsel %vm477, %v3959, -inf
  %v3974 = vmax.f32 %v3971, %v3973
  %v3975 = vsel %vm477, %v3961, -inf
  %v3976 = vmax.f32 %v3972, %v3975
  %v3977 = vsel %vm477, %v3963, -inf
  %v3978 = vmax.f32 %v3974, %v3977
  %v3979 = vsel %vm477, %v3965, -inf
  %v3980 = vmax.f32 %v3976, %v3979
  %v3981 = vsel %vm477, %v3967, -inf
  %v3982 = vmax.f32 %v3978, %v3981
  %v3983 = vsel %vm477, %v3969, -inf
  %v3984 = vmax.f32 %v3980, %v3983
  %v3985 = vmax.f32 %v3982, %v3984
  %v3986 = vsel %vm477, %v3956, -inf
  %v3987 = vsel %vm477, %v3958, -inf
  %v3988 = vsel %vm477, %v3960, -inf
  %v3989 = vmax.f32 %v3986, %v3988
  %v3990 = vsel %vm477, %v3962, -inf
  %v3991 = vmax.f32 %v3987, %v3990
  %v3992 = vsel %vm477, %v3964, -inf
  %v3993 = vmax.f32 %v3989, %v3992
  %v3994 = vsel %vm477, %v3966, -inf
  %v3995 = vmax.f32 %v3991, %v3994
  %v3996 = vsel %vm477, %v3968, -inf
  %v3997 = vmax.f32 %v3993, %v3996
  %v3998 = vsel %vm477, %v3970, -inf
  %v3999 = vmax.f32 %v3995, %v3998
  %v4000 = vmax.f32 %v3997, %v3999
  %v4001 = vmax.f32 %v3863, %v3985
  %v4002 = vmax.f32 %v3864, %v4000
  %v4004 = vcombine.high %v3312, %v3312
  %v4006 = vunpack.c.l.s4 1966171168
  %v4007 = vunpack.c.0.s8 %v4006
  %v4008 = vlaneseq
  %v4009 = vshrl.u32 %v4008, 7
  %v4010 = vsub.s32 %v4007, %v4009
  %v4011 = vrot.slane %v3312, %v4010
  %v4013 = vunpack.c.l.s4 1966171168
  %v4014 = vunpack.c.0.s8 %v4013
  %v4015 = vlaneseq
  %v4016 = vshrl.u32 %v4015, 7
  %v4017 = vsub.s32 %v4014, %v4016
  %v4018 = vrot.slane %v4004, %v4017
  %v4019 = vcombine.high %v4011, %v4011
  %v4020 = vcombine.high %v4018, %v4018
  %v4022 = vunpack.c.l.s4 1966171168
  %v4023 = vunpack.c.0.s8 %v4022
  %v4024 = vlaneseq
  %v4025 = vshrl.u32 %v4024, 7
  %v4026 = vsub.s32 %v4023, %v4025
  %v4027 = vrot.slane %v4011, %v4026
  %v4029 = vunpack.c.l.s4 1966171168
  %v4030 = vunpack.c.0.s8 %v4029
  %v4031 = vlaneseq
  %v4032 = vshrl.u32 %v4031, 7
  %v4033 = vsub.s32 %v4030, %v4032
  %v4034 = vrot.slane %v4018, %v4033
  %v4036 = vunpack.c.l.s4 1966171168
  %v4037 = vunpack.c.0.s8 %v4036
  %v4038 = vlaneseq
  %v4039 = vshrl.u32 %v4038, 7
  %v4040 = vsub.s32 %v4037, %v4039
  %v4041 = vrot.slane %v4019, %v4040
  %v4043 = vunpack.c.l.s4 1966171168
  %v4044 = vunpack.c.0.s8 %v4043
  %v4045 = vlaneseq
  %v4046 = vshrl.u32 %v4045, 7
  %v4047 = vsub.s32 %v4044, %v4046
  %v4048 = vrot.slane %v4020, %v4047
  %v4049 = vcombine.high %v4027, %v4027
  %v4050 = vcombine.high %v4034, %v4034
  %v4051 = vcombine.high %v4041, %v4041
  %v4052 = vcombine.high %v4048, %v4048
  %v4053 = vlaneseq
  %v4054 = vshrl.u32 %v4053, 7
  %v4055 = vsub.s32 0, %v4054
  %v4056 = vrot.slane %v4027, %v4055
  %v4057 = vlaneseq
  %v4058 = vshrl.u32 %v4057, 7
  %v4059 = vsub.s32 0, %v4058
  %v4060 = vrot.slane %v4041, %v4059
  %v4061 = vlaneseq
  %v4062 = vshrl.u32 %v4061, 7
  %v4063 = vsub.s32 0, %v4062
  %v4064 = vrot.slane %v4049, %v4063
  %v4065 = vlaneseq
  %v4066 = vshrl.u32 %v4065, 7
  %v4067 = vsub.s32 0, %v4066
  %v4068 = vrot.slane %v4051, %v4067
  %v4069 = vlaneseq
  %v4070 = vshrl.u32 %v4069, 7
  %v4071 = vsub.s32 0, %v4070
  %v4072 = vrot.slane %v4034, %v4071
  %v4073 = vlaneseq
  %v4074 = vshrl.u32 %v4073, 7
  %v4075 = vsub.s32 0, %v4074
  %v4076 = vrot.slane %v4048, %v4075
  %v4077 = vlaneseq
  %v4078 = vshrl.u32 %v4077, 7
  %v4079 = vsub.s32 0, %v4078
  %v4080 = vrot.slane %v4050, %v4079
  %v4081 = vlaneseq
  %v4082 = vshrl.u32 %v4081, 7
  %v4083 = vsub.s32 0, %v4082
  %v4084 = vrot.slane %v4052, %v4083
  %v4093 = vadd.f32 %v4056, %v1833
  %v4094 = vadd.f32 %v4056, %v1837
  %v4095 = vadd.f32 %v4060, %v1844
  %v4096 = vadd.f32 %v4060, %v1848
  %v4097 = vadd.f32 %v4064, %v1855
  %v4098 = vadd.f32 %v4064, %v1859
  %v4099 = vadd.f32 %v4068, %v1866
  %v4100 = vadd.f32 %v4068, %v1870
  %v4101 = vadd.f32 %v4072, %v1877
  %v4102 = vadd.f32 %v4072, %v1881
  %v4103 = vadd.f32 %v4076, %v1888
  %v4104 = vadd.f32 %v4076, %v1892
  %v4105 = vadd.f32 %v4080, %v1899
  %v4106 = vadd.f32 %v4080, %v1903
  %v4107 = vadd.f32 %v4084, %v1910
  %v4108 = vadd.f32 %v4084, %v1914
  %v4109 = vsel %vm477, %v4093, -inf
  %v4110 = vsel %vm477, %v4095, -inf
  %v4111 = vsel %vm477, %v4097, -inf
  %v4112 = vmax.f32 %v4109, %v4111
  %v4113 = vsel %vm477, %v4099, -inf
  %v4114 = vmax.f32 %v4110, %v4113
  %v4115 = vsel %vm477, %v4101, -inf
  %v4116 = vmax.f32 %v4112, %v4115
  %v4117 = vsel %vm477, %v4103, -inf
  %v4118 = vmax.f32 %v4114, %v4117
  %v4119 = vsel %vm477, %v4105, -inf
  %v4120 = vmax.f32 %v4116, %v4119
  %v4121 = vsel %vm477, %v4107, -inf
  %v4122 = vmax.f32 %v4118, %v4121
  %v4123 = vmax.f32 %v4120, %v4122
  %v4124 = vsel %vm477, %v4094, -inf
  %v4125 = vsel %vm477, %v4096, -inf
  %v4126 = vsel %vm477, %v4098, -inf
  %v4127 = vmax.f32 %v4124, %v4126
  %v4128 = vsel %vm477, %v4100, -inf
  %v4129 = vmax.f32 %v4125, %v4128
  %v4130 = vsel %vm477, %v4102, -inf
  %v4131 = vmax.f32 %v4127, %v4130
  %v4132 = vsel %vm477, %v4104, -inf
  %v4133 = vmax.f32 %v4129, %v4132
  %v4134 = vsel %vm477, %v4106, -inf
  %v4135 = vmax.f32 %v4131, %v4134
  %v4136 = vsel %vm477, %v4108, -inf
  %v4137 = vmax.f32 %v4133, %v4136
  %v4138 = vmax.f32 %v4135, %v4137
  %v4139 = vmax.f32 %v4001, %v4123
  %v4140 = vmax.f32 %v4002, %v4138
  %v4142 = vcombine.high %v3313, %v3313
  %v4144 = vunpack.c.l.s4 1966171168
  %v4145 = vunpack.c.0.s8 %v4144
  %v4146 = vlaneseq
  %v4147 = vshrl.u32 %v4146, 7
  %v4148 = vsub.s32 %v4145, %v4147
  %v4149 = vrot.slane %v3313, %v4148
  %v4151 = vunpack.c.l.s4 1966171168
  %v4152 = vunpack.c.0.s8 %v4151
  %v4153 = vlaneseq
  %v4154 = vshrl.u32 %v4153, 7
  %v4155 = vsub.s32 %v4152, %v4154
  %v4156 = vrot.slane %v4142, %v4155
  %v4157 = vcombine.high %v4149, %v4149
  %v4158 = vcombine.high %v4156, %v4156
  %v4160 = vunpack.c.l.s4 1966171168
  %v4161 = vunpack.c.0.s8 %v4160
  %v4162 = vlaneseq
  %v4163 = vshrl.u32 %v4162, 7
  %v4164 = vsub.s32 %v4161, %v4163
  %v4165 = vrot.slane %v4149, %v4164
  %v4167 = vunpack.c.l.s4 1966171168
  %v4168 = vunpack.c.0.s8 %v4167
  %v4169 = vlaneseq
  %v4170 = vshrl.u32 %v4169, 7
  %v4171 = vsub.s32 %v4168, %v4170
  %v4172 = vrot.slane %v4156, %v4171
  %v4174 = vunpack.c.l.s4 1966171168
  %v4175 = vunpack.c.0.s8 %v4174
  %v4176 = vlaneseq
  %v4177 = vshrl.u32 %v4176, 7
  %v4178 = vsub.s32 %v4175, %v4177
  %v4179 = vrot.slane %v4157, %v4178
  %v4181 = vunpack.c.l.s4 1966171168
  %v4182 = vunpack.c.0.s8 %v4181
  %v4183 = vlaneseq
  %v4184 = vshrl.u32 %v4183, 7
  %v4185 = vsub.s32 %v4182, %v4184
  %v4186 = vrot.slane %v4158, %v4185
  %v4187 = vcombine.high %v4165, %v4165
  %v4188 = vcombine.high %v4172, %v4172
  %v4189 = vcombine.high %v4179, %v4179
  %v4190 = vcombine.high %v4186, %v4186
  %v4191 = vlaneseq
  %v4192 = vshrl.u32 %v4191, 7
  %v4193 = vsub.s32 0, %v4192
  %v4194 = vrot.slane %v4165, %v4193
  %v4195 = vlaneseq
  %v4196 = vshrl.u32 %v4195, 7
  %v4197 = vsub.s32 0, %v4196
  %v4198 = vrot.slane %v4179, %v4197
  %v4199 = vlaneseq
  %v4200 = vshrl.u32 %v4199, 7
  %v4201 = vsub.s32 0, %v4200
  %v4202 = vrot.slane %v4187, %v4201
  %v4203 = vlaneseq
  %v4204 = vshrl.u32 %v4203, 7
  %v4205 = vsub.s32 0, %v4204
  %v4206 = vrot.slane %v4189, %v4205
  %v4207 = vlaneseq
  %v4208 = vshrl.u32 %v4207, 7
  %v4209 = vsub.s32 0, %v4208
  %v4210 = vrot.slane %v4172, %v4209
  %v4211 = vlaneseq
  %v4212 = vshrl.u32 %v4211, 7
  %v4213 = vsub.s32 0, %v4212
  %v4214 = vrot.slane %v4186, %v4213
  %v4215 = vlaneseq
  %v4216 = vshrl.u32 %v4215, 7
  %v4217 = vsub.s32 0, %v4216
  %v4218 = vrot.slane %v4188, %v4217
  %v4219 = vlaneseq
  %v4220 = vshrl.u32 %v4219, 7
  %v4221 = vsub.s32 0, %v4220
  %v4222 = vrot.slane %v4190, %v4221
  %v4231 = vadd.f32 %v4194, %v2059
  %v4232 = vadd.f32 %v4194, %v2063
  %v4233 = vadd.f32 %v4198, %v2070
  %v4234 = vadd.f32 %v4198, %v2074
  %v4235 = vadd.f32 %v4202, %v2081
  %v4236 = vadd.f32 %v4202, %v2085
  %v4237 = vadd.f32 %v4206, %v2092
  %v4238 = vadd.f32 %v4206, %v2096
  %v4239 = vadd.f32 %v4210, %v2103
  %v4240 = vadd.f32 %v4210, %v2107
  %v4241 = vadd.f32 %v4214, %v2114
  %v4242 = vadd.f32 %v4214, %v2118
  %v4243 = vadd.f32 %v4218, %v2125
  %v4244 = vadd.f32 %v4218, %v2129
  %v4245 = vadd.f32 %v4222, %v2136
  %v4246 = vadd.f32 %v4222, %v2140
  %v4247 = vsel %vm477, %v4231, -inf
  %v4248 = vsel %vm477, %v4233, -inf
  %v4249 = vsel %vm477, %v4235, -inf
  %v4250 = vmax.f32 %v4247, %v4249
  %v4251 = vsel %vm477, %v4237, -inf
  %v4252 = vmax.f32 %v4248, %v4251
  %v4253 = vsel %vm477, %v4239, -inf
  %v4254 = vmax.f32 %v4250, %v4253
  %v4255 = vsel %vm477, %v4241, -inf
  %v4256 = vmax.f32 %v4252, %v4255
  %v4257 = vsel %vm477, %v4243, -inf
  %v4258 = vmax.f32 %v4254, %v4257
  %v4259 = vsel %vm477, %v4245, -inf
  %v4260 = vmax.f32 %v4256, %v4259
  %v4261 = vmax.f32 %v4258, %v4260
  %v4262 = vsel %vm477, %v4232, -inf
  %v4263 = vsel %vm477, %v4234, -inf
  %v4264 = vsel %vm477, %v4236, -inf
  %v4265 = vmax.f32 %v4262, %v4264
  %v4266 = vsel %vm477, %v4238, -inf
  %v4267 = vmax.f32 %v4263, %v4266
  %v4268 = vsel %vm477, %v4240, -inf
  %v4269 = vmax.f32 %v4265, %v4268
  %v4270 = vsel %vm477, %v4242, -inf
  %v4271 = vmax.f32 %v4267, %v4270
  %v4272 = vsel %vm477, %v4244, -inf
  %v4273 = vmax.f32 %v4269, %v4272
  %v4274 = vsel %vm477, %v4246, -inf
  %v4275 = vmax.f32 %v4271, %v4274
  %v4276 = vmax.f32 %v4273, %v4275
  %v4277 = vmax.f32 %v4139, %v4261
  %v4278 = vmax.f32 %v4140, %v4276
  %v4280 = vcombine.high %v3314, %v3314
  %v4282 = vunpack.c.l.s4 1966171168
  %v4283 = vunpack.c.0.s8 %v4282
  %v4284 = vlaneseq
  %v4285 = vshrl.u32 %v4284, 7
  %v4286 = vsub.s32 %v4283, %v4285
  %v4287 = vrot.slane %v3314, %v4286
  %v4289 = vunpack.c.l.s4 1966171168
  %v4290 = vunpack.c.0.s8 %v4289
  %v4291 = vlaneseq
  %v4292 = vshrl.u32 %v4291, 7
  %v4293 = vsub.s32 %v4290, %v4292
  %v4294 = vrot.slane %v4280, %v4293
  %v4295 = vcombine.high %v4287, %v4287
  %v4296 = vcombine.high %v4294, %v4294
  %v4298 = vunpack.c.l.s4 1966171168
  %v4299 = vunpack.c.0.s8 %v4298
  %v4300 = vlaneseq
  %v4301 = vshrl.u32 %v4300, 7
  %v4302 = vsub.s32 %v4299, %v4301
  %v4303 = vrot.slane %v4287, %v4302
  %v4305 = vunpack.c.l.s4 1966171168
  %v4306 = vunpack.c.0.s8 %v4305
  %v4307 = vlaneseq
  %v4308 = vshrl.u32 %v4307, 7
  %v4309 = vsub.s32 %v4306, %v4308
  %v4310 = vrot.slane %v4294, %v4309
  %v4312 = vunpack.c.l.s4 1966171168
  %v4313 = vunpack.c.0.s8 %v4312
  %v4314 = vlaneseq
  %v4315 = vshrl.u32 %v4314, 7
  %v4316 = vsub.s32 %v4313, %v4315
  %v4317 = vrot.slane %v4295, %v4316
  %v4319 = vunpack.c.l.s4 1966171168
  %v4320 = vunpack.c.0.s8 %v4319
  %v4321 = vlaneseq
  %v4322 = vshrl.u32 %v4321, 7
  %v4323 = vsub.s32 %v4320, %v4322
  %v4324 = vrot.slane %v4296, %v4323
  %v4325 = vcombine.high %v4303, %v4303
  %v4326 = vcombine.high %v4310, %v4310
  %v4327 = vcombine.high %v4317, %v4317
  %v4328 = vcombine.high %v4324, %v4324
  %v4329 = vlaneseq
  %v4330 = vshrl.u32 %v4329, 7
  %v4331 = vsub.s32 0, %v4330
  %v4332 = vrot.slane %v4303, %v4331
  %v4333 = vlaneseq
  %v4334 = vshrl.u32 %v4333, 7
  %v4335 = vsub.s32 0, %v4334
  %v4336 = vrot.slane %v4317, %v4335
  %v4337 = vlaneseq
  %v4338 = vshrl.u32 %v4337, 7
  %v4339 = vsub.s32 0, %v4338
  %v4340 = vrot.slane %v4325, %v4339
  %v4341 = vlaneseq
  %v4342 = vshrl.u32 %v4341, 7
  %v4343 = vsub.s32 0, %v4342
  %v4344 = vrot.slane %v4327, %v4343
  %v4345 = vlaneseq
  %v4346 = vshrl.u32 %v4345, 7
  %v4347 = vsub.s32 0, %v4346
  %v4348 = vrot.slane %v4310, %v4347
  %v4349 = vlaneseq
  %v4350 = vshrl.u32 %v4349, 7
  %v4351 = vsub.s32 0, %v4350
  %v4352 = vrot.slane %v4324, %v4351
  %v4353 = vlaneseq
  %v4354 = vshrl.u32 %v4353, 7
  %v4355 = vsub.s32 0, %v4354
  %v4356 = vrot.slane %v4326, %v4355
  %v4357 = vlaneseq
  %v4358 = vshrl.u32 %v4357, 7
  %v4359 = vsub.s32 0, %v4358
  %v4360 = vrot.slane %v4328, %v4359
  %v4369 = vadd.f32 %v4332, %v2285
  %v4370 = vadd.f32 %v4332, %v2289
  %v4371 = vadd.f32 %v4336, %v2296
  %v4372 = vadd.f32 %v4336, %v2300
  %v4373 = vadd.f32 %v4340, %v2307
  %v4374 = vadd.f32 %v4340, %v2311
  %v4375 = vadd.f32 %v4344, %v2318
  %v4376 = vadd.f32 %v4344, %v2322
  %v4377 = vadd.f32 %v4348, %v2329
  %v4378 = vadd.f32 %v4348, %v2333
  %v4379 = vadd.f32 %v4352, %v2340
  %v4380 = vadd.f32 %v4352, %v2344
  %v4381 = vadd.f32 %v4356, %v2351
  %v4382 = vadd.f32 %v4356, %v2355
  %v4383 = vadd.f32 %v4360, %v2362
  %v4384 = vadd.f32 %v4360, %v2366
  %v4385 = vsel %vm477, %v4369, -inf
  %v4386 = vsel %vm477, %v4371, -inf
  %v4387 = vsel %vm477, %v4373, -inf
  %v4388 = vmax.f32 %v4385, %v4387
  %v4389 = vsel %vm477, %v4375, -inf
  %v4390 = vmax.f32 %v4386, %v4389
  %v4391 = vsel %vm477, %v4377, -inf
  %v4392 = vmax.f32 %v4388, %v4391
  %v4393 = vsel %vm477, %v4379, -inf
  %v4394 = vmax.f32 %v4390, %v4393
  %v4395 = vsel %vm477, %v4381, -inf
  %v4396 = vmax.f32 %v4392, %v4395
  %v4397 = vsel %vm477, %v4383, -inf
  %v4398 = vmax.f32 %v4394, %v4397
  %v4399 = vmax.f32 %v4396, %v4398
  %v4400 = vsel %vm477, %v4370, -inf
  %v4401 = vsel %vm477, %v4372, -inf
  %v4402 = vsel %vm477, %v4374, -inf
  %v4403 = vmax.f32 %v4400, %v4402
  %v4404 = vsel %vm477, %v4376, -inf
  %v4405 = vmax.f32 %v4401, %v4404
  %v4406 = vsel %vm477, %v4378, -inf
  %v4407 = vmax.f32 %v4403, %v4406
  %v4408 = vsel %vm477, %v4380, -inf
  %v4409 = vmax.f32 %v4405, %v4408
  %v4410 = vsel %vm477, %v4382, -inf
  %v4411 = vmax.f32 %v4407, %v4410
  %v4412 = vsel %vm477, %v4384, -inf
  %v4413 = vmax.f32 %v4409, %v4412
  %v4414 = vmax.f32 %v4411, %v4413
  %v4415 = vmax.f32 %v4277, %v4399
  %v4416 = vmax.f32 %v4278, %v4414
  %v4417 = vsel %vm2463, %v4415, 0.0
  %v4418 = vsel %vm2464, %v4416, 0.0
  %v4419 = vsub.f32 0.0, %v4415
  %v4420 = vsub.f32 0.0, %v4416
  %v4421 = vsel %vm2463, %v4419, 0.0
  %v4422 = vsel %vm2464, %v4420, 0.0
  %4425 = vrot.lane.b32.xlu0 %v3235, 32
  %v4426 = vpop.permute.xlu0 %4425
  %4427 = vrot.lane.b32.xlu0 %v3236, 32
  %v4428 = vpop.permute.xlu0 %4427
  %4433 = vrot.lane.b32.xlu0 %v4421, 32
  %v4434 = vpop.permute.xlu0 %4433
  %4435 = vrot.lane.b32.xlu0 %v4422, 32
  %v4436 = vpop.permute.xlu0 %4435
  %4441 = vrot.lane.b32.xlu0 %v4417, 96
  %v4442 = vpop.permute.xlu0 %4441
  %4443 = vrot.lane.b32.xlu0 %v4418, 96
  %v4444 = vpop.permute.xlu0 %4443
  %4449 = vrot.lane.b32.xlu0 %v3259, 96
  %v4450 = vpop.permute.xlu0 %4449
  %4451 = vrot.lane.b32.xlu0 %v3266, 96
  %v4452 = vpop.permute.xlu0 %4451
  %v4455 = vsel %vm299, %v3227, %v4426
  %v4456 = vsel %vm299, %v3232, %v4428
  %v4457 = vsel %vm477, %v4455, %v4434
  %v4458 = vsel %vm477, %v4456, %v4436
  %v4459 = vsel %vm2594, %v4457, %v4442
  %v4460 = vsel %vm2594, %v4458, %v4444
  %v4461 = vmul.f32 %v2515, %v4459
  %v4462 = vmul.f32 %v2515, %v4450
  %v4463 = vmul.f32 %v2520, %v4460
  %v4464 = vmul.f32 %v2520, %v4452
  %v4465 = vmul.f32 %v2527, %v4459
  %v4466 = vmul.f32 %v2527, %v4450
  %v4467 = vmul.f32 %v2532, %v4460
  %v4468 = vmul.f32 %v2532, %v4452
  %v4469 = vmul.f32 %v2539, %v4459
  %v4470 = vmul.f32 %v2539, %v4450
  %v4471 = vmul.f32 %v2544, %v4460
  %v4472 = vmul.f32 %v2544, %v4452
  %v4473 = vmul.f32 %v2551, %v4459
  %v4474 = vmul.f32 %v2551, %v4450
  %v4475 = vmul.f32 %v2556, %v4460
  %v4476 = vmul.f32 %v2556, %v4452
  %4479 = vrot.lane.b32.xlu0 %v4459, 32
  %v4480 = vpop.permute.xlu0 %4479
  %4481 = vrot.lane.b32.xlu0 %v4450, 32
  %v4482 = vpop.permute.xlu0 %4481
  %4483 = vrot.lane.b32.xlu0 %v4460, 32
  %v4484 = vpop.permute.xlu0 %4483
  %4485 = vrot.lane.b32.xlu0 %v4452, 32
  %v4486 = vpop.permute.xlu0 %4485
  %v4487 = vsel %vm299, %v4480, %v4482
  %v4488 = vsel %vm299, %v4484, %v4486
  %4497 = vrot.lane.b32.xlu0 %v4461, 64
  %v4498 = vpop.permute.xlu0 %4497
  %4499 = vrot.lane.b32.xlu0 %v4462, 64
  %v4500 = vpop.permute.xlu0 %4499
  %4501 = vrot.lane.b32.xlu0 %v4463, 64
  %v4502 = vpop.permute.xlu0 %4501
  %4503 = vrot.lane.b32.xlu0 %v4464, 64
  %v4504 = vpop.permute.xlu0 %4503
  %v4505 = vsel %vm477, %v4498, %v4500
  %v4506 = vsel %vm477, %v4502, %v4504
  %4515 = vrot.lane.b32.xlu0 %v4465, 96
  %v4516 = vpop.permute.xlu0 %4515
  %4517 = vrot.lane.b32.xlu0 %v4466, 96
  %v4518 = vpop.permute.xlu0 %4517
  %4519 = vrot.lane.b32.xlu0 %v4467, 96
  %v4520 = vpop.permute.xlu0 %4519
  %4521 = vrot.lane.b32.xlu0 %v4468, 96
  %v4522 = vpop.permute.xlu0 %4521
  %v4523 = vsel %vm2594, %v4516, %v4518
  %v4524 = vsel %vm2594, %v4520, %v4522
  %4533 = vrot.lane.b32.xlu0 %v4473, 32
  %v4534 = vpop.permute.xlu0 %4533
  %4535 = vrot.lane.b32.xlu0 %v4474, 32
  %v4536 = vpop.permute.xlu0 %4535
  %4537 = vrot.lane.b32.xlu0 %v4475, 32
  %v4538 = vpop.permute.xlu0 %4537
  %4539 = vrot.lane.b32.xlu0 %v4476, 32
  %v4540 = vpop.permute.xlu0 %4539
  %v4541 = vsel %vm299, %v4534, %v4536
  %v4542 = vsel %vm299, %v4538, %v4540
  %v4545 = vsel %vm299, %v2899, %v4480
  %v4546 = vsel %vm299, %v2904, %v4484
  %v4547 = vsel %vm477, %v4487, %v4498
  %v4548 = vsel %vm477, %v4488, %v4502
  %v4549 = vsel %vm2594, %v4505, %v4516
  %v4550 = vsel %vm2594, %v4506, %v4520
  %v4551 = vsel %vm299, %v4470, %v4534
  %v4552 = vsel %vm299, %v4472, %v4538
  %v4553 = vld [vmem:[%s25] sm:$0xff]
  %v4554 = vld [vmem:[%s25 + $0x8] sm:$0xff]
  %v4555 = vld [vmem:[%s25 + $0x10] sm:$0xff]
  %v4556 = vld [vmem:[%s25 + $0x18] sm:$0xff]
  %v4557 = vld [vmem:[%s25 + $0x20] sm:$0xff]
  %v4558 = vld [vmem:[%s25 + $0x28] sm:$0xff]
  %v4559 = vld [vmem:[%s25 + $0x30] sm:$0xff]
  %v4560 = vld [vmem:[%s25 + $0x38] sm:$0xff]
  %v4561 = vld [vmem:[%s25 + $0x40] sm:$0xff]
  %v4562 = vld [vmem:[%s25 + $0x48] sm:$0xff]
  %v4563 = vld [vmem:[%s25 + $0x50] sm:$0xff]
  %v4564 = vld [vmem:[%s25 + $0x58] sm:$0xff]
  %v4565 = vld [vmem:[%s25 + $0x60] sm:$0xff]
  %v4566 = vld [vmem:[%s25 + $0x68] sm:$0xff]
  %v4567 = vld [vmem:[%s25 + $0x70] sm:$0xff]
  %v4568 = vld [vmem:[%s25 + $0x78] sm:$0xff]
  %v4569 = vld [vmem:[%s25 + $0x80] sm:$0xff]
  %v4570 = vld [vmem:[%s25 + $0x88] sm:$0xff]
  %v4571 = vld [vmem:[%s25 + $0x90] sm:$0xff]
  %v4572 = vld [vmem:[%s25 + $0x98] sm:$0xff]
  %v4573 = vld [vmem:[%s25 + $0xa0] sm:$0xff]
  %v4574 = vld [vmem:[%s25 + $0xa8] sm:$0xff]
  %v4575 = vld [vmem:[%s25 + $0xb0] sm:$0xff]
  %v4576 = vld [vmem:[%s25 + $0xb8] sm:$0xff]
  %v4577 = vld [vmem:[%s25 + $0xc0] sm:$0xff]
  %v4578 = vld [vmem:[%s25 + $0xc8] sm:$0xff]
  %v4579 = vld [vmem:[%s25 + $0xd0] sm:$0xff]
  %v4580 = vld [vmem:[%s25 + $0xd8] sm:$0xff]
  %v4581 = vld [vmem:[%s25 + $0xe0] sm:$0xff]
  %v4582 = vld [vmem:[%s25 + $0xe8] sm:$0xff]
  %v4583 = vld [vmem:[%s25 + $0xf0] sm:$0xff]
  %v4584 = vld [vmem:[%s25 + $0xf8] sm:$0xff]
  %v4585 = vld [vmem:[%s25 + $0x100] sm:$0xff]
  %v4586 = vld [vmem:[%s25 + $0x108] sm:$0xff]
  %v4587 = vld [vmem:[%s25 + $0x110] sm:$0xff]
  %v4588 = vld [vmem:[%s25 + $0x118] sm:$0xff]
  %v4589 = vld [vmem:[%s25 + $0x120] sm:$0xff]
  %v4590 = vld [vmem:[%s25 + $0x128] sm:$0xff]
  %v4591 = vld [vmem:[%s25 + $0x130] sm:$0xff]
  %v4592 = vld [vmem:[%s25 + $0x138] sm:$0xff]
  %v4593 = vld [vmem:[%s25 + $0x140] sm:$0xff]
  %v4594 = vld [vmem:[%s25 + $0x148] sm:$0xff]
  %v4595 = vld [vmem:[%s25 + $0x150] sm:$0xff]
  %v4596 = vld [vmem:[%s25 + $0x158] sm:$0xff]
  %v4597 = vld [vmem:[%s25 + $0x160] sm:$0xff]
  %v4598 = vld [vmem:[%s25 + $0x168] sm:$0xff]
  %v4599 = vld [vmem:[%s25 + $0x170] sm:$0xff]
  %v4600 = vld [vmem:[%s25 + $0x178] sm:$0xff]
  %v4601 = vld [vmem:[%s25 + $0x180] sm:$0xff]
  %v4602 = vld [vmem:[%s25 + $0x188] sm:$0xff]
  %v4603 = vld [vmem:[%s25 + $0x190] sm:$0xff]
  %v4604 = vld [vmem:[%s25 + $0x198] sm:$0xff]
  %v4605 = vld [vmem:[%s25 + $0x1a0] sm:$0xff]
  %v4606 = vld [vmem:[%s25 + $0x1a8] sm:$0xff]
  %v4607 = vld [vmem:[%s25 + $0x1b0] sm:$0xff]
  %v4608 = vld [vmem:[%s25 + $0x1b8] sm:$0xff]
  %v4609 = vld [vmem:[%s25 + $0x1c0] sm:$0xff]
  %v4610 = vld [vmem:[%s25 + $0x1c8] sm:$0xff]
  %v4611 = vld [vmem:[%s25 + $0x1d0] sm:$0xff]
  %v4612 = vld [vmem:[%s25 + $0x1d8] sm:$0xff]
  %v4613 = vld [vmem:[%s25 + $0x1e0] sm:$0xff]
  %v4614 = vld [vmem:[%s25 + $0x1e8] sm:$0xff]
  %v4615 = vld [vmem:[%s25 + $0x1f0] sm:$0xff]
  %v4616 = vld [vmem:[%s25 + $0x1f8] sm:$0xff]
  %v4617 = vld [vmem:[%s25 + $0x200] sm:$0xff]
  %v4618 = vld [vmem:[%s25 + $0x208] sm:$0xff]
  %v4619 = vld [vmem:[%s25 + $0x210] sm:$0xff]
  %v4620 = vld [vmem:[%s25 + $0x218] sm:$0xff]
  %v4621 = vld [vmem:[%s25 + $0x220] sm:$0xff]
  %v4622 = vld [vmem:[%s25 + $0x228] sm:$0xff]
  %v4623 = vld [vmem:[%s25 + $0x230] sm:$0xff]
  %v4624 = vld [vmem:[%s25 + $0x238] sm:$0xff]
  %v4625 = vld [vmem:[%s25 + $0x240] sm:$0xff]
  %v4626 = vld [vmem:[%s25 + $0x248] sm:$0xff]
  %v4627 = vld [vmem:[%s25 + $0x250] sm:$0xff]
  %v4628 = vld [vmem:[%s25 + $0x258] sm:$0xff]
  %v4629 = vld [vmem:[%s25 + $0x260] sm:$0xff]
  %v4630 = vld [vmem:[%s25 + $0x268] sm:$0xff]
  %v4631 = vld [vmem:[%s25 + $0x270] sm:$0xff]
  %v4632 = vld [vmem:[%s25 + $0x278] sm:$0xff]
  %v4633 = vld [vmem:[%s25 + $0x280] sm:$0xff]
  %v4634 = vld [vmem:[%s25 + $0x288] sm:$0xff]
  %v4635 = vld [vmem:[%s25 + $0x290] sm:$0xff]
  %v4636 = vld [vmem:[%s25 + $0x298] sm:$0xff]
  %v4637 = vld [vmem:[%s25 + $0x2a0] sm:$0xff]
  %v4638 = vld [vmem:[%s25 + $0x2a8] sm:$0xff]
  %v4639 = vld [vmem:[%s25 + $0x2b0] sm:$0xff]
  %v4640 = vld [vmem:[%s25 + $0x2b8] sm:$0xff]
  %v4641 = vld [vmem:[%s25 + $0x2c0] sm:$0xff]
  %v4642 = vld [vmem:[%s25 + $0x2c8] sm:$0xff]
  %v4643 = vld [vmem:[%s25 + $0x2d0] sm:$0xff]
  %v4644 = vld [vmem:[%s25 + $0x2d8] sm:$0xff]
  %v4645 = vld [vmem:[%s25 + $0x2e0] sm:$0xff]
  %v4646 = vld [vmem:[%s25 + $0x2e8] sm:$0xff]
  %v4647 = vld [vmem:[%s25 + $0x2f0] sm:$0xff]
  %v4648 = vld [vmem:[%s25 + $0x2f8] sm:$0xff]
  %v4649 = vld [vmem:[%s25 + $0x300] sm:$0xff]
  %v4650 = vld [vmem:[%s25 + $0x308] sm:$0xff]
  %v4651 = vld [vmem:[%s25 + $0x310] sm:$0xff]
  %v4652 = vld [vmem:[%s25 + $0x318] sm:$0xff]
  %v4653 = vld [vmem:[%s25 + $0x320] sm:$0xff]
  %v4654 = vld [vmem:[%s25 + $0x328] sm:$0xff]
  %v4655 = vld [vmem:[%s25 + $0x330] sm:$0xff]
  %v4656 = vld [vmem:[%s25 + $0x338] sm:$0xff]
  %v4657 = vld [vmem:[%s27] sm:$0x1]
  %v4659 = vlaneseq
  %v4660 = vshrl.u32 %v4659, 7
  %v4661 = vsub.s32 0, %v4660
  %v4662 = vrot.slane %v4657, %v4661
  %v4664 = vsel %vm477, %v4541, 0
  %v4666 = vsel %vm477, %v4542, 0
  %4668 = vmatprep.subr.mxu0 0.0
  %4669 = vmatpush1.msra.mxu0 %v4568
  %4670 = vmatprep.subr.mxu0 0.0
  %4671 = vmatpush1.msra.mxu0 %v4567
  %4672 = vmatprep.subr.mxu0 0.0
  %4673 = vmatpush1.msra.mxu0 %v4566
  %4674 = vmatprep.subr.mxu0 0.0
  %4675 = vmatpush1.msra.mxu0 %v4565
  %4676 = vmatprep.subr.mxu0 0.0
  %4677 = vmatpush1.msra.mxu0 %v4564
  %4678 = vmatprep.subr.mxu0 0.0
  %4679 = vmatpush1.msra.mxu0 %v4563
  %4680 = vmatprep.subr.mxu0 0.0
  %4681 = vmatpush1.msra.mxu0 %v4562
  %4682 = vmatprep.subr.mxu0 0.0
  %4683 = vmatpush1.msra.mxu0 %v4561
  %4684 = vmatprep.subr.mxu0 0.0
  %4685 = vmatpush1.msra.mxu0 %v4560
  %4686 = vmatprep.subr.mxu0 0.0
  %4687 = vmatpush1.msra.mxu0 %v4559
  %4688 = vmatprep.subr.mxu0 0.0
  %4689 = vmatpush1.msra.mxu0 %v4558
  %4690 = vmatprep.subr.mxu0 0.0
  %4691 = vmatpush1.msra.mxu0 %v4557
  %4692 = vmatprep.subr.mxu0 0.0
  %4693 = vmatpush1.msra.mxu0 %v4556
  %4694 = vmatprep.subr.mxu0 0.0
  %4695 = vmatpush1.msra.mxu0 %v4555
  %4696 = vmatprep.subr.mxu0 0.0
  %4697 = vmatpush1.msra.mxu0 %v4554
  %4698 = vmatprep.subr.mxu0 0.0
  %4699 = vmatpush1.msra.mxu0 %v4553
  %4700 = vmatprep.subr.mxu0 0.0
  %4701 = vmatpush2.msra.mxu0 %v4584
  %4702 = vmatprep.subr.mxu0 0.0
  %4703 = vmatpush2.msra.mxu0 %v4583
  %4704 = vmatprep.subr.mxu0 0.0
  %4705 = vmatpush2.msra.mxu0 %v4582
  %4706 = vmatprep.subr.mxu0 0.0
  %4707 = vmatpush2.msra.mxu0 %v4581
  %4708 = vmatprep.subr.mxu0 0.0
  %4709 = vmatpush2.msra.mxu0 %v4580
  %4710 = vmatprep.subr.mxu0 0.0
  %4711 = vmatpush2.msra.mxu0 %v4579
  %4712 = vmatprep.subr.mxu0 0.0
  %4713 = vmatpush2.msra.mxu0 %v4578
  %4714 = vmatprep.subr.mxu0 0.0
  %4715 = vmatpush2.msra.mxu0 %v4577
  %4716 = vmatprep.subr.mxu0 0.0
  %4717 = vmatpush2.msra.mxu0 %v4576
  %4718 = vmatprep.subr.mxu0 0.0
  %4719 = vmatpush2.msra.mxu0 %v4575
  %4720 = vmatprep.subr.mxu0 0.0
  %4721 = vmatpush2.msra.mxu0 %v4574
  %4722 = vmatprep.subr.mxu0 0.0
  %4723 = vmatpush2.msra.mxu0 %v4573
  %4724 = vmatprep.subr.mxu0 0.0
  %4725 = vmatpush2.msra.mxu0 %v4572
  %4726 = vmatprep.subr.mxu0 0.0
  %4727 = vmatpush2.msra.mxu0 %v4571
  %4728 = vmatprep.subr.mxu0 0.0
  %4729 = vmatpush2.msra.mxu0 %v4570
  %4730 = vmatprep.subr.mxu0 0.0
  %4731 = vmatpush2.msra.mxu0 %v4569
  %4732 = vmatprep.mubr.f32.mxu0 %v4547
  %4733 = vmatmul.mubr.f32.gmra.mxu0 %v4545
  %v4734 = vpop.f32.mrf.mxu0
  %v4735 = vadd.f32 %v4662, %v4734
  %v4736 = vpop.f32.mrf.mxu0
  %4737 = vmatprep.mubr.f32.mxu0 %v4548
  %4738 = vmatmul.mubr.f32.gmra.mxu0 %v4546
  %v4739 = vpop.f32.mrf.mxu0
  %v4740 = vadd.f32 %v4662, %v4739
  %v4741 = vpop.f32.mrf.mxu0
  %4742 = vdwg.mxu0
  %4743 = vmatprep.subr.mxu0 0.0
  %4744 = vmatpush1.msra.mxu0 %v4600
  %4745 = vmatprep.subr.mxu0 0.0
  %4746 = vmatpush1.msra.mxu0 %v4599
  %4747 = vmatprep.subr.mxu0 0.0
  %4748 = vmatpush1.msra.mxu0 %v4598
  %4749 = vmatprep.subr.mxu0 0.0
  %4750 = vmatpush1.msra.mxu0 %v4597
  %4751 = vmatprep.subr.mxu0 0.0
  %4752 = vmatpush1.msra.mxu0 %v4596
  %4753 = vmatprep.subr.mxu0 0.0
  %4754 = vmatpush1.msra.mxu0 %v4595
  %4755 = vmatprep.subr.mxu0 0.0
  %4756 = vmatpush1.msra.mxu0 %v4594
  %4757 = vmatprep.subr.mxu0 0.0
  %4758 = vmatpush1.msra.mxu0 %v4593
  %4759 = vmatprep.subr.mxu0 0.0
  %4760 = vmatpush1.msra.mxu0 %v4592
  %4761 = vmatprep.subr.mxu0 0.0
  %4762 = vmatpush1.msra.mxu0 %v4591
  %4763 = vmatprep.subr.mxu0 0.0
  %4764 = vmatpush1.msra.mxu0 %v4590
  %4765 = vmatprep.subr.mxu0 0.0
  %4766 = vmatpush1.msra.mxu0 %v4589
  %4767 = vmatprep.subr.mxu0 0.0
  %4768 = vmatpush1.msra.mxu0 %v4588
  %4769 = vmatprep.subr.mxu0 0.0
  %4770 = vmatpush1.msra.mxu0 %v4587
  %4771 = vmatprep.subr.mxu0 0.0
  %4772 = vmatpush1.msra.mxu0 %v4586
  %4773 = vmatprep.subr.mxu0 0.0
  %4774 = vmatpush1.msra.mxu0 %v4585
  %4775 = vmatprep.subr.mxu0 0.0
  %4776 = vmatpush2.msra.mxu0 %v4616
  %4777 = vmatprep.subr.mxu0 0.0
  %4778 = vmatpush2.msra.mxu0 %v4615
  %4779 = vmatprep.subr.mxu0 0.0
  %4780 = vmatpush2.msra.mxu0 %v4614
  %4781 = vmatprep.subr.mxu0 0.0
  %4782 = vmatpush2.msra.mxu0 %v4613
  %4783 = vmatprep.subr.mxu0 0.0
  %4784 = vmatpush2.msra.mxu0 %v4612
  %4785 = vmatprep.subr.mxu0 0.0
  %4786 = vmatpush2.msra.mxu0 %v4611
  %4787 = vmatprep.subr.mxu0 0.0
  %4788 = vmatpush2.msra.mxu0 %v4610
  %4789 = vmatprep.subr.mxu0 0.0
  %4790 = vmatpush2.msra.mxu0 %v4609
  %4791 = vmatprep.subr.mxu0 0.0
  %4792 = vmatpush2.msra.mxu0 %v4608
  %4793 = vmatprep.subr.mxu0 0.0
  %4794 = vmatpush2.msra.mxu0 %v4607
  %4795 = vmatprep.subr.mxu0 0.0
  %4796 = vmatpush2.msra.mxu0 %v4606
  %4797 = vmatprep.subr.mxu0 0.0
  %4798 = vmatpush2.msra.mxu0 %v4605
  %4799 = vmatprep.subr.mxu0 0.0
  %4800 = vmatpush2.msra.mxu0 %v4604
  %4801 = vmatprep.subr.mxu0 0.0
  %4802 = vmatpush2.msra.mxu0 %v4603
  %4803 = vmatprep.subr.mxu0 0.0
  %4804 = vmatpush2.msra.mxu0 %v4602
  %4805 = vmatprep.subr.mxu0 0.0
  %4806 = vmatpush2.msra.mxu0 %v4601
  %4807 = vmatprep.mubr.f32.mxu0 %v4523
  %4808 = vmatmul.mubr.f32.gmra.mxu0 %v4549
  %v4809 = vpop.f32.mrf.mxu0
  %v4810 = vadd.f32 %v4735, %v4809
  %v4811 = vpop.f32.mrf.mxu0
  %4812 = vmatprep.mubr.f32.mxu0 %v4524
  %4813 = vmatmul.mubr.f32.gmra.mxu0 %v4550
  %v4814 = vpop.f32.mrf.mxu0
  %v4815 = vadd.f32 %v4740, %v4814
  %v4816 = vpop.f32.mrf.mxu0
  %4817 = vdwg.mxu0
  %4818 = vmatprep.subr.mxu0 0.0
  %4819 = vmatpush1.msra.mxu0 %v4632
  %4820 = vmatprep.subr.mxu0 0.0
  %4821 = vmatpush1.msra.mxu0 %v4631
  %4822 = vmatprep.subr.mxu0 0.0
  %4823 = vmatpush1.msra.mxu0 %v4630
  %4824 = vmatprep.subr.mxu0 0.0
  %4825 = vmatpush1.msra.mxu0 %v4629
  %4826 = vmatprep.subr.mxu0 0.0
  %4827 = vmatpush1.msra.mxu0 %v4628
  %4828 = vmatprep.subr.mxu0 0.0
  %4829 = vmatpush1.msra.mxu0 %v4627
  %4830 = vmatprep.subr.mxu0 0.0
  %4831 = vmatpush1.msra.mxu0 %v4626
  %4832 = vmatprep.subr.mxu0 0.0
  %4833 = vmatpush1.msra.mxu0 %v4625
  %4834 = vmatprep.subr.mxu0 0.0
  %4835 = vmatpush1.msra.mxu0 %v4624
  %4836 = vmatprep.subr.mxu0 0.0
  %4837 = vmatpush1.msra.mxu0 %v4623
  %4838 = vmatprep.subr.mxu0 0.0
  %4839 = vmatpush1.msra.mxu0 %v4622
  %4840 = vmatprep.subr.mxu0 0.0
  %4841 = vmatpush1.msra.mxu0 %v4621
  %4842 = vmatprep.subr.mxu0 0.0
  %4843 = vmatpush1.msra.mxu0 %v4620
  %4844 = vmatprep.subr.mxu0 0.0
  %4845 = vmatpush1.msra.mxu0 %v4619
  %4846 = vmatprep.subr.mxu0 0.0
  %4847 = vmatpush1.msra.mxu0 %v4618
  %4848 = vmatprep.subr.mxu0 0.0
  %4849 = vmatpush1.msra.mxu0 %v4617
  %4850 = vmatprep.subr.mxu0 0.0
  %4851 = vmatpush2.msra.mxu0 %v4648
  %4852 = vmatprep.subr.mxu0 0.0
  %4853 = vmatpush2.msra.mxu0 %v4647
  %4854 = vmatprep.subr.mxu0 0.0
  %4855 = vmatpush2.msra.mxu0 %v4646
  %4856 = vmatprep.subr.mxu0 0.0
  %4857 = vmatpush2.msra.mxu0 %v4645
  %4858 = vmatprep.subr.mxu0 0.0
  %4859 = vmatpush2.msra.mxu0 %v4644
  %4860 = vmatprep.subr.mxu0 0.0
  %4861 = vmatpush2.msra.mxu0 %v4643
  %4862 = vmatprep.subr.mxu0 0.0
  %4863 = vmatpush2.msra.mxu0 %v4642
  %4864 = vmatprep.subr.mxu0 0.0
  %4865 = vmatpush2.msra.mxu0 %v4641
  %4866 = vmatprep.subr.mxu0 0.0
  %4867 = vmatpush2.msra.mxu0 %v4640
  %4868 = vmatprep.subr.mxu0 0.0
  %4869 = vmatpush2.msra.mxu0 %v4639
  %4870 = vmatprep.subr.mxu0 0.0
  %4871 = vmatpush2.msra.mxu0 %v4638
  %4872 = vmatprep.subr.mxu0 0.0
  %4873 = vmatpush2.msra.mxu0 %v4637
  %4874 = vmatprep.subr.mxu0 0.0
  %4875 = vmatpush2.msra.mxu0 %v4636
  %4876 = vmatprep.subr.mxu0 0.0
  %4877 = vmatpush2.msra.mxu0 %v4635
  %4878 = vmatprep.subr.mxu0 0.0
  %4879 = vmatpush2.msra.mxu0 %v4634
  %4880 = vmatprep.subr.mxu0 0.0
  %4881 = vmatpush2.msra.mxu0 %v4633
  %4882 = vmatprep.mubr.f32.mxu0 %v4551
  %4883 = vmatmul.mubr.f32.gmra.mxu0 %v4469
  %v4884 = vpop.f32.mrf.mxu0
  %v4885 = vadd.f32 %v4810, %v4884
  %v4886 = vpop.f32.mrf.mxu0
  %4887 = vmatprep.mubr.f32.mxu0 %v4552
  %4888 = vmatmul.mubr.f32.gmra.mxu0 %v4471
  %v4889 = vpop.f32.mrf.mxu0
  %v4890 = vadd.f32 %v4815, %v4889
  %v4891 = vpop.f32.mrf.mxu0
  %4892 = vdwg.mxu0
  %4893 = vmatprep.subr.mxu0 0.0
  %4894 = vmatpush1.msra.mxu0 0.0
  %4895 = vmatprep.subr.mxu0 0.0
  %4896 = vmatpush1.msra.mxu0 0.0
  %4897 = vmatprep.subr.mxu0 0.0
  %4898 = vmatpush1.msra.mxu0 0.0
  %4899 = vmatprep.subr.mxu0 0.0
  %4900 = vmatpush1.msra.mxu0 0.0
  %4901 = vmatprep.subr.mxu0 0.0
  %4902 = vmatpush1.msra.mxu0 0.0
  %4903 = vmatprep.subr.mxu0 0.0
  %4904 = vmatpush1.msra.mxu0 0.0
  %4905 = vmatprep.subr.mxu0 0.0
  %4906 = vmatpush1.msra.mxu0 0.0
  %4907 = vmatprep.subr.mxu0 0.0
  %4908 = vmatpush1.msra.mxu0 0.0
  %4909 = vmatprep.subr.mxu0 0.0
  %4910 = vmatpush1.msra.mxu0 %v4656
  %4911 = vmatprep.subr.mxu0 0.0
  %4912 = vmatpush1.msra.mxu0 %v4655
  %4913 = vmatprep.subr.mxu0 0.0
  %4914 = vmatpush1.msra.mxu0 %v4654
  %4915 = vmatprep.subr.mxu0 0.0
  %4916 = vmatpush1.msra.mxu0 %v4653
  %4917 = vmatprep.subr.mxu0 0.0
  %4918 = vmatpush1.msra.mxu0 %v4652
  %4919 = vmatprep.subr.mxu0 0.0
  %4920 = vmatpush1.msra.mxu0 %v4651
  %4921 = vmatprep.subr.mxu0 0.0
  %4922 = vmatpush1.msra.mxu0 %v4650
  %4923 = vmatprep.subr.mxu0 0.0
  %4924 = vmatpush1.msra.mxu0 %v4649
  %4925 = vmatprep.subr.mxu0 0.0
  %4926 = vmatpush2.msra.mxu0 0.0
  %4927 = vmatprep.subr.mxu0 0.0
  %4928 = vmatpush2.msra.mxu0 0.0
  %4929 = vmatprep.subr.mxu0 0.0
  %4930 = vmatpush2.msra.mxu0 0.0
  %4931 = vmatprep.subr.mxu0 0.0
  %4932 = vmatpush2.msra.mxu0 0.0
  %4933 = vmatprep.subr.mxu0 0.0
  %4934 = vmatpush2.msra.mxu0 0.0
  %4935 = vmatprep.subr.mxu0 0.0
  %4936 = vmatpush2.msra.mxu0 0.0
  %4937 = vmatprep.subr.mxu0 0.0
  %4938 = vmatpush2.msra.mxu0 0.0
  %4939 = vmatprep.subr.mxu0 0.0
  %4940 = vmatpush2.msra.mxu0 0.0
  %4941 = vmatprep.subr.mxu0 0.0
  %4942 = vmatpush2.msra.mxu0 0.0
  %4943 = vmatprep.subr.mxu0 0.0
  %4944 = vmatpush2.msra.mxu0 0.0
  %4945 = vmatprep.subr.mxu0 0.0
  %4946 = vmatpush2.msra.mxu0 0.0
  %4947 = vmatprep.subr.mxu0 0.0
  %4948 = vmatpush2.msra.mxu0 0.0
  %4949 = vmatprep.subr.mxu0 0.0
  %4950 = vmatpush2.msra.mxu0 0.0
  %4951 = vmatprep.subr.mxu0 0.0
  %4952 = vmatpush2.msra.mxu0 0.0
  %4953 = vmatprep.subr.mxu0 0.0
  %4954 = vmatpush2.msra.mxu0 0.0
  %4955 = vmatprep.subr.mxu0 0.0
  %4956 = vmatpush2.msra.mxu0 0.0
  %4957 = vmatprep.mubr.f32.mxu0 0.0
  %4958 = vmatmul.mubr.f32.gmra.mxu0 %v4664
  %v4959 = vpop.f32.mrf.mxu0
  %v4960 = vadd.f32 %v4885, %v4959
  %v4961 = vpop.f32.mrf.mxu0
  %4962 = vmatprep.mubr.f32.mxu0 0.0
  %4963 = vmatmul.mubr.f32.gmra.mxu0 %v4666
  %v4964 = vpop.f32.mrf.mxu0
  %v4965 = vadd.f32 %v4890, %v4964
  %v4966 = vpop.f32.mrf.mxu0
  %4967 = vdwg.mxu0
  %v4968 = vld [vmem:[%s29] sm:$0xff]
  %v4969 = vld [vmem:[%s29 + $0x8] sm:$0xff]
  %v4970 = vld [vmem:[%s29 + $0x10] sm:$0xff]
  %v4971 = vld [vmem:[%s29 + $0x18] sm:$0xff]
  %v4972 = vld [vmem:[%s29 + $0x20] sm:$0xff]
  %v4973 = vld [vmem:[%s29 + $0x28] sm:$0xff]
  %v4974 = vld [vmem:[%s29 + $0x30] sm:$0xff]
  %v4975 = vld [vmem:[%s29 + $0x38] sm:$0xff]
  %v4976 = vld [vmem:[%s31] sm:$0x1]
  %v4978 = vlaneseq
  %v4979 = vshrl.u32 %v4978, 7
  %v4980 = vsub.s32 0, %v4979
  %v4981 = vrot.slane %v4976, %v4980
  %v4984 = vsel %vm477, %v4960, 0
  %v4987 = vsel %vm477, %v4965, 0
  %4989 = vmatprep.subr.mxu0 0.0
  %4990 = vmatpush1.msra.mxu0 0.0
  %4991 = vmatprep.subr.mxu0 0.0
  %4992 = vmatpush1.msra.mxu0 0.0
  %4993 = vmatprep.subr.mxu0 0.0
  %4994 = vmatpush1.msra.mxu0 0.0
  %4995 = vmatprep.subr.mxu0 0.0
  %4996 = vmatpush1.msra.mxu0 0.0
  %4997 = vmatprep.subr.mxu0 0.0
  %4998 = vmatpush1.msra.mxu0 0.0
  %4999 = vmatprep.subr.mxu0 0.0
  %5000 = vmatpush1.msra.mxu0 0.0
  %5001 = vmatprep.subr.mxu0 0.0
  %5002 = vmatpush1.msra.mxu0 0.0
  %5003 = vmatprep.subr.mxu0 0.0
  %5004 = vmatpush1.msra.mxu0 0.0
  %5005 = vmatprep.subr.mxu0 0.0
  %5006 = vmatpush1.msra.mxu0 %v4975
  %5007 = vmatprep.subr.mxu0 0.0
  %5008 = vmatpush1.msra.mxu0 %v4974
  %5009 = vmatprep.subr.mxu0 0.0
  %5010 = vmatpush1.msra.mxu0 %v4973
  %5011 = vmatprep.subr.mxu0 0.0
  %5012 = vmatpush1.msra.mxu0 %v4972
  %5013 = vmatprep.subr.mxu0 0.0
  %5014 = vmatpush1.msra.mxu0 %v4971
  %5015 = vmatprep.subr.mxu0 0.0
  %5016 = vmatpush1.msra.mxu0 %v4970
  %5017 = vmatprep.subr.mxu0 0.0
  %5018 = vmatpush1.msra.mxu0 %v4969
  %5019 = vmatprep.subr.mxu0 0.0
  %5020 = vmatpush1.msra.mxu0 %v4968
  %5021 = vmatprep.subr.mxu0 0.0
  %5022 = vmatpush2.msra.mxu0 0.0
  %5023 = vmatprep.subr.mxu0 0.0
  %5024 = vmatpush2.msra.mxu0 0.0
  %5025 = vmatprep.subr.mxu0 0.0
  %5026 = vmatpush2.msra.mxu0 0.0
  %5027 = vmatprep.subr.mxu0 0.0
  %5028 = vmatpush2.msra.mxu0 0.0
  %5029 = vmatprep.subr.mxu0 0.0
  %5030 = vmatpush2.msra.mxu0 0.0
  %5031 = vmatprep.subr.mxu0 0.0
  %5032 = vmatpush2.msra.mxu0 0.0
  %5033 = vmatprep.subr.mxu0 0.0
  %5034 = vmatpush2.msra.mxu0 0.0
  %5035 = vmatprep.subr.mxu0 0.0
  %5036 = vmatpush2.msra.mxu0 0.0
  %5037 = vmatprep.subr.mxu0 0.0
  %5038 = vmatpush2.msra.mxu0 0.0
  %5039 = vmatprep.subr.mxu0 0.0
  %5040 = vmatpush2.msra.mxu0 0.0
  %5041 = vmatprep.subr.mxu0 0.0
  %5042 = vmatpush2.msra.mxu0 0.0
  %5043 = vmatprep.subr.mxu0 0.0
  %5044 = vmatpush2.msra.mxu0 0.0
  %5045 = vmatprep.subr.mxu0 0.0
  %5046 = vmatpush2.msra.mxu0 0.0
  %5047 = vmatprep.subr.mxu0 0.0
  %5048 = vmatpush2.msra.mxu0 0.0
  %5049 = vmatprep.subr.mxu0 0.0
  %5050 = vmatpush2.msra.mxu0 0.0
  %5051 = vmatprep.subr.mxu0 0.0
  %5052 = vmatpush2.msra.mxu0 0.0
  %5053 = vmatprep.mubr.f32.mxu0 0.0
  %5054 = vmatmul.mubr.f32.gmra.mxu0 %v4984
  %v5055 = vpop.f32.mrf.mxu0
  %v5056 = vadd.f32 %v4981, %v5055
  %v5057 = vpop.f32.mrf.mxu0
  %5058 = vmatprep.mubr.f32.mxu0 0.0
  %5059 = vmatmul.mubr.f32.gmra.mxu0 %v4987
  %v5060 = vpop.f32.mrf.mxu0
  %v5061 = vadd.f32 %v4981, %v5060
  %v5062 = vpop.f32.mrf.mxu0
  %5063 = vdwg.mxu0
  %v5064 = vld [vmem:[%s33] sm:$0xff]
  %v5065 = vld [vmem:[%s33 + $0x8] sm:$0xff]
  %v5066 = vld [vmem:[%s33 + $0x10] sm:$0xff]
  %v5067 = vld [vmem:[%s33 + $0x18] sm:$0xff]
  %v5068 = vld [vmem:[%s33 + $0x20] sm:$0xff]
  %v5069 = vld [vmem:[%s33 + $0x28] sm:$0xff]
  %v5070 = vld [vmem:[%s33 + $0x30] sm:$0xff]
  %v5071 = vld [vmem:[%s33 + $0x38] sm:$0xff]
  %v5073 = vsel %vm477, %v5056, 0
  %v5076 = vsel %vm477, %v5061, 0
  %5078 = vmatprep.subr.mxu0 0.0
  %5079 = vmatpush1.msra.mxu0 0.0
  %5080 = vmatprep.subr.mxu0 0.0
  %5081 = vmatpush1.msra.mxu0 0.0
  %5082 = vmatprep.subr.mxu0 0.0
  %5083 = vmatpush1.msra.mxu0 0.0
  %5084 = vmatprep.subr.mxu0 0.0
  %5085 = vmatpush1.msra.mxu0 0.0
  %5086 = vmatprep.subr.mxu0 0.0
  %5087 = vmatpush1.msra.mxu0 0.0
  %5088 = vmatprep.subr.mxu0 0.0
  %5089 = vmatpush1.msra.mxu0 0.0
  %5090 = vmatprep.subr.mxu0 0.0
  %5091 = vmatpush1.msra.mxu0 0.0
  %5092 = vmatprep.subr.mxu0 0.0
  %5093 = vmatpush1.msra.mxu0 0.0
  %5094 = vmatprep.subr.mxu0 0.0
  %5095 = vmatpush1.msra.mxu0 %v5071
  %5096 = vmatprep.subr.mxu0 0.0
  %5097 = vmatpush1.msra.mxu0 %v5070
  %5098 = vmatprep.subr.mxu0 0.0
  %5099 = vmatpush1.msra.mxu0 %v5069
  %5100 = vmatprep.subr.mxu0 0.0
  %5101 = vmatpush1.msra.mxu0 %v5068
  %5102 = vmatprep.subr.mxu0 0.0
  %5103 = vmatpush1.msra.mxu0 %v5067
  %5104 = vmatprep.subr.mxu0 0.0
  %5105 = vmatpush1.msra.mxu0 %v5066
  %5106 = vmatprep.subr.mxu0 0.0
  %5107 = vmatpush1.msra.mxu0 %v5065
  %5108 = vmatprep.subr.mxu0 0.0
  %5109 = vmatpush1.msra.mxu0 %v5064
  %5110 = vmatprep.subr.mxu0 0.0
  %5111 = vmatpush2.msra.mxu0 0.0
  %5112 = vmatprep.subr.mxu0 0.0
  %5113 = vmatpush2.msra.mxu0 0.0
  %5114 = vmatprep.subr.mxu0 0.0
  %5115 = vmatpush2.msra.mxu0 0.0
  %5116 = vmatprep.subr.mxu0 0.0
  %5117 = vmatpush2.msra.mxu0 0.0
  %5118 = vmatprep.subr.mxu0 0.0
  %5119 = vmatpush2.msra.mxu0 0.0
  %5120 = vmatprep.subr.mxu0 0.0
  %5121 = vmatpush2.msra.mxu0 0.0
  %5122 = vmatprep.subr.mxu0 0.0
  %5123 = vmatpush2.msra.mxu0 0.0
  %5124 = vmatprep.subr.mxu0 0.0
  %5125 = vmatpush2.msra.mxu0 0.0
  %5126 = vmatprep.subr.mxu0 0.0
  %5127 = vmatpush2.msra.mxu0 0.0
  %5128 = vmatprep.subr.mxu0 0.0
  %5129 = vmatpush2.msra.mxu0 0.0
  %5130 = vmatprep.subr.mxu0 0.0
  %5131 = vmatpush2.msra.mxu0 0.0
  %5132 = vmatprep.subr.mxu0 0.0
  %5133 = vmatpush2.msra.mxu0 0.0
  %5134 = vmatprep.subr.mxu0 0.0
  %5135 = vmatpush2.msra.mxu0 0.0
  %5136 = vmatprep.subr.mxu0 0.0
  %5137 = vmatpush2.msra.mxu0 0.0
  %5138 = vmatprep.subr.mxu0 0.0
  %5139 = vmatpush2.msra.mxu0 0.0
  %5140 = vmatprep.subr.mxu0 0.0
  %5141 = vmatpush2.msra.mxu0 0.0
  %5142 = vmatprep.mubr.f32.mxu0 0.0
  %5143 = vmatmul.mubr.f32.gmra.mxu0 %v5073
  %v5144 = vpop.f32.mrf.mxu0
  %v5145 = vadd.f32 0.0, %v5144
  %v5146 = vpop.f32.mrf.mxu0
  %5147 = vmatprep.mubr.f32.mxu0 0.0
  %5148 = vmatmul.mubr.f32.gmra.mxu0 %v5076
  %v5149 = vpop.f32.mrf.mxu0
  %v5150 = vadd.f32 0.0, %v5149
  %v5151 = vpop.f32.mrf.mxu0
  %5152 = vdwg.mxu0
  %5155 = vrot.lane.b32.xlu0 %v5145, 64
  %v5156 = vpop.permute.xlu0 %5155
  %5157 = vrot.lane.b32.xlu0 %v5150, 64
  %v5158 = vpop.permute.xlu0 %5157
  %v5161 = vld [vmem:[%s35] sm:$0x1]
  %v5163 = vlaneseq
  %v5164 = vshrl.u32 %v5163, 7
  %v5165 = vsub.s32 0, %v5164
  %v5166 = vrot.slane %v5161, %v5165
  %5168 = vmatprep.subr.mxu0 0.0
  %5169 = vmatpush1.msra.mxu0 0.0
  %5170 = vmatprep.subr.mxu0 0.0
  %5171 = vmatpush1.msra.mxu0 0.0
  %5172 = vmatprep.subr.mxu0 0.0
  %5173 = vmatpush1.msra.mxu0 0.0
  %5174 = vmatprep.subr.mxu0 0.0
  %5175 = vmatpush1.msra.mxu0 0.0
  %5176 = vmatprep.subr.mxu0 0.0
  %5177 = vmatpush1.msra.mxu0 0.0
  %5178 = vmatprep.subr.mxu0 0.0
  %5179 = vmatpush1.msra.mxu0 0.0
  %5180 = vmatprep.subr.mxu0 0.0
  %5181 = vmatpush1.msra.mxu0 0.0
  %5182 = vmatprep.subr.mxu0 0.0
  %5183 = vmatpush1.msra.mxu0 0.0
  %5184 = vmatprep.subr.mxu0 0.0
  %5185 = vmatpush1.msra.mxu0 0.0
  %5186 = vmatprep.subr.mxu0 0.0
  %5187 = vmatpush1.msra.mxu0 0.0
  %5188 = vmatprep.subr.mxu0 0.0
  %5189 = vmatpush1.msra.mxu0 0.0
  %5190 = vmatprep.subr.mxu0 0.0
  %5191 = vmatpush1.msra.mxu0 0.0
  %5192 = vmatprep.subr.mxu0 0.0
  %5193 = vmatpush1.msra.mxu0 %v5158
  %5194 = vmatprep.subr.mxu0 0.0
  %5195 = vmatpush1.msra.mxu0 %v5156
  %5196 = vmatprep.subr.mxu0 0.0
  %5197 = vmatpush1.msra.mxu0 %v5150
  %5198 = vmatprep.subr.mxu0 0.0
  %5199 = vmatpush1.msra.mxu0 %v5145
  %5200 = vmatprep.subr.mxu0 0.0
  %5201 = vmatpush2.msra.mxu0 0.0
  %5202 = vmatprep.subr.mxu0 0.0
  %5203 = vmatpush2.msra.mxu0 0.0
  %5204 = vmatprep.subr.mxu0 0.0
  %5205 = vmatpush2.msra.mxu0 0.0
  %5206 = vmatprep.subr.mxu0 0.0
  %5207 = vmatpush2.msra.mxu0 0.0
  %5208 = vmatprep.subr.mxu0 0.0
  %5209 = vmatpush2.msra.mxu0 0.0
  %5210 = vmatprep.subr.mxu0 0.0
  %5211 = vmatpush2.msra.mxu0 0.0
  %5212 = vmatprep.subr.mxu0 0.0
  %5213 = vmatpush2.msra.mxu0 0.0
  %5214 = vmatprep.subr.mxu0 0.0
  %5215 = vmatpush2.msra.mxu0 0.0
  %5216 = vmatprep.subr.mxu0 0.0
  %5217 = vmatpush2.msra.mxu0 0.0
  %5218 = vmatprep.subr.mxu0 0.0
  %5219 = vmatpush2.msra.mxu0 0.0
  %5220 = vmatprep.subr.mxu0 0.0
  %5221 = vmatpush2.msra.mxu0 0.0
  %5222 = vmatprep.subr.mxu0 0.0
  %5223 = vmatpush2.msra.mxu0 0.0
  %5224 = vmatprep.subr.mxu0 0.0
  %5225 = vmatpush2.msra.mxu0 0.0
  %5226 = vmatprep.subr.mxu0 0.0
  %5227 = vmatpush2.msra.mxu0 0.0
  %5228 = vmatprep.subr.mxu0 0.0
  %5229 = vmatpush2.msra.mxu0 0.0
  %5230 = vmatprep.subr.mxu0 0.0
  %5231 = vmatpush2.msra.mxu0 0.0
  %5232 = vmatprep.mubr.f32.mxu0 0.0
  %5233 = vmatmul.mubr.f32.gmra.mxu0 %v301
  %v5234 = vpop.f32.mrf.mxu0
  %v5235 = vadd.f32 %v5166, %v5234
  %v5236 = vpop.f32.mrf.mxu0
  %5237 = vmatprep.mubr.f32.mxu0 0.0
  %5238 = vmatmul.mubr.f32.gmra.mxu0 %v304
  %v5239 = vpop.f32.mrf.mxu0
  %v5240 = vadd.f32 %v5166, %v5239
  %v5241 = vpop.f32.mrf.mxu0
  %5242 = vmatprep.mubr.f32.mxu0 0.0
  %5243 = vmatmul.mubr.f32.gmra.mxu0 %v307
  %v5244 = vpop.f32.mrf.mxu0
  %v5245 = vadd.f32 %v5166, %v5244
  %v5246 = vpop.f32.mrf.mxu0
  %5247 = vmatprep.mubr.f32.mxu0 0.0
  %5248 = vmatmul.mubr.f32.gmra.mxu0 %v310
  %v5249 = vpop.f32.mrf.mxu0
  %v5250 = vadd.f32 %v5166, %v5249
  %v5251 = vpop.f32.mrf.mxu0
  %5252 = vmatprep.mubr.f32.mxu0 0.0
  %5253 = vmatmul.mubr.f32.gmra.mxu0 %v313
  %v5254 = vpop.f32.mrf.mxu0
  %v5255 = vadd.f32 %v5166, %v5254
  %v5256 = vpop.f32.mrf.mxu0
  %5257 = vmatprep.mubr.f32.mxu0 0.0
  %5258 = vmatmul.mubr.f32.gmra.mxu0 %v316
  %v5259 = vpop.f32.mrf.mxu0
  %v5260 = vadd.f32 %v5166, %v5259
  %v5261 = vpop.f32.mrf.mxu0
  %5262 = vmatprep.mubr.f32.mxu0 0.0
  %5263 = vmatmul.mubr.f32.gmra.mxu0 %v319
  %v5264 = vpop.f32.mrf.mxu0
  %v5265 = vadd.f32 %v5166, %v5264
  %v5266 = vpop.f32.mrf.mxu0
  %5267 = vmatprep.mubr.f32.mxu0 0.0
  %5268 = vmatmul.mubr.f32.gmra.mxu0 %v322
  %v5269 = vpop.f32.mrf.mxu0
  %v5270 = vadd.f32 %v5166, %v5269
  %v5271 = vpop.f32.mrf.mxu0
  %5272 = vdwg.mxu0
  %v5273 = vmul.f32 %v5235, %v5235
  %v5274 = vmul.f32 %v5240, %v5240
  %v5275 = vmul.f32 %v5245, %v5245
  %v5276 = vmul.f32 %v5250, %v5250
  %v5277 = vmul.f32 %v5255, %v5255
  %v5278 = vmul.f32 %v5260, %v5260
  %v5279 = vmul.f32 %v5265, %v5265
  %v5280 = vmul.f32 %v5270, %v5270
  %5289 = vrot.lane.b32.xlu0 %v5273, 64
  %v5290 = vpop.permute.xlu0 %5289
  %5291 = vrot.lane.b32.xlu0 %v5274, 64
  %v5292 = vpop.permute.xlu0 %5291
  %5293 = vrot.lane.b32.xlu0 %v5275, 64
  %v5294 = vpop.permute.xlu0 %5293
  %5295 = vrot.lane.b32.xlu0 %v5276, 64
  %v5296 = vpop.permute.xlu0 %5295
  %5297 = vrot.lane.b32.xlu0 %v5277, 64
  %v5298 = vpop.permute.xlu0 %5297
  %5299 = vrot.lane.b32.xlu0 %v5278, 64
  %v5300 = vpop.permute.xlu0 %5299
  %5301 = vrot.lane.b32.xlu0 %v5279, 64
  %v5302 = vpop.permute.xlu0 %5301
  %5303 = vrot.lane.b32.xlu0 %v5280, 64
  %v5304 = vpop.permute.xlu0 %5303
  %v5313 = vsel %vm477, %v5235, %v5290
  %v5314 = vsel %vm477, %v5240, %v5292
  %v5315 = vsel %vm477, %v5245, %v5294
  %v5316 = vsel %vm477, %v5250, %v5296
  %v5317 = vsel %vm477, %v5255, %v5298
  %v5318 = vsel %vm477, %v5260, %v5300
  %v5319 = vsel %vm477, %v5265, %v5302
  %v5320 = vsel %vm477, %v5270, %v5304
  %5321 = vmatprep.subr.mxu0 0.0
  %5322 = vmatpush1.msra.mxu0 0.0
  %5323 = vmatprep.subr.mxu0 0.0
  %5324 = vmatpush1.msra.mxu0 0.0
  %5325 = vmatprep.subr.mxu0 0.0
  %5326 = vmatpush1.msra.mxu0 0.0
  %5327 = vmatprep.subr.mxu0 0.0
  %5328 = vmatpush1.msra.mxu0 0.0
  %5329 = vmatprep.subr.mxu0 0.0
  %5330 = vmatpush1.msra.mxu0 0.0
  %5331 = vmatprep.subr.mxu0 0.0
  %5332 = vmatpush1.msra.mxu0 0.0
  %5333 = vmatprep.subr.mxu0 0.0
  %5334 = vmatpush1.msra.mxu0 0.0
  %5335 = vmatprep.subr.mxu0 0.0
  %5336 = vmatpush1.msra.mxu0 0.0
  %5337 = vmatprep.subr.mxu0 0.0
  %5338 = vmatpush1.msra.mxu0 %v5320
  %5339 = vmatprep.subr.mxu0 0.0
  %5340 = vmatpush1.msra.mxu0 %v5319
  %5341 = vmatprep.subr.mxu0 0.0
  %5342 = vmatpush1.msra.mxu0 %v5318
  %5343 = vmatprep.subr.mxu0 0.0
  %5344 = vmatpush1.msra.mxu0 %v5317
  %5345 = vmatprep.subr.mxu0 0.0
  %5346 = vmatpush1.msra.mxu0 %v5316
  %5347 = vmatprep.subr.mxu0 0.0
  %5348 = vmatpush1.msra.mxu0 %v5315
  %5349 = vmatprep.subr.mxu0 0.0
  %5350 = vmatpush1.msra.mxu0 %v5314
  %5351 = vmatprep.subr.mxu0 0.0
  %5352 = vmatpush1.msra.mxu0 %v5313
  %5353 = vmatprep.subr.mxu0 0.0
  %5354 = vmatpush2.msra.mxu0 0.0
  %5355 = vmatprep.subr.mxu0 0.0
  %5356 = vmatpush2.msra.mxu0 0.0
  %5357 = vmatprep.subr.mxu0 0.0
  %5358 = vmatpush2.msra.mxu0 0.0
  %5359 = vmatprep.subr.mxu0 0.0
  %5360 = vmatpush2.msra.mxu0 0.0
  %5361 = vmatprep.subr.mxu0 0.0
  %5362 = vmatpush2.msra.mxu0 0.0
  %5363 = vmatprep.subr.mxu0 0.0
  %5364 = vmatpush2.msra.mxu0 0.0
  %5365 = vmatprep.subr.mxu0 0.0
  %5366 = vmatpush2.msra.mxu0 0.0
  %5367 = vmatprep.subr.mxu0 0.0
  %5368 = vmatpush2.msra.mxu0 0.0
  %5369 = vmatprep.subr.mxu0 0.0
  %5370 = vmatpush2.msra.mxu0 0.0
  %5371 = vmatprep.subr.mxu0 0.0
  %5372 = vmatpush2.msra.mxu0 0.0
  %5373 = vmatprep.subr.mxu0 0.0
  %5374 = vmatpush2.msra.mxu0 0.0
  %5375 = vmatprep.subr.mxu0 0.0
  %5376 = vmatpush2.msra.mxu0 0.0
  %5377 = vmatprep.subr.mxu0 0.0
  %5378 = vmatpush2.msra.mxu0 0.0
  %5379 = vmatprep.subr.mxu0 0.0
  %5380 = vmatpush2.msra.mxu0 0.0
  %5381 = vmatprep.subr.mxu0 0.0
  %5382 = vmatpush2.msra.mxu0 0.0
  %5383 = vmatprep.subr.mxu0 0.0
  %5384 = vmatpush2.msra.mxu0 0.0
  %5385 = vmatprep.mubr.f32.mxu0 0.0
  %5386 = vmatmul.mubr.f32.gmra.mxu0 %v479
  %v5387 = vpop.f32.mrf.mxu0
  %v5388 = vadd.f32 0.0, %v5387
  %v5389 = vpop.f32.mrf.mxu0
  %5390 = vmatprep.mubr.f32.mxu0 0.0
  %5391 = vmatmul.mubr.f32.gmra.mxu0 %v482
  %v5392 = vpop.f32.mrf.mxu0
  %v5393 = vadd.f32 0.0, %v5392
  %v5394 = vpop.f32.mrf.mxu0
  %5395 = vdwg.mxu0
  %v5396 = vmul.f32 %v5388, %v562
  %v5397 = vmul.f32 %v5393, %v567
  %v5398 = vmul.f32 %v5396, %v5396
  %v5399 = vmul.f32 %v5397, %v5397
  %5402 = vrot.lane.b32.xlu0 %v5398, 64
  %v5403 = vpop.permute.xlu0 %5402
  %5404 = vrot.lane.b32.xlu0 %v5399, 64
  %v5405 = vpop.permute.xlu0 %5404
  %v5408 = vsub.f32 %v5396, %v5403
  %v5409 = vsub.f32 %v5397, %v5405
  %v5410 = vmax.f32 %v5408, 0.0
  %v5411 = vmax.f32 %v5409, 0.0
  %v5412 = vadd.f32 %v5410, 1e-05
  %v5413 = vadd.f32 %v5411, 1e-05
  %v5414 = vrsqrt.pop %v5412
  %v5415 = vmul.f32 %v5412, %v5414
  %vm5416 = vcmp.eq.f32.partialorder %v5412, inf
  %v5417 = vsel %vm5416, %v5412, %v5415
  %vm5418 = vcmp.eq.f32.partialorder %v5412, 0.0
  %v5419 = vand.u32 %v5412, 2147483648
  %v5420 = vsel %vm5418, %v5419, %v5417
  %v5421 = vrsqrt.pop %v5413
  %v5422 = vmul.f32 %v5413, %v5421
  %vm5423 = vcmp.eq.f32.partialorder %v5413, inf
  %v5424 = vsel %vm5423, %v5413, %v5422
  %vm5425 = vcmp.eq.f32.partialorder %v5413, 0.0
  %v5426 = vand.u32 %v5413, 2147483648
  %v5427 = vsel %vm5425, %v5426, %v5424
  %v5428 = vsub.f32 0.0, %v5235
  %v5429 = vsub.f32 0.0, %v5240
  %v5430 = vsub.f32 0.0, %v5245
  %v5431 = vsub.f32 0.0, %v5250
  %v5432 = vsub.f32 0.0, %v5255
  %v5433 = vsub.f32 0.0, %v5260
  %v5434 = vsub.f32 0.0, %v5265
  %v5435 = vsub.f32 0.0, %v5270
  %5444 = vrot.lane.b32.xlu0 %v5428, 64
  %v5445 = vpop.permute.xlu0 %5444
  %5446 = vrot.lane.b32.xlu0 %v5429, 64
  %v5447 = vpop.permute.xlu0 %5446
  %5448 = vrot.lane.b32.xlu0 %v5430, 64
  %v5449 = vpop.permute.xlu0 %5448
  %5450 = vrot.lane.b32.xlu0 %v5431, 64
  %v5451 = vpop.permute.xlu0 %5450
  %5452 = vrot.lane.b32.xlu0 %v5432, 64
  %v5453 = vpop.permute.xlu0 %5452
  %5454 = vrot.lane.b32.xlu0 %v5433, 64
  %v5455 = vpop.permute.xlu0 %5454
  %5456 = vrot.lane.b32.xlu0 %v5434, 64
  %v5457 = vpop.permute.xlu0 %5456
  %5458 = vrot.lane.b32.xlu0 %v5435, 64
  %v5459 = vpop.permute.xlu0 %5458
  %v5468 = vsel %vm477, %v5235, %v5445
  %v5469 = vsel %vm477, %v5240, %v5447
  %v5470 = vsel %vm477, %v5245, %v5449
  %v5471 = vsel %vm477, %v5250, %v5451
  %v5472 = vsel %vm477, %v5255, %v5453
  %v5473 = vsel %vm477, %v5260, %v5455
  %v5474 = vsel %vm477, %v5265, %v5457
  %v5475 = vsel %vm477, %v5270, %v5459
  %v5477 = vcombine.high %v5468, %v5468
  %v5479 = vunpack.c.l.s4 1966171168
  %v5480 = vunpack.c.0.s8 %v5479
  %v5481 = vlaneseq
  %v5482 = vshrl.u32 %v5481, 7
  %v5483 = vsub.s32 %v5480, %v5482
  %v5484 = vrot.slane %v5468, %v5483
  %v5486 = vunpack.c.l.s4 1966171168
  %v5487 = vunpack.c.0.s8 %v5486
  %v5488 = vlaneseq
  %v5489 = vshrl.u32 %v5488, 7
  %v5490 = vsub.s32 %v5487, %v5489
  %v5491 = vrot.slane %v5477, %v5490
  %v5492 = vcombine.high %v5484, %v5484
  %v5493 = vcombine.high %v5491, %v5491
  %v5495 = vunpack.c.l.s4 1966171168
  %v5496 = vunpack.c.0.s8 %v5495
  %v5497 = vlaneseq
  %v5498 = vshrl.u32 %v5497, 7
  %v5499 = vsub.s32 %v5496, %v5498
  %v5500 = vrot.slane %v5484, %v5499
  %v5502 = vunpack.c.l.s4 1966171168
  %v5503 = vunpack.c.0.s8 %v5502
  %v5504 = vlaneseq
  %v5505 = vshrl.u32 %v5504, 7
  %v5506 = vsub.s32 %v5503, %v5505
  %v5507 = vrot.slane %v5491, %v5506
  %v5509 = vunpack.c.l.s4 1966171168
  %v5510 = vunpack.c.0.s8 %v5509
  %v5511 = vlaneseq
  %v5512 = vshrl.u32 %v5511, 7
  %v5513 = vsub.s32 %v5510, %v5512
  %v5514 = vrot.slane %v5492, %v5513
  %v5516 = vunpack.c.l.s4 1966171168
  %v5517 = vunpack.c.0.s8 %v5516
  %v5518 = vlaneseq
  %v5519 = vshrl.u32 %v5518, 7
  %v5520 = vsub.s32 %v5517, %v5519
  %v5521 = vrot.slane %v5493, %v5520
  %v5522 = vcombine.high %v5500, %v5500
  %v5523 = vcombine.high %v5507, %v5507
  %v5524 = vcombine.high %v5514, %v5514
  %v5525 = vcombine.high %v5521, %v5521
  %v5526 = vlaneseq
  %v5527 = vshrl.u32 %v5526, 7
  %v5528 = vsub.s32 0, %v5527
  %v5529 = vrot.slane %v5500, %v5528
  %v5530 = vlaneseq
  %v5531 = vshrl.u32 %v5530, 7
  %v5532 = vsub.s32 0, %v5531
  %v5533 = vrot.slane %v5514, %v5532
  %v5534 = vlaneseq
  %v5535 = vshrl.u32 %v5534, 7
  %v5536 = vsub.s32 0, %v5535
  %v5537 = vrot.slane %v5522, %v5536
  %v5538 = vlaneseq
  %v5539 = vshrl.u32 %v5538, 7
  %v5540 = vsub.s32 0, %v5539
  %v5541 = vrot.slane %v5524, %v5540
  %v5542 = vlaneseq
  %v5543 = vshrl.u32 %v5542, 7
  %v5544 = vsub.s32 0, %v5543
  %v5545 = vrot.slane %v5507, %v5544
  %v5546 = vlaneseq
  %v5547 = vshrl.u32 %v5546, 7
  %v5548 = vsub.s32 0, %v5547
  %v5549 = vrot.slane %v5521, %v5548
  %v5550 = vlaneseq
  %v5551 = vshrl.u32 %v5550, 7
  %v5552 = vsub.s32 0, %v5551
  %v5553 = vrot.slane %v5523, %v5552
  %v5554 = vlaneseq
  %v5555 = vshrl.u32 %v5554, 7
  %v5556 = vsub.s32 0, %v5555
  %v5557 = vrot.slane %v5525, %v5556
  %v5566 = vadd.f32 %v5529, %v705
  %v5567 = vadd.f32 %v5529, %v709
  %v5568 = vadd.f32 %v5533, %v716
  %v5569 = vadd.f32 %v5533, %v720
  %v5570 = vadd.f32 %v5537, %v727
  %v5571 = vadd.f32 %v5537, %v731
  %v5572 = vadd.f32 %v5541, %v738
  %v5573 = vadd.f32 %v5541, %v742
  %v5574 = vadd.f32 %v5545, %v749
  %v5575 = vadd.f32 %v5545, %v753
  %v5576 = vadd.f32 %v5549, %v760
  %v5577 = vadd.f32 %v5549, %v764
  %v5578 = vadd.f32 %v5553, %v771
  %v5579 = vadd.f32 %v5553, %v775
  %v5580 = vadd.f32 %v5557, %v782
  %v5581 = vadd.f32 %v5557, %v786
  %v5582 = vmax.f32 %v5566, %v5570
  %v5583 = vmax.f32 %v5568, %v5572
  %v5584 = vmax.f32 %v5582, %v5574
  %v5585 = vmax.f32 %v5583, %v5576
  %v5586 = vmax.f32 %v5584, %v5578
  %v5587 = vmax.f32 %v5585, %v5580
  %v5588 = vmax.f32 %v5586, %v5587
  %v5589 = vmax.f32 %v5567, %v5571
  %v5590 = vmax.f32 %v5569, %v5573
  %v5591 = vmax.f32 %v5589, %v5575
  %v5592 = vmax.f32 %v5590, %v5577
  %v5593 = vmax.f32 %v5591, %v5579
  %v5594 = vmax.f32 %v5592, %v5581
  %v5595 = vmax.f32 %v5593, %v5594
  %v5597 = vcombine.high %v5469, %v5469
  %v5599 = vunpack.c.l.s4 1966171168
  %v5600 = vunpack.c.0.s8 %v5599
  %v5601 = vlaneseq
  %v5602 = vshrl.u32 %v5601, 7
  %v5603 = vsub.s32 %v5600, %v5602
  %v5604 = vrot.slane %v5469, %v5603
  %v5606 = vunpack.c.l.s4 1966171168
  %v5607 = vunpack.c.0.s8 %v5606
  %v5608 = vlaneseq
  %v5609 = vshrl.u32 %v5608, 7
  %v5610 = vsub.s32 %v5607, %v5609
  %v5611 = vrot.slane %v5597, %v5610
  %v5612 = vcombine.high %v5604, %v5604
  %v5613 = vcombine.high %v5611, %v5611
  %v5615 = vunpack.c.l.s4 1966171168
  %v5616 = vunpack.c.0.s8 %v5615
  %v5617 = vlaneseq
  %v5618 = vshrl.u32 %v5617, 7
  %v5619 = vsub.s32 %v5616, %v5618
  %v5620 = vrot.slane %v5604, %v5619
  %v5622 = vunpack.c.l.s4 1966171168
  %v5623 = vunpack.c.0.s8 %v5622
  %v5624 = vlaneseq
  %v5625 = vshrl.u32 %v5624, 7
  %v5626 = vsub.s32 %v5623, %v5625
  %v5627 = vrot.slane %v5611, %v5626
  %v5629 = vunpack.c.l.s4 1966171168
  %v5630 = vunpack.c.0.s8 %v5629
  %v5631 = vlaneseq
  %v5632 = vshrl.u32 %v5631, 7
  %v5633 = vsub.s32 %v5630, %v5632
  %v5634 = vrot.slane %v5612, %v5633
  %v5636 = vunpack.c.l.s4 1966171168
  %v5637 = vunpack.c.0.s8 %v5636
  %v5638 = vlaneseq
  %v5639 = vshrl.u32 %v5638, 7
  %v5640 = vsub.s32 %v5637, %v5639
  %v5641 = vrot.slane %v5613, %v5640
  %v5642 = vcombine.high %v5620, %v5620
  %v5643 = vcombine.high %v5627, %v5627
  %v5644 = vcombine.high %v5634, %v5634
  %v5645 = vcombine.high %v5641, %v5641
  %v5646 = vlaneseq
  %v5647 = vshrl.u32 %v5646, 7
  %v5648 = vsub.s32 0, %v5647
  %v5649 = vrot.slane %v5620, %v5648
  %v5650 = vlaneseq
  %v5651 = vshrl.u32 %v5650, 7
  %v5652 = vsub.s32 0, %v5651
  %v5653 = vrot.slane %v5634, %v5652
  %v5654 = vlaneseq
  %v5655 = vshrl.u32 %v5654, 7
  %v5656 = vsub.s32 0, %v5655
  %v5657 = vrot.slane %v5642, %v5656
  %v5658 = vlaneseq
  %v5659 = vshrl.u32 %v5658, 7
  %v5660 = vsub.s32 0, %v5659
  %v5661 = vrot.slane %v5644, %v5660
  %v5662 = vlaneseq
  %v5663 = vshrl.u32 %v5662, 7
  %v5664 = vsub.s32 0, %v5663
  %v5665 = vrot.slane %v5627, %v5664
  %v5666 = vlaneseq
  %v5667 = vshrl.u32 %v5666, 7
  %v5668 = vsub.s32 0, %v5667
  %v5669 = vrot.slane %v5641, %v5668
  %v5670 = vlaneseq
  %v5671 = vshrl.u32 %v5670, 7
  %v5672 = vsub.s32 0, %v5671
  %v5673 = vrot.slane %v5643, %v5672
  %v5674 = vlaneseq
  %v5675 = vshrl.u32 %v5674, 7
  %v5676 = vsub.s32 0, %v5675
  %v5677 = vrot.slane %v5645, %v5676
  %v5686 = vadd.f32 %v5649, %v929
  %v5687 = vadd.f32 %v5649, %v933
  %v5688 = vadd.f32 %v5653, %v940
  %v5689 = vadd.f32 %v5653, %v944
  %v5690 = vadd.f32 %v5657, %v951
  %v5691 = vadd.f32 %v5657, %v955
  %v5692 = vadd.f32 %v5661, %v962
  %v5693 = vadd.f32 %v5661, %v966
  %v5694 = vadd.f32 %v5665, %v973
  %v5695 = vadd.f32 %v5665, %v977
  %v5696 = vadd.f32 %v5669, %v984
  %v5697 = vadd.f32 %v5669, %v988
  %v5698 = vadd.f32 %v5673, %v995
  %v5699 = vadd.f32 %v5673, %v999
  %v5700 = vadd.f32 %v5677, %v1006
  %v5701 = vadd.f32 %v5677, %v1010
  %v5702 = vmax.f32 %v5686, %v5690
  %v5703 = vmax.f32 %v5688, %v5692
  %v5704 = vmax.f32 %v5702, %v5694
  %v5705 = vmax.f32 %v5703, %v5696
  %v5706 = vmax.f32 %v5704, %v5698
  %v5707 = vmax.f32 %v5705, %v5700
  %v5708 = vmax.f32 %v5706, %v5707
  %v5709 = vmax.f32 %v5687, %v5691
  %v5710 = vmax.f32 %v5689, %v5693
  %v5711 = vmax.f32 %v5709, %v5695
  %v5712 = vmax.f32 %v5710, %v5697
  %v5713 = vmax.f32 %v5711, %v5699
  %v5714 = vmax.f32 %v5712, %v5701
  %v5715 = vmax.f32 %v5713, %v5714
  %v5716 = vmax.f32 %v5588, %v5708
  %v5717 = vmax.f32 %v5595, %v5715
  %v5719 = vcombine.high %v5470, %v5470
  %v5721 = vunpack.c.l.s4 1966171168
  %v5722 = vunpack.c.0.s8 %v5721
  %v5723 = vlaneseq
  %v5724 = vshrl.u32 %v5723, 7
  %v5725 = vsub.s32 %v5722, %v5724
  %v5726 = vrot.slane %v5470, %v5725
  %v5728 = vunpack.c.l.s4 1966171168
  %v5729 = vunpack.c.0.s8 %v5728
  %v5730 = vlaneseq
  %v5731 = vshrl.u32 %v5730, 7
  %v5732 = vsub.s32 %v5729, %v5731
  %v5733 = vrot.slane %v5719, %v5732
  %v5734 = vcombine.high %v5726, %v5726
  %v5735 = vcombine.high %v5733, %v5733
  %v5737 = vunpack.c.l.s4 1966171168
  %v5738 = vunpack.c.0.s8 %v5737
  %v5739 = vlaneseq
  %v5740 = vshrl.u32 %v5739, 7
  %v5741 = vsub.s32 %v5738, %v5740
  %v5742 = vrot.slane %v5726, %v5741
  %v5744 = vunpack.c.l.s4 1966171168
  %v5745 = vunpack.c.0.s8 %v5744
  %v5746 = vlaneseq
  %v5747 = vshrl.u32 %v5746, 7
  %v5748 = vsub.s32 %v5745, %v5747
  %v5749 = vrot.slane %v5733, %v5748
  %v5751 = vunpack.c.l.s4 1966171168
  %v5752 = vunpack.c.0.s8 %v5751
  %v5753 = vlaneseq
  %v5754 = vshrl.u32 %v5753, 7
  %v5755 = vsub.s32 %v5752, %v5754
  %v5756 = vrot.slane %v5734, %v5755
  %v5758 = vunpack.c.l.s4 1966171168
  %v5759 = vunpack.c.0.s8 %v5758
  %v5760 = vlaneseq
  %v5761 = vshrl.u32 %v5760, 7
  %v5762 = vsub.s32 %v5759, %v5761
  %v5763 = vrot.slane %v5735, %v5762
  %v5764 = vcombine.high %v5742, %v5742
  %v5765 = vcombine.high %v5749, %v5749
  %v5766 = vcombine.high %v5756, %v5756
  %v5767 = vcombine.high %v5763, %v5763
  %v5768 = vlaneseq
  %v5769 = vshrl.u32 %v5768, 7
  %v5770 = vsub.s32 0, %v5769
  %v5771 = vrot.slane %v5742, %v5770
  %v5772 = vlaneseq
  %v5773 = vshrl.u32 %v5772, 7
  %v5774 = vsub.s32 0, %v5773
  %v5775 = vrot.slane %v5756, %v5774
  %v5776 = vlaneseq
  %v5777 = vshrl.u32 %v5776, 7
  %v5778 = vsub.s32 0, %v5777
  %v5779 = vrot.slane %v5764, %v5778
  %v5780 = vlaneseq
  %v5781 = vshrl.u32 %v5780, 7
  %v5782 = vsub.s32 0, %v5781
  %v5783 = vrot.slane %v5766, %v5782
  %v5784 = vlaneseq
  %v5785 = vshrl.u32 %v5784, 7
  %v5786 = vsub.s32 0, %v5785
  %v5787 = vrot.slane %v5749, %v5786
  %v5788 = vlaneseq
  %v5789 = vshrl.u32 %v5788, 7
  %v5790 = vsub.s32 0, %v5789
  %v5791 = vrot.slane %v5763, %v5790
  %v5792 = vlaneseq
  %v5793 = vshrl.u32 %v5792, 7
  %v5794 = vsub.s32 0, %v5793
  %v5795 = vrot.slane %v5765, %v5794
  %v5796 = vlaneseq
  %v5797 = vshrl.u32 %v5796, 7
  %v5798 = vsub.s32 0, %v5797
  %v5799 = vrot.slane %v5767, %v5798
  %v5808 = vadd.f32 %v5771, %v1155
  %v5809 = vadd.f32 %v5771, %v1159
  %v5810 = vadd.f32 %v5775, %v1166
  %v5811 = vadd.f32 %v5775, %v1170
  %v5812 = vadd.f32 %v5779, %v1177
  %v5813 = vadd.f32 %v5779, %v1181
  %v5814 = vadd.f32 %v5783, %v1188
  %v5815 = vadd.f32 %v5783, %v1192
  %v5816 = vadd.f32 %v5787, %v1199
  %v5817 = vadd.f32 %v5787, %v1203
  %v5818 = vadd.f32 %v5791, %v1210
  %v5819 = vadd.f32 %v5791, %v1214
  %v5820 = vadd.f32 %v5795, %v1221
  %v5821 = vadd.f32 %v5795, %v1225
  %v5822 = vadd.f32 %v5799, %v1232
  %v5823 = vadd.f32 %v5799, %v1236
  %v5824 = vmax.f32 %v5808, %v5812
  %v5825 = vmax.f32 %v5810, %v5814
  %v5826 = vmax.f32 %v5824, %v5816
  %v5827 = vmax.f32 %v5825, %v5818
  %v5828 = vmax.f32 %v5826, %v5820
  %v5829 = vmax.f32 %v5827, %v5822
  %v5830 = vmax.f32 %v5828, %v5829
  %v5831 = vmax.f32 %v5809, %v5813
  %v5832 = vmax.f32 %v5811, %v5815
  %v5833 = vmax.f32 %v5831, %v5817
  %v5834 = vmax.f32 %v5832, %v5819
  %v5835 = vmax.f32 %v5833, %v5821
  %v5836 = vmax.f32 %v5834, %v5823
  %v5837 = vmax.f32 %v5835, %v5836
  %v5838 = vmax.f32 %v5716, %v5830
  %v5839 = vmax.f32 %v5717, %v5837
  %v5841 = vcombine.high %v5471, %v5471
  %v5843 = vunpack.c.l.s4 1966171168
  %v5844 = vunpack.c.0.s8 %v5843
  %v5845 = vlaneseq
  %v5846 = vshrl.u32 %v5845, 7
  %v5847 = vsub.s32 %v5844, %v5846
  %v5848 = vrot.slane %v5471, %v5847
  %v5850 = vunpack.c.l.s4 1966171168
  %v5851 = vunpack.c.0.s8 %v5850
  %v5852 = vlaneseq
  %v5853 = vshrl.u32 %v5852, 7
  %v5854 = vsub.s32 %v5851, %v5853
  %v5855 = vrot.slane %v5841, %v5854
  %v5856 = vcombine.high %v5848, %v5848
  %v5857 = vcombine.high %v5855, %v5855
  %v5859 = vunpack.c.l.s4 1966171168
  %v5860 = vunpack.c.0.s8 %v5859
  %v5861 = vlaneseq
  %v5862 = vshrl.u32 %v5861, 7
  %v5863 = vsub.s32 %v5860, %v5862
  %v5864 = vrot.slane %v5848, %v5863
  %v5866 = vunpack.c.l.s4 1966171168
  %v5867 = vunpack.c.0.s8 %v5866
  %v5868 = vlaneseq
  %v5869 = vshrl.u32 %v5868, 7
  %v5870 = vsub.s32 %v5867, %v5869
  %v5871 = vrot.slane %v5855, %v5870
  %v5873 = vunpack.c.l.s4 1966171168
  %v5874 = vunpack.c.0.s8 %v5873
  %v5875 = vlaneseq
  %v5876 = vshrl.u32 %v5875, 7
  %v5877 = vsub.s32 %v5874, %v5876
  %v5878 = vrot.slane %v5856, %v5877
  %v5880 = vunpack.c.l.s4 1966171168
  %v5881 = vunpack.c.0.s8 %v5880
  %v5882 = vlaneseq
  %v5883 = vshrl.u32 %v5882, 7
  %v5884 = vsub.s32 %v5881, %v5883
  %v5885 = vrot.slane %v5857, %v5884
  %v5886 = vcombine.high %v5864, %v5864
  %v5887 = vcombine.high %v5871, %v5871
  %v5888 = vcombine.high %v5878, %v5878
  %v5889 = vcombine.high %v5885, %v5885
  %v5890 = vlaneseq
  %v5891 = vshrl.u32 %v5890, 7
  %v5892 = vsub.s32 0, %v5891
  %v5893 = vrot.slane %v5864, %v5892
  %v5894 = vlaneseq
  %v5895 = vshrl.u32 %v5894, 7
  %v5896 = vsub.s32 0, %v5895
  %v5897 = vrot.slane %v5878, %v5896
  %v5898 = vlaneseq
  %v5899 = vshrl.u32 %v5898, 7
  %v5900 = vsub.s32 0, %v5899
  %v5901 = vrot.slane %v5886, %v5900
  %v5902 = vlaneseq
  %v5903 = vshrl.u32 %v5902, 7
  %v5904 = vsub.s32 0, %v5903
  %v5905 = vrot.slane %v5888, %v5904
  %v5906 = vlaneseq
  %v5907 = vshrl.u32 %v5906, 7
  %v5908 = vsub.s32 0, %v5907
  %v5909 = vrot.slane %v5871, %v5908
  %v5910 = vlaneseq
  %v5911 = vshrl.u32 %v5910, 7
  %v5912 = vsub.s32 0, %v5911
  %v5913 = vrot.slane %v5885, %v5912
  %v5914 = vlaneseq
  %v5915 = vshrl.u32 %v5914, 7
  %v5916 = vsub.s32 0, %v5915
  %v5917 = vrot.slane %v5887, %v5916
  %v5918 = vlaneseq
  %v5919 = vshrl.u32 %v5918, 7
  %v5920 = vsub.s32 0, %v5919
  %v5921 = vrot.slane %v5889, %v5920
  %v5930 = vadd.f32 %v5893, %v1381
  %v5931 = vadd.f32 %v5893, %v1385
  %v5932 = vadd.f32 %v5897, %v1392
  %v5933 = vadd.f32 %v5897, %v1396
  %v5934 = vadd.f32 %v5901, %v1403
  %v5935 = vadd.f32 %v5901, %v1407
  %v5936 = vadd.f32 %v5905, %v1414
  %v5937 = vadd.f32 %v5905, %v1418
  %v5938 = vadd.f32 %v5909, %v1425
  %v5939 = vadd.f32 %v5909, %v1429
  %v5940 = vadd.f32 %v5913, %v1436
  %v5941 = vadd.f32 %v5913, %v1440
  %v5942 = vadd.f32 %v5917, %v1447
  %v5943 = vadd.f32 %v5917, %v1451
  %v5944 = vadd.f32 %v5921, %v1458
  %v5945 = vadd.f32 %v5921, %v1462
  %v5946 = vmax.f32 %v5930, %v5934
  %v5947 = vmax.f32 %v5932, %v5936
  %v5948 = vmax.f32 %v5946, %v5938
  %v5949 = vmax.f32 %v5947, %v5940
  %v5950 = vmax.f32 %v5948, %v5942
  %v5951 = vmax.f32 %v5949, %v5944
  %v5952 = vmax.f32 %v5950, %v5951
  %v5953 = vmax.f32 %v5931, %v5935
  %v5954 = vmax.f32 %v5933, %v5937
  %v5955 = vmax.f32 %v5953, %v5939
  %v5956 = vmax.f32 %v5954, %v5941
  %v5957 = vmax.f32 %v5955, %v5943
  %v5958 = vmax.f32 %v5956, %v5945
  %v5959 = vmax.f32 %v5957, %v5958
  %v5960 = vmax.f32 %v5838, %v5952
  %v5961 = vmax.f32 %v5839, %v5959
  %v5963 = vcombine.high %v5472, %v5472
  %v5965 = vunpack.c.l.s4 1966171168
  %v5966 = vunpack.c.0.s8 %v5965
  %v5967 = vlaneseq
  %v5968 = vshrl.u32 %v5967, 7
  %v5969 = vsub.s32 %v5966, %v5968
  %v5970 = vrot.slane %v5472, %v5969
  %v5972 = vunpack.c.l.s4 1966171168
  %v5973 = vunpack.c.0.s8 %v5972
  %v5974 = vlaneseq
  %v5975 = vshrl.u32 %v5974, 7
  %v5976 = vsub.s32 %v5973, %v5975
  %v5977 = vrot.slane %v5963, %v5976
  %v5978 = vcombine.high %v5970, %v5970
  %v5979 = vcombine.high %v5977, %v5977
  %v5981 = vunpack.c.l.s4 1966171168
  %v5982 = vunpack.c.0.s8 %v5981
  %v5983 = vlaneseq
  %v5984 = vshrl.u32 %v5983, 7
  %v5985 = vsub.s32 %v5982, %v5984
  %v5986 = vrot.slane %v5970, %v5985
  %v5988 = vunpack.c.l.s4 1966171168
  %v5989 = vunpack.c.0.s8 %v5988
  %v5990 = vlaneseq
  %v5991 = vshrl.u32 %v5990, 7
  %v5992 = vsub.s32 %v5989, %v5991
  %v5993 = vrot.slane %v5977, %v5992
  %v5995 = vunpack.c.l.s4 1966171168
  %v5996 = vunpack.c.0.s8 %v5995
  %v5997 = vlaneseq
  %v5998 = vshrl.u32 %v5997, 7
  %v5999 = vsub.s32 %v5996, %v5998
  %v6000 = vrot.slane %v5978, %v5999
  %v6002 = vunpack.c.l.s4 1966171168
  %v6003 = vunpack.c.0.s8 %v6002
  %v6004 = vlaneseq
  %v6005 = vshrl.u32 %v6004, 7
  %v6006 = vsub.s32 %v6003, %v6005
  %v6007 = vrot.slane %v5979, %v6006
  %v6008 = vcombine.high %v5986, %v5986
  %v6009 = vcombine.high %v5993, %v5993
  %v6010 = vcombine.high %v6000, %v6000
  %v6011 = vcombine.high %v6007, %v6007
  %v6012 = vlaneseq
  %v6013 = vshrl.u32 %v6012, 7
  %v6014 = vsub.s32 0, %v6013
  %v6015 = vrot.slane %v5986, %v6014
  %v6016 = vlaneseq
  %v6017 = vshrl.u32 %v6016, 7
  %v6018 = vsub.s32 0, %v6017
  %v6019 = vrot.slane %v6000, %v6018
  %v6020 = vlaneseq
  %v6021 = vshrl.u32 %v6020, 7
  %v6022 = vsub.s32 0, %v6021
  %v6023 = vrot.slane %v6008, %v6022
  %v6024 = vlaneseq
  %v6025 = vshrl.u32 %v6024, 7
  %v6026 = vsub.s32 0, %v6025
  %v6027 = vrot.slane %v6010, %v6026
  %v6028 = vlaneseq
  %v6029 = vshrl.u32 %v6028, 7
  %v6030 = vsub.s32 0, %v6029
  %v6031 = vrot.slane %v5993, %v6030
  %v6032 = vlaneseq
  %v6033 = vshrl.u32 %v6032, 7
  %v6034 = vsub.s32 0, %v6033
  %v6035 = vrot.slane %v6007, %v6034
  %v6036 = vlaneseq
  %v6037 = vshrl.u32 %v6036, 7
  %v6038 = vsub.s32 0, %v6037
  %v6039 = vrot.slane %v6009, %v6038
  %v6040 = vlaneseq
  %v6041 = vshrl.u32 %v6040, 7
  %v6042 = vsub.s32 0, %v6041
  %v6043 = vrot.slane %v6011, %v6042
  %v6052 = vadd.f32 %v6015, %v1607
  %v6053 = vadd.f32 %v6015, %v1611
  %v6054 = vadd.f32 %v6019, %v1618
  %v6055 = vadd.f32 %v6019, %v1622
  %v6056 = vadd.f32 %v6023, %v1629
  %v6057 = vadd.f32 %v6023, %v1633
  %v6058 = vadd.f32 %v6027, %v1640
  %v6059 = vadd.f32 %v6027, %v1644
  %v6060 = vadd.f32 %v6031, %v1651
  %v6061 = vadd.f32 %v6031, %v1655
  %v6062 = vadd.f32 %v6035, %v1662
  %v6063 = vadd.f32 %v6035, %v1666
  %v6064 = vadd.f32 %v6039, %v1673
  %v6065 = vadd.f32 %v6039, %v1677
  %v6066 = vadd.f32 %v6043, %v1684
  %v6067 = vadd.f32 %v6043, %v1688
  %v6068 = vmax.f32 %v6052, %v6056
  %v6069 = vmax.f32 %v6054, %v6058
  %v6070 = vmax.f32 %v6068, %v6060
  %v6071 = vmax.f32 %v6069, %v6062
  %v6072 = vmax.f32 %v6070, %v6064
  %v6073 = vmax.f32 %v6071, %v6066
  %v6074 = vmax.f32 %v6072, %v6073
  %v6075 = vmax.f32 %v6053, %v6057
  %v6076 = vmax.f32 %v6055, %v6059
  %v6077 = vmax.f32 %v6075, %v6061
  %v6078 = vmax.f32 %v6076, %v6063
  %v6079 = vmax.f32 %v6077, %v6065
  %v6080 = vmax.f32 %v6078, %v6067
  %v6081 = vmax.f32 %v6079, %v6080
  %v6082 = vmax.f32 %v5960, %v6074
  %v6083 = vmax.f32 %v5961, %v6081
  %v6085 = vcombine.high %v5473, %v5473
  %v6087 = vunpack.c.l.s4 1966171168
  %v6088 = vunpack.c.0.s8 %v6087
  %v6089 = vlaneseq
  %v6090 = vshrl.u32 %v6089, 7
  %v6091 = vsub.s32 %v6088, %v6090
  %v6092 = vrot.slane %v5473, %v6091
  %v6094 = vunpack.c.l.s4 1966171168
  %v6095 = vunpack.c.0.s8 %v6094
  %v6096 = vlaneseq
  %v6097 = vshrl.u32 %v6096, 7
  %v6098 = vsub.s32 %v6095, %v6097
  %v6099 = vrot.slane %v6085, %v6098
  %v6100 = vcombine.high %v6092, %v6092
  %v6101 = vcombine.high %v6099, %v6099
  %v6103 = vunpack.c.l.s4 1966171168
  %v6104 = vunpack.c.0.s8 %v6103
  %v6105 = vlaneseq
  %v6106 = vshrl.u32 %v6105, 7
  %v6107 = vsub.s32 %v6104, %v6106
  %v6108 = vrot.slane %v6092, %v6107
  %v6110 = vunpack.c.l.s4 1966171168
  %v6111 = vunpack.c.0.s8 %v6110
  %v6112 = vlaneseq
  %v6113 = vshrl.u32 %v6112, 7
  %v6114 = vsub.s32 %v6111, %v6113
  %v6115 = vrot.slane %v6099, %v6114
  %v6117 = vunpack.c.l.s4 1966171168
  %v6118 = vunpack.c.0.s8 %v6117
  %v6119 = vlaneseq
  %v6120 = vshrl.u32 %v6119, 7
  %v6121 = vsub.s32 %v6118, %v6120
  %v6122 = vrot.slane %v6100, %v6121
  %v6124 = vunpack.c.l.s4 1966171168
  %v6125 = vunpack.c.0.s8 %v6124
  %v6126 = vlaneseq
  %v6127 = vshrl.u32 %v6126, 7
  %v6128 = vsub.s32 %v6125, %v6127
  %v6129 = vrot.slane %v6101, %v6128
  %v6130 = vcombine.high %v6108, %v6108
  %v6131 = vcombine.high %v6115, %v6115
  %v6132 = vcombine.high %v6122, %v6122
  %v6133 = vcombine.high %v6129, %v6129
  %v6134 = vlaneseq
  %v6135 = vshrl.u32 %v6134, 7
  %v6136 = vsub.s32 0, %v6135
  %v6137 = vrot.slane %v6108, %v6136
  %v6138 = vlaneseq
  %v6139 = vshrl.u32 %v6138, 7
  %v6140 = vsub.s32 0, %v6139
  %v6141 = vrot.slane %v6122, %v6140
  %v6142 = vlaneseq
  %v6143 = vshrl.u32 %v6142, 7
  %v6144 = vsub.s32 0, %v6143
  %v6145 = vrot.slane %v6130, %v6144
  %v6146 = vlaneseq
  %v6147 = vshrl.u32 %v6146, 7
  %v6148 = vsub.s32 0, %v6147
  %v6149 = vrot.slane %v6132, %v6148
  %v6150 = vlaneseq
  %v6151 = vshrl.u32 %v6150, 7
  %v6152 = vsub.s32 0, %v6151
  %v6153 = vrot.slane %v6115, %v6152
  %v6154 = vlaneseq
  %v6155 = vshrl.u32 %v6154, 7
  %v6156 = vsub.s32 0, %v6155
  %v6157 = vrot.slane %v6129, %v6156
  %v6158 = vlaneseq
  %v6159 = vshrl.u32 %v6158, 7
  %v6160 = vsub.s32 0, %v6159
  %v6161 = vrot.slane %v6131, %v6160
  %v6162 = vlaneseq
  %v6163 = vshrl.u32 %v6162, 7
  %v6164 = vsub.s32 0, %v6163
  %v6165 = vrot.slane %v6133, %v6164
  %v6174 = vadd.f32 %v6137, %v1833
  %v6175 = vadd.f32 %v6137, %v1837
  %v6176 = vadd.f32 %v6141, %v1844
  %v6177 = vadd.f32 %v6141, %v1848
  %v6178 = vadd.f32 %v6145, %v1855
  %v6179 = vadd.f32 %v6145, %v1859
  %v6180 = vadd.f32 %v6149, %v1866
  %v6181 = vadd.f32 %v6149, %v1870
  %v6182 = vadd.f32 %v6153, %v1877
  %v6183 = vadd.f32 %v6153, %v1881
  %v6184 = vadd.f32 %v6157, %v1888
  %v6185 = vadd.f32 %v6157, %v1892
  %v6186 = vadd.f32 %v6161, %v1899
  %v6187 = vadd.f32 %v6161, %v1903
  %v6188 = vadd.f32 %v6165, %v1910
  %v6189 = vadd.f32 %v6165, %v1914
  %v6190 = vmax.f32 %v6174, %v6178
  %v6191 = vmax.f32 %v6176, %v6180
  %v6192 = vmax.f32 %v6190, %v6182
  %v6193 = vmax.f32 %v6191, %v6184
  %v6194 = vmax.f32 %v6192, %v6186
  %v6195 = vmax.f32 %v6193, %v6188
  %v6196 = vmax.f32 %v6194, %v6195
  %v6197 = vmax.f32 %v6175, %v6179
  %v6198 = vmax.f32 %v6177, %v6181
  %v6199 = vmax.f32 %v6197, %v6183
  %v6200 = vmax.f32 %v6198, %v6185
  %v6201 = vmax.f32 %v6199, %v6187
  %v6202 = vmax.f32 %v6200, %v6189
  %v6203 = vmax.f32 %v6201, %v6202
  %v6204 = vmax.f32 %v6082, %v6196
  %v6205 = vmax.f32 %v6083, %v6203
  %v6207 = vcombine.high %v5474, %v5474
  %v6209 = vunpack.c.l.s4 1966171168
  %v6210 = vunpack.c.0.s8 %v6209
  %v6211 = vlaneseq
  %v6212 = vshrl.u32 %v6211, 7
  %v6213 = vsub.s32 %v6210, %v6212
  %v6214 = vrot.slane %v5474, %v6213
  %v6216 = vunpack.c.l.s4 1966171168
  %v6217 = vunpack.c.0.s8 %v6216
  %v6218 = vlaneseq
  %v6219 = vshrl.u32 %v6218, 7
  %v6220 = vsub.s32 %v6217, %v6219
  %v6221 = vrot.slane %v6207, %v6220
  %v6222 = vcombine.high %v6214, %v6214
  %v6223 = vcombine.high %v6221, %v6221
  %v6225 = vunpack.c.l.s4 1966171168
  %v6226 = vunpack.c.0.s8 %v6225
  %v6227 = vlaneseq
  %v6228 = vshrl.u32 %v6227, 7
  %v6229 = vsub.s32 %v6226, %v6228
  %v6230 = vrot.slane %v6214, %v6229
  %v6232 = vunpack.c.l.s4 1966171168
  %v6233 = vunpack.c.0.s8 %v6232
  %v6234 = vlaneseq
  %v6235 = vshrl.u32 %v6234, 7
  %v6236 = vsub.s32 %v6233, %v6235
  %v6237 = vrot.slane %v6221, %v6236
  %v6239 = vunpack.c.l.s4 1966171168
  %v6240 = vunpack.c.0.s8 %v6239
  %v6241 = vlaneseq
  %v6242 = vshrl.u32 %v6241, 7
  %v6243 = vsub.s32 %v6240, %v6242
  %v6244 = vrot.slane %v6222, %v6243
  %v6246 = vunpack.c.l.s4 1966171168
  %v6247 = vunpack.c.0.s8 %v6246
  %v6248 = vlaneseq
  %v6249 = vshrl.u32 %v6248, 7
  %v6250 = vsub.s32 %v6247, %v6249
  %v6251 = vrot.slane %v6223, %v6250
  %v6252 = vcombine.high %v6230, %v6230
  %v6253 = vcombine.high %v6237, %v6237
  %v6254 = vcombine.high %v6244, %v6244
  %v6255 = vcombine.high %v6251, %v6251
  %v6256 = vlaneseq
  %v6257 = vshrl.u32 %v6256, 7
  %v6258 = vsub.s32 0, %v6257
  %v6259 = vrot.slane %v6230, %v6258
  %v6260 = vlaneseq
  %v6261 = vshrl.u32 %v6260, 7
  %v6262 = vsub.s32 0, %v6261
  %v6263 = vrot.slane %v6244, %v6262
  %v6264 = vlaneseq
  %v6265 = vshrl.u32 %v6264, 7
  %v6266 = vsub.s32 0, %v6265
  %v6267 = vrot.slane %v6252, %v6266
  %v6268 = vlaneseq
  %v6269 = vshrl.u32 %v6268, 7
  %v6270 = vsub.s32 0, %v6269
  %v6271 = vrot.slane %v6254, %v6270
  %v6272 = vlaneseq
  %v6273 = vshrl.u32 %v6272, 7
  %v6274 = vsub.s32 0, %v6273
  %v6275 = vrot.slane %v6237, %v6274
  %v6276 = vlaneseq
  %v6277 = vshrl.u32 %v6276, 7
  %v6278 = vsub.s32 0, %v6277
  %v6279 = vrot.slane %v6251, %v6278
  %v6280 = vlaneseq
  %v6281 = vshrl.u32 %v6280, 7
  %v6282 = vsub.s32 0, %v6281
  %v6283 = vrot.slane %v6253, %v6282
  %v6284 = vlaneseq
  %v6285 = vshrl.u32 %v6284, 7
  %v6286 = vsub.s32 0, %v6285
  %v6287 = vrot.slane %v6255, %v6286
  %v6296 = vadd.f32 %v6259, %v2059
  %v6297 = vadd.f32 %v6259, %v2063
  %v6298 = vadd.f32 %v6263, %v2070
  %v6299 = vadd.f32 %v6263, %v2074
  %v6300 = vadd.f32 %v6267, %v2081
  %v6301 = vadd.f32 %v6267, %v2085
  %v6302 = vadd.f32 %v6271, %v2092
  %v6303 = vadd.f32 %v6271, %v2096
  %v6304 = vadd.f32 %v6275, %v2103
  %v6305 = vadd.f32 %v6275, %v2107
  %v6306 = vadd.f32 %v6279, %v2114
  %v6307 = vadd.f32 %v6279, %v2118
  %v6308 = vadd.f32 %v6283, %v2125
  %v6309 = vadd.f32 %v6283, %v2129
  %v6310 = vadd.f32 %v6287, %v2136
  %v6311 = vadd.f32 %v6287, %v2140
  %v6312 = vmax.f32 %v6296, %v6300
  %v6313 = vmax.f32 %v6298, %v6302
  %v6314 = vmax.f32 %v6312, %v6304
  %v6315 = vmax.f32 %v6313, %v6306
  %v6316 = vmax.f32 %v6314, %v6308
  %v6317 = vmax.f32 %v6315, %v6310
  %v6318 = vmax.f32 %v6316, %v6317
  %v6319 = vmax.f32 %v6297, %v6301
  %v6320 = vmax.f32 %v6299, %v6303
  %v6321 = vmax.f32 %v6319, %v6305
  %v6322 = vmax.f32 %v6320, %v6307
  %v6323 = vmax.f32 %v6321, %v6309
  %v6324 = vmax.f32 %v6322, %v6311
  %v6325 = vmax.f32 %v6323, %v6324
  %v6326 = vmax.f32 %v6204, %v6318
  %v6327 = vmax.f32 %v6205, %v6325
  %v6329 = vcombine.high %v5475, %v5475
  %v6331 = vunpack.c.l.s4 1966171168
  %v6332 = vunpack.c.0.s8 %v6331
  %v6333 = vlaneseq
  %v6334 = vshrl.u32 %v6333, 7
  %v6335 = vsub.s32 %v6332, %v6334
  %v6336 = vrot.slane %v5475, %v6335
  %v6338 = vunpack.c.l.s4 1966171168
  %v6339 = vunpack.c.0.s8 %v6338
  %v6340 = vlaneseq
  %v6341 = vshrl.u32 %v6340, 7
  %v6342 = vsub.s32 %v6339, %v6341
  %v6343 = vrot.slane %v6329, %v6342
  %v6344 = vcombine.high %v6336, %v6336
  %v6345 = vcombine.high %v6343, %v6343
  %v6347 = vunpack.c.l.s4 1966171168
  %v6348 = vunpack.c.0.s8 %v6347
  %v6349 = vlaneseq
  %v6350 = vshrl.u32 %v6349, 7
  %v6351 = vsub.s32 %v6348, %v6350
  %v6352 = vrot.slane %v6336, %v6351
  %v6354 = vunpack.c.l.s4 1966171168
  %v6355 = vunpack.c.0.s8 %v6354
  %v6356 = vlaneseq
  %v6357 = vshrl.u32 %v6356, 7
  %v6358 = vsub.s32 %v6355, %v6357
  %v6359 = vrot.slane %v6343, %v6358
  %v6361 = vunpack.c.l.s4 1966171168
  %v6362 = vunpack.c.0.s8 %v6361
  %v6363 = vlaneseq
  %v6364 = vshrl.u32 %v6363, 7
  %v6365 = vsub.s32 %v6362, %v6364
  %v6366 = vrot.slane %v6344, %v6365
  %v6368 = vunpack.c.l.s4 1966171168
  %v6369 = vunpack.c.0.s8 %v6368
  %v6370 = vlaneseq
  %v6371 = vshrl.u32 %v6370, 7
  %v6372 = vsub.s32 %v6369, %v6371
  %v6373 = vrot.slane %v6345, %v6372
  %v6374 = vcombine.high %v6352, %v6352
  %v6375 = vcombine.high %v6359, %v6359
  %v6376 = vcombine.high %v6366, %v6366
  %v6377 = vcombine.high %v6373, %v6373
  %v6378 = vlaneseq
  %v6379 = vshrl.u32 %v6378, 7
  %v6380 = vsub.s32 0, %v6379
  %v6381 = vrot.slane %v6352, %v6380
  %v6382 = vlaneseq
  %v6383 = vshrl.u32 %v6382, 7
  %v6384 = vsub.s32 0, %v6383
  %v6385 = vrot.slane %v6366, %v6384
  %v6386 = vlaneseq
  %v6387 = vshrl.u32 %v6386, 7
  %v6388 = vsub.s32 0, %v6387
  %v6389 = vrot.slane %v6374, %v6388
  %v6390 = vlaneseq
  %v6391 = vshrl.u32 %v6390, 7
  %v6392 = vsub.s32 0, %v6391
  %v6393 = vrot.slane %v6376, %v6392
  %v6394 = vlaneseq
  %v6395 = vshrl.u32 %v6394, 7
  %v6396 = vsub.s32 0, %v6395
  %v6397 = vrot.slane %v6359, %v6396
  %v6398 = vlaneseq
  %v6399 = vshrl.u32 %v6398, 7
  %v6400 = vsub.s32 0, %v6399
  %v6401 = vrot.slane %v6373, %v6400
  %v6402 = vlaneseq
  %v6403 = vshrl.u32 %v6402, 7
  %v6404 = vsub.s32 0, %v6403
  %v6405 = vrot.slane %v6375, %v6404
  %v6406 = vlaneseq
  %v6407 = vshrl.u32 %v6406, 7
  %v6408 = vsub.s32 0, %v6407
  %v6409 = vrot.slane %v6377, %v6408
  %v6418 = vadd.f32 %v6381, %v2285
  %v6419 = vadd.f32 %v6381, %v2289
  %v6420 = vadd.f32 %v6385, %v2296
  %v6421 = vadd.f32 %v6385, %v2300
  %v6422 = vadd.f32 %v6389, %v2307
  %v6423 = vadd.f32 %v6389, %v2311
  %v6424 = vadd.f32 %v6393, %v2318
  %v6425 = vadd.f32 %v6393, %v2322
  %v6426 = vadd.f32 %v6397, %v2329
  %v6427 = vadd.f32 %v6397, %v2333
  %v6428 = vadd.f32 %v6401, %v2340
  %v6429 = vadd.f32 %v6401, %v2344
  %v6430 = vadd.f32 %v6405, %v2351
  %v6431 = vadd.f32 %v6405, %v2355
  %v6432 = vadd.f32 %v6409, %v2362
  %v6433 = vadd.f32 %v6409, %v2366
  %v6434 = vmax.f32 %v6418, %v6422
  %v6435 = vmax.f32 %v6420, %v6424
  %v6436 = vmax.f32 %v6434, %v6426
  %v6437 = vmax.f32 %v6435, %v6428
  %v6438 = vmax.f32 %v6436, %v6430
  %v6439 = vmax.f32 %v6437, %v6432
  %v6440 = vmax.f32 %v6438, %v6439
  %v6441 = vmax.f32 %v6419, %v6423
  %v6442 = vmax.f32 %v6421, %v6425
  %v6443 = vmax.f32 %v6441, %v6427
  %v6444 = vmax.f32 %v6442, %v6429
  %v6445 = vmax.f32 %v6443, %v6431
  %v6446 = vmax.f32 %v6444, %v6433
  %v6447 = vmax.f32 %v6445, %v6446
  %v6448 = vmax.f32 %v6326, %v6440
  %v6449 = vmax.f32 %v6327, %v6447
  %v6450 = vsel %vm2463, %v6448, 0.0
  %v6451 = vsel %vm2464, %v6449, 0.0
  %v6452 = vsub.f32 0.0, %v6448
  %v6453 = vsub.f32 0.0, %v6449
  %v6454 = vsel %vm2463, %v6452, 0.0
  %v6455 = vsel %vm2464, %v6453, 0.0
  %6458 = vrot.lane.b32.xlu0 %v5396, 64
  %v6459 = vpop.permute.xlu0 %6458
  %6460 = vrot.lane.b32.xlu0 %v5397, 64
  %v6461 = vpop.permute.xlu0 %6460
  %6466 = vrot.lane.b32.xlu0 %v6454, 64
  %v6467 = vpop.permute.xlu0 %6466
  %6468 = vrot.lane.b32.xlu0 %v6455, 64
  %v6469 = vpop.permute.xlu0 %6468
  %6474 = vrot.lane.b32.xlu0 %v6450, 64
  %v6475 = vpop.permute.xlu0 %6474
  %6476 = vrot.lane.b32.xlu0 %v6451, 64
  %v6477 = vpop.permute.xlu0 %6476
  %6482 = vrot.lane.b32.xlu0 %v5420, 64
  %v6483 = vpop.permute.xlu0 %6482
  %6484 = vrot.lane.b32.xlu0 %v5427, 64
  %v6485 = vpop.permute.xlu0 %6484
  %v6488 = vsel %vm477, %v5388, %v6459
  %v6489 = vsel %vm477, %v5393, %v6461
  %v6490 = vsel %vm477, %v6467, %v6475
  %v6491 = vsel %vm477, %v6469, %v6477
  %v6492 = vmul.f32 %v2515, %v6488
  %v6493 = vmul.f32 %v2515, %v6490
  %v6494 = vmul.f32 %v2515, %v6483
  %v6495 = vmul.f32 %v2520, %v6489
  %v6496 = vmul.f32 %v2520, %v6491
  %v6497 = vmul.f32 %v2520, %v6485
  %v6498 = vmul.f32 %v2527, %v6488
  %v6499 = vmul.f32 %v2527, %v6490
  %v6500 = vmul.f32 %v2527, %v6483
  %v6501 = vmul.f32 %v2532, %v6489
  %v6502 = vmul.f32 %v2532, %v6491
  %v6503 = vmul.f32 %v2532, %v6485
  %v6504 = vmul.f32 %v2539, %v6488
  %v6505 = vmul.f32 %v2539, %v6490
  %v6506 = vmul.f32 %v2539, %v6483
  %v6507 = vmul.f32 %v2544, %v6489
  %v6508 = vmul.f32 %v2544, %v6491
  %v6509 = vmul.f32 %v2544, %v6485
  %v6510 = vmul.f32 %v2551, %v6488
  %v6511 = vmul.f32 %v2551, %v6490
  %v6512 = vmul.f32 %v2551, %v6483
  %v6513 = vmul.f32 %v2556, %v6489
  %v6514 = vmul.f32 %v2556, %v6491
  %v6515 = vmul.f32 %v2556, %v6485
  %6520 = vrot.lane.b32.xlu0 %v6488, 64
  %v6521 = vpop.permute.xlu0 %6520
  %6522 = vrot.lane.b32.xlu0 %v6490, 64
  %v6523 = vpop.permute.xlu0 %6522
  %6524 = vrot.lane.b32.xlu0 %v6483, 64
  %v6525 = vpop.permute.xlu0 %6524
  %6526 = vrot.lane.b32.xlu0 %v6489, 64
  %v6527 = vpop.permute.xlu0 %6526
  %6528 = vrot.lane.b32.xlu0 %v6491, 64
  %v6529 = vpop.permute.xlu0 %6528
  %6530 = vrot.lane.b32.xlu0 %v6485, 64
  %v6531 = vpop.permute.xlu0 %6530
  %v6532 = vsel %vm477, %v6521, %v6523
  %v6533 = vsel %vm477, %v6523, %v6525
  %v6534 = vsel %vm477, %v6527, %v6529
  %v6535 = vsel %vm477, %v6529, %v6531
  %6548 = vrot.lane.b32.xlu0 %v6498, 64
  %v6549 = vpop.permute.xlu0 %6548
  %6550 = vrot.lane.b32.xlu0 %v6499, 64
  %v6551 = vpop.permute.xlu0 %6550
  %6552 = vrot.lane.b32.xlu0 %v6500, 64
  %v6553 = vpop.permute.xlu0 %6552
  %6554 = vrot.lane.b32.xlu0 %v6501, 64
  %v6555 = vpop.permute.xlu0 %6554
  %6556 = vrot.lane.b32.xlu0 %v6502, 64
  %v6557 = vpop.permute.xlu0 %6556
  %6558 = vrot.lane.b32.xlu0 %v6503, 64
  %v6559 = vpop.permute.xlu0 %6558
  %v6560 = vsel %vm477, %v6549, %v6551
  %v6561 = vsel %vm477, %v6551, %v6553
  %v6562 = vsel %vm477, %v6555, %v6557
  %v6563 = vsel %vm477, %v6557, %v6559
  %6576 = vrot.lane.b32.xlu0 %v6510, 64
  %v6577 = vpop.permute.xlu0 %6576
  %6578 = vrot.lane.b32.xlu0 %v6511, 64
  %v6579 = vpop.permute.xlu0 %6578
  %6580 = vrot.lane.b32.xlu0 %v6512, 64
  %v6581 = vpop.permute.xlu0 %6580
  %6582 = vrot.lane.b32.xlu0 %v6513, 64
  %v6583 = vpop.permute.xlu0 %6582
  %6584 = vrot.lane.b32.xlu0 %v6514, 64
  %v6585 = vpop.permute.xlu0 %6584
  %6586 = vrot.lane.b32.xlu0 %v6515, 64
  %v6587 = vpop.permute.xlu0 %6586
  %v6588 = vsel %vm477, %v6577, %v6579
  %v6589 = vsel %vm477, %v6579, %v6581
  %v6590 = vsel %vm477, %v6583, %v6585
  %v6591 = vsel %vm477, %v6585, %v6587
  %v6598 = vsel %vm477, %v5056, %v6521
  %v6599 = vsel %vm477, %v5061, %v6527
  %v6600 = vsel %vm477, %v6494, %v6549
  %v6601 = vsel %vm477, %v6497, %v6555
  %v6602 = vsel %vm477, %v6506, %v6577
  %v6603 = vsel %vm477, %v6509, %v6583
  %v6604 = vld [vmem:[%s37] sm:$0xff]
  %v6605 = vld [vmem:[%s37 + $0x8] sm:$0xff]
  %v6606 = vld [vmem:[%s37 + $0x10] sm:$0xff]
  %v6607 = vld [vmem:[%s37 + $0x18] sm:$0xff]
  %v6608 = vld [vmem:[%s37 + $0x20] sm:$0xff]
  %v6609 = vld [vmem:[%s37 + $0x28] sm:$0xff]
  %v6610 = vld [vmem:[%s37 + $0x30] sm:$0xff]
  %v6611 = vld [vmem:[%s37 + $0x38] sm:$0xff]
  %v6612 = vld [vmem:[%s37 + $0x40] sm:$0xff]
  %v6613 = vld [vmem:[%s37 + $0x48] sm:$0xff]
  %v6614 = vld [vmem:[%s37 + $0x50] sm:$0xff]
  %v6615 = vld [vmem:[%s37 + $0x58] sm:$0xff]
  %v6616 = vld [vmem:[%s37 + $0x60] sm:$0xff]
  %v6617 = vld [vmem:[%s37 + $0x68] sm:$0xff]
  %v6618 = vld [vmem:[%s37 + $0x70] sm:$0xff]
  %v6619 = vld [vmem:[%s37 + $0x78] sm:$0xff]
  %v6620 = vld [vmem:[%s37 + $0x80] sm:$0xff]
  %v6621 = vld [vmem:[%s37 + $0x88] sm:$0xff]
  %v6622 = vld [vmem:[%s37 + $0x90] sm:$0xff]
  %v6623 = vld [vmem:[%s37 + $0x98] sm:$0xff]
  %v6624 = vld [vmem:[%s37 + $0xa0] sm:$0xff]
  %v6625 = vld [vmem:[%s37 + $0xa8] sm:$0xff]
  %v6626 = vld [vmem:[%s37 + $0xb0] sm:$0xff]
  %v6627 = vld [vmem:[%s37 + $0xb8] sm:$0xff]
  %v6628 = vld [vmem:[%s37 + $0xc0] sm:$0xff]
  %v6629 = vld [vmem:[%s37 + $0xc8] sm:$0xff]
  %v6630 = vld [vmem:[%s37 + $0xd0] sm:$0xff]
  %v6631 = vld [vmem:[%s37 + $0xd8] sm:$0xff]
  %v6632 = vld [vmem:[%s37 + $0xe0] sm:$0xff]
  %v6633 = vld [vmem:[%s37 + $0xe8] sm:$0xff]
  %v6634 = vld [vmem:[%s37 + $0xf0] sm:$0xff]
  %v6635 = vld [vmem:[%s37 + $0xf8] sm:$0xff]
  %v6636 = vld [vmem:[%s37 + $0x100] sm:$0xff]
  %v6637 = vld [vmem:[%s37 + $0x108] sm:$0xff]
  %v6638 = vld [vmem:[%s37 + $0x110] sm:$0xff]
  %v6639 = vld [vmem:[%s37 + $0x118] sm:$0xff]
  %v6640 = vld [vmem:[%s37 + $0x120] sm:$0xff]
  %v6641 = vld [vmem:[%s37 + $0x128] sm:$0xff]
  %v6642 = vld [vmem:[%s37 + $0x130] sm:$0xff]
  %v6643 = vld [vmem:[%s37 + $0x138] sm:$0xff]
  %v6644 = vld [vmem:[%s37 + $0x140] sm:$0xff]
  %v6645 = vld [vmem:[%s37 + $0x148] sm:$0xff]
  %v6646 = vld [vmem:[%s37 + $0x150] sm:$0xff]
  %v6647 = vld [vmem:[%s37 + $0x158] sm:$0xff]
  %v6648 = vld [vmem:[%s37 + $0x160] sm:$0xff]
  %v6649 = vld [vmem:[%s37 + $0x168] sm:$0xff]
  %v6650 = vld [vmem:[%s37 + $0x170] sm:$0xff]
  %v6651 = vld [vmem:[%s37 + $0x178] sm:$0xff]
  %v6652 = vld [vmem:[%s37 + $0x180] sm:$0xff]
  %v6653 = vld [vmem:[%s37 + $0x188] sm:$0xff]
  %v6654 = vld [vmem:[%s37 + $0x190] sm:$0xff]
  %v6655 = vld [vmem:[%s37 + $0x198] sm:$0xff]
  %v6656 = vld [vmem:[%s37 + $0x1a0] sm:$0xff]
  %v6657 = vld [vmem:[%s37 + $0x1a8] sm:$0xff]
  %v6658 = vld [vmem:[%s37 + $0x1b0] sm:$0xff]
  %v6659 = vld [vmem:[%s37 + $0x1b8] sm:$0xff]
  %v6660 = vld [vmem:[%s37 + $0x1c0] sm:$0xff]
  %v6661 = vld [vmem:[%s37 + $0x1c8] sm:$0xff]
  %v6662 = vld [vmem:[%s37 + $0x1d0] sm:$0xff]
  %v6663 = vld [vmem:[%s37 + $0x1d8] sm:$0xff]
  %v6664 = vld [vmem:[%s37 + $0x1e0] sm:$0xff]
  %v6665 = vld [vmem:[%s37 + $0x1e8] sm:$0xff]
  %v6666 = vld [vmem:[%s37 + $0x1f0] sm:$0xff]
  %v6667 = vld [vmem:[%s37 + $0x1f8] sm:$0xff]
  %v6668 = vld [vmem:[%s37 + $0x200] sm:$0xff]
  %v6669 = vld [vmem:[%s37 + $0x208] sm:$0xff]
  %v6670 = vld [vmem:[%s37 + $0x210] sm:$0xff]
  %v6671 = vld [vmem:[%s37 + $0x218] sm:$0xff]
  %v6672 = vld [vmem:[%s37 + $0x220] sm:$0xff]
  %v6673 = vld [vmem:[%s37 + $0x228] sm:$0xff]
  %v6674 = vld [vmem:[%s37 + $0x230] sm:$0xff]
  %v6675 = vld [vmem:[%s37 + $0x238] sm:$0xff]
  %v6676 = vld [vmem:[%s37 + $0x240] sm:$0xff]
  %v6677 = vld [vmem:[%s37 + $0x248] sm:$0xff]
  %v6678 = vld [vmem:[%s37 + $0x250] sm:$0xff]
  %v6679 = vld [vmem:[%s37 + $0x258] sm:$0xff]
  %v6680 = vld [vmem:[%s37 + $0x260] sm:$0xff]
  %v6681 = vld [vmem:[%s37 + $0x268] sm:$0xff]
  %v6682 = vld [vmem:[%s37 + $0x270] sm:$0xff]
  %v6683 = vld [vmem:[%s37 + $0x278] sm:$0xff]
  %v6684 = vld [vmem:[%s37 + $0x280] sm:$0xff]
  %v6685 = vld [vmem:[%s37 + $0x288] sm:$0xff]
  %v6686 = vld [vmem:[%s37 + $0x290] sm:$0xff]
  %v6687 = vld [vmem:[%s37 + $0x298] sm:$0xff]
  %v6688 = vld [vmem:[%s37 + $0x2a0] sm:$0xff]
  %v6689 = vld [vmem:[%s37 + $0x2a8] sm:$0xff]
  %v6690 = vld [vmem:[%s37 + $0x2b0] sm:$0xff]
  %v6691 = vld [vmem:[%s37 + $0x2b8] sm:$0xff]
  %v6692 = vld [vmem:[%s37 + $0x2c0] sm:$0xff]
  %v6693 = vld [vmem:[%s37 + $0x2c8] sm:$0xff]
  %v6694 = vld [vmem:[%s37 + $0x2d0] sm:$0xff]
  %v6695 = vld [vmem:[%s37 + $0x2d8] sm:$0xff]
  %v6696 = vld [vmem:[%s37 + $0x2e0] sm:$0xff]
  %v6697 = vld [vmem:[%s37 + $0x2e8] sm:$0xff]
  %v6698 = vld [vmem:[%s37 + $0x2f0] sm:$0xff]
  %v6699 = vld [vmem:[%s37 + $0x2f8] sm:$0xff]
  %v6700 = vld [vmem:[%s37 + $0x300] sm:$0xff]
  %v6701 = vld [vmem:[%s37 + $0x308] sm:$0xff]
  %v6702 = vld [vmem:[%s37 + $0x310] sm:$0xff]
  %v6703 = vld [vmem:[%s37 + $0x318] sm:$0xff]
  %v6704 = vld [vmem:[%s37 + $0x320] sm:$0xff]
  %v6705 = vld [vmem:[%s37 + $0x328] sm:$0xff]
  %v6706 = vld [vmem:[%s37 + $0x330] sm:$0xff]
  %v6707 = vld [vmem:[%s37 + $0x338] sm:$0xff]
  %v6708 = vld [vmem:[%s37 + $0x340] sm:$0xff]
  %v6709 = vld [vmem:[%s37 + $0x348] sm:$0xff]
  %v6710 = vld [vmem:[%s37 + $0x350] sm:$0xff]
  %v6711 = vld [vmem:[%s37 + $0x358] sm:$0xff]
  %v6712 = vld [vmem:[%s37 + $0x360] sm:$0xff]
  %v6713 = vld [vmem:[%s37 + $0x368] sm:$0xff]
  %v6714 = vld [vmem:[%s37 + $0x370] sm:$0xff]
  %v6715 = vld [vmem:[%s37 + $0x378] sm:$0xff]
  %v6716 = vld [vmem:[%s37 + $0x380] sm:$0xff]
  %v6717 = vld [vmem:[%s37 + $0x388] sm:$0xff]
  %v6718 = vld [vmem:[%s37 + $0x390] sm:$0xff]
  %v6719 = vld [vmem:[%s37 + $0x398] sm:$0xff]
  %v6720 = vld [vmem:[%s37 + $0x3a0] sm:$0xff]
  %v6721 = vld [vmem:[%s37 + $0x3a8] sm:$0xff]
  %v6722 = vld [vmem:[%s37 + $0x3b0] sm:$0xff]
  %v6723 = vld [vmem:[%s37 + $0x3b8] sm:$0xff]
  %v6724 = vld [vmem:[%s37 + $0x3c0] sm:$0xff]
  %v6725 = vld [vmem:[%s37 + $0x3c8] sm:$0xff]
  %v6726 = vld [vmem:[%s37 + $0x3d0] sm:$0xff]
  %v6727 = vld [vmem:[%s37 + $0x3d8] sm:$0xff]
  %v6728 = vld [vmem:[%s37 + $0x3e0] sm:$0xff]
  %v6729 = vld [vmem:[%s37 + $0x3e8] sm:$0xff]
  %v6730 = vld [vmem:[%s37 + $0x3f0] sm:$0xff]
  %v6731 = vld [vmem:[%s37 + $0x3f8] sm:$0xff]
  %v6732 = vld [vmem:[%s37 + $0x400] sm:$0xff]
  %v6733 = vld [vmem:[%s37 + $0x408] sm:$0xff]
  %v6734 = vld [vmem:[%s37 + $0x410] sm:$0xff]
  %v6735 = vld [vmem:[%s37 + $0x418] sm:$0xff]
  %v6736 = vld [vmem:[%s37 + $0x420] sm:$0xff]
  %v6737 = vld [vmem:[%s37 + $0x428] sm:$0xff]
  %v6738 = vld [vmem:[%s37 + $0x430] sm:$0xff]
  %v6739 = vld [vmem:[%s37 + $0x438] sm:$0xff]
  %v6740 = vld [vmem:[%s37 + $0x440] sm:$0xff]
  %v6741 = vld [vmem:[%s37 + $0x448] sm:$0xff]
  %v6742 = vld [vmem:[%s37 + $0x450] sm:$0xff]
  %v6743 = vld [vmem:[%s37 + $0x458] sm:$0xff]
  %v6744 = vld [vmem:[%s37 + $0x460] sm:$0xff]
  %v6745 = vld [vmem:[%s37 + $0x468] sm:$0xff]
  %v6746 = vld [vmem:[%s37 + $0x470] sm:$0xff]
  %v6747 = vld [vmem:[%s37 + $0x478] sm:$0xff]
  %v6748 = vld [vmem:[%s37 + $0x480] sm:$0xff]
  %v6749 = vld [vmem:[%s37 + $0x488] sm:$0xff]
  %v6750 = vld [vmem:[%s37 + $0x490] sm:$0xff]
  %v6751 = vld [vmem:[%s37 + $0x498] sm:$0xff]
  %v6752 = vld [vmem:[%s37 + $0x4a0] sm:$0xff]
  %v6753 = vld [vmem:[%s37 + $0x4a8] sm:$0xff]
  %v6754 = vld [vmem:[%s37 + $0x4b0] sm:$0xff]
  %v6755 = vld [vmem:[%s37 + $0x4b8] sm:$0xff]
  %v6756 = vld [vmem:[%s37 + $0x4c0] sm:$0xff]
  %v6757 = vld [vmem:[%s37 + $0x4c8] sm:$0xff]
  %v6758 = vld [vmem:[%s37 + $0x4d0] sm:$0xff]
  %v6759 = vld [vmem:[%s37 + $0x4d8] sm:$0xff]
  %v6760 = vld [vmem:[%s37 + $0x4e0] sm:$0xff]
  %v6761 = vld [vmem:[%s37 + $0x4e8] sm:$0xff]
  %v6762 = vld [vmem:[%s37 + $0x4f0] sm:$0xff]
  %v6763 = vld [vmem:[%s37 + $0x4f8] sm:$0xff]
  %v6764 = vld [vmem:[%s37 + $0x500] sm:$0xff]
  %v6765 = vld [vmem:[%s37 + $0x508] sm:$0xff]
  %v6766 = vld [vmem:[%s37 + $0x510] sm:$0xff]
  %v6767 = vld [vmem:[%s37 + $0x518] sm:$0xff]
  %v6768 = vld [vmem:[%s37 + $0x520] sm:$0xff]
  %v6769 = vld [vmem:[%s37 + $0x528] sm:$0xff]
  %v6770 = vld [vmem:[%s37 + $0x530] sm:$0xff]
  %v6771 = vld [vmem:[%s37 + $0x538] sm:$0xff]
  %v6772 = vld [vmem:[%s37 + $0x540] sm:$0xff]
  %v6773 = vld [vmem:[%s37 + $0x548] sm:$0xff]
  %v6774 = vld [vmem:[%s37 + $0x550] sm:$0xff]
  %v6775 = vld [vmem:[%s37 + $0x558] sm:$0xff]
  %v6776 = vld [vmem:[%s37 + $0x560] sm:$0xff]
  %v6777 = vld [vmem:[%s37 + $0x568] sm:$0xff]
  %v6778 = vld [vmem:[%s37 + $0x570] sm:$0xff]
  %v6779 = vld [vmem:[%s37 + $0x578] sm:$0xff]
  %v6780 = vld [vmem:[%s37 + $0x580] sm:$0xff]
  %v6781 = vld [vmem:[%s37 + $0x588] sm:$0xff]
  %v6782 = vld [vmem:[%s37 + $0x590] sm:$0xff]
  %v6783 = vld [vmem:[%s37 + $0x598] sm:$0xff]
  %v6784 = vld [vmem:[%s37 + $0x5a0] sm:$0xff]
  %v6785 = vld [vmem:[%s37 + $0x5a8] sm:$0xff]
  %v6786 = vld [vmem:[%s37 + $0x5b0] sm:$0xff]
  %v6787 = vld [vmem:[%s37 + $0x5b8] sm:$0xff]
  %v6788 = vld [vmem:[%s37 + $0x5c0] sm:$0xff]
  %v6789 = vld [vmem:[%s37 + $0x5c8] sm:$0xff]
  %v6790 = vld [vmem:[%s37 + $0x5d0] sm:$0xff]
  %v6791 = vld [vmem:[%s37 + $0x5d8] sm:$0xff]
  %v6792 = vld [vmem:[%s37 + $0x5e0] sm:$0xff]
  %v6793 = vld [vmem:[%s37 + $0x5e8] sm:$0xff]
  %v6794 = vld [vmem:[%s37 + $0x5f0] sm:$0xff]
  %v6795 = vld [vmem:[%s37 + $0x5f8] sm:$0xff]
  %v6796 = vld [vmem:[%s37 + $0x600] sm:$0xff]
  %v6797 = vld [vmem:[%s37 + $0x608] sm:$0xff]
  %v6798 = vld [vmem:[%s37 + $0x610] sm:$0xff]
  %v6799 = vld [vmem:[%s37 + $0x618] sm:$0xff]
  %v6800 = vld [vmem:[%s37 + $0x620] sm:$0xff]
  %v6801 = vld [vmem:[%s37 + $0x628] sm:$0xff]
  %v6802 = vld [vmem:[%s37 + $0x630] sm:$0xff]
  %v6803 = vld [vmem:[%s37 + $0x638] sm:$0xff]
  %v6804 = vld [vmem:[%s37 + $0x640] sm:$0xff]
  %v6805 = vld [vmem:[%s37 + $0x648] sm:$0xff]
  %v6806 = vld [vmem:[%s37 + $0x650] sm:$0xff]
  %v6807 = vld [vmem:[%s37 + $0x658] sm:$0xff]
  %v6808 = vld [vmem:[%s37 + $0x660] sm:$0xff]
  %v6809 = vld [vmem:[%s37 + $0x668] sm:$0xff]
  %v6810 = vld [vmem:[%s37 + $0x670] sm:$0xff]
  %v6811 = vld [vmem:[%s37 + $0x678] sm:$0xff]
  %v6812 = vld [vmem:[%s39] sm:$0x1]
  %v6814 = vlaneseq
  %v6815 = vshrl.u32 %v6814, 7
  %v6816 = vsub.s32 0, %v6815
  %v6817 = vrot.slane %v6812, %v6816
  %6819 = vmatprep.subr.mxu0 0.0
  %6820 = vmatpush1.msra.mxu0 %v6619
  %6821 = vmatprep.subr.mxu0 0.0
  %6822 = vmatpush1.msra.mxu0 %v6618
  %6823 = vmatprep.subr.mxu0 0.0
  %6824 = vmatpush1.msra.mxu0 %v6617
  %6825 = vmatprep.subr.mxu0 0.0
  %6826 = vmatpush1.msra.mxu0 %v6616
  %6827 = vmatprep.subr.mxu0 0.0
  %6828 = vmatpush1.msra.mxu0 %v6615
  %6829 = vmatprep.subr.mxu0 0.0
  %6830 = vmatpush1.msra.mxu0 %v6614
  %6831 = vmatprep.subr.mxu0 0.0
  %6832 = vmatpush1.msra.mxu0 %v6613
  %6833 = vmatprep.subr.mxu0 0.0
  %6834 = vmatpush1.msra.mxu0 %v6612
  %6835 = vmatprep.subr.mxu0 0.0
  %6836 = vmatpush1.msra.mxu0 %v6611
  %6837 = vmatprep.subr.mxu0 0.0
  %6838 = vmatpush1.msra.mxu0 %v6610
  %6839 = vmatprep.subr.mxu0 0.0
  %6840 = vmatpush1.msra.mxu0 %v6609
  %6841 = vmatprep.subr.mxu0 0.0
  %6842 = vmatpush1.msra.mxu0 %v6608
  %6843 = vmatprep.subr.mxu0 0.0
  %6844 = vmatpush1.msra.mxu0 %v6607
  %6845 = vmatprep.subr.mxu0 0.0
  %6846 = vmatpush1.msra.mxu0 %v6606
  %6847 = vmatprep.subr.mxu0 0.0
  %6848 = vmatpush1.msra.mxu0 %v6605
  %6849 = vmatprep.subr.mxu0 0.0
  %6850 = vmatpush1.msra.mxu0 %v6604
  %6851 = vmatprep.subr.mxu0 0.0
  %6852 = vmatpush2.msra.mxu0 %v6635
  %6853 = vmatprep.subr.mxu0 0.0
  %6854 = vmatpush2.msra.mxu0 %v6634
  %6855 = vmatprep.subr.mxu0 0.0
  %6856 = vmatpush2.msra.mxu0 %v6633
  %6857 = vmatprep.subr.mxu0 0.0
  %6858 = vmatpush2.msra.mxu0 %v6632
  %6859 = vmatprep.subr.mxu0 0.0
  %6860 = vmatpush2.msra.mxu0 %v6631
  %6861 = vmatprep.subr.mxu0 0.0
  %6862 = vmatpush2.msra.mxu0 %v6630
  %6863 = vmatprep.subr.mxu0 0.0
  %6864 = vmatpush2.msra.mxu0 %v6629
  %6865 = vmatprep.subr.mxu0 0.0
  %6866 = vmatpush2.msra.mxu0 %v6628
  %6867 = vmatprep.subr.mxu0 0.0
  %6868 = vmatpush2.msra.mxu0 %v6627
  %6869 = vmatprep.subr.mxu0 0.0
  %6870 = vmatpush2.msra.mxu0 %v6626
  %6871 = vmatprep.subr.mxu0 0.0
  %6872 = vmatpush2.msra.mxu0 %v6625
  %6873 = vmatprep.subr.mxu0 0.0
  %6874 = vmatpush2.msra.mxu0 %v6624
  %6875 = vmatprep.subr.mxu0 0.0
  %6876 = vmatpush2.msra.mxu0 %v6623
  %6877 = vmatprep.subr.mxu0 0.0
  %6878 = vmatpush2.msra.mxu0 %v6622
  %6879 = vmatprep.subr.mxu0 0.0
  %6880 = vmatpush2.msra.mxu0 %v6621
  %6881 = vmatprep.subr.mxu0 0.0
  %6882 = vmatpush2.msra.mxu0 %v6620
  %6883 = vmatprep.mubr.f32.mxu0 %v6532
  %6884 = vmatmul.mubr.f32.gmra.mxu0 %v6598
  %v6885 = vpop.f32.mrf.mxu0
  %v6886 = vadd.f32 %v6817, %v6885
  %v6887 = vpop.f32.mrf.mxu0
  %6888 = vmatprep.mubr.f32.mxu0 %v6534
  %6889 = vmatmul.mubr.f32.gmra.mxu0 %v6599
  %v6890 = vpop.f32.mrf.mxu0
  %v6891 = vadd.f32 %v6817, %v6890
  %v6892 = vpop.f32.mrf.mxu0
  %6893 = vdwg.mxu0
  %6894 = vmatprep.subr.mxu0 0.0
  %6895 = vmatpush1.msra.mxu0 %v6651
  %6896 = vmatprep.subr.mxu0 0.0
  %6897 = vmatpush1.msra.mxu0 %v6650
  %6898 = vmatprep.subr.mxu0 0.0
  %6899 = vmatpush1.msra.mxu0 %v6649
  %6900 = vmatprep.subr.mxu0 0.0
  %6901 = vmatpush1.msra.mxu0 %v6648
  %6902 = vmatprep.subr.mxu0 0.0
  %6903 = vmatpush1.msra.mxu0 %v6647
  %6904 = vmatprep.subr.mxu0 0.0
  %6905 = vmatpush1.msra.mxu0 %v6646
  %6906 = vmatprep.subr.mxu0 0.0
  %6907 = vmatpush1.msra.mxu0 %v6645
  %6908 = vmatprep.subr.mxu0 0.0
  %6909 = vmatpush1.msra.mxu0 %v6644
  %6910 = vmatprep.subr.mxu0 0.0
  %6911 = vmatpush1.msra.mxu0 %v6643
  %6912 = vmatprep.subr.mxu0 0.0
  %6913 = vmatpush1.msra.mxu0 %v6642
  %6914 = vmatprep.subr.mxu0 0.0
  %6915 = vmatpush1.msra.mxu0 %v6641
  %6916 = vmatprep.subr.mxu0 0.0
  %6917 = vmatpush1.msra.mxu0 %v6640
  %6918 = vmatprep.subr.mxu0 0.0
  %6919 = vmatpush1.msra.mxu0 %v6639
  %6920 = vmatprep.subr.mxu0 0.0
  %6921 = vmatpush1.msra.mxu0 %v6638
  %6922 = vmatprep.subr.mxu0 0.0
  %6923 = vmatpush1.msra.mxu0 %v6637
  %6924 = vmatprep.subr.mxu0 0.0
  %6925 = vmatpush1.msra.mxu0 %v6636
  %6926 = vmatprep.subr.mxu0 0.0
  %6927 = vmatpush2.msra.mxu0 %v6667
  %6928 = vmatprep.subr.mxu0 0.0
  %6929 = vmatpush2.msra.mxu0 %v6666
  %6930 = vmatprep.subr.mxu0 0.0
  %6931 = vmatpush2.msra.mxu0 %v6665
  %6932 = vmatprep.subr.mxu0 0.0
  %6933 = vmatpush2.msra.mxu0 %v6664
  %6934 = vmatprep.subr.mxu0 0.0
  %6935 = vmatpush2.msra.mxu0 %v6663
  %6936 = vmatprep.subr.mxu0 0.0
  %6937 = vmatpush2.msra.mxu0 %v6662
  %6938 = vmatprep.subr.mxu0 0.0
  %6939 = vmatpush2.msra.mxu0 %v6661
  %6940 = vmatprep.subr.mxu0 0.0
  %6941 = vmatpush2.msra.mxu0 %v6660
  %6942 = vmatprep.subr.mxu0 0.0
  %6943 = vmatpush2.msra.mxu0 %v6659
  %6944 = vmatprep.subr.mxu0 0.0
  %6945 = vmatpush2.msra.mxu0 %v6658
  %6946 = vmatprep.subr.mxu0 0.0
  %6947 = vmatpush2.msra.mxu0 %v6657
  %6948 = vmatprep.subr.mxu0 0.0
  %6949 = vmatpush2.msra.mxu0 %v6656
  %6950 = vmatprep.subr.mxu0 0.0
  %6951 = vmatpush2.msra.mxu0 %v6655
  %6952 = vmatprep.subr.mxu0 0.0
  %6953 = vmatpush2.msra.mxu0 %v6654
  %6954 = vmatprep.subr.mxu0 0.0
  %6955 = vmatpush2.msra.mxu0 %v6653
  %6956 = vmatprep.subr.mxu0 0.0
  %6957 = vmatpush2.msra.mxu0 %v6652
  %6958 = vmatprep.mubr.f32.mxu0 %v6492
  %6959 = vmatmul.mubr.f32.gmra.mxu0 %v6533
  %v6960 = vpop.f32.mrf.mxu0
  %v6961 = vadd.f32 %v6886, %v6960
  %v6962 = vpop.f32.mrf.mxu0
  %6963 = vmatprep.mubr.f32.mxu0 %v6495
  %6964 = vmatmul.mubr.f32.gmra.mxu0 %v6535
  %v6965 = vpop.f32.mrf.mxu0
  %v6966 = vadd.f32 %v6891, %v6965
  %v6967 = vpop.f32.mrf.mxu0
  %6968 = vdwg.mxu0
  %6969 = vmatprep.subr.mxu0 0.0
  %6970 = vmatpush1.msra.mxu0 %v6683
  %6971 = vmatprep.subr.mxu0 0.0
  %6972 = vmatpush1.msra.mxu0 %v6682
  %6973 = vmatprep.subr.mxu0 0.0
  %6974 = vmatpush1.msra.mxu0 %v6681
  %6975 = vmatprep.subr.mxu0 0.0
  %6976 = vmatpush1.msra.mxu0 %v6680
  %6977 = vmatprep.subr.mxu0 0.0
  %6978 = vmatpush1.msra.mxu0 %v6679
  %6979 = vmatprep.subr.mxu0 0.0
  %6980 = vmatpush1.msra.mxu0 %v6678
  %6981 = vmatprep.subr.mxu0 0.0
  %6982 = vmatpush1.msra.mxu0 %v6677
  %6983 = vmatprep.subr.mxu0 0.0
  %6984 = vmatpush1.msra.mxu0 %v6676
  %6985 = vmatprep.subr.mxu0 0.0
  %6986 = vmatpush1.msra.mxu0 %v6675
  %6987 = vmatprep.subr.mxu0 0.0
  %6988 = vmatpush1.msra.mxu0 %v6674
  %6989 = vmatprep.subr.mxu0 0.0
  %6990 = vmatpush1.msra.mxu0 %v6673
  %6991 = vmatprep.subr.mxu0 0.0
  %6992 = vmatpush1.msra.mxu0 %v6672
  %6993 = vmatprep.subr.mxu0 0.0
  %6994 = vmatpush1.msra.mxu0 %v6671
  %6995 = vmatprep.subr.mxu0 0.0
  %6996 = vmatpush1.msra.mxu0 %v6670
  %6997 = vmatprep.subr.mxu0 0.0
  %6998 = vmatpush1.msra.mxu0 %v6669
  %6999 = vmatprep.subr.mxu0 0.0
  %7000 = vmatpush1.msra.mxu0 %v6668
  %7001 = vmatprep.subr.mxu0 0.0
  %7002 = vmatpush2.msra.mxu0 %v6699
  %7003 = vmatprep.subr.mxu0 0.0
  %7004 = vmatpush2.msra.mxu0 %v6698
  %7005 = vmatprep.subr.mxu0 0.0
  %7006 = vmatpush2.msra.mxu0 %v6697
  %7007 = vmatprep.subr.mxu0 0.0
  %7008 = vmatpush2.msra.mxu0 %v6696
  %7009 = vmatprep.subr.mxu0 0.0
  %7010 = vmatpush2.msra.mxu0 %v6695
  %7011 = vmatprep.subr.mxu0 0.0
  %7012 = vmatpush2.msra.mxu0 %v6694
  %7013 = vmatprep.subr.mxu0 0.0
  %7014 = vmatpush2.msra.mxu0 %v6693
  %7015 = vmatprep.subr.mxu0 0.0
  %7016 = vmatpush2.msra.mxu0 %v6692
  %7017 = vmatprep.subr.mxu0 0.0
  %7018 = vmatpush2.msra.mxu0 %v6691
  %7019 = vmatprep.subr.mxu0 0.0
  %7020 = vmatpush2.msra.mxu0 %v6690
  %7021 = vmatprep.subr.mxu0 0.0
  %7022 = vmatpush2.msra.mxu0 %v6689
  %7023 = vmatprep.subr.mxu0 0.0
  %7024 = vmatpush2.msra.mxu0 %v6688
  %7025 = vmatprep.subr.mxu0 0.0
  %7026 = vmatpush2.msra.mxu0 %v6687
  %7027 = vmatprep.subr.mxu0 0.0
  %7028 = vmatpush2.msra.mxu0 %v6686
  %7029 = vmatprep.subr.mxu0 0.0
  %7030 = vmatpush2.msra.mxu0 %v6685
  %7031 = vmatprep.subr.mxu0 0.0
  %7032 = vmatpush2.msra.mxu0 %v6684
  %7033 = vmatprep.mubr.f32.mxu0 %v6600
  %7034 = vmatmul.mubr.f32.gmra.mxu0 %v6493
  %v7035 = vpop.f32.mrf.mxu0
  %v7036 = vadd.f32 %v6961, %v7035
  %v7037 = vpop.f32.mrf.mxu0
  %7038 = vmatprep.mubr.f32.mxu0 %v6601
  %7039 = vmatmul.mubr.f32.gmra.mxu0 %v6496
  %v7040 = vpop.f32.mrf.mxu0
  %v7041 = vadd.f32 %v6966, %v7040
  %v7042 = vpop.f32.mrf.mxu0
  %7043 = vdwg.mxu0
  %7044 = vmatprep.subr.mxu0 0.0
  %7045 = vmatpush1.msra.mxu0 %v6715
  %7046 = vmatprep.subr.mxu0 0.0
  %7047 = vmatpush1.msra.mxu0 %v6714
  %7048 = vmatprep.subr.mxu0 0.0
  %7049 = vmatpush1.msra.mxu0 %v6713
  %7050 = vmatprep.subr.mxu0 0.0
  %7051 = vmatpush1.msra.mxu0 %v6712
  %7052 = vmatprep.subr.mxu0 0.0
  %7053 = vmatpush1.msra.mxu0 %v6711
  %7054 = vmatprep.subr.mxu0 0.0
  %7055 = vmatpush1.msra.mxu0 %v6710
  %7056 = vmatprep.subr.mxu0 0.0
  %7057 = vmatpush1.msra.mxu0 %v6709
  %7058 = vmatprep.subr.mxu0 0.0
  %7059 = vmatpush1.msra.mxu0 %v6708
  %7060 = vmatprep.subr.mxu0 0.0
  %7061 = vmatpush1.msra.mxu0 %v6707
  %7062 = vmatprep.subr.mxu0 0.0
  %7063 = vmatpush1.msra.mxu0 %v6706
  %7064 = vmatprep.subr.mxu0 0.0
  %7065 = vmatpush1.msra.mxu0 %v6705
  %7066 = vmatprep.subr.mxu0 0.0
  %7067 = vmatpush1.msra.mxu0 %v6704
  %7068 = vmatprep.subr.mxu0 0.0
  %7069 = vmatpush1.msra.mxu0 %v6703
  %7070 = vmatprep.subr.mxu0 0.0
  %7071 = vmatpush1.msra.mxu0 %v6702
  %7072 = vmatprep.subr.mxu0 0.0
  %7073 = vmatpush1.msra.mxu0 %v6701
  %7074 = vmatprep.subr.mxu0 0.0
  %7075 = vmatpush1.msra.mxu0 %v6700
  %7076 = vmatprep.subr.mxu0 0.0
  %7077 = vmatpush2.msra.mxu0 %v6731
  %7078 = vmatprep.subr.mxu0 0.0
  %7079 = vmatpush2.msra.mxu0 %v6730
  %7080 = vmatprep.subr.mxu0 0.0
  %7081 = vmatpush2.msra.mxu0 %v6729
  %7082 = vmatprep.subr.mxu0 0.0
  %7083 = vmatpush2.msra.mxu0 %v6728
  %7084 = vmatprep.subr.mxu0 0.0
  %7085 = vmatpush2.msra.mxu0 %v6727
  %7086 = vmatprep.subr.mxu0 0.0
  %7087 = vmatpush2.msra.mxu0 %v6726
  %7088 = vmatprep.subr.mxu0 0.0
  %7089 = vmatpush2.msra.mxu0 %v6725
  %7090 = vmatprep.subr.mxu0 0.0
  %7091 = vmatpush2.msra.mxu0 %v6724
  %7092 = vmatprep.subr.mxu0 0.0
  %7093 = vmatpush2.msra.mxu0 %v6723
  %7094 = vmatprep.subr.mxu0 0.0
  %7095 = vmatpush2.msra.mxu0 %v6722
  %7096 = vmatprep.subr.mxu0 0.0
  %7097 = vmatpush2.msra.mxu0 %v6721
  %7098 = vmatprep.subr.mxu0 0.0
  %7099 = vmatpush2.msra.mxu0 %v6720
  %7100 = vmatprep.subr.mxu0 0.0
  %7101 = vmatpush2.msra.mxu0 %v6719
  %7102 = vmatprep.subr.mxu0 0.0
  %7103 = vmatpush2.msra.mxu0 %v6718
  %7104 = vmatprep.subr.mxu0 0.0
  %7105 = vmatpush2.msra.mxu0 %v6717
  %7106 = vmatprep.subr.mxu0 0.0
  %7107 = vmatpush2.msra.mxu0 %v6716
  %7108 = vmatprep.mubr.f32.mxu0 %v6561
  %7109 = vmatmul.mubr.f32.gmra.mxu0 %v6560
  %v7110 = vpop.f32.mrf.mxu0
  %v7111 = vadd.f32 %v7036, %v7110
  %v7112 = vpop.f32.mrf.mxu0
  %7113 = vmatprep.mubr.f32.mxu0 %v6563
  %7114 = vmatmul.mubr.f32.gmra.mxu0 %v6562
  %v7115 = vpop.f32.mrf.mxu0
  %v7116 = vadd.f32 %v7041, %v7115
  %v7117 = vpop.f32.mrf.mxu0
  %7118 = vdwg.mxu0
  %7119 = vmatprep.subr.mxu0 0.0
  %7120 = vmatpush1.msra.mxu0 %v6747
  %7121 = vmatprep.subr.mxu0 0.0
  %7122 = vmatpush1.msra.mxu0 %v6746
  %7123 = vmatprep.subr.mxu0 0.0
  %7124 = vmatpush1.msra.mxu0 %v6745
  %7125 = vmatprep.subr.mxu0 0.0
  %7126 = vmatpush1.msra.mxu0 %v6744
  %7127 = vmatprep.subr.mxu0 0.0
  %7128 = vmatpush1.msra.mxu0 %v6743
  %7129 = vmatprep.subr.mxu0 0.0
  %7130 = vmatpush1.msra.mxu0 %v6742
  %7131 = vmatprep.subr.mxu0 0.0
  %7132 = vmatpush1.msra.mxu0 %v6741
  %7133 = vmatprep.subr.mxu0 0.0
  %7134 = vmatpush1.msra.mxu0 %v6740
  %7135 = vmatprep.subr.mxu0 0.0
  %7136 = vmatpush1.msra.mxu0 %v6739
  %7137 = vmatprep.subr.mxu0 0.0
  %7138 = vmatpush1.msra.mxu0 %v6738
  %7139 = vmatprep.subr.mxu0 0.0
  %7140 = vmatpush1.msra.mxu0 %v6737
  %7141 = vmatprep.subr.mxu0 0.0
  %7142 = vmatpush1.msra.mxu0 %v6736
  %7143 = vmatprep.subr.mxu0 0.0
  %7144 = vmatpush1.msra.mxu0 %v6735
  %7145 = vmatprep.subr.mxu0 0.0
  %7146 = vmatpush1.msra.mxu0 %v6734
  %7147 = vmatprep.subr.mxu0 0.0
  %7148 = vmatpush1.msra.mxu0 %v6733
  %7149 = vmatprep.subr.mxu0 0.0
  %7150 = vmatpush1.msra.mxu0 %v6732
  %7151 = vmatprep.subr.mxu0 0.0
  %7152 = vmatpush2.msra.mxu0 %v6763
  %7153 = vmatprep.subr.mxu0 0.0
  %7154 = vmatpush2.msra.mxu0 %v6762
  %7155 = vmatprep.subr.mxu0 0.0
  %7156 = vmatpush2.msra.mxu0 %v6761
  %7157 = vmatprep.subr.mxu0 0.0
  %7158 = vmatpush2.msra.mxu0 %v6760
  %7159 = vmatprep.subr.mxu0 0.0
  %7160 = vmatpush2.msra.mxu0 %v6759
  %7161 = vmatprep.subr.mxu0 0.0
  %7162 = vmatpush2.msra.mxu0 %v6758
  %7163 = vmatprep.subr.mxu0 0.0
  %7164 = vmatpush2.msra.mxu0 %v6757
  %7165 = vmatprep.subr.mxu0 0.0
  %7166 = vmatpush2.msra.mxu0 %v6756
  %7167 = vmatprep.subr.mxu0 0.0
  %7168 = vmatpush2.msra.mxu0 %v6755
  %7169 = vmatprep.subr.mxu0 0.0
  %7170 = vmatpush2.msra.mxu0 %v6754
  %7171 = vmatprep.subr.mxu0 0.0
  %7172 = vmatpush2.msra.mxu0 %v6753
  %7173 = vmatprep.subr.mxu0 0.0
  %7174 = vmatpush2.msra.mxu0 %v6752
  %7175 = vmatprep.subr.mxu0 0.0
  %7176 = vmatpush2.msra.mxu0 %v6751
  %7177 = vmatprep.subr.mxu0 0.0
  %7178 = vmatpush2.msra.mxu0 %v6750
  %7179 = vmatprep.subr.mxu0 0.0
  %7180 = vmatpush2.msra.mxu0 %v6749
  %7181 = vmatprep.subr.mxu0 0.0
  %7182 = vmatpush2.msra.mxu0 %v6748
  %7183 = vmatprep.mubr.f32.mxu0 %v6505
  %7184 = vmatmul.mubr.f32.gmra.mxu0 %v6504
  %v7185 = vpop.f32.mrf.mxu0
  %v7186 = vadd.f32 %v7111, %v7185
  %v7187 = vpop.f32.mrf.mxu0
  %7188 = vmatprep.mubr.f32.mxu0 %v6508
  %7189 = vmatmul.mubr.f32.gmra.mxu0 %v6507
  %v7190 = vpop.f32.mrf.mxu0
  %v7191 = vadd.f32 %v7116, %v7190
  %v7192 = vpop.f32.mrf.mxu0
  %7193 = vdwg.mxu0
  %7194 = vmatprep.subr.mxu0 0.0
  %7195 = vmatpush1.msra.mxu0 %v6779
  %7196 = vmatprep.subr.mxu0 0.0
  %7197 = vmatpush1.msra.mxu0 %v6778
  %7198 = vmatprep.subr.mxu0 0.0
  %7199 = vmatpush1.msra.mxu0 %v6777
  %7200 = vmatprep.subr.mxu0 0.0
  %7201 = vmatpush1.msra.mxu0 %v6776
  %7202 = vmatprep.subr.mxu0 0.0
  %7203 = vmatpush1.msra.mxu0 %v6775
  %7204 = vmatprep.subr.mxu0 0.0
  %7205 = vmatpush1.msra.mxu0 %v6774
  %7206 = vmatprep.subr.mxu0 0.0
  %7207 = vmatpush1.msra.mxu0 %v6773
  %7208 = vmatprep.subr.mxu0 0.0
  %7209 = vmatpush1.msra.mxu0 %v6772
  %7210 = vmatprep.subr.mxu0 0.0
  %7211 = vmatpush1.msra.mxu0 %v6771
  %7212 = vmatprep.subr.mxu0 0.0
  %7213 = vmatpush1.msra.mxu0 %v6770
  %7214 = vmatprep.subr.mxu0 0.0
  %7215 = vmatpush1.msra.mxu0 %v6769
  %7216 = vmatprep.subr.mxu0 0.0
  %7217 = vmatpush1.msra.mxu0 %v6768
  %7218 = vmatprep.subr.mxu0 0.0
  %7219 = vmatpush1.msra.mxu0 %v6767
  %7220 = vmatprep.subr.mxu0 0.0
  %7221 = vmatpush1.msra.mxu0 %v6766
  %7222 = vmatprep.subr.mxu0 0.0
  %7223 = vmatpush1.msra.mxu0 %v6765
  %7224 = vmatprep.subr.mxu0 0.0
  %7225 = vmatpush1.msra.mxu0 %v6764
  %7226 = vmatprep.subr.mxu0 0.0
  %7227 = vmatpush2.msra.mxu0 %v6795
  %7228 = vmatprep.subr.mxu0 0.0
  %7229 = vmatpush2.msra.mxu0 %v6794
  %7230 = vmatprep.subr.mxu0 0.0
  %7231 = vmatpush2.msra.mxu0 %v6793
  %7232 = vmatprep.subr.mxu0 0.0
  %7233 = vmatpush2.msra.mxu0 %v6792
  %7234 = vmatprep.subr.mxu0 0.0
  %7235 = vmatpush2.msra.mxu0 %v6791
  %7236 = vmatprep.subr.mxu0 0.0
  %7237 = vmatpush2.msra.mxu0 %v6790
  %7238 = vmatprep.subr.mxu0 0.0
  %7239 = vmatpush2.msra.mxu0 %v6789
  %7240 = vmatprep.subr.mxu0 0.0
  %7241 = vmatpush2.msra.mxu0 %v6788
  %7242 = vmatprep.subr.mxu0 0.0
  %7243 = vmatpush2.msra.mxu0 %v6787
  %7244 = vmatprep.subr.mxu0 0.0
  %7245 = vmatpush2.msra.mxu0 %v6786
  %7246 = vmatprep.subr.mxu0 0.0
  %7247 = vmatpush2.msra.mxu0 %v6785
  %7248 = vmatprep.subr.mxu0 0.0
  %7249 = vmatpush2.msra.mxu0 %v6784
  %7250 = vmatprep.subr.mxu0 0.0
  %7251 = vmatpush2.msra.mxu0 %v6783
  %7252 = vmatprep.subr.mxu0 0.0
  %7253 = vmatpush2.msra.mxu0 %v6782
  %7254 = vmatprep.subr.mxu0 0.0
  %7255 = vmatpush2.msra.mxu0 %v6781
  %7256 = vmatprep.subr.mxu0 0.0
  %7257 = vmatpush2.msra.mxu0 %v6780
  %7258 = vmatprep.mubr.f32.mxu0 %v6588
  %7259 = vmatmul.mubr.f32.gmra.mxu0 %v6602
  %v7260 = vpop.f32.mrf.mxu0
  %v7261 = vadd.f32 %v7186, %v7260
  %v7262 = vpop.f32.mrf.mxu0
  %7263 = vmatprep.mubr.f32.mxu0 %v6590
  %7264 = vmatmul.mubr.f32.gmra.mxu0 %v6603
  %v7265 = vpop.f32.mrf.mxu0
  %v7266 = vadd.f32 %v7191, %v7265
  %v7267 = vpop.f32.mrf.mxu0
  %7268 = vdwg.mxu0
  %7269 = vmatprep.subr.mxu0 0.0
  %7270 = vmatpush1.msra.mxu0 %v6811
  %7271 = vmatprep.subr.mxu0 0.0
  %7272 = vmatpush1.msra.mxu0 %v6810
  %7273 = vmatprep.subr.mxu0 0.0
  %7274 = vmatpush1.msra.mxu0 %v6809
  %7275 = vmatprep.subr.mxu0 0.0
  %7276 = vmatpush1.msra.mxu0 %v6808
  %7277 = vmatprep.subr.mxu0 0.0
  %7278 = vmatpush1.msra.mxu0 %v6807
  %7279 = vmatprep.subr.mxu0 0.0
  %7280 = vmatpush1.msra.mxu0 %v6806
  %7281 = vmatprep.subr.mxu0 0.0
  %7282 = vmatpush1.msra.mxu0 %v6805
  %7283 = vmatprep.subr.mxu0 0.0
  %7284 = vmatpush1.msra.mxu0 %v6804
  %7285 = vmatprep.subr.mxu0 0.0
  %7286 = vmatpush1.msra.mxu0 %v6803
  %7287 = vmatprep.subr.mxu0 0.0
  %7288 = vmatpush1.msra.mxu0 %v6802
  %7289 = vmatprep.subr.mxu0 0.0
  %7290 = vmatpush1.msra.mxu0 %v6801
  %7291 = vmatprep.subr.mxu0 0.0
  %7292 = vmatpush1.msra.mxu0 %v6800
  %7293 = vmatprep.subr.mxu0 0.0
  %7294 = vmatpush1.msra.mxu0 %v6799
  %7295 = vmatprep.subr.mxu0 0.0
  %7296 = vmatpush1.msra.mxu0 %v6798
  %7297 = vmatprep.subr.mxu0 0.0
  %7298 = vmatpush1.msra.mxu0 %v6797
  %7299 = vmatprep.subr.mxu0 0.0
  %7300 = vmatpush1.msra.mxu0 %v6796
  %7301 = vmatprep.subr.mxu0 0.0
  %7302 = vmatpush2.msra.mxu0 0.0
  %7303 = vmatprep.subr.mxu0 0.0
  %7304 = vmatpush2.msra.mxu0 0.0
  %7305 = vmatprep.subr.mxu0 0.0
  %7306 = vmatpush2.msra.mxu0 0.0
  %7307 = vmatprep.subr.mxu0 0.0
  %7308 = vmatpush2.msra.mxu0 0.0
  %7309 = vmatprep.subr.mxu0 0.0
  %7310 = vmatpush2.msra.mxu0 0.0
  %7311 = vmatprep.subr.mxu0 0.0
  %7312 = vmatpush2.msra.mxu0 0.0
  %7313 = vmatprep.subr.mxu0 0.0
  %7314 = vmatpush2.msra.mxu0 0.0
  %7315 = vmatprep.subr.mxu0 0.0
  %7316 = vmatpush2.msra.mxu0 0.0
  %7317 = vmatprep.subr.mxu0 0.0
  %7318 = vmatpush2.msra.mxu0 0.0
  %7319 = vmatprep.subr.mxu0 0.0
  %7320 = vmatpush2.msra.mxu0 0.0
  %7321 = vmatprep.subr.mxu0 0.0
  %7322 = vmatpush2.msra.mxu0 0.0
  %7323 = vmatprep.subr.mxu0 0.0
  %7324 = vmatpush2.msra.mxu0 0.0
  %7325 = vmatprep.subr.mxu0 0.0
  %7326 = vmatpush2.msra.mxu0 0.0
  %7327 = vmatprep.subr.mxu0 0.0
  %7328 = vmatpush2.msra.mxu0 0.0
  %7329 = vmatprep.subr.mxu0 0.0
  %7330 = vmatpush2.msra.mxu0 0.0
  %7331 = vmatprep.subr.mxu0 0.0
  %7332 = vmatpush2.msra.mxu0 0.0
  %7333 = vmatprep.mubr.f32.mxu0 0.0
  %7334 = vmatmul.mubr.f32.gmra.mxu0 %v6589
  %v7335 = vpop.f32.mrf.mxu0
  %v7336 = vadd.f32 %v7261, %v7335
  %v7337 = vpop.f32.mrf.mxu0
  %7338 = vmatprep.mubr.f32.mxu0 0.0
  %7339 = vmatmul.mubr.f32.gmra.mxu0 %v6591
  %v7340 = vpop.f32.mrf.mxu0
  %v7341 = vadd.f32 %v7266, %v7340
  %v7342 = vpop.f32.mrf.mxu0
  %7343 = vdwg.mxu0
  %v7344 = vld [vmem:[%s41] sm:$0xff]
  %v7345 = vld [vmem:[%s41 + $0x8] sm:$0xff]
  %v7346 = vld [vmem:[%s41 + $0x10] sm:$0xff]
  %v7347 = vld [vmem:[%s41 + $0x18] sm:$0xff]
  %v7348 = vld [vmem:[%s41 + $0x20] sm:$0xff]
  %v7349 = vld [vmem:[%s41 + $0x28] sm:$0xff]
  %v7350 = vld [vmem:[%s41 + $0x30] sm:$0xff]
  %v7351 = vld [vmem:[%s41 + $0x38] sm:$0xff]
  %v7352 = vld [vmem:[%s41 + $0x40] sm:$0xff]
  %v7353 = vld [vmem:[%s41 + $0x48] sm:$0xff]
  %v7354 = vld [vmem:[%s41 + $0x50] sm:$0xff]
  %v7355 = vld [vmem:[%s41 + $0x58] sm:$0xff]
  %v7356 = vld [vmem:[%s41 + $0x60] sm:$0xff]
  %v7357 = vld [vmem:[%s41 + $0x68] sm:$0xff]
  %v7358 = vld [vmem:[%s41 + $0x70] sm:$0xff]
  %v7359 = vld [vmem:[%s41 + $0x78] sm:$0xff]
  %v7360 = vld [vmem:[%s43] sm:$0x1]
  %v7362 = vlaneseq
  %v7363 = vshrl.u32 %v7362, 7
  %v7364 = vsub.s32 0, %v7363
  %v7365 = vrot.slane %v7360, %v7364
  %7367 = vmatprep.subr.mxu0 0.0
  %7368 = vmatpush1.msra.mxu0 %v7359
  %7369 = vmatprep.subr.mxu0 0.0
  %7370 = vmatpush1.msra.mxu0 %v7358
  %7371 = vmatprep.subr.mxu0 0.0
  %7372 = vmatpush1.msra.mxu0 %v7357
  %7373 = vmatprep.subr.mxu0 0.0
  %7374 = vmatpush1.msra.mxu0 %v7356
  %7375 = vmatprep.subr.mxu0 0.0
  %7376 = vmatpush1.msra.mxu0 %v7355
  %7377 = vmatprep.subr.mxu0 0.0
  %7378 = vmatpush1.msra.mxu0 %v7354
  %7379 = vmatprep.subr.mxu0 0.0
  %7380 = vmatpush1.msra.mxu0 %v7353
  %7381 = vmatprep.subr.mxu0 0.0
  %7382 = vmatpush1.msra.mxu0 %v7352
  %7383 = vmatprep.subr.mxu0 0.0
  %7384 = vmatpush1.msra.mxu0 %v7351
  %7385 = vmatprep.subr.mxu0 0.0
  %7386 = vmatpush1.msra.mxu0 %v7350
  %7387 = vmatprep.subr.mxu0 0.0
  %7388 = vmatpush1.msra.mxu0 %v7349
  %7389 = vmatprep.subr.mxu0 0.0
  %7390 = vmatpush1.msra.mxu0 %v7348
  %7391 = vmatprep.subr.mxu0 0.0
  %7392 = vmatpush1.msra.mxu0 %v7347
  %7393 = vmatprep.subr.mxu0 0.0
  %7394 = vmatpush1.msra.mxu0 %v7346
  %7395 = vmatprep.subr.mxu0 0.0
  %7396 = vmatpush1.msra.mxu0 %v7345
  %7397 = vmatprep.subr.mxu0 0.0
  %7398 = vmatpush1.msra.mxu0 %v7344
  %7399 = vmatprep.subr.mxu0 0.0
  %7400 = vmatpush2.msra.mxu0 0.0
  %7401 = vmatprep.subr.mxu0 0.0
  %7402 = vmatpush2.msra.mxu0 0.0
  %7403 = vmatprep.subr.mxu0 0.0
  %7404 = vmatpush2.msra.mxu0 0.0
  %7405 = vmatprep.subr.mxu0 0.0
  %7406 = vmatpush2.msra.mxu0 0.0
  %7407 = vmatprep.subr.mxu0 0.0
  %7408 = vmatpush2.msra.mxu0 0.0
  %7409 = vmatprep.subr.mxu0 0.0
  %7410 = vmatpush2.msra.mxu0 0.0
  %7411 = vmatprep.subr.mxu0 0.0
  %7412 = vmatpush2.msra.mxu0 0.0
  %7413 = vmatprep.subr.mxu0 0.0
  %7414 = vmatpush2.msra.mxu0 0.0
  %7415 = vmatprep.subr.mxu0 0.0
  %7416 = vmatpush2.msra.mxu0 0.0
  %7417 = vmatprep.subr.mxu0 0.0
  %7418 = vmatpush2.msra.mxu0 0.0
  %7419 = vmatprep.subr.mxu0 0.0
  %7420 = vmatpush2.msra.mxu0 0.0
  %7421 = vmatprep.subr.mxu0 0.0
  %7422 = vmatpush2.msra.mxu0 0.0
  %7423 = vmatprep.subr.mxu0 0.0
  %7424 = vmatpush2.msra.mxu0 0.0
  %7425 = vmatprep.subr.mxu0 0.0
  %7426 = vmatpush2.msra.mxu0 0.0
  %7427 = vmatprep.subr.mxu0 0.0
  %7428 = vmatpush2.msra.mxu0 0.0
  %7429 = vmatprep.subr.mxu0 0.0
  %7430 = vmatpush2.msra.mxu0 0.0
  %7431 = vmatprep.mubr.f32.mxu0 0.0
  %7432 = vmatmul.mubr.f32.gmra.mxu0 %v7336
  %v7433 = vpop.f32.mrf.mxu0
  %v7434 = vadd.f32 %v7365, %v7433
  %v7435 = vpop.f32.mrf.mxu0
  %7436 = vmatprep.mubr.f32.mxu0 0.0
  %7437 = vmatmul.mubr.f32.gmra.mxu0 %v7341
  %v7438 = vpop.f32.mrf.mxu0
  %v7439 = vadd.f32 %v7365, %v7438
  %v7440 = vpop.f32.mrf.mxu0
  %7441 = vdwg.mxu0
  %v7442 = vld [vmem:[%s45] sm:$0xff]
  %v7443 = vld [vmem:[%s45 + $0x8] sm:$0xff]
  %v7444 = vld [vmem:[%s47] sm:$0x1]
  %v7446 = vlaneseq
  %v7447 = vshrl.u32 %v7446, 7
  %v7448 = vsub.s32 0, %v7447
  %v7449 = vrot.slane %v7444, %v7448
  %7451 = vmatprep.subr.mxu0 0.0
  %7452 = vmatpush1.msra.mxu0 0.0
  %7453 = vmatprep.subr.mxu0 0.0
  %7454 = vmatpush1.msra.mxu0 0.0
  %7455 = vmatprep.subr.mxu0 0.0
  %7456 = vmatpush1.msra.mxu0 0.0
  %7457 = vmatprep.subr.mxu0 0.0
  %7458 = vmatpush1.msra.mxu0 0.0
  %7459 = vmatprep.subr.mxu0 0.0
  %7460 = vmatpush1.msra.mxu0 0.0
  %7461 = vmatprep.subr.mxu0 0.0
  %7462 = vmatpush1.msra.mxu0 0.0
  %7463 = vmatprep.subr.mxu0 0.0
  %7464 = vmatpush1.msra.mxu0 0.0
  %7465 = vmatprep.subr.mxu0 0.0
  %7466 = vmatpush1.msra.mxu0 0.0
  %7467 = vmatprep.subr.mxu0 0.0
  %7468 = vmatpush1.msra.mxu0 0.0
  %7469 = vmatprep.subr.mxu0 0.0
  %7470 = vmatpush1.msra.mxu0 0.0
  %7471 = vmatprep.subr.mxu0 0.0
  %7472 = vmatpush1.msra.mxu0 0.0
  %7473 = vmatprep.subr.mxu0 0.0
  %7474 = vmatpush1.msra.mxu0 0.0
  %7475 = vmatprep.subr.mxu0 0.0
  %7476 = vmatpush1.msra.mxu0 0.0
  %7477 = vmatprep.subr.mxu0 0.0
  %7478 = vmatpush1.msra.mxu0 0.0
  %7479 = vmatprep.subr.mxu0 0.0
  %7480 = vmatpush1.msra.mxu0 %v7443
  %7481 = vmatprep.subr.mxu0 0.0
  %7482 = vmatpush1.msra.mxu0 %v7442
  %7483 = vmatprep.subr.mxu0 0.0
  %7484 = vmatpush2.msra.mxu0 0.0
  %7485 = vmatprep.subr.mxu0 0.0
  %7486 = vmatpush2.msra.mxu0 0.0
  %7487 = vmatprep.subr.mxu0 0.0
  %7488 = vmatpush2.msra.mxu0 0.0
  %7489 = vmatprep.subr.mxu0 0.0
  %7490 = vmatpush2.msra.mxu0 0.0
  %7491 = vmatprep.subr.mxu0 0.0
  %7492 = vmatpush2.msra.mxu0 0.0
  %7493 = vmatprep.subr.mxu0 0.0
  %7494 = vmatpush2.msra.mxu0 0.0
  %7495 = vmatprep.subr.mxu0 0.0
  %7496 = vmatpush2.msra.mxu0 0.0
  %7497 = vmatprep.subr.mxu0 0.0
  %7498 = vmatpush2.msra.mxu0 0.0
  %7499 = vmatprep.subr.mxu0 0.0
  %7500 = vmatpush2.msra.mxu0 0.0
  %7501 = vmatprep.subr.mxu0 0.0
  %7502 = vmatpush2.msra.mxu0 0.0
  %7503 = vmatprep.subr.mxu0 0.0
  %7504 = vmatpush2.msra.mxu0 0.0
  %7505 = vmatprep.subr.mxu0 0.0
  %7506 = vmatpush2.msra.mxu0 0.0
  %7507 = vmatprep.subr.mxu0 0.0
  %7508 = vmatpush2.msra.mxu0 0.0
  %7509 = vmatprep.subr.mxu0 0.0
  %7510 = vmatpush2.msra.mxu0 0.0
  %7511 = vmatprep.subr.mxu0 0.0
  %7512 = vmatpush2.msra.mxu0 0.0
  %7513 = vmatprep.subr.mxu0 0.0
  %7514 = vmatpush2.msra.mxu0 0.0
  %7515 = vmatprep.mubr.f32.mxu0 0.0
  %7516 = vmatmul.mubr.f32.gmra.mxu0 %v204
  %v7517 = vpop.f32.mrf.mxu0
  %v7518 = vadd.f32 %v7449, %v7517
  %v7519 = vpop.f32.mrf.mxu0
  %7520 = vmatprep.mubr.f32.mxu0 0.0
  %7521 = vmatmul.mubr.f32.gmra.mxu0 %v207
  %v7522 = vpop.f32.mrf.mxu0
  %v7523 = vadd.f32 %v7449, %v7522
  %v7524 = vpop.f32.mrf.mxu0
  %7525 = vdwg.mxu0
  %v7526 = vmax.f32 %v7518, 0.0
  %v7527 = vmax.f32 %v7523, 0.0
  %v7528 = vld [vmem:[%s49] sm:$0xff]
  %v7529 = vld [vmem:[%s49 + $0x8] sm:$0xff]
  %v7530 = vld [vmem:[%s49 + $0x10] sm:$0xff]
  %v7531 = vld [vmem:[%s49 + $0x18] sm:$0xff]
  %v7532 = vld [vmem:[%s51] sm:$0x1]
  %v7534 = vlaneseq
  %v7535 = vshrl.u32 %v7534, 7
  %v7536 = vsub.s32 0, %v7535
  %v7537 = vrot.slane %v7532, %v7536
  %7539 = vmatprep.subr.mxu0 0.0
  %7540 = vmatpush1.msra.mxu0 0.0
  %7541 = vmatprep.subr.mxu0 0.0
  %7542 = vmatpush1.msra.mxu0 0.0
  %7543 = vmatprep.subr.mxu0 0.0
  %7544 = vmatpush1.msra.mxu0 0.0
  %7545 = vmatprep.subr.mxu0 0.0
  %7546 = vmatpush1.msra.mxu0 0.0
  %7547 = vmatprep.subr.mxu0 0.0
  %7548 = vmatpush1.msra.mxu0 0.0
  %7549 = vmatprep.subr.mxu0 0.0
  %7550 = vmatpush1.msra.mxu0 0.0
  %7551 = vmatprep.subr.mxu0 0.0
  %7552 = vmatpush1.msra.mxu0 0.0
  %7553 = vmatprep.subr.mxu0 0.0
  %7554 = vmatpush1.msra.mxu0 0.0
  %7555 = vmatprep.subr.mxu0 0.0
  %7556 = vmatpush1.msra.mxu0 0.0
  %7557 = vmatprep.subr.mxu0 0.0
  %7558 = vmatpush1.msra.mxu0 0.0
  %7559 = vmatprep.subr.mxu0 0.0
  %7560 = vmatpush1.msra.mxu0 0.0
  %7561 = vmatprep.subr.mxu0 0.0
  %7562 = vmatpush1.msra.mxu0 0.0
  %7563 = vmatprep.subr.mxu0 0.0
  %7564 = vmatpush1.msra.mxu0 %v7531
  %7565 = vmatprep.subr.mxu0 0.0
  %7566 = vmatpush1.msra.mxu0 %v7530
  %7567 = vmatprep.subr.mxu0 0.0
  %7568 = vmatpush1.msra.mxu0 %v7529
  %7569 = vmatprep.subr.mxu0 0.0
  %7570 = vmatpush1.msra.mxu0 %v7528
  %7571 = vmatprep.subr.mxu0 0.0
  %7572 = vmatpush2.msra.mxu0 0.0
  %7573 = vmatprep.subr.mxu0 0.0
  %7574 = vmatpush2.msra.mxu0 0.0
  %7575 = vmatprep.subr.mxu0 0.0
  %7576 = vmatpush2.msra.mxu0 0.0
  %7577 = vmatprep.subr.mxu0 0.0
  %7578 = vmatpush2.msra.mxu0 0.0
  %7579 = vmatprep.subr.mxu0 0.0
  %7580 = vmatpush2.msra.mxu0 0.0
  %7581 = vmatprep.subr.mxu0 0.0
  %7582 = vmatpush2.msra.mxu0 0.0
  %7583 = vmatprep.subr.mxu0 0.0
  %7584 = vmatpush2.msra.mxu0 0.0
  %7585 = vmatprep.subr.mxu0 0.0
  %7586 = vmatpush2.msra.mxu0 0.0
  %7587 = vmatprep.subr.mxu0 0.0
  %7588 = vmatpush2.msra.mxu0 0.0
  %7589 = vmatprep.subr.mxu0 0.0
  %7590 = vmatpush2.msra.mxu0 0.0
  %7591 = vmatprep.subr.mxu0 0.0
  %7592 = vmatpush2.msra.mxu0 0.0
  %7593 = vmatprep.subr.mxu0 0.0
  %7594 = vmatpush2.msra.mxu0 0.0
  %7595 = vmatprep.subr.mxu0 0.0
  %7596 = vmatpush2.msra.mxu0 0.0
  %7597 = vmatprep.subr.mxu0 0.0
  %7598 = vmatpush2.msra.mxu0 0.0
  %7599 = vmatprep.subr.mxu0 0.0
  %7600 = vmatpush2.msra.mxu0 0.0
  %7601 = vmatprep.subr.mxu0 0.0
  %7602 = vmatpush2.msra.mxu0 0.0
  %7603 = vmatprep.mubr.f32.mxu0 0.0
  %7604 = vmatmul.mubr.f32.gmra.mxu0 %v2912
  %v7605 = vpop.f32.mrf.mxu0
  %v7606 = vadd.f32 %v7537, %v7605
  %v7607 = vpop.f32.mrf.mxu0
  %7608 = vmatprep.mubr.f32.mxu0 0.0
  %7609 = vmatmul.mubr.f32.gmra.mxu0 %v2915
  %v7610 = vpop.f32.mrf.mxu0
  %v7611 = vadd.f32 %v7537, %v7610
  %v7612 = vpop.f32.mrf.mxu0
  %7613 = vdwg.mxu0
  %v7614 = vmax.f32 %v7606, 0.0
  %v7615 = vmax.f32 %v7611, 0.0
  %v7616 = vld [vmem:[%s53] sm:$0xff]
  %v7617 = vld [vmem:[%s53 + $0x8] sm:$0xff]
  %v7618 = vld [vmem:[%s53 + $0x10] sm:$0xff]
  %v7619 = vld [vmem:[%s53 + $0x18] sm:$0xff]
  %v7620 = vld [vmem:[%s53 + $0x20] sm:$0xff]
  %v7621 = vld [vmem:[%s53 + $0x28] sm:$0xff]
  %v7622 = vld [vmem:[%s53 + $0x30] sm:$0xff]
  %v7623 = vld [vmem:[%s53 + $0x38] sm:$0xff]
  %v7624 = vld [vmem:[%s55] sm:$0x1]
  %v7626 = vlaneseq
  %v7627 = vshrl.u32 %v7626, 7
  %v7628 = vsub.s32 0, %v7627
  %v7629 = vrot.slane %v7624, %v7628
  %7631 = vmatprep.subr.mxu0 0.0
  %7632 = vmatpush1.msra.mxu0 0.0
  %7633 = vmatprep.subr.mxu0 0.0
  %7634 = vmatpush1.msra.mxu0 0.0
  %7635 = vmatprep.subr.mxu0 0.0
  %7636 = vmatpush1.msra.mxu0 0.0
  %7637 = vmatprep.subr.mxu0 0.0
  %7638 = vmatpush1.msra.mxu0 0.0
  %7639 = vmatprep.subr.mxu0 0.0
  %7640 = vmatpush1.msra.mxu0 0.0
  %7641 = vmatprep.subr.mxu0 0.0
  %7642 = vmatpush1.msra.mxu0 0.0
  %7643 = vmatprep.subr.mxu0 0.0
  %7644 = vmatpush1.msra.mxu0 0.0
  %7645 = vmatprep.subr.mxu0 0.0
  %7646 = vmatpush1.msra.mxu0 0.0
  %7647 = vmatprep.subr.mxu0 0.0
  %7648 = vmatpush1.msra.mxu0 %v7623
  %7649 = vmatprep.subr.mxu0 0.0
  %7650 = vmatpush1.msra.mxu0 %v7622
  %7651 = vmatprep.subr.mxu0 0.0
  %7652 = vmatpush1.msra.mxu0 %v7621
  %7653 = vmatprep.subr.mxu0 0.0
  %7654 = vmatpush1.msra.mxu0 %v7620
  %7655 = vmatprep.subr.mxu0 0.0
  %7656 = vmatpush1.msra.mxu0 %v7619
  %7657 = vmatprep.subr.mxu0 0.0
  %7658 = vmatpush1.msra.mxu0 %v7618
  %7659 = vmatprep.subr.mxu0 0.0
  %7660 = vmatpush1.msra.mxu0 %v7617
  %7661 = vmatprep.subr.mxu0 0.0
  %7662 = vmatpush1.msra.mxu0 %v7616
  %7663 = vmatprep.subr.mxu0 0.0
  %7664 = vmatpush2.msra.mxu0 0.0
  %7665 = vmatprep.subr.mxu0 0.0
  %7666 = vmatpush2.msra.mxu0 0.0
  %7667 = vmatprep.subr.mxu0 0.0
  %7668 = vmatpush2.msra.mxu0 0.0
  %7669 = vmatprep.subr.mxu0 0.0
  %7670 = vmatpush2.msra.mxu0 0.0
  %7671 = vmatprep.subr.mxu0 0.0
  %7672 = vmatpush2.msra.mxu0 0.0
  %7673 = vmatprep.subr.mxu0 0.0
  %7674 = vmatpush2.msra.mxu0 0.0
  %7675 = vmatprep.subr.mxu0 0.0
  %7676 = vmatpush2.msra.mxu0 0.0
  %7677 = vmatprep.subr.mxu0 0.0
  %7678 = vmatpush2.msra.mxu0 0.0
  %7679 = vmatprep.subr.mxu0 0.0
  %7680 = vmatpush2.msra.mxu0 0.0
  %7681 = vmatprep.subr.mxu0 0.0
  %7682 = vmatpush2.msra.mxu0 0.0
  %7683 = vmatprep.subr.mxu0 0.0
  %7684 = vmatpush2.msra.mxu0 0.0
  %7685 = vmatprep.subr.mxu0 0.0
  %7686 = vmatpush2.msra.mxu0 0.0
  %7687 = vmatprep.subr.mxu0 0.0
  %7688 = vmatpush2.msra.mxu0 0.0
  %7689 = vmatprep.subr.mxu0 0.0
  %7690 = vmatpush2.msra.mxu0 0.0
  %7691 = vmatprep.subr.mxu0 0.0
  %7692 = vmatpush2.msra.mxu0 0.0
  %7693 = vmatprep.subr.mxu0 0.0
  %7694 = vmatpush2.msra.mxu0 0.0
  %7695 = vmatprep.mubr.f32.mxu0 0.0
  %7696 = vmatmul.mubr.f32.gmra.mxu0 %v5073
  %v7697 = vpop.f32.mrf.mxu0
  %v7698 = vadd.f32 %v7629, %v7697
  %v7699 = vpop.f32.mrf.mxu0
  %7700 = vmatprep.mubr.f32.mxu0 0.0
  %7701 = vmatmul.mubr.f32.gmra.mxu0 %v5076
  %v7702 = vpop.f32.mrf.mxu0
  %v7703 = vadd.f32 %v7629, %v7702
  %v7704 = vpop.f32.mrf.mxu0
  %7705 = vdwg.mxu0
  %v7706 = vmax.f32 %v7698, 0.0
  %v7707 = vmax.f32 %v7703, 0.0
  %7710 = vrot.lane.b32.xlu0 %v7434, 32
  %v7711 = vpop.permute.xlu0 %7710
  %7712 = vrot.lane.b32.xlu0 %v7439, 32
  %v7713 = vpop.permute.xlu0 %7712
  %7718 = vrot.lane.b32.xlu0 %v7614, 32
  %v7719 = vpop.permute.xlu0 %7718
  %7720 = vrot.lane.b32.xlu0 %v7615, 32
  %v7721 = vpop.permute.xlu0 %7720
  %7726 = vrot.lane.b32.xlu0 %v7706, 96
  %v7727 = vpop.permute.xlu0 %7726
  %7728 = vrot.lane.b32.xlu0 %v7707, 96
  %v7729 = vpop.permute.xlu0 %7728
  %v7732 = vsel %vm299, %v7526, %v7711
  %v7733 = vsel %vm299, %v7527, %v7713
  %v7734 = vsel %vm299, %v7711, %v7719
  %v7735 = vsel %vm299, %v7713, %v7721
  %v7736 = vsel %vm2594, %v7734, %v7727
  %v7737 = vsel %vm2594, %v7735, %v7729
  %v7738 = vld [vmem:[%s57] sm:$0xff]
  %v7739 = vld [vmem:[%s57 + $0x8] sm:$0xff]
  %v7740 = vld [vmem:[%s57 + $0x10] sm:$0xff]
  %v7741 = vld [vmem:[%s57 + $0x18] sm:$0xff]
  %v7742 = vld [vmem:[%s57 + $0x20] sm:$0xff]
  %v7743 = vld [vmem:[%s57 + $0x28] sm:$0xff]
  %v7744 = vld [vmem:[%s57 + $0x30] sm:$0xff]
  %v7745 = vld [vmem:[%s57 + $0x38] sm:$0xff]
  %v7746 = vld [vmem:[%s57 + $0x40] sm:$0xff]
  %v7747 = vld [vmem:[%s57 + $0x48] sm:$0xff]
  %v7748 = vld [vmem:[%s57 + $0x50] sm:$0xff]
  %v7749 = vld [vmem:[%s57 + $0x58] sm:$0xff]
  %v7750 = vld [vmem:[%s57 + $0x60] sm:$0xff]
  %v7751 = vld [vmem:[%s57 + $0x68] sm:$0xff]
  %v7752 = vld [vmem:[%s57 + $0x70] sm:$0xff]
  %v7753 = vld [vmem:[%s57 + $0x78] sm:$0xff]
  %v7754 = vld [vmem:[%s57 + $0x80] sm:$0xff]
  %v7755 = vld [vmem:[%s57 + $0x88] sm:$0xff]
  %v7756 = vld [vmem:[%s57 + $0x90] sm:$0xff]
  %v7757 = vld [vmem:[%s57 + $0x98] sm:$0xff]
  %v7758 = vld [vmem:[%s57 + $0xa0] sm:$0xff]
  %v7759 = vld [vmem:[%s57 + $0xa8] sm:$0xff]
  %v7760 = vld [vmem:[%s57 + $0xb0] sm:$0xff]
  %v7761 = vld [vmem:[%s57 + $0xb8] sm:$0xff]
  %v7762 = vld [vmem:[%s57 + $0xc0] sm:$0xff]
  %v7763 = vld [vmem:[%s57 + $0xc8] sm:$0xff]
  %v7764 = vld [vmem:[%s57 + $0xd0] sm:$0xff]
  %v7765 = vld [vmem:[%s57 + $0xd8] sm:$0xff]
  %v7766 = vld [vmem:[%s57 + $0xe0] sm:$0xff]
  %v7767 = vld [vmem:[%s57 + $0xe8] sm:$0xff]
  %v7768 = vld [vmem:[%s57 + $0xf0] sm:$0xff]
  %v7769 = vld [vmem:[%s57 + $0xf8] sm:$0xff]
  %v7770 = vld [vmem:[%s57 + $0x100] sm:$0xff]
  %v7771 = vld [vmem:[%s57 + $0x108] sm:$0xff]
  %v7772 = vld [vmem:[%s57 + $0x110] sm:$0xff]
  %v7773 = vld [vmem:[%s57 + $0x118] sm:$0xff]
  %v7774 = vld [vmem:[%s57 + $0x120] sm:$0xff]
  %v7775 = vld [vmem:[%s57 + $0x128] sm:$0xff]
  %v7776 = vld [vmem:[%s57 + $0x130] sm:$0xff]
  %v7777 = vld [vmem:[%s57 + $0x138] sm:$0xff]
  %v7778 = vld [vmem:[%s57 + $0x140] sm:$0xff]
  %v7779 = vld [vmem:[%s57 + $0x148] sm:$0xff]
  %v7780 = vld [vmem:[%s57 + $0x150] sm:$0xff]
  %v7781 = vld [vmem:[%s57 + $0x158] sm:$0xff]
  %v7782 = vld [vmem:[%s57 + $0x160] sm:$0xff]
  %v7783 = vld [vmem:[%s57 + $0x168] sm:$0xff]
  %v7784 = vld [vmem:[%s57 + $0x170] sm:$0xff]
  %v7785 = vld [vmem:[%s57 + $0x178] sm:$0xff]
  %v7786 = vld [vmem:[%s57 + $0x180] sm:$0xff]
  %v7787 = vld [vmem:[%s57 + $0x188] sm:$0xff]
  %v7788 = vld [vmem:[%s57 + $0x190] sm:$0xff]
  %v7789 = vld [vmem:[%s57 + $0x198] sm:$0xff]
  %v7790 = vld [vmem:[%s57 + $0x1a0] sm:$0xff]
  %v7791 = vld [vmem:[%s57 + $0x1a8] sm:$0xff]
  %v7792 = vld [vmem:[%s57 + $0x1b0] sm:$0xff]
  %v7793 = vld [vmem:[%s57 + $0x1b8] sm:$0xff]
  %v7794 = vld [vmem:[%s57 + $0x1c0] sm:$0xff]
  %v7795 = vld [vmem:[%s57 + $0x1c8] sm:$0xff]
  %v7796 = vld [vmem:[%s57 + $0x1d0] sm:$0xff]
  %v7797 = vld [vmem:[%s57 + $0x1d8] sm:$0xff]
  %v7798 = vld [vmem:[%s57 + $0x1e0] sm:$0xff]
  %v7799 = vld [vmem:[%s57 + $0x1e8] sm:$0xff]
  %v7800 = vld [vmem:[%s57 + $0x1f0] sm:$0xff]
  %v7801 = vld [vmem:[%s57 + $0x1f8] sm:$0xff]
  %v7802 = vld [vmem:[%s57 + $0x200] sm:$0xff]
  %v7803 = vld [vmem:[%s57 + $0x208] sm:$0xff]
  %v7804 = vld [vmem:[%s57 + $0x210] sm:$0xff]
  %v7805 = vld [vmem:[%s57 + $0x218] sm:$0xff]
  %v7806 = vld [vmem:[%s57 + $0x220] sm:$0xff]
  %v7807 = vld [vmem:[%s57 + $0x228] sm:$0xff]
  %v7808 = vld [vmem:[%s57 + $0x230] sm:$0xff]
  %v7809 = vld [vmem:[%s57 + $0x238] sm:$0xff]
  %v7810 = vld [vmem:[%s57 + $0x240] sm:$0xff]
  %v7811 = vld [vmem:[%s57 + $0x248] sm:$0xff]
  %v7812 = vld [vmem:[%s57 + $0x250] sm:$0xff]
  %v7813 = vld [vmem:[%s57 + $0x258] sm:$0xff]
  %v7814 = vld [vmem:[%s57 + $0x260] sm:$0xff]
  %v7815 = vld [vmem:[%s57 + $0x268] sm:$0xff]
  %v7816 = vld [vmem:[%s57 + $0x270] sm:$0xff]
  %v7817 = vld [vmem:[%s57 + $0x278] sm:$0xff]
  %v7818 = vld [vmem:[%s57 + $0x280] sm:$0xff]
  %v7819 = vld [vmem:[%s57 + $0x288] sm:$0xff]
  %v7820 = vld [vmem:[%s57 + $0x290] sm:$0xff]
  %v7821 = vld [vmem:[%s57 + $0x298] sm:$0xff]
  %v7822 = vld [vmem:[%s57 + $0x2a0] sm:$0xff]
  %v7823 = vld [vmem:[%s57 + $0x2a8] sm:$0xff]
  %v7824 = vld [vmem:[%s57 + $0x2b0] sm:$0xff]
  %v7825 = vld [vmem:[%s57 + $0x2b8] sm:$0xff]
  %v7826 = vld [vmem:[%s57 + $0x2c0] sm:$0xff]
  %v7827 = vld [vmem:[%s57 + $0x2c8] sm:$0xff]
  %v7828 = vld [vmem:[%s57 + $0x2d0] sm:$0xff]
  %v7829 = vld [vmem:[%s57 + $0x2d8] sm:$0xff]
  %v7830 = vld [vmem:[%s57 + $0x2e0] sm:$0xff]
  %v7831 = vld [vmem:[%s57 + $0x2e8] sm:$0xff]
  %v7832 = vld [vmem:[%s57 + $0x2f0] sm:$0xff]
  %v7833 = vld [vmem:[%s57 + $0x2f8] sm:$0xff]
  %v7834 = vld [vmem:[%s57 + $0x300] sm:$0xff]
  %v7835 = vld [vmem:[%s57 + $0x308] sm:$0xff]
  %v7836 = vld [vmem:[%s57 + $0x310] sm:$0xff]
  %v7837 = vld [vmem:[%s57 + $0x318] sm:$0xff]
  %v7838 = vld [vmem:[%s57 + $0x320] sm:$0xff]
  %v7839 = vld [vmem:[%s57 + $0x328] sm:$0xff]
  %v7840 = vld [vmem:[%s57 + $0x330] sm:$0xff]
  %v7841 = vld [vmem:[%s57 + $0x338] sm:$0xff]
  %v7842 = vld [vmem:[%s57 + $0x340] sm:$0xff]
  %v7843 = vld [vmem:[%s57 + $0x348] sm:$0xff]
  %v7844 = vld [vmem:[%s57 + $0x350] sm:$0xff]
  %v7845 = vld [vmem:[%s57 + $0x358] sm:$0xff]
  %v7846 = vld [vmem:[%s57 + $0x360] sm:$0xff]
  %v7847 = vld [vmem:[%s57 + $0x368] sm:$0xff]
  %v7848 = vld [vmem:[%s57 + $0x370] sm:$0xff]
  %v7849 = vld [vmem:[%s57 + $0x378] sm:$0xff]
  %v7850 = vld [vmem:[%s57 + $0x380] sm:$0xff]
  %v7851 = vld [vmem:[%s57 + $0x388] sm:$0xff]
  %v7852 = vld [vmem:[%s57 + $0x390] sm:$0xff]
  %v7853 = vld [vmem:[%s57 + $0x398] sm:$0xff]
  %v7854 = vld [vmem:[%s57 + $0x3a0] sm:$0xff]
  %v7855 = vld [vmem:[%s57 + $0x3a8] sm:$0xff]
  %v7856 = vld [vmem:[%s57 + $0x3b0] sm:$0xff]
  %v7857 = vld [vmem:[%s57 + $0x3b8] sm:$0xff]
  %v7858 = vld [vmem:[%s57 + $0x3c0] sm:$0xff]
  %v7859 = vld [vmem:[%s57 + $0x3c8] sm:$0xff]
  %v7860 = vld [vmem:[%s57 + $0x3d0] sm:$0xff]
  %v7861 = vld [vmem:[%s57 + $0x3d8] sm:$0xff]
  %v7862 = vld [vmem:[%s57 + $0x3e0] sm:$0xff]
  %v7863 = vld [vmem:[%s57 + $0x3e8] sm:$0xff]
  %v7864 = vld [vmem:[%s57 + $0x3f0] sm:$0xff]
  %v7865 = vld [vmem:[%s57 + $0x3f8] sm:$0xff]
  %v7866 = vld [vmem:[%s57 + $0x400] sm:$0xff]
  %v7867 = vld [vmem:[%s57 + $0x408] sm:$0xff]
  %v7868 = vld [vmem:[%s57 + $0x410] sm:$0xff]
  %v7869 = vld [vmem:[%s57 + $0x418] sm:$0xff]
  %v7870 = vld [vmem:[%s59] sm:$0x7]
  %v7872 = vlaneseq
  %v7873 = vshrl.u32 %v7872, 7
  %v7874 = vsub.s32 0, %v7873
  %v7875 = vrot.slane %v7870, %v7874
  %v7876 = vlaneseq
  %v7877 = vshrl.u32 %v7876, 7
  %v7878 = vsub.s32 1, %v7877
  %v7879 = vrot.slane %v7870, %v7878
  %v7880 = vlaneseq
  %v7881 = vshrl.u32 %v7880, 7
  %v7882 = vsub.s32 2, %v7881
  %v7883 = vrot.slane %v7870, %v7882
  %v7887 = vsel %vm2594, %v7727, 0
  %v7889 = vsel %vm2594, %v7729, 0
  %7891 = vmatprep.subr.mxu0 %v7784
  %7892 = vmatpush1.msra.mxu0 %v7783
  %7893 = vmatprep.subr.mxu0 %v7781
  %7894 = vmatpush1.msra.mxu0 %v7780
  %7895 = vmatprep.subr.mxu0 %v7778
  %7896 = vmatpush1.msra.mxu0 %v7777
  %7897 = vmatprep.subr.mxu0 %v7775
  %7898 = vmatpush1.msra.mxu0 %v7774
  %7899 = vmatprep.subr.mxu0 %v7772
  %7900 = vmatpush1.msra.mxu0 %v7771
  %7901 = vmatprep.subr.mxu0 %v7769
  %7902 = vmatpush1.msra.mxu0 %v7768
  %7903 = vmatprep.subr.mxu0 %v7766
  %7904 = vmatpush1.msra.mxu0 %v7765
  %7905 = vmatprep.subr.mxu0 %v7763
  %7906 = vmatpush1.msra.mxu0 %v7762
  %7907 = vmatprep.subr.mxu0 %v7760
  %7908 = vmatpush1.msra.mxu0 %v7759
  %7909 = vmatprep.subr.mxu0 %v7757
  %7910 = vmatpush1.msra.mxu0 %v7756
  %7911 = vmatprep.subr.mxu0 %v7754
  %7912 = vmatpush1.msra.mxu0 %v7753
  %7913 = vmatprep.subr.mxu0 %v7751
  %7914 = vmatpush1.msra.mxu0 %v7750
  %7915 = vmatprep.subr.mxu0 %v7748
  %7916 = vmatpush1.msra.mxu0 %v7747
  %7917 = vmatprep.subr.mxu0 %v7745
  %7918 = vmatpush1.msra.mxu0 %v7744
  %7919 = vmatprep.subr.mxu0 %v7742
  %7920 = vmatpush1.msra.mxu0 %v7741
  %7921 = vmatprep.subr.mxu0 %v7739
  %7922 = vmatpush1.msra.mxu0 %v7738
  %7923 = vmatprep.subr.mxu0 %v7832
  %7924 = vmatpush2.msra.mxu0 %v7831
  %7925 = vmatprep.subr.mxu0 %v7829
  %7926 = vmatpush2.msra.mxu0 %v7828
  %7927 = vmatprep.subr.mxu0 %v7826
  %7928 = vmatpush2.msra.mxu0 %v7825
  %7929 = vmatprep.subr.mxu0 %v7823
  %7930 = vmatpush2.msra.mxu0 %v7822
  %7931 = vmatprep.subr.mxu0 %v7820
  %7932 = vmatpush2.msra.mxu0 %v7819
  %7933 = vmatprep.subr.mxu0 %v7817
  %7934 = vmatpush2.msra.mxu0 %v7816
  %7935 = vmatprep.subr.mxu0 %v7814
  %7936 = vmatpush2.msra.mxu0 %v7813
  %7937 = vmatprep.subr.mxu0 %v7811
  %7938 = vmatpush2.msra.mxu0 %v7810
  %7939 = vmatprep.subr.mxu0 %v7808
  %7940 = vmatpush2.msra.mxu0 %v7807
  %7941 = vmatprep.subr.mxu0 %v7805
  %7942 = vmatpush2.msra.mxu0 %v7804
  %7943 = vmatprep.subr.mxu0 %v7802
  %7944 = vmatpush2.msra.mxu0 %v7801
  %7945 = vmatprep.subr.mxu0 %v7799
  %7946 = vmatpush2.msra.mxu0 %v7798
  %7947 = vmatprep.subr.mxu0 %v7796
  %7948 = vmatpush2.msra.mxu0 %v7795
  %7949 = vmatprep.subr.mxu0 %v7793
  %7950 = vmatpush2.msra.mxu0 %v7792
  %7951 = vmatprep.subr.mxu0 %v7790
  %7952 = vmatpush2.msra.mxu0 %v7789
  %7953 = vmatprep.subr.mxu0 %v7787
  %7954 = vmatpush2.msra.mxu0 %v7786
  %7955 = vmatprep.mubr.f32.mxu0 %v7736
  %7956 = vmatmul.mubr.f32.gmra.mxu0 %v7732
  %v7957 = vpop.f32.mrf.mxu0
  %v7958 = vadd.f32 %v7875, %v7957
  %v7959 = vpop.f32.mrf.mxu0
  %v7960 = vadd.f32 %v7879, %v7959
  %7961 = vmatprep.mubr.f32.mxu0 %v7737
  %7962 = vmatmul.mubr.f32.gmra.mxu0 %v7733
  %v7963 = vpop.f32.mrf.mxu0
  %v7964 = vadd.f32 %v7875, %v7963
  %v7965 = vpop.f32.mrf.mxu0
  %v7966 = vadd.f32 %v7879, %v7965
  %7967 = vdwg.mxu0
  %7968 = vmatprep.subr.mxu0 0.0
  %7969 = vmatpush1.msra.mxu0 0.0
  %7970 = vmatprep.subr.mxu0 0.0
  %7971 = vmatpush1.msra.mxu0 0.0
  %7972 = vmatprep.subr.mxu0 0.0
  %7973 = vmatpush1.msra.mxu0 0.0
  %7974 = vmatprep.subr.mxu0 0.0
  %7975 = vmatpush1.msra.mxu0 0.0
  %7976 = vmatprep.subr.mxu0 %v7868
  %7977 = vmatpush1.msra.mxu0 %v7867
  %7978 = vmatprep.subr.mxu0 %v7865
  %7979 = vmatpush1.msra.mxu0 %v7864
  %7980 = vmatprep.subr.mxu0 %v7862
  %7981 = vmatpush1.msra.mxu0 %v7861
  %7982 = vmatprep.subr.mxu0 %v7859
  %7983 = vmatpush1.msra.mxu0 %v7858
  %7984 = vmatprep.subr.mxu0 %v7856
  %7985 = vmatpush1.msra.mxu0 %v7855
  %7986 = vmatprep.subr.mxu0 %v7853
  %7987 = vmatpush1.msra.mxu0 %v7852
  %7988 = vmatprep.subr.mxu0 %v7850
  %7989 = vmatpush1.msra.mxu0 %v7849
  %7990 = vmatprep.subr.mxu0 %v7847
  %7991 = vmatpush1.msra.mxu0 %v7846
  %7992 = vmatprep.subr.mxu0 %v7844
  %7993 = vmatpush1.msra.mxu0 %v7843
  %7994 = vmatprep.subr.mxu0 %v7841
  %7995 = vmatpush1.msra.mxu0 %v7840
  %7996 = vmatprep.subr.mxu0 %v7838
  %7997 = vmatpush1.msra.mxu0 %v7837
  %7998 = vmatprep.subr.mxu0 %v7835
  %7999 = vmatpush1.msra.mxu0 %v7834
  %8000 = vmatprep.subr.mxu0 0.0
  %8001 = vmatpush2.msra.mxu0 0.0
  %8002 = vmatprep.subr.mxu0 0.0
  %8003 = vmatpush2.msra.mxu0 0.0
  %8004 = vmatprep.subr.mxu0 0.0
  %8005 = vmatpush2.msra.mxu0 0.0
  %8006 = vmatprep.subr.mxu0 0.0
  %8007 = vmatpush2.msra.mxu0 0.0
  %8008 = vmatprep.subr.mxu0 0.0
  %8009 = vmatpush2.msra.mxu0 0.0
  %8010 = vmatprep.subr.mxu0 0.0
  %8011 = vmatpush2.msra.mxu0 0.0
  %8012 = vmatprep.subr.mxu0 0.0
  %8013 = vmatpush2.msra.mxu0 0.0
  %8014 = vmatprep.subr.mxu0 0.0
  %8015 = vmatpush2.msra.mxu0 0.0
  %8016 = vmatprep.subr.mxu0 0.0
  %8017 = vmatpush2.msra.mxu0 0.0
  %8018 = vmatprep.subr.mxu0 0.0
  %8019 = vmatpush2.msra.mxu0 0.0
  %8020 = vmatprep.subr.mxu0 0.0
  %8021 = vmatpush2.msra.mxu0 0.0
  %8022 = vmatprep.subr.mxu0 0.0
  %8023 = vmatpush2.msra.mxu0 0.0
  %8024 = vmatprep.subr.mxu0 0.0
  %8025 = vmatpush2.msra.mxu0 0.0
  %8026 = vmatprep.subr.mxu0 0.0
  %8027 = vmatpush2.msra.mxu0 0.0
  %8028 = vmatprep.subr.mxu0 0.0
  %8029 = vmatpush2.msra.mxu0 0.0
  %8030 = vmatprep.subr.mxu0 0.0
  %8031 = vmatpush2.msra.mxu0 0.0
  %8032 = vmatprep.mubr.f32.mxu0 0.0
  %8033 = vmatmul.mubr.f32.gmra.mxu0 %v7887
  %v8034 = vpop.f32.mrf.mxu0
  %v8035 = vadd.f32 %v7958, %v8034
  %v8036 = vpop.f32.mrf.mxu0
  %v8037 = vadd.f32 %v7960, %v8036
  %8038 = vmatprep.mubr.f32.mxu0 0.0
  %8039 = vmatmul.mubr.f32.gmra.mxu0 %v7889
  %v8040 = vpop.f32.mrf.mxu0
  %v8041 = vadd.f32 %v7964, %v8040
  %v8042 = vpop.f32.mrf.mxu0
  %v8043 = vadd.f32 %v7966, %v8042
  %8044 = vdwg.mxu0
  %8045 = vmatprep.subr.mxu0 0.0
  %8046 = vmatpush1.msra.mxu0 %v7785
  %8047 = vmatprep.subr.mxu0 0.0
  %8048 = vmatpush1.msra.mxu0 %v7782
  %8049 = vmatprep.subr.mxu0 0.0
  %8050 = vmatpush1.msra.mxu0 %v7779
  %8051 = vmatprep.subr.mxu0 0.0
  %8052 = vmatpush1.msra.mxu0 %v7776
  %8053 = vmatprep.subr.mxu0 0.0
  %8054 = vmatpush1.msra.mxu0 %v7773
  %8055 = vmatprep.subr.mxu0 0.0
  %8056 = vmatpush1.msra.mxu0 %v7770
  %8057 = vmatprep.subr.mxu0 0.0
  %8058 = vmatpush1.msra.mxu0 %v7767
  %8059 = vmatprep.subr.mxu0 0.0
  %8060 = vmatpush1.msra.mxu0 %v7764
  %8061 = vmatprep.subr.mxu0 0.0
  %8062 = vmatpush1.msra.mxu0 %v7761
  %8063 = vmatprep.subr.mxu0 0.0
  %8064 = vmatpush1.msra.mxu0 %v7758
  %8065 = vmatprep.subr.mxu0 0.0
  %8066 = vmatpush1.msra.mxu0 %v7755
  %8067 = vmatprep.subr.mxu0 0.0
  %8068 = vmatpush1.msra.mxu0 %v7752
  %8069 = vmatprep.subr.mxu0 0.0
  %8070 = vmatpush1.msra.mxu0 %v7749
  %8071 = vmatprep.subr.mxu0 0.0
  %8072 = vmatpush1.msra.mxu0 %v7746
  %8073 = vmatprep.subr.mxu0 0.0
  %8074 = vmatpush1.msra.mxu0 %v7743
  %8075 = vmatprep.subr.mxu0 0.0
  %8076 = vmatpush1.msra.mxu0 %v7740
  %8077 = vmatprep.subr.mxu0 0.0
  %8078 = vmatpush2.msra.mxu0 %v7833
  %8079 = vmatprep.subr.mxu0 0.0
  %8080 = vmatpush2.msra.mxu0 %v7830
  %8081 = vmatprep.subr.mxu0 0.0
  %8082 = vmatpush2.msra.mxu0 %v7827
  %8083 = vmatprep.subr.mxu0 0.0
  %8084 = vmatpush2.msra.mxu0 %v7824
  %8085 = vmatprep.subr.mxu0 0.0
  %8086 = vmatpush2.msra.mxu0 %v7821
  %8087 = vmatprep.subr.mxu0 0.0
  %8088 = vmatpush2.msra.mxu0 %v7818
  %8089 = vmatprep.subr.mxu0 0.0
  %8090 = vmatpush2.msra.mxu0 %v7815
  %8091 = vmatprep.subr.mxu0 0.0
  %8092 = vmatpush2.msra.mxu0 %v7812
  %8093 = vmatprep.subr.mxu0 0.0
  %8094 = vmatpush2.msra.mxu0 %v7809
  %8095 = vmatprep.subr.mxu0 0.0
  %8096 = vmatpush2.msra.mxu0 %v7806
  %8097 = vmatprep.subr.mxu0 0.0
  %8098 = vmatpush2.msra.mxu0 %v7803
  %8099 = vmatprep.subr.mxu0 0.0
  %8100 = vmatpush2.msra.mxu0 %v7800
  %8101 = vmatprep.subr.mxu0 0.0
  %8102 = vmatpush2.msra.mxu0 %v7797
  %8103 = vmatprep.subr.mxu0 0.0
  %8104 = vmatpush2.msra.mxu0 %v7794
  %8105 = vmatprep.subr.mxu0 0.0
  %8106 = vmatpush2.msra.mxu0 %v7791
  %8107 = vmatprep.subr.mxu0 0.0
  %8108 = vmatpush2.msra.mxu0 %v7788
  %8109 = vmatprep.mubr.f32.mxu0 %v7736
  %8110 = vmatmul.mubr.f32.gmra.mxu0 %v7732
  %v8111 = vpop.f32.mrf.mxu0
  %v8112 = vadd.f32 %v7883, %v8111
  %v8113 = vpop.f32.mrf.mxu0
  %8114 = vmatprep.mubr.f32.mxu0 %v7737
  %8115 = vmatmul.mubr.f32.gmra.mxu0 %v7733
  %v8116 = vpop.f32.mrf.mxu0
  %v8117 = vadd.f32 %v7883, %v8116
  %v8118 = vpop.f32.mrf.mxu0
  %8119 = vdwg.mxu0
  %8120 = vmatprep.subr.mxu0 0.0
  %8121 = vmatpush1.msra.mxu0 0.0
  %8122 = vmatprep.subr.mxu0 0.0
  %8123 = vmatpush1.msra.mxu0 0.0
  %8124 = vmatprep.subr.mxu0 0.0
  %8125 = vmatpush1.msra.mxu0 0.0
  %8126 = vmatprep.subr.mxu0 0.0
  %8127 = vmatpush1.msra.mxu0 0.0
  %8128 = vmatprep.subr.mxu0 0.0
  %8129 = vmatpush1.msra.mxu0 %v7869
  %8130 = vmatprep.subr.mxu0 0.0
  %8131 = vmatpush1.msra.mxu0 %v7866
  %8132 = vmatprep.subr.mxu0 0.0
  %8133 = vmatpush1.msra.mxu0 %v7863
  %8134 = vmatprep.subr.mxu0 0.0
  %8135 = vmatpush1.msra.mxu0 %v7860
  %8136 = vmatprep.subr.mxu0 0.0
  %8137 = vmatpush1.msra.mxu0 %v7857
  %8138 = vmatprep.subr.mxu0 0.0
  %8139 = vmatpush1.msra.mxu0 %v7854
  %8140 = vmatprep.subr.mxu0 0.0
  %8141 = vmatpush1.msra.mxu0 %v7851
  %8142 = vmatprep.subr.mxu0 0.0
  %8143 = vmatpush1.msra.mxu0 %v7848
  %8144 = vmatprep.subr.mxu0 0.0
  %8145 = vmatpush1.msra.mxu0 %v7845
  %8146 = vmatprep.subr.mxu0 0.0
  %8147 = vmatpush1.msra.mxu0 %v7842
  %8148 = vmatprep.subr.mxu0 0.0
  %8149 = vmatpush1.msra.mxu0 %v7839
  %8150 = vmatprep.subr.mxu0 0.0
  %8151 = vmatpush1.msra.mxu0 %v7836
  %8152 = vmatprep.subr.mxu0 0.0
  %8153 = vmatpush2.msra.mxu0 0.0
  %8154 = vmatprep.subr.mxu0 0.0
  %8155 = vmatpush2.msra.mxu0 0.0
  %8156 = vmatprep.subr.mxu0 0.0
  %8157 = vmatpush2.msra.mxu0 0.0
  %8158 = vmatprep.subr.mxu0 0.0
  %8159 = vmatpush2.msra.mxu0 0.0
  %8160 = vmatprep.subr.mxu0 0.0
  %8161 = vmatpush2.msra.mxu0 0.0
  %8162 = vmatprep.subr.mxu0 0.0
  %8163 = vmatpush2.msra.mxu0 0.0
  %8164 = vmatprep.subr.mxu0 0.0
  %8165 = vmatpush2.msra.mxu0 0.0
  %8166 = vmatprep.subr.mxu0 0.0
  %8167 = vmatpush2.msra.mxu0 0.0
  %8168 = vmatprep.subr.mxu0 0.0
  %8169 = vmatpush2.msra.mxu0 0.0
  %8170 = vmatprep.subr.mxu0 0.0
  %8171 = vmatpush2.msra.mxu0 0.0
  %8172 = vmatprep.subr.mxu0 0.0
  %8173 = vmatpush2.msra.mxu0 0.0
  %8174 = vmatprep.subr.mxu0 0.0
  %8175 = vmatpush2.msra.mxu0 0.0
  %8176 = vmatprep.subr.mxu0 0.0
  %8177 = vmatpush2.msra.mxu0 0.0
  %8178 = vmatprep.subr.mxu0 0.0
  %8179 = vmatpush2.msra.mxu0 0.0
  %8180 = vmatprep.subr.mxu0 0.0
  %8181 = vmatpush2.msra.mxu0 0.0
  %8182 = vmatprep.subr.mxu0 0.0
  %8183 = vmatpush2.msra.mxu0 0.0
  %8184 = vmatprep.mubr.f32.mxu0 0.0
  %8185 = vmatmul.mubr.f32.gmra.mxu0 %v7887
  %v8186 = vpop.f32.mrf.mxu0
  %v8187 = vadd.f32 %v8112, %v8186
  %v8188 = vpop.f32.mrf.mxu0
  %8189 = vmatprep.mubr.f32.mxu0 0.0
  %8190 = vmatmul.mubr.f32.gmra.mxu0 %v7889
  %v8191 = vpop.f32.mrf.mxu0
  %v8192 = vadd.f32 %v8117, %v8191
  %v8193 = vpop.f32.mrf.mxu0
  %8194 = vdwg.mxu0
  %v8195 = vmax.f32 %v8035, 0.0
  %v8196 = vmax.f32 %v8037, 0.0
  %v8197 = vmax.f32 %v8187, 0.0
  %v8198 = vmax.f32 %v8041, 0.0
  %v8199 = vmax.f32 %v8043, 0.0
  %v8200 = vmax.f32 %v8192, 0.0
  %v8201 = vld [vmem:[%s61] sm:$0xff]
  %v8202 = vld [vmem:[%s61 + $0x8] sm:$0xff]
  %v8203 = vld [vmem:[%s61 + $0x10] sm:$0xff]
  %v8204 = vld [vmem:[%s61 + $0x18] sm:$0xff]
  %v8205 = vld [vmem:[%s61 + $0x20] sm:$0xff]
  %v8206 = vld [vmem:[%s61 + $0x28] sm:$0xff]
  %v8207 = vld [vmem:[%s61 + $0x30] sm:$0xff]
  %v8208 = vld [vmem:[%s61 + $0x38] sm:$0xff]
  %v8209 = vld [vmem:[%s61 + $0x40] sm:$0xff]
  %v8210 = vld [vmem:[%s61 + $0x48] sm:$0xff]
  %v8211 = vld [vmem:[%s61 + $0x50] sm:$0xff]
  %v8212 = vld [vmem:[%s61 + $0x58] sm:$0xff]
  %v8213 = vld [vmem:[%s61 + $0x60] sm:$0xff]
  %v8214 = vld [vmem:[%s61 + $0x68] sm:$0xff]
  %v8215 = vld [vmem:[%s61 + $0x70] sm:$0xff]
  %v8216 = vld [vmem:[%s61 + $0x78] sm:$0xff]
  %v8217 = vld [vmem:[%s61 + $0x80] sm:$0xff]
  %v8218 = vld [vmem:[%s61 + $0x88] sm:$0xff]
  %v8219 = vld [vmem:[%s61 + $0x90] sm:$0xff]
  %v8220 = vld [vmem:[%s61 + $0x98] sm:$0xff]
  %v8221 = vld [vmem:[%s61 + $0xa0] sm:$0xff]
  %v8222 = vld [vmem:[%s61 + $0xa8] sm:$0xff]
  %v8223 = vld [vmem:[%s61 + $0xb0] sm:$0xff]
  %v8224 = vld [vmem:[%s61 + $0xb8] sm:$0xff]
  %v8225 = vld [vmem:[%s61 + $0xc0] sm:$0xff]
  %v8226 = vld [vmem:[%s61 + $0xc8] sm:$0xff]
  %v8227 = vld [vmem:[%s61 + $0xd0] sm:$0xff]
  %v8228 = vld [vmem:[%s61 + $0xd8] sm:$0xff]
  %v8229 = vld [vmem:[%s61 + $0xe0] sm:$0xff]
  %v8230 = vld [vmem:[%s61 + $0xe8] sm:$0xff]
  %v8231 = vld [vmem:[%s61 + $0xf0] sm:$0xff]
  %v8232 = vld [vmem:[%s61 + $0xf8] sm:$0xff]
  %v8233 = vld [vmem:[%s61 + $0x100] sm:$0xff]
  %v8234 = vld [vmem:[%s61 + $0x108] sm:$0xff]
  %v8235 = vld [vmem:[%s61 + $0x110] sm:$0xff]
  %v8236 = vld [vmem:[%s61 + $0x118] sm:$0xff]
  %v8237 = vld [vmem:[%s61 + $0x120] sm:$0xff]
  %v8238 = vld [vmem:[%s61 + $0x128] sm:$0xf]
  %v8239 = vld [vmem:[%s63] sm:$0x1]
  %v8241 = vlaneseq
  %v8242 = vshrl.u32 %v8241, 7
  %v8243 = vsub.s32 0, %v8242
  %v8244 = vrot.slane %v8239, %v8243
  %vm8246 = vcmask 359424
  %v8248 = vsel %vm8246, %v8197, 0
  %v8251 = vsel %vm8246, %v8200, 0
  %vm8253 = vcmask 1043456
  %v8255 = vsel %vm8253, %v8238, 0
  %8257 = vmatprep.subr.mxu0 0.0
  %8258 = vmatpush1.msra.mxu0 %v8216
  %8259 = vmatprep.subr.mxu0 0.0
  %8260 = vmatpush1.msra.mxu0 %v8215
  %8261 = vmatprep.subr.mxu0 0.0
  %8262 = vmatpush1.msra.mxu0 %v8214
  %8263 = vmatprep.subr.mxu0 0.0
  %8264 = vmatpush1.msra.mxu0 %v8213
  %8265 = vmatprep.subr.mxu0 0.0
  %8266 = vmatpush1.msra.mxu0 %v8212
  %8267 = vmatprep.subr.mxu0 0.0
  %8268 = vmatpush1.msra.mxu0 %v8211
  %8269 = vmatprep.subr.mxu0 0.0
  %8270 = vmatpush1.msra.mxu0 %v8210
  %8271 = vmatprep.subr.mxu0 0.0
  %8272 = vmatpush1.msra.mxu0 %v8209
  %8273 = vmatprep.subr.mxu0 0.0
  %8274 = vmatpush1.msra.mxu0 %v8208
  %8275 = vmatprep.subr.mxu0 0.0
  %8276 = vmatpush1.msra.mxu0 %v8207
  %8277 = vmatprep.subr.mxu0 0.0
  %8278 = vmatpush1.msra.mxu0 %v8206
  %8279 = vmatprep.subr.mxu0 0.0
  %8280 = vmatpush1.msra.mxu0 %v8205
  %8281 = vmatprep.subr.mxu0 0.0
  %8282 = vmatpush1.msra.mxu0 %v8204
  %8283 = vmatprep.subr.mxu0 0.0
  %8284 = vmatpush1.msra.mxu0 %v8203
  %8285 = vmatprep.subr.mxu0 0.0
  %8286 = vmatpush1.msra.mxu0 %v8202
  %8287 = vmatprep.subr.mxu0 0.0
  %8288 = vmatpush1.msra.mxu0 %v8201
  %8289 = vmatprep.subr.mxu0 0.0
  %8290 = vmatpush2.msra.mxu0 %v8232
  %8291 = vmatprep.subr.mxu0 0.0
  %8292 = vmatpush2.msra.mxu0 %v8231
  %8293 = vmatprep.subr.mxu0 0.0
  %8294 = vmatpush2.msra.mxu0 %v8230
  %8295 = vmatprep.subr.mxu0 0.0
  %8296 = vmatpush2.msra.mxu0 %v8229
  %8297 = vmatprep.subr.mxu0 0.0
  %8298 = vmatpush2.msra.mxu0 %v8228
  %8299 = vmatprep.subr.mxu0 0.0
  %8300 = vmatpush2.msra.mxu0 %v8227
  %8301 = vmatprep.subr.mxu0 0.0
  %8302 = vmatpush2.msra.mxu0 %v8226
  %8303 = vmatprep.subr.mxu0 0.0
  %8304 = vmatpush2.msra.mxu0 %v8225
  %8305 = vmatprep.subr.mxu0 0.0
  %8306 = vmatpush2.msra.mxu0 %v8224
  %8307 = vmatprep.subr.mxu0 0.0
  %8308 = vmatpush2.msra.mxu0 %v8223
  %8309 = vmatprep.subr.mxu0 0.0
  %8310 = vmatpush2.msra.mxu0 %v8222
  %8311 = vmatprep.subr.mxu0 0.0
  %8312 = vmatpush2.msra.mxu0 %v8221
  %8313 = vmatprep.subr.mxu0 0.0
  %8314 = vmatpush2.msra.mxu0 %v8220
  %8315 = vmatprep.subr.mxu0 0.0
  %8316 = vmatpush2.msra.mxu0 %v8219
  %8317 = vmatprep.subr.mxu0 0.0
  %8318 = vmatpush2.msra.mxu0 %v8218
  %8319 = vmatprep.subr.mxu0 0.0
  %8320 = vmatpush2.msra.mxu0 %v8217
  %8321 = vmatprep.mubr.f32.mxu0 %v8196
  %8322 = vmatmul.mubr.f32.gmra.mxu0 %v8195
  %v8323 = vpop.f32.mrf.mxu0
  %v8324 = vadd.f32 %v8244, %v8323
  %v8325 = vpop.f32.mrf.mxu0
  %8326 = vmatprep.mubr.f32.mxu0 %v8199
  %8327 = vmatmul.mubr.f32.gmra.mxu0 %v8198
  %v8328 = vpop.f32.mrf.mxu0
  %v8329 = vadd.f32 %v8244, %v8328
  %v8330 = vpop.f32.mrf.mxu0
  %8331 = vdwg.mxu0
  %8332 = vmatprep.subr.mxu0 0.0
  %8333 = vmatpush1.msra.mxu0 0.0
  %8334 = vmatprep.subr.mxu0 0.0
  %8335 = vmatpush1.msra.mxu0 0.0
  %8336 = vmatprep.subr.mxu0 0.0
  %8337 = vmatpush1.msra.mxu0 0.0
  %8338 = vmatprep.subr.mxu0 0.0
  %8339 = vmatpush1.msra.mxu0 0.0
  %8340 = vmatprep.subr.mxu0 0.0
  %8341 = vmatpush1.msra.mxu0 0.0
  %8342 = vmatprep.subr.mxu0 0.0
  %8343 = vmatpush1.msra.mxu0 0.0
  %8344 = vmatprep.subr.mxu0 0.0
  %8345 = vmatpush1.msra.mxu0 0.0
  %8346 = vmatprep.subr.mxu0 0.0
  %8347 = vmatpush1.msra.mxu0 0.0
  %8348 = vmatprep.subr.mxu0 0.0
  %8349 = vmatpush1.msra.mxu0 0.0
  %8350 = vmatprep.subr.mxu0 0.0
  %8351 = vmatpush1.msra.mxu0 0.0
  %8352 = vmatprep.subr.mxu0 0.0
  %8353 = vmatpush1.msra.mxu0 %v8255
  %8354 = vmatprep.subr.mxu0 0.0
  %8355 = vmatpush1.msra.mxu0 %v8237
  %8356 = vmatprep.subr.mxu0 0.0
  %8357 = vmatpush1.msra.mxu0 %v8236
  %8358 = vmatprep.subr.mxu0 0.0
  %8359 = vmatpush1.msra.mxu0 %v8235
  %8360 = vmatprep.subr.mxu0 0.0
  %8361 = vmatpush1.msra.mxu0 %v8234
  %8362 = vmatprep.subr.mxu0 0.0
  %8363 = vmatpush1.msra.mxu0 %v8233
  %8364 = vmatprep.subr.mxu0 0.0
  %8365 = vmatpush2.msra.mxu0 0.0
  %8366 = vmatprep.subr.mxu0 0.0
  %8367 = vmatpush2.msra.mxu0 0.0
  %8368 = vmatprep.subr.mxu0 0.0
  %8369 = vmatpush2.msra.mxu0 0.0
  %8370 = vmatprep.subr.mxu0 0.0
  %8371 = vmatpush2.msra.mxu0 0.0
  %8372 = vmatprep.subr.mxu0 0.0
  %8373 = vmatpush2.msra.mxu0 0.0
  %8374 = vmatprep.subr.mxu0 0.0
  %8375 = vmatpush2.msra.mxu0 0.0
  %8376 = vmatprep.subr.mxu0 0.0
  %8377 = vmatpush2.msra.mxu0 0.0
  %8378 = vmatprep.subr.mxu0 0.0
  %8379 = vmatpush2.msra.mxu0 0.0
  %8380 = vmatprep.subr.mxu0 0.0
  %8381 = vmatpush2.msra.mxu0 0.0
  %8382 = vmatprep.subr.mxu0 0.0
  %8383 = vmatpush2.msra.mxu0 0.0
  %8384 = vmatprep.subr.mxu0 0.0
  %8385 = vmatpush2.msra.mxu0 0.0
  %8386 = vmatprep.subr.mxu0 0.0
  %8387 = vmatpush2.msra.mxu0 0.0
  %8388 = vmatprep.subr.mxu0 0.0
  %8389 = vmatpush2.msra.mxu0 0.0
  %8390 = vmatprep.subr.mxu0 0.0
  %8391 = vmatpush2.msra.mxu0 0.0
  %8392 = vmatprep.subr.mxu0 0.0
  %8393 = vmatpush2.msra.mxu0 0.0
  %8394 = vmatprep.subr.mxu0 0.0
  %8395 = vmatpush2.msra.mxu0 0.0
  %8396 = vmatprep.mubr.f32.mxu0 0.0
  %8397 = vmatmul.mubr.f32.gmra.mxu0 %v8248
  %v8398 = vpop.f32.mrf.mxu0
  %v8399 = vadd.f32 %v8324, %v8398
  %v8400 = vpop.f32.mrf.mxu0
  %8401 = vmatprep.mubr.f32.mxu0 0.0
  %8402 = vmatmul.mubr.f32.gmra.mxu0 %v8251
  %v8403 = vpop.f32.mrf.mxu0
  %v8404 = vadd.f32 %v8329, %v8403
  %v8405 = vpop.f32.mrf.mxu0
  %8406 = vdwg.mxu0
  %v8407 = vmax.f32 %v8399, 0.0
  %v8408 = vmax.f32 %v8404, 0.0
  %v8409 = vld [vmem:[%s65] sm:$0xff]
  %v8410 = vld [vmem:[%s65 + $0x8] sm:$0xff]
  %v8411 = vld [vmem:[%s65 + $0x10] sm:$0xff]
  %v8412 = vld [vmem:[%s65 + $0x18] sm:$0xff]
  %v8413 = vld [vmem:[%s65 + $0x20] sm:$0xff]
  %v8414 = vld [vmem:[%s65 + $0x28] sm:$0xff]
  %v8415 = vld [vmem:[%s65 + $0x30] sm:$0xff]
  %v8416 = vld [vmem:[%s65 + $0x38] sm:$0xff]
  %v8417 = vld [vmem:[%s65 + $0x40] sm:$0xff]
  %v8418 = vld [vmem:[%s65 + $0x48] sm:$0xff]
  %v8419 = vld [vmem:[%s65 + $0x50] sm:$0xff]
  %v8420 = vld [vmem:[%s65 + $0x58] sm:$0xff]
  %v8421 = vld [vmem:[%s65 + $0x60] sm:$0xff]
  %v8422 = vld [vmem:[%s65 + $0x68] sm:$0xff]
  %v8423 = vld [vmem:[%s65 + $0x70] sm:$0xff]
  %v8424 = vld [vmem:[%s65 + $0x78] sm:$0xf]
  %v8425 = vld [vmem:[#allocation2] sm:$0x1]
  %v8427 = vlaneseq
  %v8428 = vshrl.u32 %v8427, 7
  %v8429 = vsub.s32 0, %v8428
  %v8430 = vrot.slane %v8425, %v8429
  %vm8432 = vcmask 1014784
  %v8434 = vsel %vm8432, %v8407, 0
  %v8437 = vsel %vm8432, %v8408, 0
  %v8440 = vsel %vm8253, %v8424, 0
  %8442 = vmatprep.subr.mxu0 0.0
  %8443 = vmatpush1.msra.mxu0 %v8440
  %8444 = vmatprep.subr.mxu0 0.0
  %8445 = vmatpush1.msra.mxu0 %v8423
  %8446 = vmatprep.subr.mxu0 0.0
  %8447 = vmatpush1.msra.mxu0 %v8422
  %8448 = vmatprep.subr.mxu0 0.0
  %8449 = vmatpush1.msra.mxu0 %v8421
  %8450 = vmatprep.subr.mxu0 0.0
  %8451 = vmatpush1.msra.mxu0 %v8420
  %8452 = vmatprep.subr.mxu0 0.0
  %8453 = vmatpush1.msra.mxu0 %v8419
  %8454 = vmatprep.subr.mxu0 0.0
  %8455 = vmatpush1.msra.mxu0 %v8418
  %8456 = vmatprep.subr.mxu0 0.0
  %8457 = vmatpush1.msra.mxu0 %v8417
  %8458 = vmatprep.subr.mxu0 0.0
  %8459 = vmatpush1.msra.mxu0 %v8416
  %8460 = vmatprep.subr.mxu0 0.0
  %8461 = vmatpush1.msra.mxu0 %v8415
  %8462 = vmatprep.subr.mxu0 0.0
  %8463 = vmatpush1.msra.mxu0 %v8414
  %8464 = vmatprep.subr.mxu0 0.0
  %8465 = vmatpush1.msra.mxu0 %v8413
  %8466 = vmatprep.subr.mxu0 0.0
  %8467 = vmatpush1.msra.mxu0 %v8412
  %8468 = vmatprep.subr.mxu0 0.0
  %8469 = vmatpush1.msra.mxu0 %v8411
  %8470 = vmatprep.subr.mxu0 0.0
  %8471 = vmatpush1.msra.mxu0 %v8410
  %8472 = vmatprep.subr.mxu0 0.0
  %8473 = vmatpush1.msra.mxu0 %v8409
  %8474 = vmatprep.subr.mxu0 0.0
  %8475 = vmatpush2.msra.mxu0 0.0
  %8476 = vmatprep.subr.mxu0 0.0
  %8477 = vmatpush2.msra.mxu0 0.0
  %8478 = vmatprep.subr.mxu0 0.0
  %8479 = vmatpush2.msra.mxu0 0.0
  %8480 = vmatprep.subr.mxu0 0.0
  %8481 = vmatpush2.msra.mxu0 0.0
  %8482 = vmatprep.subr.mxu0 0.0
  %8483 = vmatpush2.msra.mxu0 0.0
  %8484 = vmatprep.subr.mxu0 0.0
  %8485 = vmatpush2.msra.mxu0 0.0
  %8486 = vmatprep.subr.mxu0 0.0
  %8487 = vmatpush2.msra.mxu0 0.0
  %8488 = vmatprep.subr.mxu0 0.0
  %8489 = vmatpush2.msra.mxu0 0.0
  %8490 = vmatprep.subr.mxu0 0.0
  %8491 = vmatpush2.msra.mxu0 0.0
  %8492 = vmatprep.subr.mxu0 0.0
  %8493 = vmatpush2.msra.mxu0 0.0
  %8494 = vmatprep.subr.mxu0 0.0
  %8495 = vmatpush2.msra.mxu0 0.0
  %8496 = vmatprep.subr.mxu0 0.0
  %8497 = vmatpush2.msra.mxu0 0.0
  %8498 = vmatprep.subr.mxu0 0.0
  %8499 = vmatpush2.msra.mxu0 0.0
  %8500 = vmatprep.subr.mxu0 0.0
  %8501 = vmatpush2.msra.mxu0 0.0
  %8502 = vmatprep.subr.mxu0 0.0
  %8503 = vmatpush2.msra.mxu0 0.0
  %8504 = vmatprep.subr.mxu0 0.0
  %8505 = vmatpush2.msra.mxu0 0.0
  %8506 = vmatprep.mubr.f32.mxu0 0.0
  %8507 = vmatmul.mubr.f32.gmra.mxu0 %v8434
  %v8508 = vpop.f32.mrf.mxu0
  %v8509 = vadd.f32 %v8430, %v8508
  %v8510 = vpop.f32.mrf.mxu0
  %8511 = vmatprep.mubr.f32.mxu0 0.0
  %8512 = vmatmul.mubr.f32.gmra.mxu0 %v8437
  %v8513 = vpop.f32.mrf.mxu0
  %v8514 = vadd.f32 %v8430, %v8513
  %v8515 = vpop.f32.mrf.mxu0
  %8516 = vdwg.mxu0
  %v8517 = vsub.f32 0.0, %v8509
  %v8518 = vsub.f32 0.0, %v8514
  %v8519 = vmul.f32 %v8517, 1.442695
  %v8520 = vpow.pop %v8519
  %v8521 = vmul.f32 %v8518, 1.442695
  %v8522 = vpow.pop %v8521
  %v8523 = vadd.f32 %v8520, 1.0
  %v8524 = vadd.f32 %v8522, 1.0
  %v8525 = vrcp.pop %v8523
  %v8526 = vmul.f32 1.0, %v8525
  %v8527 = vrcp.pop %v8524
  %v8528 = vmul.f32 1.0, %v8527
  %vm8529 = vcmask 7168
  %8530 = vst.msk [vmem:[%s69] sm:$0xff] %vm8529, %v8526
  %8531 = vst.msk [vmem:[%s69 + $0x8] sm:$0xff] %vm8529, %v8528
  // Predicated region
  $region138: #{model_forward.1} parent=0 // pred_check
    _
  $region139: #{model_forward.1} parent=0 // pred_check_branch
    %8533 = sbr.rel (0) target = $region141
  $region140: #{model_forward.1} parent=0 // pred_region
    _
  $region141: #{model_forward.1} parent=0 // pred_fallthru
    _
  // Predicated region
  $region142: #{model_forward.1} parent=0 // pred_check
    _
  $region143: #{model_forward.1} parent=0 // pred_check_branch
    %8535 = sbr.rel (0) target = $region145
  $region144: #{model_forward.1} parent=0 // pred_region
    _
  $region145: #{model_forward.1} parent=0 // pred_fallthru
    _

</llo_original>
